<compile_context>
chip_gen: v5e
topology: v5e:2x2
jax: 0.10.0
libtpu: 0.0.40
codegen_flags: <defaults>
</compile_context>

<pallas_src>
import functools
import math

import jax
import jax.numpy as jnp
from jax.experimental import pallas as pl
from jax.experimental.pallas import tpu as pltpu

# ----------------------------- model config (module defaults) ----------------
DATA_DIM = 4          # data_dim
X_LATENT = 128        # x_latent_dim
T_EMBED = 128         # time_embed_dim
STEP_SCALE = 1000.0   # step_scale
HALF = T_EMBED // 2
MAX_PERIOD = 10000.0

SELU_ALPHA = 1.6732632423543772
SELU_SCALE = 1.0507009873554805


def _selu(x):
    # exp of the discarded positive branch overflows to +inf, never NaN; jnp.where
    # (a select) drops it safely, so no clamping guard is needed.
    return SELU_SCALE * jnp.where(x > 0, x, SELU_ALPHA * (jnp.exp(x) - 1.0))


# ------------------------------- Pallas kernel --------------------------------
def vf_kernel(
    x_ref, freqs_ref, phase_ref,
    w1_ref, b1_ref, w2_ref, b2_ref, w3_ref, b3_ref,
    wo1_ref, bo1_ref, wo2_ref, bo2_ref, wo3_ref, bo3_ref,
    out_ref, *scratch, use_cat: bool, act_dtype,
):
    bf16 = jnp.bfloat16
    f32 = jnp.float32

    xt = x_ref[...]                               # [BN, DATA_DIM + 1] f32
    x = xt[:, :DATA_DIM]                          # [BN, DATA_DIM]
    t = xt[:, DATA_DIM:DATA_DIM + 1]              # [BN, 1]

    def act(z):                                    # f32 accum -> activation dtype
        return _selu(z.astype(act_dtype))

    # ---- x_module: Linear(4,128) -> SELU -> Linear -> SELU -> Linear ----
    # K=4 first layer on the VPU (an MXU push would use only 4 of 128/256 rows).
    w1 = w1_ref[...]                              # [4, 128] f32
    h = b1_ref[...] + x[:, 0:1] * w1[0:1, :]
    for k in range(1, DATA_DIM):
        h = h + x[:, k:k + 1] * w1[k:k + 1, :]
    h = act(h)
    h = act(jnp.dot(h.astype(bf16), w2_ref[...],
                    preferred_element_type=f32) + b2_ref[...])
    x_out = jnp.dot(h.astype(bf16), w3_ref[...],
                    preferred_element_type=f32) + b3_ref[...]

    # ---- sinusoidal timestep embedding (STEP_SCALE pre-folded into freqs) ----
    # one cos over 128 lanes; lanes [64:128] carry a -pi/2 phase -> they yield sin.
    t_emb = jnp.cos(t * freqs_ref[...] + phase_ref[...])     # [BN, T_EMBED] f32

    # ---- out_module on concat([x_out, t_emb]) ----
    if use_cat:
        # v6e/v7x: bf16 scratch -> single K=256 matmul (full-depth MXU fill).
        cat_ref, = scratch
        cat_ref[:, :X_LATENT] = x_out.astype(bf16)
        cat_ref[:, X_LATENT:] = t_emb.astype(bf16)
        z = jnp.dot(cat_ref[...], wo1_ref[...],
                    preferred_element_type=f32) + bo1_ref[...]
    else:
        # v5e: no scratch round trip; wo1 split into two K=128 matmuls.
        z = (jnp.dot(x_out.astype(bf16), wo1_ref[:X_LATENT, :],
                     preferred_element_type=f32)
             + jnp.dot(t_emb.astype(bf16), wo1_ref[X_LATENT:, :],
                       preferred_element_type=f32)
             + bo1_ref[...])
    h = act(z)
    h = act(jnp.dot(h.astype(bf16), wo2_ref[...],
                    preferred_element_type=f32) + bo2_ref[...])
    out = jnp.dot(h.astype(bf16), wo3_ref[...],
                  preferred_element_type=f32) + bo3_ref[...]
    out_ref[...] = out.astype(out_ref.dtype)


# ------------------------------- wrapper --------------------------------------
def _round_up(n, m):
    return ((n + m - 1) // m) * m


def _tpu_generation():
    try:
        dk = jax.devices()[0].device_kind.lower()
    except Exception:
        return 0
    if "v7" in dk or "7x" in dk:
        return 7
    for g in (6, 5, 4, 3, 2):
        if f"v{g}" in dk:
            return g
    return 0


def _choose_block_n(n, max_block=1024):
    """Large tiles (amortize grid-step overhead / MXU fill) with an EVEN tile count."""
    if n <= 32:
        return max(16, _round_up(n, 16))
    tiles = _round_up(max(pl.cdiv(n, max_block), 2), 2)   # even, >= 2 (v7x megacore)
    return min(max_block, max(16, _round_up(pl.cdiv(n, tiles), 16)))


def vector_field_forward(x_full, params, *, max_block_n=1024):
    """x_full: [N, DATA_DIM + 1]; last column is time t (matches torch forward)."""
    N = x_full.shape[0]
    block_n = _choose_block_n(N, max_block_n)
    grid = (pl.cdiv(N, block_n),)   # ragged last block: OOB reads padded, writes masked

    gen = _tpu_generation()
    modern = gen >= 6                      # bf16-native VPU/EUP + 256-deep MXU
    act_dtype = jnp.bfloat16 if modern else jnp.float32
    use_cat = modern

    x_in = x_full if x_full.dtype == jnp.float32 else x_full.astype(jnp.float32)

    freqs = jnp.exp(
        -math.log(MAX_PERIOD) * jnp.arange(HALF, dtype=jnp.float32) / HALF)
    # STEP_SCALE folded in here -> kernel does a single FMA for the embedding args.
    freqs_full = (jnp.concatenate([freqs, freqs]) * STEP_SCALE).reshape(1, T_EMBED)
    phase = jnp.concatenate(
        [jnp.zeros((HALF,), jnp.float32),
         jnp.full((HALF,), -math.pi / 2.0, jnp.float32)]).reshape(1, T_EMBED)

    (w1, b1, w2, b2, w3, b3, wo1, bo1, wo2, bo2, wo3, bo3) = params
    bf16 = jnp.bfloat16
    # bf16 weights (f32 accumulation on the MXU), f32 biases; w1 stays f32 (VPU path).
    kparams = (w1, b1,
               w2.astype(bf16), b2, w3.astype(bf16), b3,
               wo1.astype(bf16), bo1, wo2.astype(bf16), bo2,
               wo3.astype(bf16), bo3)

    def batch_spec(dim):
        return pl.BlockSpec((block_n, dim), lambda i: (i, 0))

    def const_spec(arr):
        return pl.BlockSpec(arr.shape, lambda i: (0, 0))

    in_specs = ([batch_spec(DATA_DIM + 1), const_spec(freqs_full), const_spec(phase)]
                + [const_spec(p) for p in kparams])

    scratch_shapes = ([pltpu.VMEM((block_n, X_LATENT + T_EMBED), bf16)]
                      if use_cat else [])

    kernel = functools.partial(vf_kernel, use_cat=use_cat, act_dtype=act_dtype)

    return pl.pallas_call(
        kernel,
        out_shape=jax.ShapeDtypeStruct((N, DATA_DIM), jnp.float32),
        grid=grid,
        in_specs=in_specs,
        out_specs=batch_spec(DATA_DIM),
        scratch_shapes=scratch_shapes,
        compiler_params=pltpu.CompilerParams(dimension_semantics=("parallel",)),
        # working set per tile is a few MiB at block_n=1024 -> default scoped-VMEM
        # limit is fine on all generations (incl. v7x 64 MiB physical).
    )(x_in, freqs_full, phase, *kparams)


# ----------------------------- param init (deterministic) ---------------------
def init_params(key):
    def linear(key, fan_in, fan_out):
        kw, kb = jax.random.split(key)
        bound = 1.0 / math.sqrt(fan_in)
        w = jax.random.uniform(kw, (fan_in, fan_out), jnp.float32, -bound, bound)
        b = jax.random.uniform(kb, (1, fan_out), jnp.float32, -bound, bound)
        return w, b

    keys = jax.random.split(key, 6)
    # x_module: Linear(D, H), Linear(H, H), Linear(H, H)
    w1, b1 = linear(keys[0], DATA_DIM, X_LATENT)
    w2, b2 = linear(keys[1], X_LATENT, X_LATENT)
    w3, b3 = linear(keys[2], X_LATENT, X_LATENT)
    # out_module: Linear(H + T_EMBED, H), Linear(H, H), Linear(H, D)
    # wo1 rows are ordered [x_out | cos | sin], matching torch's concat order.
    wo1, bo1 = linear(keys[3], X_LATENT + T_EMBED, X_LATENT)
    wo2, bo2 = linear(keys[4], X_LATENT, X_LATENT)
    wo3, bo3 = linear(keys[5], X_LATENT, DATA_DIM)
    return (w1, b1, w2, b2, w3, b3, wo1, bo1, wo2, bo2, wo3, bo3)


# ----------------------------- pure-JAX reference ------------------------------
def reference_forward(x_full, params, act_dtype=jnp.float32):
    """Same math as the torch module, with the kernel's bf16 quantization choices."""
    (w1, b1, w2, b2, w3, b3, wo1, bo1, wo2, bo2, wo3, bo3) = params
    bf = lambda a: a.astype(jnp.bfloat16)
    f32 = jnp.float32

    t = x_full[:, -1:].astype(f32)
    x = x_full[:, :-1].astype(f32)
    freqs = jnp.exp(-math.log(MAX_PERIOD) * jnp.arange(HALF, dtype=f32) / HALF)
    args = (t * STEP_SCALE) * freqs[None, :]
    t_emb = jnp.concatenate([jnp.cos(args), jnp.sin(args)], axis=-1)

    act = lambda z: _selu(z.astype(act_dtype))
    h = act(jnp.dot(x, w1, precision=jax.lax.Precision.HIGHEST) + b1)
    h = act(jnp.dot(bf(h), bf(w2), preferred_element_type=f32) + b2)
    x_out = jnp.dot(bf(h), bf(w3), preferred_element_type=f32) + b3

    z = (jnp.dot(bf(x_out), bf(wo1[:X_LATENT]), preferred_element_type=f32)
         + jnp.dot(bf(t_emb), bf(wo1[X_LATENT:]), preferred_element_type=f32)
         + bo1)
    h = act(z)
    h = act(jnp.dot(bf(h), bf(wo2), preferred_element_type=f32) + bo2)
    return jnp.dot(bf(h), bf(wo3), preferred_element_type=f32) + bo3


# ------------------------------------ main -------------------------------------
if __name__ == "__main__":
    key = jax.random.PRNGKey(0)
    kp, kx, kt = jax.random.split(key, 3)

    params = init_params(kp)

    # N deliberately NOT a multiple of the tile size -> exercises the ragged
    # (masked) last block that replaced the host-side pad/slice.
    N = 500
    x_data = jax.random.normal(kx, (N, DATA_DIM), jnp.float32)
    t = jax.random.uniform(kt, (N, 1), jnp.float32)           # t in [0, 1)
    x_full = jnp.concatenate([x_data, t], axis=1)              # [N, DATA_DIM + 1]

    out = jax.block_until_ready(vector_field_forward(x_full, params))

    act_dtype = jnp.bfloat16 if _tpu_generation() >= 6 else jnp.float32
    ref = reference_forward(x_full, params, act_dtype=act_dtype)
    assert out.shape == (N, DATA_DIM)
    max_err = jnp.max(jnp.abs(out - ref))
    # tolerance covers EUP-vs-XLA transcendental differences in the bf16 path
    assert jnp.allclose(out, ref, rtol=3e-2, atol=3e-2), f"max abs err {max_err}"

    print("KERNEL_OK")
</pallas_src>

<mosaic_0001>
module attributes {stable_mosaic.version = 11 : i64} {
  func.func @vf_kernel(%arg0: i32, %arg1: memref<256x5xf32, #tpu.memory_space<vmem>>, %arg2: memref<1x128xf32, #tpu.memory_space<vmem>>, %arg3: memref<1x128xf32, #tpu.memory_space<vmem>>, %arg4: memref<4x128xf32, #tpu.memory_space<vmem>>, %arg5: memref<1x128xf32, #tpu.memory_space<vmem>>, %arg6: memref<128x128xbf16, #tpu.memory_space<vmem>>, %arg7: memref<1x128xf32, #tpu.memory_space<vmem>>, %arg8: memref<128x128xbf16, #tpu.memory_space<vmem>>, %arg9: memref<1x128xf32, #tpu.memory_space<vmem>>, %arg10: memref<256x128xbf16, #tpu.memory_space<vmem>>, %arg11: memref<1x128xf32, #tpu.memory_space<vmem>>, %arg12: memref<128x128xbf16, #tpu.memory_space<vmem>>, %arg13: memref<1x128xf32, #tpu.memory_space<vmem>>, %arg14: memref<128x4xbf16, #tpu.memory_space<vmem>>, %arg15: memref<1x4xf32, #tpu.memory_space<vmem>>, %arg16: memref<256x4xf32, #tpu.memory_space<vmem>>) attributes {dimension_semantics = [#tpu.dimension_semantics<parallel>], iteration_bounds = array<i64: 2>, scalar_prefetch = 0 : i64, scratch_operands = 0 : i64, tpu.core_type = #tpu.core_type<tc>, window_params = [{transform_indices = @transform_0, window_bounds = array<i64: 256, 5>}, {pipeline_mode = #tpu.pipeline_mode<synchronous>, transform_indices = @transform_1, window_bounds = array<i64: 1, 128>}, {pipeline_mode = #tpu.pipeline_mode<synchronous>, transform_indices = @transform_2, window_bounds = array<i64: 1, 128>}, {pipeline_mode = #tpu.pipeline_mode<synchronous>, transform_indices = @transform_3, window_bounds = array<i64: 4, 128>}, {pipeline_mode = #tpu.pipeline_mode<synchronous>, transform_indices = @transform_4, window_bounds = array<i64: 1, 128>}, {pipeline_mode = #tpu.pipeline_mode<synchronous>, transform_indices = @transform_5, window_bounds = array<i64: 128, 128>}, {pipeline_mode = #tpu.pipeline_mode<synchronous>, transform_indices = @transform_6, window_bounds = array<i64: 1, 128>}, {pipeline_mode = #tpu.pipeline_mode<synchronous>, transform_indices = @transform_7, window_bounds = array<i64: 128, 128>}, {pipeline_mode = #tpu.pipeline_mode<synchronous>, transform_indices = @transform_8, window_bounds = array<i64: 1, 128>}, {pipeline_mode = #tpu.pipeline_mode<synchronous>, transform_indices = @transform_9, window_bounds = array<i64: 256, 128>}, {pipeline_mode = #tpu.pipeline_mode<synchronous>, transform_indices = @transform_10, window_bounds = array<i64: 1, 128>}, {pipeline_mode = #tpu.pipeline_mode<synchronous>, transform_indices = @transform_11, window_bounds = array<i64: 128, 128>}, {pipeline_mode = #tpu.pipeline_mode<synchronous>, transform_indices = @transform_12, window_bounds = array<i64: 1, 128>}, {pipeline_mode = #tpu.pipeline_mode<synchronous>, transform_indices = @transform_13, window_bounds = array<i64: 128, 4>}, {pipeline_mode = #tpu.pipeline_mode<synchronous>, transform_indices = @transform_14, window_bounds = array<i64: 1, 4>}, {transform_indices = @transform_15, window_bounds = array<i64: 256, 4>}]} {
    %c0 = arith.constant 0 : index
    %c0_0 = arith.constant 0 : index
    %0 = vector.load %arg1[%c0, %c0_0] : memref<256x5xf32, #tpu.memory_space<vmem>>, vector<256x5xf32>
    %1 = vector.extract_strided_slice %0 {offsets = [0, 0], sizes = [256, 4], strides = [1, 1]} : vector<256x5xf32> to vector<256x4xf32>
    %2 = vector.extract_strided_slice %0 {offsets = [0, 4], sizes = [256, 1], strides = [1, 1]} : vector<256x5xf32> to vector<256x1xf32>
    %c0_1 = arith.constant 0 : index
    %c0_2 = arith.constant 0 : index
    %3 = vector.load %arg4[%c0_1, %c0_2] : memref<4x128xf32, #tpu.memory_space<vmem>>, vector<4x128xf32>
    %c0_3 = arith.constant 0 : index
    %c0_4 = arith.constant 0 : index
    %4 = vector.load %arg5[%c0_3, %c0_4] : memref<1x128xf32, #tpu.memory_space<vmem>>, vector<1x128xf32>
    %5 = vector.extract_strided_slice %1 {offsets = [0, 0], sizes = [256, 1], strides = [1, 1]} : vector<256x4xf32> to vector<256x1xf32>
    %6 = vector.extract_strided_slice %3 {offsets = [0, 0], sizes = [1, 128], strides = [1, 1]} : vector<4x128xf32> to vector<1x128xf32>
    %7 = vector.broadcast %5 : vector<256x1xf32> to vector<256x128xf32>
    %8 = vector.broadcast %6 : vector<1x128xf32> to vector<256x128xf32>
    %9 = arith.mulf %7, %8 : vector<256x128xf32>
    %10 = vector.broadcast %4 : vector<1x128xf32> to vector<256x128xf32>
    %11 = arith.addf %10, %9 : vector<256x128xf32>
    %12 = vector.extract_strided_slice %1 {offsets = [0, 1], sizes = [256, 1], strides = [1, 1]} : vector<256x4xf32> to vector<256x1xf32>
    %13 = vector.extract_strided_slice %3 {offsets = [1, 0], sizes = [1, 128], strides = [1, 1]} : vector<4x128xf32> to vector<1x128xf32>
    %14 = vector.broadcast %12 : vector<256x1xf32> to vector<256x128xf32>
    %15 = vector.broadcast %13 : vector<1x128xf32> to vector<256x128xf32>
    %16 = arith.mulf %14, %15 : vector<256x128xf32>
    %17 = arith.addf %11, %16 : vector<256x128xf32>
    %18 = vector.extract_strided_slice %1 {offsets = [0, 2], sizes = [256, 1], strides = [1, 1]} : vector<256x4xf32> to vector<256x1xf32>
    %19 = vector.extract_strided_slice %3 {offsets = [2, 0], sizes = [1, 128], strides = [1, 1]} : vector<4x128xf32> to vector<1x128xf32>
    %20 = vector.broadcast %18 : vector<256x1xf32> to vector<256x128xf32>
    %21 = vector.broadcast %19 : vector<1x128xf32> to vector<256x128xf32>
    %22 = arith.mulf %20, %21 : vector<256x128xf32>
    %23 = arith.addf %17, %22 : vector<256x128xf32>
    %24 = vector.extract_strided_slice %1 {offsets = [0, 3], sizes = [256, 1], strides = [1, 1]} : vector<256x4xf32> to vector<256x1xf32>
    %25 = vector.extract_strided_slice %3 {offsets = [3, 0], sizes = [1, 128], strides = [1, 1]} : vector<4x128xf32> to vector<1x128xf32>
    %26 = vector.broadcast %24 : vector<256x1xf32> to vector<256x128xf32>
    %27 = vector.broadcast %25 : vector<1x128xf32> to vector<256x128xf32>
    %28 = arith.mulf %26, %27 : vector<256x128xf32>
    %29 = arith.addf %23, %28 : vector<256x128xf32>
    %cst = arith.constant 0.000000e+00 : f32
    %30 = vector.broadcast %cst : f32 to vector<256x128xf32>
    %31 = arith.cmpf ogt, %29, %30 : vector<256x128xf32>
    %32 = math.exp %29 : vector<256x128xf32>
    %cst_5 = arith.constant 1.000000e+00 : f32
    %33 = vector.broadcast %cst_5 : f32 to vector<256x128xf32>
    %34 = arith.subf %32, %33 : vector<256x128xf32>
    %cst_6 = arith.constant 1.67326319 : f32
    %35 = vector.broadcast %cst_6 : f32 to vector<256x128xf32>
    %36 = arith.mulf %35, %34 : vector<256x128xf32>
    %37 = arith.select %31, %29, %36 : vector<256x128xi1>, vector<256x128xf32>
    %cst_7 = arith.constant 1.05070102 : f32
    %38 = vector.broadcast %cst_7 : f32 to vector<256x128xf32>
    %39 = arith.mulf %38, %37 : vector<256x128xf32>
    %40 = arith.truncf %39 : vector<256x128xf32> to vector<256x128xbf16>
    %c0_8 = arith.constant 0 : index
    %c0_9 = arith.constant 0 : index
    %41 = vector.load %arg6[%c0_8, %c0_9] : memref<128x128xbf16, #tpu.memory_space<vmem>>, vector<128x128xbf16>
    %cst_10 = arith.constant dense<0.000000e+00> : vector<256x128xf32>
    %42 = tpu.matmul %40, %41, %cst_10 {dimension_numbers = #tpu.dot_dimension_numbers<[1], [0], [0], [1], [0, 0, 1, 1], [], []>} : vector<256x128xbf16>, vector<128x128xbf16>, vector<256x128xf32> -> vector<256x128xf32>
    %c0_11 = arith.constant 0 : index
    %c0_12 = arith.constant 0 : index
    %43 = vector.load %arg7[%c0_11, %c0_12] : memref<1x128xf32, #tpu.memory_space<vmem>>, vector<1x128xf32>
    %44 = vector.broadcast %43 : vector<1x128xf32> to vector<256x128xf32>
    %45 = arith.addf %42, %44 : vector<256x128xf32>
    %cst_13 = arith.constant 0.000000e+00 : f32
    %46 = vector.broadcast %cst_13 : f32 to vector<256x128xf32>
    %47 = arith.cmpf ogt, %45, %46 : vector<256x128xf32>
    %48 = math.exp %45 : vector<256x128xf32>
    %cst_14 = arith.constant 1.000000e+00 : f32
    %49 = vector.broadcast %cst_14 : f32 to vector<256x128xf32>
    %50 = arith.subf %48, %49 : vector<256x128xf32>
    %cst_15 = arith.constant 1.67326319 : f32
    %51 = vector.broadcast %cst_15 : f32 to vector<256x128xf32>
    %52 = arith.mulf %51, %50 : vector<256x128xf32>
    %53 = arith.select %47, %45, %52 : vector<256x128xi1>, vector<256x128xf32>
    %cst_16 = arith.constant 1.05070102 : f32
    %54 = vector.broadcast %cst_16 : f32 to vector<256x128xf32>
    %55 = arith.mulf %54, %53 : vector<256x128xf32>
    %56 = arith.truncf %55 : vector<256x128xf32> to vector<256x128xbf16>
    %c0_17 = arith.constant 0 : index
    %c0_18 = arith.constant 0 : index
    %57 = vector.load %arg8[%c0_17, %c0_18] : memref<128x128xbf16, #tpu.memory_space<vmem>>, vector<128x128xbf16>
    %cst_19 = arith.constant dense<0.000000e+00> : vector<256x128xf32>
    %58 = tpu.matmul %56, %57, %cst_19 {dimension_numbers = #tpu.dot_dimension_numbers<[1], [0], [0], [1], [0, 0, 1, 1], [], []>} : vector<256x128xbf16>, vector<128x128xbf16>, vector<256x128xf32> -> vector<256x128xf32>
    %c0_20 = arith.constant 0 : index
    %c0_21 = arith.constant 0 : index
    %59 = vector.load %arg9[%c0_20, %c0_21] : memref<1x128xf32, #tpu.memory_space<vmem>>, vector<1x128xf32>
    %60 = vector.broadcast %59 : vector<1x128xf32> to vector<256x128xf32>
    %61 = arith.addf %58, %60 : vector<256x128xf32>
    %c0_22 = arith.constant 0 : index
    %c0_23 = arith.constant 0 : index
    %62 = vector.load %arg2[%c0_22, %c0_23] : memref<1x128xf32, #tpu.memory_space<vmem>>, vector<1x128xf32>
    %63 = vector.broadcast %2 : vector<256x1xf32> to vector<256x128xf32>
    %64 = vector.broadcast %62 : vector<1x128xf32> to vector<256x128xf32>
    %65 = arith.mulf %63, %64 : vector<256x128xf32>
    %c0_24 = arith.constant 0 : index
    %c0_25 = arith.constant 0 : index
    %66 = vector.load %arg3[%c0_24, %c0_25] : memref<1x128xf32, #tpu.memory_space<vmem>>, vector<1x128xf32>
    %67 = vector.broadcast %66 : vector<1x128xf32> to vector<256x128xf32>
    %68 = arith.addf %65, %67 : vector<256x128xf32>
    %69 = math.cos %68 : vector<256x128xf32>
    %70 = arith.truncf %61 : vector<256x128xf32> to vector<256x128xbf16>
    %c0_26 = arith.constant 0 : index
    %c0_27 = arith.constant 0 : index
    %71 = vector.load %arg10[%c0_26, %c0_27] : memref<256x128xbf16, #tpu.memory_space<vmem>>, vector<128x128xbf16>
    %cst_28 = arith.constant dense<0.000000e+00> : vector<256x128xf32>
    %72 = tpu.matmul %70, %71, %cst_28 {dimension_numbers = #tpu.dot_dimension_numbers<[1], [0], [0], [1], [0, 0, 1, 1], [], []>} : vector<256x128xbf16>, vector<128x128xbf16>, vector<256x128xf32> -> vector<256x128xf32>
    %73 = arith.truncf %69 : vector<256x128xf32> to vector<256x128xbf16>
    %c128 = arith.constant 128 : index
    %c0_29 = arith.constant 0 : index
    %74 = vector.load %arg10[%c128, %c0_29] : memref<256x128xbf16, #tpu.memory_space<vmem>>, vector<128x128xbf16>
    %cst_30 = arith.constant dense<0.000000e+00> : vector<256x128xf32>
    %75 = tpu.matmul %73, %74, %cst_30 {dimension_numbers = #tpu.dot_dimension_numbers<[1], [0], [0], [1], [0, 0, 1, 1], [], []>} : vector<256x128xbf16>, vector<128x128xbf16>, vector<256x128xf32> -> vector<256x128xf32>
    %76 = arith.addf %72, %75 : vector<256x128xf32>
    %c0_31 = arith.constant 0 : index
    %c0_32 = arith.constant 0 : index
    %77 = vector.load %arg11[%c0_31, %c0_32] : memref<1x128xf32, #tpu.memory_space<vmem>>, vector<1x128xf32>
    %78 = vector.broadcast %77 : vector<1x128xf32> to vector<256x128xf32>
    %79 = arith.addf %76, %78 : vector<256x128xf32>
    %cst_33 = arith.constant 0.000000e+00 : f32
    %80 = vector.broadcast %cst_33 : f32 to vector<256x128xf32>
    %81 = arith.cmpf ogt, %79, %80 : vector<256x128xf32>
    %82 = math.exp %79 : vector<256x128xf32>
    %cst_34 = arith.constant 1.000000e+00 : f32
    %83 = vector.broadcast %cst_34 : f32 to vector<256x128xf32>
    %84 = arith.subf %82, %83 : vector<256x128xf32>
    %cst_35 = arith.constant 1.67326319 : f32
    %85 = vector.broadcast %cst_35 : f32 to vector<256x128xf32>
    %86 = arith.mulf %85, %84 : vector<256x128xf32>
    %87 = arith.select %81, %79, %86 : vector<256x128xi1>, vector<256x128xf32>
    %cst_36 = arith.constant 1.05070102 : f32
    %88 = vector.broadcast %cst_36 : f32 to vector<256x128xf32>
    %89 = arith.mulf %88, %87 : vector<256x128xf32>
    %90 = arith.truncf %89 : vector<256x128xf32> to vector<256x128xbf16>
    %c0_37 = arith.constant 0 : index
    %c0_38 = arith.constant 0 : index
    %91 = vector.load %arg12[%c0_37, %c0_38] : memref<128x128xbf16, #tpu.memory_space<vmem>>, vector<128x128xbf16>
    %cst_39 = arith.constant dense<0.000000e+00> : vector<256x128xf32>
    %92 = tpu.matmul %90, %91, %cst_39 {dimension_numbers = #tpu.dot_dimension_numbers<[1], [0], [0], [1], [0, 0, 1, 1], [], []>} : vector<256x128xbf16>, vector<128x128xbf16>, vector<256x128xf32> -> vector<256x128xf32>
    %c0_40 = arith.constant 0 : index
    %c0_41 = arith.constant 0 : index
    %93 = vector.load %arg13[%c0_40, %c0_41] : memref<1x128xf32, #tpu.memory_space<vmem>>, vector<1x128xf32>
    %94 = vector.broadcast %93 : vector<1x128xf32> to vector<256x128xf32>
    %95 = arith.addf %92, %94 : vector<256x128xf32>
    %cst_42 = arith.constant 0.000000e+00 : f32
    %96 = vector.broadcast %cst_42 : f32 to vector<256x128xf32>
    %97 = arith.cmpf ogt, %95, %96 : vector<256x128xf32>
    %98 = math.exp %95 : vector<256x128xf32>
    %cst_43 = arith.constant 1.000000e+00 : f32
    %99 = vector.broadcast %cst_43 : f32 to vector<256x128xf32>
    %100 = arith.subf %98, %99 : vector<256x128xf32>
    %cst_44 = arith.constant 1.67326319 : f32
    %101 = vector.broadcast %cst_44 : f32 to vector<256x128xf32>
    %102 = arith.mulf %101, %100 : vector<256x128xf32>
    %103 = arith.select %97, %95, %102 : vector<256x128xi1>, vector<256x128xf32>
    %cst_45 = arith.constant 1.05070102 : f32
    %104 = vector.broadcast %cst_45 : f32 to vector<256x128xf32>
    %105 = arith.mulf %104, %103 : vector<256x128xf32>
    %106 = arith.truncf %105 : vector<256x128xf32> to vector<256x128xbf16>
    %c0_46 = arith.constant 0 : index
    %c0_47 = arith.constant 0 : index
    %107 = vector.load %arg14[%c0_46, %c0_47] : memref<128x4xbf16, #tpu.memory_space<vmem>>, vector<128x4xbf16>
    %cst_48 = arith.constant dense<0.000000e+00> : vector<256x4xf32>
    %108 = tpu.matmul %106, %107, %cst_48 {dimension_numbers = #tpu.dot_dimension_numbers<[1], [0], [0], [1], [0, 0, 1, 1], [], []>} : vector<256x128xbf16>, vector<128x4xbf16>, vector<256x4xf32> -> vector<256x4xf32>
    %c0_49 = arith.constant 0 : index
    %c0_50 = arith.constant 0 : index
    %109 = vector.load %arg15[%c0_49, %c0_50] : memref<1x4xf32, #tpu.memory_space<vmem>>, vector<1x4xf32>
    %110 = vector.broadcast %109 : vector<1x4xf32> to vector<256x4xf32>
    %111 = arith.addf %108, %110 : vector<256x4xf32>
    %c0_51 = arith.constant 0 : index
    %c0_52 = arith.constant 0 : index
    %112 = vector.load %arg16[%c0_51, %c0_52] : memref<256x4xf32, #tpu.memory_space<vmem>>, vector<256x4xf32>
    tpu.vector_store %arg16[%c0_51, %c0_52], %111 {strides = array<i32>} : memref<256x4xf32, #tpu.memory_space<vmem>>, vector<256x4xf32>,
    return
  }
  func.func @transform_0(%arg0: i32) -> (i32, i32) {
    %c0_i32 = arith.constant 0 : i32
    %c0_i32_0 = arith.constant 0 : i32
    return %arg0, %c0_i32 : i32, i32
  }
  func.func @transform_1(%arg0: i32) -> (i32, i32) {
    %c0_i32 = arith.constant 0 : i32
    %c0_i32_0 = arith.constant 0 : i32
    %c0_i32_1 = arith.constant 0 : i32
    return %c0_i32, %c0_i32_0 : i32, i32
  }
  func.func @transform_2(%arg0: i32) -> (i32, i32) {
    %c0_i32 = arith.constant 0 : i32
    %c0_i32_0 = arith.constant 0 : i32
    %c0_i32_1 = arith.constant 0 : i32
    return %c0_i32, %c0_i32_0 : i32, i32
  }
  func.func @transform_3(%arg0: i32) -> (i32, i32) {
    %c0_i32 = arith.constant 0 : i32
    %c0_i32_0 = arith.constant 0 : i32
    %c0_i32_1 = arith.constant 0 : i32
    return %c0_i32, %c0_i32_0 : i32, i32
  }
  func.func @transform_4(%arg0: i32) -> (i32, i32) {
    %c0_i32 = arith.constant 0 : i32
    %c0_i32_0 = arith.constant 0 : i32
    %c0_i32_1 = arith.constant 0 : i32
    return %c0_i32, %c0_i32_0 : i32, i32
  }
  func.func @transform_5(%arg0: i32) -> (i32, i32) {
    %c0_i32 = arith.constant 0 : i32
    %c0_i32_0 = arith.constant 0 : i32
    %c0_i32_1 = arith.constant 0 : i32
    return %c0_i32, %c0_i32_0 : i32, i32
  }
  func.func @transform_6(%arg0: i32) -> (i32, i32) {
    %c0_i32 = arith.constant 0 : i32
    %c0_i32_0 = arith.constant 0 : i32
    %c0_i32_1 = arith.constant 0 : i32
    return %c0_i32, %c0_i32_0 : i32, i32
  }
  func.func @transform_7(%arg0: i32) -> (i32, i32) {
    %c0_i32 = arith.constant 0 : i32
    %c0_i32_0 = arith.constant 0 : i32
    %c0_i32_1 = arith.constant 0 : i32
    return %c0_i32, %c0_i32_0 : i32, i32
  }
  func.func @transform_8(%arg0: i32) -> (i32, i32) {
    %c0_i32 = arith.constant 0 : i32
    %c0_i32_0 = arith.constant 0 : i32
    %c0_i32_1 = arith.constant 0 : i32
    return %c0_i32, %c0_i32_0 : i32, i32
  }
  func.func @transform_9(%arg0: i32) -> (i32, i32) {
    %c0_i32 = arith.constant 0 : i32
    %c0_i32_0 = arith.constant 0 : i32
    %c0_i32_1 = arith.constant 0 : i32
    return %c0_i32, %c0_i32_0 : i32, i32
  }
  func.func @transform_10(%arg0: i32) -> (i32, i32) {
    %c0_i32 = arith.constant 0 : i32
    %c0_i32_0 = arith.constant 0 : i32
    %c0_i32_1 = arith.constant 0 : i32
    return %c0_i32, %c0_i32_0 : i32, i32
  }
  func.func @transform_11(%arg0: i32) -> (i32, i32) {
    %c0_i32 = arith.constant 0 : i32
    %c0_i32_0 = arith.constant 0 : i32
    %c0_i32_1 = arith.constant 0 : i32
    return %c0_i32, %c0_i32_0 : i32, i32
  }
  func.func @transform_12(%arg0: i32) -> (i32, i32) {
    %c0_i32 = arith.constant 0 : i32
    %c0_i32_0 = arith.constant 0 : i32
    %c0_i32_1 = arith.constant 0 : i32
    return %c0_i32, %c0_i32_0 : i32, i32
  }
  func.func @transform_13(%arg0: i32) -> (i32, i32) {
    %c0_i32 = arith.constant 0 : i32
    %c0_i32_0 = arith.constant 0 : i32
    %c0_i32_1 = arith.constant 0 : i32
    return %c0_i32, %c0_i32_0 : i32, i32
  }
  func.func @transform_14(%arg0: i32) -> (i32, i32) {
    %c0_i32 = arith.constant 0 : i32
    %c0_i32_0 = arith.constant 0 : i32
    %c0_i32_1 = arith.constant 0 : i32
    return %c0_i32, %c0_i32_0 : i32, i32
  }
  func.func @transform_15(%arg0: i32) -> (i32, i32) {
    %c0_i32 = arith.constant 0 : i32
    %c0_i32_0 = arith.constant 0 : i32
    return %arg0, %c0_i32 : i32, i32
  }
}

</mosaic_0001>

<llo_original>
// kernel: tpu_custom_call.1
$region0: #{tpu_custom_call.1}
  #allocation0 [shape = 'u32[]', space=smem, size = 0x4, offset = 0x4, fixed_abs, tag = 'smem constant byte address 0x4 - core index']
  #allocation1 [shape = 'u32[72,128]{1,0:T(1,128)}', space=vmem, size = 0x9000, scoped, tag = 'internal scratch']
  %s0 = inlined_call_operand.vmem [shape: f32[500,5], index: 0, kind: input, shape index: {}]
  %s1 = inlined_call_operand.vmem [shape: f32[1,128], index: 1, kind: input, shape index: {}]
  %s2 = inlined_call_operand.vmem [shape: f32[1,128], index: 2, kind: input, shape index: {}]
  %s3 = inlined_call_operand.vmem [shape: f32[4,128], index: 3, kind: input, shape index: {}]
  %s4 = inlined_call_operand.vmem [shape: f32[1,128], index: 4, kind: input, shape index: {}]
  %s5 = inlined_call_operand.vmem [shape: bf16[128,128], index: 5, kind: input, shape index: {}]
  %s6 = inlined_call_operand.vmem [shape: f32[1,128], index: 6, kind: input, shape index: {}]
  %s7 = inlined_call_operand.vmem [shape: bf16[128,128], index: 7, kind: input, shape index: {}]
  %s8 = inlined_call_operand.vmem [shape: f32[1,128], index: 8, kind: input, shape index: {}]
  %s9 = inlined_call_operand.vmem [shape: bf16[256,128], index: 9, kind: input, shape index: {}]
  %s10 = inlined_call_operand.vmem [shape: f32[1,128], index: 10, kind: input, shape index: {}]
  %s11 = inlined_call_operand.vmem [shape: bf16[128,128], index: 11, kind: input, shape index: {}]
  %s12 = inlined_call_operand.vmem [shape: f32[1,128], index: 12, kind: input, shape index: {}]
  %s13 = inlined_call_operand.vmem [shape: bf16[128,4], index: 13, kind: input, shape index: {}]
  %s14 = inlined_call_operand.vmem [shape: f32[1,4], index: 14, kind: input, shape index: {}]
  %s15 = inlined_call_operand.vmem [shape: f32[500,4], index: 15, kind: output, shape index: {}]
  %s16 = sld [smem:[#allocation0]]
  $region141: #{tpu_custom_call.1} parent=0
    _
  %s18 = ssub.s32 1, %s16
  %s19 = scalar_select 0, %s18, %s16
  $region1: #{tpu_custom_call.1} parent=0
    #allocation2 [shape = 'u8[262144]{0}', space=vmem, size = 0x40000, scoped, tag = 'output window, operand 0']
    loop: start=0, step=1, limit=4
    $region2: #{tpu_custom_call.1} parent=1 // loop_pre_header
      _
    $region3: #{tpu_custom_call.1} parent=1 // loop_header
      %s21 = sphi 0, %s25
      %p22 = scmp.ge.s32.totalorder %s21, 4
      %s31 = sphi 0, %s33
      %s34 = sphi 0, %s31
      %s35 = sphi 0, %s34
      %s51 = sphi 0, %s35
      %s55 = sphi 0, %s55
      %s57 = sphi 0, %s55
      %s58 = sphi 0, %s57
      %s72 = sphi 0, %s58
      %s76 = sphi 0, %s76
      %s78 = sphi 0, %s76
      %s79 = sphi 0, %s78
      %s93 = sphi 0, %s79
      %s97 = sphi 0, %s97
      %s99 = sphi 0, %s97
      %s100 = sphi 0, %s99
      %s114 = sphi 0, %s100
      %s118 = sphi 0, %s118
      %s120 = sphi 0, %s118
      %s121 = sphi 0, %s120
      %s135 = sphi 0, %s121
      %s139 = sphi 0, %s139
      %s141 = sphi 0, %s139
      %s142 = sphi 0, %s141
      %s156 = sphi 0, %s142
      %s160 = sphi 0, %s160
      %s162 = sphi 0, %s160
      %s163 = sphi 0, %s162
      %s177 = sphi 0, %s163
      %s181 = sphi 0, %s181
      %s183 = sphi 0, %s181
      %s184 = sphi 0, %s183
      %s198 = sphi 0, %s184
      %s202 = sphi 0, %s202
      %s204 = sphi 0, %s202
      %s205 = sphi 0, %s204
      %s219 = sphi 0, %s205
      %s223 = sphi 0, %s223
      %s225 = sphi 0, %s223
      %s226 = sphi 0, %s225
      %s240 = sphi 0, %s226
      %s244 = sphi 0, %s244
      %s246 = sphi 0, %s244
      %s247 = sphi 0, %s246
      %s261 = sphi 0, %s247
      %s265 = sphi 0, %s265
      %s267 = sphi 0, %s265
      %s268 = sphi 0, %s267
      %s282 = sphi 0, %s268
      %s286 = sphi 0, %s286
      %s288 = sphi 0, %s286
      %s289 = sphi 0, %s288
      %s303 = sphi 0, %s289
      %s307 = sphi 0, %s307
      %s309 = sphi 0, %s307
      %s310 = sphi 0, %s309
      %s324 = sphi 0, %s310
      %s328 = sphi 0, %s328
      %s330 = sphi 0, %s328
      %s331 = sphi 0, %s330
      %s345 = sphi 0, %s331
      %s351 = sphi 0, %s353
      %s354 = sphi 0, %s351
      %s355 = sphi 0, %s354
      %s371 = sphi 0, %s355
    $region4: #{tpu_custom_call.1} parent=1 // loop_header_branch
      %24 = sbr.rel (%p22) target = $region8
    $region5: #{tpu_custom_call.1} parent=1 // loop_body
      %s26 = ssub.s32 %s21, 1
      %s27 = ssub.s32 %s21, 2
      %s28 = sadd.s32 %s21, 1
      %s29 = ssub.s32 %s21, %s28
      %p30 = scmp.eq.s32.totalorder %s29, 0
      %s32 = sadd.s32 %s31, 1
      %s33 = scalar_select %p30, %s31, %s32
      %p36 = pneg %p30
      %p37 = scmp.eq.s32.totalorder %s21, 1
      %p38 = por %p36, %p37
      %p39 = scmp.ne.s32.totalorder %s31, %s34
      %p40 = scmp.eq.s32.totalorder %s21, 0
      %p41 = por %p39, %p40
      %p42 = scmp.ne.s32.totalorder %s31, %s34
      %p43 = scmp.eq.s32.totalorder %s26, 1
      %p44 = por %p42, %p43
      %p45 = scmp.ne.s32.totalorder %s34, %s35
      %p46 = scmp.eq.s32.totalorder %s26, 0
      %p47 = por %p45, %p46
      %p48 = scmp.ne.s32.totalorder %s34, %s35
      %p49 = scmp.eq.s32.totalorder %s27, 1
      %p50 = por %p48, %p49
      %p52 = scmp.ne.s32.totalorder %s35, %s51
      %p53 = scmp.eq.s32.totalorder %s27, 0
      %p54 = por %p52, %p53
      %s56 = sadd.s32 %s55, 1
      %p59 = scmp.eq.s32.totalorder %s21, 1
      %p60 = scmp.ne.s32.totalorder %s55, %s57
      %p61 = scmp.eq.s32.totalorder %s21, 0
      %p62 = por %p60, %p61
      %p63 = scmp.ne.s32.totalorder %s55, %s57
      %p64 = scmp.eq.s32.totalorder %s26, 1
      %p65 = por %p63, %p64
      %p66 = scmp.ne.s32.totalorder %s57, %s58
      %p67 = scmp.eq.s32.totalorder %s26, 0
      %p68 = por %p66, %p67
      %p69 = scmp.ne.s32.totalorder %s57, %s58
      %p70 = scmp.eq.s32.totalorder %s27, 1
      %p71 = por %p69, %p70
      %p73 = scmp.ne.s32.totalorder %s58, %s72
      %p74 = scmp.eq.s32.totalorder %s27, 0
      %p75 = por %p73, %p74
      %s77 = sadd.s32 %s76, 1
      %p80 = scmp.eq.s32.totalorder %s21, 1
      %p81 = scmp.ne.s32.totalorder %s76, %s78
      %p82 = scmp.eq.s32.totalorder %s21, 0
      %p83 = por %p81, %p82
      %p84 = scmp.ne.s32.totalorder %s76, %s78
      %p85 = scmp.eq.s32.totalorder %s26, 1
      %p86 = por %p84, %p85
      %p87 = scmp.ne.s32.totalorder %s78, %s79
      %p88 = scmp.eq.s32.totalorder %s26, 0
      %p89 = por %p87, %p88
      %p90 = scmp.ne.s32.totalorder %s78, %s79
      %p91 = scmp.eq.s32.totalorder %s27, 1
      %p92 = por %p90, %p91
      %p94 = scmp.ne.s32.totalorder %s79, %s93
      %p95 = scmp.eq.s32.totalorder %s27, 0
      %p96 = por %p94, %p95
      %s98 = sadd.s32 %s97, 1
      %p101 = scmp.eq.s32.totalorder %s21, 1
      %p102 = scmp.ne.s32.totalorder %s97, %s99
      %p103 = scmp.eq.s32.totalorder %s21, 0
      %p104 = por %p102, %p103
      %p105 = scmp.ne.s32.totalorder %s97, %s99
      %p106 = scmp.eq.s32.totalorder %s26, 1
      %p107 = por %p105, %p106
      %p108 = scmp.ne.s32.totalorder %s99, %s100
      %p109 = scmp.eq.s32.totalorder %s26, 0
      %p110 = por %p108, %p109
      %p111 = scmp.ne.s32.totalorder %s99, %s100
      %p112 = scmp.eq.s32.totalorder %s27, 1
      %p113 = por %p111, %p112
      %p115 = scmp.ne.s32.totalorder %s100, %s114
      %p116 = scmp.eq.s32.totalorder %s27, 0
      %p117 = por %p115, %p116
      %s119 = sadd.s32 %s118, 1
      %p122 = scmp.eq.s32.totalorder %s21, 1
      %p123 = scmp.ne.s32.totalorder %s118, %s120
      %p124 = scmp.eq.s32.totalorder %s21, 0
      %p125 = por %p123, %p124
      %p126 = scmp.ne.s32.totalorder %s118, %s120
      %p127 = scmp.eq.s32.totalorder %s26, 1
      %p128 = por %p126, %p127
      %p129 = scmp.ne.s32.totalorder %s120, %s121
      %p130 = scmp.eq.s32.totalorder %s26, 0
      %p131 = por %p129, %p130
      %p132 = scmp.ne.s32.totalorder %s120, %s121
      %p133 = scmp.eq.s32.totalorder %s27, 1
      %p134 = por %p132, %p133
      %p136 = scmp.ne.s32.totalorder %s121, %s135
      %p137 = scmp.eq.s32.totalorder %s27, 0
      %p138 = por %p136, %p137
      %s140 = sadd.s32 %s139, 1
      %p143 = scmp.eq.s32.totalorder %s21, 1
      %p144 = scmp.ne.s32.totalorder %s139, %s141
      %p145 = scmp.eq.s32.totalorder %s21, 0
      %p146 = por %p144, %p145
      %p147 = scmp.ne.s32.totalorder %s139, %s141
      %p148 = scmp.eq.s32.totalorder %s26, 1
      %p149 = por %p147, %p148
      %p150 = scmp.ne.s32.totalorder %s141, %s142
      %p151 = scmp.eq.s32.totalorder %s26, 0
      %p152 = por %p150, %p151
      %p153 = scmp.ne.s32.totalorder %s141, %s142
      %p154 = scmp.eq.s32.totalorder %s27, 1
      %p155 = por %p153, %p154
      %p157 = scmp.ne.s32.totalorder %s142, %s156
      %p158 = scmp.eq.s32.totalorder %s27, 0
      %p159 = por %p157, %p158
      %s161 = sadd.s32 %s160, 1
      %p164 = scmp.eq.s32.totalorder %s21, 1
      %p165 = scmp.ne.s32.totalorder %s160, %s162
      %p166 = scmp.eq.s32.totalorder %s21, 0
      %p167 = por %p165, %p166
      %p168 = scmp.ne.s32.totalorder %s160, %s162
      %p169 = scmp.eq.s32.totalorder %s26, 1
      %p170 = por %p168, %p169
      %p171 = scmp.ne.s32.totalorder %s162, %s163
      %p172 = scmp.eq.s32.totalorder %s26, 0
      %p173 = por %p171, %p172
      %p174 = scmp.ne.s32.totalorder %s162, %s163
      %p175 = scmp.eq.s32.totalorder %s27, 1
      %p176 = por %p174, %p175
      %p178 = scmp.ne.s32.totalorder %s163, %s177
      %p179 = scmp.eq.s32.totalorder %s27, 0
      %p180 = por %p178, %p179
      %s182 = sadd.s32 %s181, 1
      %p185 = scmp.eq.s32.totalorder %s21, 1
      %p186 = scmp.ne.s32.totalorder %s181, %s183
      %p187 = scmp.eq.s32.totalorder %s21, 0
      %p188 = por %p186, %p187
      %p189 = scmp.ne.s32.totalorder %s181, %s183
      %p190 = scmp.eq.s32.totalorder %s26, 1
      %p191 = por %p189, %p190
      %p192 = scmp.ne.s32.totalorder %s183, %s184
      %p193 = scmp.eq.s32.totalorder %s26, 0
      %p194 = por %p192, %p193
      %p195 = scmp.ne.s32.totalorder %s183, %s184
      %p196 = scmp.eq.s32.totalorder %s27, 1
      %p197 = por %p195, %p196
      %p199 = scmp.ne.s32.totalorder %s184, %s198
      %p200 = scmp.eq.s32.totalorder %s27, 0
      %p201 = por %p199, %p200
      %s203 = sadd.s32 %s202, 1
      %p206 = scmp.eq.s32.totalorder %s21, 1
      %p207 = scmp.ne.s32.totalorder %s202, %s204
      %p208 = scmp.eq.s32.totalorder %s21, 0
      %p209 = por %p207, %p208
      %p210 = scmp.ne.s32.totalorder %s202, %s204
      %p211 = scmp.eq.s32.totalorder %s26, 1
      %p212 = por %p210, %p211
      %p213 = scmp.ne.s32.totalorder %s204, %s205
      %p214 = scmp.eq.s32.totalorder %s26, 0
      %p215 = por %p213, %p214
      %p216 = scmp.ne.s32.totalorder %s204, %s205
      %p217 = scmp.eq.s32.totalorder %s27, 1
      %p218 = por %p216, %p217
      %p220 = scmp.ne.s32.totalorder %s205, %s219
      %p221 = scmp.eq.s32.totalorder %s27, 0
      %p222 = por %p220, %p221
      %s224 = sadd.s32 %s223, 1
      %p227 = scmp.eq.s32.totalorder %s21, 1
      %p228 = scmp.ne.s32.totalorder %s223, %s225
      %p229 = scmp.eq.s32.totalorder %s21, 0
      %p230 = por %p228, %p229
      %p231 = scmp.ne.s32.totalorder %s223, %s225
      %p232 = scmp.eq.s32.totalorder %s26, 1
      %p233 = por %p231, %p232
      %p234 = scmp.ne.s32.totalorder %s225, %s226
      %p235 = scmp.eq.s32.totalorder %s26, 0
      %p236 = por %p234, %p235
      %p237 = scmp.ne.s32.totalorder %s225, %s226
      %p238 = scmp.eq.s32.totalorder %s27, 1
      %p239 = por %p237, %p238
      %p241 = scmp.ne.s32.totalorder %s226, %s240
      %p242 = scmp.eq.s32.totalorder %s27, 0
      %p243 = por %p241, %p242
      %s245 = sadd.s32 %s244, 1
      %p248 = scmp.eq.s32.totalorder %s21, 1
      %p249 = scmp.ne.s32.totalorder %s244, %s246
      %p250 = scmp.eq.s32.totalorder %s21, 0
      %p251 = por %p249, %p250
      %p252 = scmp.ne.s32.totalorder %s244, %s246
      %p253 = scmp.eq.s32.totalorder %s26, 1
      %p254 = por %p252, %p253
      %p255 = scmp.ne.s32.totalorder %s246, %s247
      %p256 = scmp.eq.s32.totalorder %s26, 0
      %p257 = por %p255, %p256
      %p258 = scmp.ne.s32.totalorder %s246, %s247
      %p259 = scmp.eq.s32.totalorder %s27, 1
      %p260 = por %p258, %p259
      %p262 = scmp.ne.s32.totalorder %s247, %s261
      %p263 = scmp.eq.s32.totalorder %s27, 0
      %p264 = por %p262, %p263
      %s266 = sadd.s32 %s265, 1
      %p269 = scmp.eq.s32.totalorder %s21, 1
      %p270 = scmp.ne.s32.totalorder %s265, %s267
      %p271 = scmp.eq.s32.totalorder %s21, 0
      %p272 = por %p270, %p271
      %p273 = scmp.ne.s32.totalorder %s265, %s267
      %p274 = scmp.eq.s32.totalorder %s26, 1
      %p275 = por %p273, %p274
      %p276 = scmp.ne.s32.totalorder %s267, %s268
      %p277 = scmp.eq.s32.totalorder %s26, 0
      %p278 = por %p276, %p277
      %p279 = scmp.ne.s32.totalorder %s267, %s268
      %p280 = scmp.eq.s32.totalorder %s27, 1
      %p281 = por %p279, %p280
      %p283 = scmp.ne.s32.totalorder %s268, %s282
      %p284 = scmp.eq.s32.totalorder %s27, 0
      %p285 = por %p283, %p284
      %s287 = sadd.s32 %s286, 1
      %p290 = scmp.eq.s32.totalorder %s21, 1
      %p291 = scmp.ne.s32.totalorder %s286, %s288
      %p292 = scmp.eq.s32.totalorder %s21, 0
      %p293 = por %p291, %p292
      %p294 = scmp.ne.s32.totalorder %s286, %s288
      %p295 = scmp.eq.s32.totalorder %s26, 1
      %p296 = por %p294, %p295
      %p297 = scmp.ne.s32.totalorder %s288, %s289
      %p298 = scmp.eq.s32.totalorder %s26, 0
      %p299 = por %p297, %p298
      %p300 = scmp.ne.s32.totalorder %s288, %s289
      %p301 = scmp.eq.s32.totalorder %s27, 1
      %p302 = por %p300, %p301
      %p304 = scmp.ne.s32.totalorder %s289, %s303
      %p305 = scmp.eq.s32.totalorder %s27, 0
      %p306 = por %p304, %p305
      %s308 = sadd.s32 %s307, 1
      %p311 = scmp.eq.s32.totalorder %s21, 1
      %p312 = scmp.ne.s32.totalorder %s307, %s309
      %p313 = scmp.eq.s32.totalorder %s21, 0
      %p314 = por %p312, %p313
      %p315 = scmp.ne.s32.totalorder %s307, %s309
      %p316 = scmp.eq.s32.totalorder %s26, 1
      %p317 = por %p315, %p316
      %p318 = scmp.ne.s32.totalorder %s309, %s310
      %p319 = scmp.eq.s32.totalorder %s26, 0
      %p320 = por %p318, %p319
      %p321 = scmp.ne.s32.totalorder %s309, %s310
      %p322 = scmp.eq.s32.totalorder %s27, 1
      %p323 = por %p321, %p322
      %p325 = scmp.ne.s32.totalorder %s310, %s324
      %p326 = scmp.eq.s32.totalorder %s27, 0
      %p327 = por %p325, %p326
      %s329 = sadd.s32 %s328, 1
      %p332 = scmp.eq.s32.totalorder %s21, 1
      %p333 = scmp.ne.s32.totalorder %s328, %s330
      %p334 = scmp.eq.s32.totalorder %s21, 0
      %p335 = por %p333, %p334
      %p336 = scmp.ne.s32.totalorder %s328, %s330
      %p337 = scmp.eq.s32.totalorder %s26, 1
      %p338 = por %p336, %p337
      %p339 = scmp.ne.s32.totalorder %s330, %s331
      %p340 = scmp.eq.s32.totalorder %s26, 0
      %p341 = por %p339, %p340
      %p342 = scmp.ne.s32.totalorder %s330, %s331
      %p343 = scmp.eq.s32.totalorder %s27, 1
      %p344 = por %p342, %p343
      %p346 = scmp.ne.s32.totalorder %s331, %s345
      %p347 = scmp.eq.s32.totalorder %s27, 0
      %p348 = por %p346, %p347
      %s349 = ssub.s32 %s21, %s28
      %p350 = scmp.eq.s32.totalorder %s349, 0
      %s352 = sadd.s32 %s351, 1
      %s353 = scalar_select %p350, %s351, %s352
      %p356 = pneg %p350
      %p357 = scmp.eq.s32.totalorder %s21, 1
      %p358 = por %p356, %p357
      %p359 = scmp.ne.s32.totalorder %s351, %s354
      %p360 = scmp.eq.s32.totalorder %s21, 0
      %p361 = por %p359, %p360
      %p362 = scmp.ne.s32.totalorder %s351, %s354
      %p363 = scmp.eq.s32.totalorder %s26, 1
      %p364 = por %p362, %p363
      %p365 = scmp.ne.s32.totalorder %s354, %s355
      %p366 = scmp.eq.s32.totalorder %s26, 0
      %p367 = por %p365, %p366
      %p368 = scmp.ne.s32.totalorder %s354, %s355
      %p369 = scmp.eq.s32.totalorder %s27, 1
      %p370 = por %p368, %p369
      %p372 = scmp.ne.s32.totalorder %s355, %s371
      %p373 = scmp.eq.s32.totalorder %s27, 0
      %p374 = por %p372, %p373
      %p375 = scmp.le.s32.totalorder 1, %s21
      %p376 = scmp.lt.s32.totalorder %s21, 3
      %p377 = pnand %p375, %p376
      %p378 = pneg %p377
      // Predicated region
      $region9: #{tpu_custom_call.1} parent=5 // pred_check
        _
      $region10: #{tpu_custom_call.1} parent=5 // pred_check_branch
        %380 = sbr.rel (%p377) target = $region12
      $region11: #{tpu_custom_call.1} parent=5 // pred_region
        %s381 = ssub.s32 %s21, 1
        // Predicated region
        $region13: #{tpu_custom_call.1} parent=11 // pred_check
          %p382 = pneg %p68
        $region14: #{tpu_custom_call.1} parent=11 // pred_check_branch
          %384 = sbr.rel (%p382) target = $region16
        $region15: #{tpu_custom_call.1} parent=11 // pred_region
          _
        $region16: #{tpu_custom_call.1} parent=11 // pred_fallthru
          _
        // Predicated region
        $region17: #{tpu_custom_call.1} parent=11 // pred_check
          %p385 = pneg %p89
        $region18: #{tpu_custom_call.1} parent=11 // pred_check_branch
          %387 = sbr.rel (%p385) target = $region20
        $region19: #{tpu_custom_call.1} parent=11 // pred_region
          _
        $region20: #{tpu_custom_call.1} parent=11 // pred_fallthru
          _
        // Predicated region
        $region21: #{tpu_custom_call.1} parent=11 // pred_check
          %p388 = pneg %p110
        $region22: #{tpu_custom_call.1} parent=11 // pred_check_branch
          %390 = sbr.rel (%p388) target = $region24
        $region23: #{tpu_custom_call.1} parent=11 // pred_region
          _
        $region24: #{tpu_custom_call.1} parent=11 // pred_fallthru
          _
        // Predicated region
        $region25: #{tpu_custom_call.1} parent=11 // pred_check
          %p391 = pneg %p131
        $region26: #{tpu_custom_call.1} parent=11 // pred_check_branch
          %393 = sbr.rel (%p391) target = $region28
        $region27: #{tpu_custom_call.1} parent=11 // pred_region
          _
        $region28: #{tpu_custom_call.1} parent=11 // pred_fallthru
          _
        // Predicated region
        $region29: #{tpu_custom_call.1} parent=11 // pred_check
          %p394 = pneg %p152
        $region30: #{tpu_custom_call.1} parent=11 // pred_check_branch
          %396 = sbr.rel (%p394) target = $region32
        $region31: #{tpu_custom_call.1} parent=11 // pred_region
          _
        $region32: #{tpu_custom_call.1} parent=11 // pred_fallthru
          _
        // Predicated region
        $region33: #{tpu_custom_call.1} parent=11 // pred_check
          %p397 = pneg %p173
        $region34: #{tpu_custom_call.1} parent=11 // pred_check_branch
          %399 = sbr.rel (%p397) target = $region36
        $region35: #{tpu_custom_call.1} parent=11 // pred_region
          _
        $region36: #{tpu_custom_call.1} parent=11 // pred_fallthru
          _
        // Predicated region
        $region37: #{tpu_custom_call.1} parent=11 // pred_check
          %p400 = pneg %p194
        $region38: #{tpu_custom_call.1} parent=11 // pred_check_branch
          %402 = sbr.rel (%p400) target = $region40
        $region39: #{tpu_custom_call.1} parent=11 // pred_region
          _
        $region40: #{tpu_custom_call.1} parent=11 // pred_fallthru
          _
        // Predicated region
        $region41: #{tpu_custom_call.1} parent=11 // pred_check
          %p403 = pneg %p215
        $region42: #{tpu_custom_call.1} parent=11 // pred_check_branch
          %405 = sbr.rel (%p403) target = $region44
        $region43: #{tpu_custom_call.1} parent=11 // pred_region
          _
        $region44: #{tpu_custom_call.1} parent=11 // pred_fallthru
          _
        // Predicated region
        $region45: #{tpu_custom_call.1} parent=11 // pred_check
          %p406 = pneg %p236
        $region46: #{tpu_custom_call.1} parent=11 // pred_check_branch
          %408 = sbr.rel (%p406) target = $region48
        $region47: #{tpu_custom_call.1} parent=11 // pred_region
          _
        $region48: #{tpu_custom_call.1} parent=11 // pred_fallthru
          _
        // Predicated region
        $region49: #{tpu_custom_call.1} parent=11 // pred_check
          %p409 = pneg %p257
        $region50: #{tpu_custom_call.1} parent=11 // pred_check_branch
          %411 = sbr.rel (%p409) target = $region52
        $region51: #{tpu_custom_call.1} parent=11 // pred_region
          _
        $region52: #{tpu_custom_call.1} parent=11 // pred_fallthru
          _
        // Predicated region
        $region53: #{tpu_custom_call.1} parent=11 // pred_check
          %p412 = pneg %p278
        $region54: #{tpu_custom_call.1} parent=11 // pred_check_branch
          %414 = sbr.rel (%p412) target = $region56
        $region55: #{tpu_custom_call.1} parent=11 // pred_region
          _
        $region56: #{tpu_custom_call.1} parent=11 // pred_fallthru
          _
        // Predicated region
        $region57: #{tpu_custom_call.1} parent=11 // pred_check
          %p415 = pneg %p299
        $region58: #{tpu_custom_call.1} parent=11 // pred_check_branch
          %417 = sbr.rel (%p415) target = $region60
        $region59: #{tpu_custom_call.1} parent=11 // pred_region
          _
        $region60: #{tpu_custom_call.1} parent=11 // pred_fallthru
          _
        // Predicated region
        $region61: #{tpu_custom_call.1} parent=11 // pred_check
          %p418 = pneg %p320
        $region62: #{tpu_custom_call.1} parent=11 // pred_check_branch
          %420 = sbr.rel (%p418) target = $region64
        $region63: #{tpu_custom_call.1} parent=11 // pred_region
          _
        $region64: #{tpu_custom_call.1} parent=11 // pred_fallthru
          _
        // Predicated region
        $region65: #{tpu_custom_call.1} parent=11 // pred_check
          %p421 = pneg %p341
        $region66: #{tpu_custom_call.1} parent=11 // pred_check_branch
          %423 = sbr.rel (%p421) target = $region68
        $region67: #{tpu_custom_call.1} parent=11 // pred_region
          _
        $region68: #{tpu_custom_call.1} parent=11 // pred_fallthru
          _
      $region12: #{tpu_custom_call.1} parent=5 // pred_fallthru
        _
      %p424 = scmp.lt.s32.totalorder %s21, 2
      // Predicated region
      $region69: #{tpu_custom_call.1} parent=5 // pred_check
        %p425 = pneg %p424
      $region70: #{tpu_custom_call.1} parent=5 // pred_check_branch
        %427 = sbr.rel (%p425) target = $region72
      $region71: #{tpu_custom_call.1} parent=5 // pred_region
        // Predicated region
        $region73: #{tpu_custom_call.1} parent=71 // pred_check
          %p428 = pneg %p41
        $region74: #{tpu_custom_call.1} parent=71 // pred_check_branch
          %430 = sbr.rel (%p428) target = $region76
        $region75: #{tpu_custom_call.1} parent=71 // pred_region
          %s431 = smul.u32 32, %s21
          %s432 = ssub.s32 63, %s431
          %p433 = scmp.lt.s32.totalorder %s432, 32
          %s434 = scalar_select %p433, %s432, 32
          %s435 = smul.u32 8, %s434
          %p436 = scmp.lt.s32.totalorder %s431, 62
          %s437 = scalar_select %p436, %s431, 62
          %s438 = smul.addr %s437, 8
          %s439 = scalar_lea.vmem %s0, %s438
          %s440 = smul.u32 32, %s21
          %s441 = ssub.s32 63, %s440
          %p442 = scmp.lt.s32.totalorder %s441, 32
          %s443 = scalar_select %p442, %s441, 32
          %s444 = smul.u32 8, %s443
        $region76: #{tpu_custom_call.1} parent=71 // pred_fallthru
          _
      $region72: #{tpu_custom_call.1} parent=5 // pred_fallthru
        _
      %p445 = scmp.le.s32.totalorder 1, %s21
      %p446 = scmp.lt.s32.totalorder %s21, 3
      %p447 = pnand %p445, %p446
      %p448 = pneg %p447
      // Predicated region
      $region77: #{tpu_custom_call.1} parent=5 // pred_check
        _
      $region78: #{tpu_custom_call.1} parent=5 // pred_check_branch
        %450 = sbr.rel (%p447) target = $region80
      $region79: #{tpu_custom_call.1} parent=5 // pred_region
        %s451 = ssub.s32 %s21, 1
        %s452 = smul.u32 32, %s26
        %s453 = ssub.s32 63, %s452
        %p454 = scmp.lt.s32.totalorder %s453, 32
        %s455 = scalar_select %p454, %s453, 32
        %s456 = smul.u32 8, %s455
        %p457 = scmp.lt.s32.totalorder %s452, 62
        %s458 = scalar_select %p457, %s452, 62
        %s459 = smul.addr %s458, 8
        %s460 = scalar_lea.vmem %s0, %s459
        %p461 = pneg %p47
        %p462 = pneg %p44
        %p463 = pneg %p68
        %p464 = pneg %p65
        %p465 = pneg %p89
        %p466 = pneg %p86
        %p467 = pneg %p110
        %p468 = pneg %p107
        %p469 = pneg %p131
        %p470 = pneg %p128
        %p471 = pneg %p152
        %p472 = pneg %p149
        %p473 = pneg %p173
        %p474 = pneg %p170
        %p475 = pneg %p194
        %p476 = pneg %p191
        %p477 = pneg %p215
        %p478 = pneg %p212
        %p479 = pneg %p236
        %p480 = pneg %p233
        %p481 = pneg %p257
        %p482 = pneg %p254
        %p483 = pneg %p278
        %p484 = pneg %p275
        %p485 = pneg %p299
        %p486 = pneg %p296
        %p487 = pneg %p320
        %p488 = pneg %p317
        %p489 = pneg %p341
        %p490 = pneg %p338
        %p491 = pneg %p367
        %p492 = pneg %p364
        %s493 = sand.u32 %s354, 1
        %s494 = sand.u32 %s354, 1
        %s495 = smul.addr %s494, 256
        %s496 = scalar_lea.vmem [#allocation2], %s495
        %s497 = smul.u32 32, %s26
        %s498 = ssub.s32 63, %s497
        %p499 = scmp.lt.s32.totalorder %s498, 32
        %s500 = scalar_select %p499, %s498, 32
        %s501 = smul.u32 8, %s500
        %p502 = scmp.lt.s32.totalorder %s497, 62
        %s503 = scalar_select %p502, %s497, 62
        %s504 = smul.addr %s503, 8
        %s505 = scalar_lea.vmem %s0, %s504
        %s506 = smul.u32 32, %s26
        %s507 = ssub.s32 63, %s506
        %p508 = scmp.lt.s32.totalorder %s507, 32
        %s509 = scalar_select %p508, %s507, 32
        %s510 = smul.u32 8, %s509
        %s511 = smul.u32 32, %s26
        %s512 = ssub.s32 63, %s511
        %p513 = scmp.lt.s32.totalorder %s512, 32
        %s514 = scalar_select %p513, %s512, 32
        %s515 = smul.u32 8, %s514
        %v516 = vld [vmem:[%s505] sm:$0xff]
        %v517 = vld [vmem:[%s505 + $0x8] sm:$0xff]
        %v518 = vld [vmem:[%s505 + $0x10] sm:$0xff]
        %v519 = vld [vmem:[%s505 + $0x18] sm:$0xff]
        %v520 = vld [vmem:[%s505 + $0x20] sm:$0xff]
        %v521 = vld [vmem:[%s505 + $0x28] sm:$0xff]
        %v522 = vld [vmem:[%s505 + $0x30] sm:$0xff]
        %v523 = vld [vmem:[%s505 + $0x38] sm:$0xff]
        %v524 = vld [vmem:[%s505 + $0x40] sm:$0xff]
        %v525 = vld [vmem:[%s505 + $0x48] sm:$0xff]
        %v526 = vld [vmem:[%s505 + $0x50] sm:$0xff]
        %v527 = vld [vmem:[%s505 + $0x58] sm:$0xff]
        %v528 = vld [vmem:[%s505 + $0x60] sm:$0xff]
        %v529 = vld [vmem:[%s505 + $0x68] sm:$0xff]
        %v530 = vld [vmem:[%s505 + $0x70] sm:$0xff]
        %v531 = vld [vmem:[%s505 + $0x78] sm:$0xff]
        %v532 = vld [vmem:[%s505 + $0x80] sm:$0xff]
        %v533 = vld [vmem:[%s505 + $0x88] sm:$0xff]
        %v534 = vld [vmem:[%s505 + $0x90] sm:$0xff]
        %v535 = vld [vmem:[%s505 + $0x98] sm:$0xff]
        %v536 = vld [vmem:[%s505 + $0xa0] sm:$0xff]
        %v537 = vld [vmem:[%s505 + $0xa8] sm:$0xff]
        %v538 = vld [vmem:[%s505 + $0xb0] sm:$0xff]
        %v539 = vld [vmem:[%s505 + $0xb8] sm:$0xff]
        %v540 = vld [vmem:[%s505 + $0xc0] sm:$0xff]
        %v541 = vld [vmem:[%s505 + $0xc8] sm:$0xff]
        %v542 = vld [vmem:[%s505 + $0xd0] sm:$0xff]
        %v543 = vld [vmem:[%s505 + $0xd8] sm:$0xff]
        %v544 = vld [vmem:[%s505 + $0xe0] sm:$0xff]
        %v545 = vld [vmem:[%s505 + $0xe8] sm:$0xff]
        %v546 = vld [vmem:[%s505 + $0xf0] sm:$0xff]
        %v547 = vld [vmem:[%s505 + $0xf8] sm:$0xff]
        %v548 = vld [vmem:[%s3] sm:$0xf]
        %v549 = vld [vmem:[%s4] sm:$0x1]
        %551 = vset.pattern.permute.xlu0 0
        %552 = vperm.xlu0 %551, %v516
        %v553 = vpop.permute.xlu0 %552
        %556 = vset.pattern.permute.xlu0 0
        %557 = vperm.xlu0 %556, %v517
        %v558 = vpop.permute.xlu0 %557
        %561 = vset.pattern.permute.xlu0 0
        %562 = vperm.xlu0 %561, %v518
        %v563 = vpop.permute.xlu0 %562
        %566 = vset.pattern.permute.xlu0 0
        %567 = vperm.xlu0 %566, %v519
        %v568 = vpop.permute.xlu0 %567
        %571 = vset.pattern.permute.xlu0 0
        %572 = vperm.xlu0 %571, %v520
        %v573 = vpop.permute.xlu0 %572
        %576 = vset.pattern.permute.xlu0 0
        %577 = vperm.xlu0 %576, %v521
        %v578 = vpop.permute.xlu0 %577
        %581 = vset.pattern.permute.xlu0 0
        %582 = vperm.xlu0 %581, %v522
        %v583 = vpop.permute.xlu0 %582
        %586 = vset.pattern.permute.xlu0 0
        %587 = vperm.xlu0 %586, %v523
        %v588 = vpop.permute.xlu0 %587
        %591 = vset.pattern.permute.xlu0 0
        %592 = vperm.xlu0 %591, %v524
        %v593 = vpop.permute.xlu0 %592
        %596 = vset.pattern.permute.xlu0 0
        %597 = vperm.xlu0 %596, %v525
        %v598 = vpop.permute.xlu0 %597
        %601 = vset.pattern.permute.xlu0 0
        %602 = vperm.xlu0 %601, %v526
        %v603 = vpop.permute.xlu0 %602
        %606 = vset.pattern.permute.xlu0 0
        %607 = vperm.xlu0 %606, %v527
        %v608 = vpop.permute.xlu0 %607
        %611 = vset.pattern.permute.xlu0 0
        %612 = vperm.xlu0 %611, %v528
        %v613 = vpop.permute.xlu0 %612
        %616 = vset.pattern.permute.xlu0 0
        %617 = vperm.xlu0 %616, %v529
        %v618 = vpop.permute.xlu0 %617
        %621 = vset.pattern.permute.xlu0 0
        %622 = vperm.xlu0 %621, %v530
        %v623 = vpop.permute.xlu0 %622
        %626 = vset.pattern.permute.xlu0 0
        %627 = vperm.xlu0 %626, %v531
        %v628 = vpop.permute.xlu0 %627
        %631 = vset.pattern.permute.xlu0 0
        %632 = vperm.xlu0 %631, %v532
        %v633 = vpop.permute.xlu0 %632
        %636 = vset.pattern.permute.xlu0 0
        %637 = vperm.xlu0 %636, %v533
        %v638 = vpop.permute.xlu0 %637
        %641 = vset.pattern.permute.xlu0 0
        %642 = vperm.xlu0 %641, %v534
        %v643 = vpop.permute.xlu0 %642
        %646 = vset.pattern.permute.xlu0 0
        %647 = vperm.xlu0 %646, %v535
        %v648 = vpop.permute.xlu0 %647
        %651 = vset.pattern.permute.xlu0 0
        %652 = vperm.xlu0 %651, %v536
        %v653 = vpop.permute.xlu0 %652
        %656 = vset.pattern.permute.xlu0 0
        %657 = vperm.xlu0 %656, %v537
        %v658 = vpop.permute.xlu0 %657
        %661 = vset.pattern.permute.xlu0 0
        %662 = vperm.xlu0 %661, %v538
        %v663 = vpop.permute.xlu0 %662
        %666 = vset.pattern.permute.xlu0 0
        %667 = vperm.xlu0 %666, %v539
        %v668 = vpop.permute.xlu0 %667
        %671 = vset.pattern.permute.xlu0 0
        %672 = vperm.xlu0 %671, %v540
        %v673 = vpop.permute.xlu0 %672
        %676 = vset.pattern.permute.xlu0 0
        %677 = vperm.xlu0 %676, %v541
        %v678 = vpop.permute.xlu0 %677
        %681 = vset.pattern.permute.xlu0 0
        %682 = vperm.xlu0 %681, %v542
        %v683 = vpop.permute.xlu0 %682
        %686 = vset.pattern.permute.xlu0 0
        %687 = vperm.xlu0 %686, %v543
        %v688 = vpop.permute.xlu0 %687
        %691 = vset.pattern.permute.xlu0 0
        %692 = vperm.xlu0 %691, %v544
        %v693 = vpop.permute.xlu0 %692
        %696 = vset.pattern.permute.xlu0 0
        %697 = vperm.xlu0 %696, %v545
        %v698 = vpop.permute.xlu0 %697
        %701 = vset.pattern.permute.xlu0 0
        %702 = vperm.xlu0 %701, %v546
        %v703 = vpop.permute.xlu0 %702
        %706 = vset.pattern.permute.xlu0 0
        %707 = vperm.xlu0 %706, %v547
        %v708 = vpop.permute.xlu0 %707
        %v710 = vperm.slane %v548, 0
        %v711 = vmul.f32 %v553, %v710
        %v712 = vmul.f32 %v558, %v710
        %v713 = vmul.f32 %v563, %v710
        %v714 = vmul.f32 %v568, %v710
        %v715 = vmul.f32 %v573, %v710
        %v716 = vmul.f32 %v578, %v710
        %v717 = vmul.f32 %v583, %v710
        %v718 = vmul.f32 %v588, %v710
        %v719 = vmul.f32 %v593, %v710
        %v720 = vmul.f32 %v598, %v710
        %v721 = vmul.f32 %v603, %v710
        %v722 = vmul.f32 %v608, %v710
        %v723 = vmul.f32 %v613, %v710
        %v724 = vmul.f32 %v618, %v710
        %v725 = vmul.f32 %v623, %v710
        %v726 = vmul.f32 %v628, %v710
        %v727 = vmul.f32 %v633, %v710
        %v728 = vmul.f32 %v638, %v710
        %v729 = vmul.f32 %v643, %v710
        %v730 = vmul.f32 %v648, %v710
        %v731 = vmul.f32 %v653, %v710
        %v732 = vmul.f32 %v658, %v710
        %v733 = vmul.f32 %v663, %v710
        %v734 = vmul.f32 %v668, %v710
        %v735 = vmul.f32 %v673, %v710
        %v736 = vmul.f32 %v678, %v710
        %v737 = vmul.f32 %v683, %v710
        %v738 = vmul.f32 %v688, %v710
        %v739 = vmul.f32 %v693, %v710
        %v740 = vmul.f32 %v698, %v710
        %v741 = vmul.f32 %v703, %v710
        %v742 = vmul.f32 %v708, %v710
        %v744 = vperm.slane %v549, 0
        %v746 = vadd.f32 %v744, %v711
        %v747 = vadd.f32 %v744, %v712
        %v748 = vadd.f32 %v744, %v713
        %v749 = vadd.f32 %v744, %v714
        %v750 = vadd.f32 %v744, %v715
        %v751 = vadd.f32 %v744, %v716
        %v752 = vadd.f32 %v744, %v717
        %v753 = vadd.f32 %v744, %v718
        %v754 = vadd.f32 %v744, %v719
        %v755 = vadd.f32 %v744, %v720
        %v756 = vadd.f32 %v744, %v721
        %v757 = vadd.f32 %v744, %v722
        %v758 = vadd.f32 %v744, %v723
        %v759 = vadd.f32 %v744, %v724
        %v760 = vadd.f32 %v744, %v725
        %v761 = vadd.f32 %v744, %v726
        %v762 = vadd.f32 %v744, %v727
        %v763 = vadd.f32 %v744, %v728
        %v764 = vadd.f32 %v744, %v729
        %v765 = vadd.f32 %v744, %v730
        %v766 = vadd.f32 %v744, %v731
        %v767 = vadd.f32 %v744, %v732
        %v768 = vadd.f32 %v744, %v733
        %v769 = vadd.f32 %v744, %v734
        %v770 = vadd.f32 %v744, %v735
        %v771 = vadd.f32 %v744, %v736
        %v772 = vadd.f32 %v744, %v737
        %v773 = vadd.f32 %v744, %v738
        %v774 = vadd.f32 %v744, %v739
        %v775 = vadd.f32 %v744, %v740
        %v776 = vadd.f32 %v744, %v741
        %v777 = vadd.f32 %v744, %v742
        %778 = vset.pattern.permute.xlu0 1
        %779 = vperm.xlu0 %778, %v516
        %v780 = vpop.permute.xlu0 %779
        %782 = vset.pattern.permute.xlu0 1
        %783 = vperm.xlu0 %782, %v517
        %v784 = vpop.permute.xlu0 %783
        %786 = vset.pattern.permute.xlu0 1
        %787 = vperm.xlu0 %786, %v518
        %v788 = vpop.permute.xlu0 %787
        %790 = vset.pattern.permute.xlu0 1
        %791 = vperm.xlu0 %790, %v519
        %v792 = vpop.permute.xlu0 %791
        %794 = vset.pattern.permute.xlu0 1
        %795 = vperm.xlu0 %794, %v520
        %v796 = vpop.permute.xlu0 %795
        %798 = vset.pattern.permute.xlu0 1
        %799 = vperm.xlu0 %798, %v521
        %v800 = vpop.permute.xlu0 %799
        %802 = vset.pattern.permute.xlu0 1
        %803 = vperm.xlu0 %802, %v522
        %v804 = vpop.permute.xlu0 %803
        %806 = vset.pattern.permute.xlu0 1
        %807 = vperm.xlu0 %806, %v523
        %v808 = vpop.permute.xlu0 %807
        %810 = vset.pattern.permute.xlu0 1
        %811 = vperm.xlu0 %810, %v524
        %v812 = vpop.permute.xlu0 %811
        %814 = vset.pattern.permute.xlu0 1
        %815 = vperm.xlu0 %814, %v525
        %v816 = vpop.permute.xlu0 %815
        %818 = vset.pattern.permute.xlu0 1
        %819 = vperm.xlu0 %818, %v526
        %v820 = vpop.permute.xlu0 %819
        %822 = vset.pattern.permute.xlu0 1
        %823 = vperm.xlu0 %822, %v527
        %v824 = vpop.permute.xlu0 %823
        %826 = vset.pattern.permute.xlu0 1
        %827 = vperm.xlu0 %826, %v528
        %v828 = vpop.permute.xlu0 %827
        %830 = vset.pattern.permute.xlu0 1
        %831 = vperm.xlu0 %830, %v529
        %v832 = vpop.permute.xlu0 %831
        %834 = vset.pattern.permute.xlu0 1
        %835 = vperm.xlu0 %834, %v530
        %v836 = vpop.permute.xlu0 %835
        %838 = vset.pattern.permute.xlu0 1
        %839 = vperm.xlu0 %838, %v531
        %v840 = vpop.permute.xlu0 %839
        %842 = vset.pattern.permute.xlu0 1
        %843 = vperm.xlu0 %842, %v532
        %v844 = vpop.permute.xlu0 %843
        %846 = vset.pattern.permute.xlu0 1
        %847 = vperm.xlu0 %846, %v533
        %v848 = vpop.permute.xlu0 %847
        %850 = vset.pattern.permute.xlu0 1
        %851 = vperm.xlu0 %850, %v534
        %v852 = vpop.permute.xlu0 %851
        %854 = vset.pattern.permute.xlu0 1
        %855 = vperm.xlu0 %854, %v535
        %v856 = vpop.permute.xlu0 %855
        %858 = vset.pattern.permute.xlu0 1
        %859 = vperm.xlu0 %858, %v536
        %v860 = vpop.permute.xlu0 %859
        %862 = vset.pattern.permute.xlu0 1
        %863 = vperm.xlu0 %862, %v537
        %v864 = vpop.permute.xlu0 %863
        %866 = vset.pattern.permute.xlu0 1
        %867 = vperm.xlu0 %866, %v538
        %v868 = vpop.permute.xlu0 %867
        %870 = vset.pattern.permute.xlu0 1
        %871 = vperm.xlu0 %870, %v539
        %v872 = vpop.permute.xlu0 %871
        %874 = vset.pattern.permute.xlu0 1
        %875 = vperm.xlu0 %874, %v540
        %v876 = vpop.permute.xlu0 %875
        %878 = vset.pattern.permute.xlu0 1
        %879 = vperm.xlu0 %878, %v541
        %v880 = vpop.permute.xlu0 %879
        %882 = vset.pattern.permute.xlu0 1
        %883 = vperm.xlu0 %882, %v542
        %v884 = vpop.permute.xlu0 %883
        %886 = vset.pattern.permute.xlu0 1
        %887 = vperm.xlu0 %886, %v543
        %v888 = vpop.permute.xlu0 %887
        %890 = vset.pattern.permute.xlu0 1
        %891 = vperm.xlu0 %890, %v544
        %v892 = vpop.permute.xlu0 %891
        %894 = vset.pattern.permute.xlu0 1
        %895 = vperm.xlu0 %894, %v545
        %v896 = vpop.permute.xlu0 %895
        %898 = vset.pattern.permute.xlu0 1
        %899 = vperm.xlu0 %898, %v546
        %v900 = vpop.permute.xlu0 %899
        %902 = vset.pattern.permute.xlu0 1
        %903 = vperm.xlu0 %902, %v547
        %v904 = vpop.permute.xlu0 %903
        %v906 = vperm.slane %v548, 1
        %v907 = vmul.f32 %v780, %v906
        %v908 = vmul.f32 %v784, %v906
        %v909 = vmul.f32 %v788, %v906
        %v910 = vmul.f32 %v792, %v906
        %v911 = vmul.f32 %v796, %v906
        %v912 = vmul.f32 %v800, %v906
        %v913 = vmul.f32 %v804, %v906
        %v914 = vmul.f32 %v808, %v906
        %v915 = vmul.f32 %v812, %v906
        %v916 = vmul.f32 %v816, %v906
        %v917 = vmul.f32 %v820, %v906
        %v918 = vmul.f32 %v824, %v906
        %v919 = vmul.f32 %v828, %v906
        %v920 = vmul.f32 %v832, %v906
        %v921 = vmul.f32 %v836, %v906
        %v922 = vmul.f32 %v840, %v906
        %v923 = vmul.f32 %v844, %v906
        %v924 = vmul.f32 %v848, %v906
        %v925 = vmul.f32 %v852, %v906
        %v926 = vmul.f32 %v856, %v906
        %v927 = vmul.f32 %v860, %v906
        %v928 = vmul.f32 %v864, %v906
        %v929 = vmul.f32 %v868, %v906
        %v930 = vmul.f32 %v872, %v906
        %v931 = vmul.f32 %v876, %v906
        %v932 = vmul.f32 %v880, %v906
        %v933 = vmul.f32 %v884, %v906
        %v934 = vmul.f32 %v888, %v906
        %v935 = vmul.f32 %v892, %v906
        %v936 = vmul.f32 %v896, %v906
        %v937 = vmul.f32 %v900, %v906
        %v938 = vmul.f32 %v904, %v906
        %v939 = vadd.f32 %v746, %v907
        %v940 = vadd.f32 %v747, %v908
        %v941 = vadd.f32 %v748, %v909
        %v942 = vadd.f32 %v749, %v910
        %v943 = vadd.f32 %v750, %v911
        %v944 = vadd.f32 %v751, %v912
        %v945 = vadd.f32 %v752, %v913
        %v946 = vadd.f32 %v753, %v914
        %v947 = vadd.f32 %v754, %v915
        %v948 = vadd.f32 %v755, %v916
        %v949 = vadd.f32 %v756, %v917
        %v950 = vadd.f32 %v757, %v918
        %v951 = vadd.f32 %v758, %v919
        %v952 = vadd.f32 %v759, %v920
        %v953 = vadd.f32 %v760, %v921
        %v954 = vadd.f32 %v761, %v922
        %v955 = vadd.f32 %v762, %v923
        %v956 = vadd.f32 %v763, %v924
        %v957 = vadd.f32 %v764, %v925
        %v958 = vadd.f32 %v765, %v926
        %v959 = vadd.f32 %v766, %v927
        %v960 = vadd.f32 %v767, %v928
        %v961 = vadd.f32 %v768, %v929
        %v962 = vadd.f32 %v769, %v930
        %v963 = vadd.f32 %v770, %v931
        %v964 = vadd.f32 %v771, %v932
        %v965 = vadd.f32 %v772, %v933
        %v966 = vadd.f32 %v773, %v934
        %v967 = vadd.f32 %v774, %v935
        %v968 = vadd.f32 %v775, %v936
        %v969 = vadd.f32 %v776, %v937
        %v970 = vadd.f32 %v777, %v938
        %971 = vset.pattern.permute.xlu0 2
        %972 = vperm.xlu0 %971, %v516
        %v973 = vpop.permute.xlu0 %972
        %975 = vset.pattern.permute.xlu0 2
        %976 = vperm.xlu0 %975, %v517
        %v977 = vpop.permute.xlu0 %976
        %979 = vset.pattern.permute.xlu0 2
        %980 = vperm.xlu0 %979, %v518
        %v981 = vpop.permute.xlu0 %980
        %983 = vset.pattern.permute.xlu0 2
        %984 = vperm.xlu0 %983, %v519
        %v985 = vpop.permute.xlu0 %984
        %987 = vset.pattern.permute.xlu0 2
        %988 = vperm.xlu0 %987, %v520
        %v989 = vpop.permute.xlu0 %988
        %991 = vset.pattern.permute.xlu0 2
        %992 = vperm.xlu0 %991, %v521
        %v993 = vpop.permute.xlu0 %992
        %995 = vset.pattern.permute.xlu0 2
        %996 = vperm.xlu0 %995, %v522
        %v997 = vpop.permute.xlu0 %996
        %999 = vset.pattern.permute.xlu0 2
        %1000 = vperm.xlu0 %999, %v523
        %v1001 = vpop.permute.xlu0 %1000
        %1003 = vset.pattern.permute.xlu0 2
        %1004 = vperm.xlu0 %1003, %v524
        %v1005 = vpop.permute.xlu0 %1004
        %1007 = vset.pattern.permute.xlu0 2
        %1008 = vperm.xlu0 %1007, %v525
        %v1009 = vpop.permute.xlu0 %1008
        %1011 = vset.pattern.permute.xlu0 2
        %1012 = vperm.xlu0 %1011, %v526
        %v1013 = vpop.permute.xlu0 %1012
        %1015 = vset.pattern.permute.xlu0 2
        %1016 = vperm.xlu0 %1015, %v527
        %v1017 = vpop.permute.xlu0 %1016
        %1019 = vset.pattern.permute.xlu0 2
        %1020 = vperm.xlu0 %1019, %v528
        %v1021 = vpop.permute.xlu0 %1020
        %1023 = vset.pattern.permute.xlu0 2
        %1024 = vperm.xlu0 %1023, %v529
        %v1025 = vpop.permute.xlu0 %1024
        %1027 = vset.pattern.permute.xlu0 2
        %1028 = vperm.xlu0 %1027, %v530
        %v1029 = vpop.permute.xlu0 %1028
        %1031 = vset.pattern.permute.xlu0 2
        %1032 = vperm.xlu0 %1031, %v531
        %v1033 = vpop.permute.xlu0 %1032
        %1035 = vset.pattern.permute.xlu0 2
        %1036 = vperm.xlu0 %1035, %v532
        %v1037 = vpop.permute.xlu0 %1036
        %1039 = vset.pattern.permute.xlu0 2
        %1040 = vperm.xlu0 %1039, %v533
        %v1041 = vpop.permute.xlu0 %1040
        %1043 = vset.pattern.permute.xlu0 2
        %1044 = vperm.xlu0 %1043, %v534
        %v1045 = vpop.permute.xlu0 %1044
        %1047 = vset.pattern.permute.xlu0 2
        %1048 = vperm.xlu0 %1047, %v535
        %v1049 = vpop.permute.xlu0 %1048
        %1051 = vset.pattern.permute.xlu0 2
        %1052 = vperm.xlu0 %1051, %v536
        %v1053 = vpop.permute.xlu0 %1052
        %1055 = vset.pattern.permute.xlu0 2
        %1056 = vperm.xlu0 %1055, %v537
        %v1057 = vpop.permute.xlu0 %1056
        %1059 = vset.pattern.permute.xlu0 2
        %1060 = vperm.xlu0 %1059, %v538
        %v1061 = vpop.permute.xlu0 %1060
        %1063 = vset.pattern.permute.xlu0 2
        %1064 = vperm.xlu0 %1063, %v539
        %v1065 = vpop.permute.xlu0 %1064
        %1067 = vset.pattern.permute.xlu0 2
        %1068 = vperm.xlu0 %1067, %v540
        %v1069 = vpop.permute.xlu0 %1068
        %1071 = vset.pattern.permute.xlu0 2
        %1072 = vperm.xlu0 %1071, %v541
        %v1073 = vpop.permute.xlu0 %1072
        %1075 = vset.pattern.permute.xlu0 2
        %1076 = vperm.xlu0 %1075, %v542
        %v1077 = vpop.permute.xlu0 %1076
        %1079 = vset.pattern.permute.xlu0 2
        %1080 = vperm.xlu0 %1079, %v543
        %v1081 = vpop.permute.xlu0 %1080
        %1083 = vset.pattern.permute.xlu0 2
        %1084 = vperm.xlu0 %1083, %v544
        %v1085 = vpop.permute.xlu0 %1084
        %1087 = vset.pattern.permute.xlu0 2
        %1088 = vperm.xlu0 %1087, %v545
        %v1089 = vpop.permute.xlu0 %1088
        %1091 = vset.pattern.permute.xlu0 2
        %1092 = vperm.xlu0 %1091, %v546
        %v1093 = vpop.permute.xlu0 %1092
        %1095 = vset.pattern.permute.xlu0 2
        %1096 = vperm.xlu0 %1095, %v547
        %v1097 = vpop.permute.xlu0 %1096
        %v1099 = vperm.slane %v548, 2
        %v1100 = vmul.f32 %v973, %v1099
        %v1101 = vmul.f32 %v977, %v1099
        %v1102 = vmul.f32 %v981, %v1099
        %v1103 = vmul.f32 %v985, %v1099
        %v1104 = vmul.f32 %v989, %v1099
        %v1105 = vmul.f32 %v993, %v1099
        %v1106 = vmul.f32 %v997, %v1099
        %v1107 = vmul.f32 %v1001, %v1099
        %v1108 = vmul.f32 %v1005, %v1099
        %v1109 = vmul.f32 %v1009, %v1099
        %v1110 = vmul.f32 %v1013, %v1099
        %v1111 = vmul.f32 %v1017, %v1099
        %v1112 = vmul.f32 %v1021, %v1099
        %v1113 = vmul.f32 %v1025, %v1099
        %v1114 = vmul.f32 %v1029, %v1099
        %v1115 = vmul.f32 %v1033, %v1099
        %v1116 = vmul.f32 %v1037, %v1099
        %v1117 = vmul.f32 %v1041, %v1099
        %v1118 = vmul.f32 %v1045, %v1099
        %v1119 = vmul.f32 %v1049, %v1099
        %v1120 = vmul.f32 %v1053, %v1099
        %v1121 = vmul.f32 %v1057, %v1099
        %v1122 = vmul.f32 %v1061, %v1099
        %v1123 = vmul.f32 %v1065, %v1099
        %v1124 = vmul.f32 %v1069, %v1099
        %v1125 = vmul.f32 %v1073, %v1099
        %v1126 = vmul.f32 %v1077, %v1099
        %v1127 = vmul.f32 %v1081, %v1099
        %v1128 = vmul.f32 %v1085, %v1099
        %v1129 = vmul.f32 %v1089, %v1099
        %v1130 = vmul.f32 %v1093, %v1099
        %v1131 = vmul.f32 %v1097, %v1099
        %v1132 = vadd.f32 %v939, %v1100
        %v1133 = vadd.f32 %v940, %v1101
        %v1134 = vadd.f32 %v941, %v1102
        %v1135 = vadd.f32 %v942, %v1103
        %v1136 = vadd.f32 %v943, %v1104
        %v1137 = vadd.f32 %v944, %v1105
        %v1138 = vadd.f32 %v945, %v1106
        %v1139 = vadd.f32 %v946, %v1107
        %v1140 = vadd.f32 %v947, %v1108
        %v1141 = vadd.f32 %v948, %v1109
        %v1142 = vadd.f32 %v949, %v1110
        %v1143 = vadd.f32 %v950, %v1111
        %v1144 = vadd.f32 %v951, %v1112
        %v1145 = vadd.f32 %v952, %v1113
        %v1146 = vadd.f32 %v953, %v1114
        %v1147 = vadd.f32 %v954, %v1115
        %v1148 = vadd.f32 %v955, %v1116
        %v1149 = vadd.f32 %v956, %v1117
        %v1150 = vadd.f32 %v957, %v1118
        %v1151 = vadd.f32 %v958, %v1119
        %v1152 = vadd.f32 %v959, %v1120
        %v1153 = vadd.f32 %v960, %v1121
        %v1154 = vadd.f32 %v961, %v1122
        %v1155 = vadd.f32 %v962, %v1123
        %v1156 = vadd.f32 %v963, %v1124
        %v1157 = vadd.f32 %v964, %v1125
        %v1158 = vadd.f32 %v965, %v1126
        %v1159 = vadd.f32 %v966, %v1127
        %v1160 = vadd.f32 %v967, %v1128
        %v1161 = vadd.f32 %v968, %v1129
        %v1162 = vadd.f32 %v969, %v1130
        %v1163 = vadd.f32 %v970, %v1131
        %1164 = vset.pattern.permute.xlu0 3
        %1165 = vperm.xlu0 %1164, %v516
        %v1166 = vpop.permute.xlu0 %1165
        %1168 = vset.pattern.permute.xlu0 3
        %1169 = vperm.xlu0 %1168, %v517
        %v1170 = vpop.permute.xlu0 %1169
        %1172 = vset.pattern.permute.xlu0 3
        %1173 = vperm.xlu0 %1172, %v518
        %v1174 = vpop.permute.xlu0 %1173
        %1176 = vset.pattern.permute.xlu0 3
        %1177 = vperm.xlu0 %1176, %v519
        %v1178 = vpop.permute.xlu0 %1177
        %1180 = vset.pattern.permute.xlu0 3
        %1181 = vperm.xlu0 %1180, %v520
        %v1182 = vpop.permute.xlu0 %1181
        %1184 = vset.pattern.permute.xlu0 3
        %1185 = vperm.xlu0 %1184, %v521
        %v1186 = vpop.permute.xlu0 %1185
        %1188 = vset.pattern.permute.xlu0 3
        %1189 = vperm.xlu0 %1188, %v522
        %v1190 = vpop.permute.xlu0 %1189
        %1192 = vset.pattern.permute.xlu0 3
        %1193 = vperm.xlu0 %1192, %v523
        %v1194 = vpop.permute.xlu0 %1193
        %1196 = vset.pattern.permute.xlu0 3
        %1197 = vperm.xlu0 %1196, %v524
        %v1198 = vpop.permute.xlu0 %1197
        %1200 = vset.pattern.permute.xlu0 3
        %1201 = vperm.xlu0 %1200, %v525
        %v1202 = vpop.permute.xlu0 %1201
        %1204 = vset.pattern.permute.xlu0 3
        %1205 = vperm.xlu0 %1204, %v526
        %v1206 = vpop.permute.xlu0 %1205
        %1208 = vset.pattern.permute.xlu0 3
        %1209 = vperm.xlu0 %1208, %v527
        %v1210 = vpop.permute.xlu0 %1209
        %1212 = vset.pattern.permute.xlu0 3
        %1213 = vperm.xlu0 %1212, %v528
        %v1214 = vpop.permute.xlu0 %1213
        %1216 = vset.pattern.permute.xlu0 3
        %1217 = vperm.xlu0 %1216, %v529
        %v1218 = vpop.permute.xlu0 %1217
        %1220 = vset.pattern.permute.xlu0 3
        %1221 = vperm.xlu0 %1220, %v530
        %v1222 = vpop.permute.xlu0 %1221
        %1224 = vset.pattern.permute.xlu0 3
        %1225 = vperm.xlu0 %1224, %v531
        %v1226 = vpop.permute.xlu0 %1225
        %1228 = vset.pattern.permute.xlu0 3
        %1229 = vperm.xlu0 %1228, %v532
        %v1230 = vpop.permute.xlu0 %1229
        %1232 = vset.pattern.permute.xlu0 3
        %1233 = vperm.xlu0 %1232, %v533
        %v1234 = vpop.permute.xlu0 %1233
        %1236 = vset.pattern.permute.xlu0 3
        %1237 = vperm.xlu0 %1236, %v534
        %v1238 = vpop.permute.xlu0 %1237
        %1240 = vset.pattern.permute.xlu0 3
        %1241 = vperm.xlu0 %1240, %v535
        %v1242 = vpop.permute.xlu0 %1241
        %1244 = vset.pattern.permute.xlu0 3
        %1245 = vperm.xlu0 %1244, %v536
        %v1246 = vpop.permute.xlu0 %1245
        %1248 = vset.pattern.permute.xlu0 3
        %1249 = vperm.xlu0 %1248, %v537
        %v1250 = vpop.permute.xlu0 %1249
        %1252 = vset.pattern.permute.xlu0 3
        %1253 = vperm.xlu0 %1252, %v538
        %v1254 = vpop.permute.xlu0 %1253
        %1256 = vset.pattern.permute.xlu0 3
        %1257 = vperm.xlu0 %1256, %v539
        %v1258 = vpop.permute.xlu0 %1257
        %1260 = vset.pattern.permute.xlu0 3
        %1261 = vperm.xlu0 %1260, %v540
        %v1262 = vpop.permute.xlu0 %1261
        %1264 = vset.pattern.permute.xlu0 3
        %1265 = vperm.xlu0 %1264, %v541
        %v1266 = vpop.permute.xlu0 %1265
        %1268 = vset.pattern.permute.xlu0 3
        %1269 = vperm.xlu0 %1268, %v542
        %v1270 = vpop.permute.xlu0 %1269
        %1272 = vset.pattern.permute.xlu0 3
        %1273 = vperm.xlu0 %1272, %v543
        %v1274 = vpop.permute.xlu0 %1273
        %1276 = vset.pattern.permute.xlu0 3
        %1277 = vperm.xlu0 %1276, %v544
        %v1278 = vpop.permute.xlu0 %1277
        %1280 = vset.pattern.permute.xlu0 3
        %1281 = vperm.xlu0 %1280, %v545
        %v1282 = vpop.permute.xlu0 %1281
        %1284 = vset.pattern.permute.xlu0 3
        %1285 = vperm.xlu0 %1284, %v546
        %v1286 = vpop.permute.xlu0 %1285
        %1288 = vset.pattern.permute.xlu0 3
        %1289 = vperm.xlu0 %1288, %v547
        %v1290 = vpop.permute.xlu0 %1289
        %v1292 = vperm.slane %v548, 3
        %v1293 = vmul.f32 %v1166, %v1292
        %v1294 = vmul.f32 %v1170, %v1292
        %v1295 = vmul.f32 %v1174, %v1292
        %v1296 = vmul.f32 %v1178, %v1292
        %v1297 = vmul.f32 %v1182, %v1292
        %v1298 = vmul.f32 %v1186, %v1292
        %v1299 = vmul.f32 %v1190, %v1292
        %v1300 = vmul.f32 %v1194, %v1292
        %v1301 = vmul.f32 %v1198, %v1292
        %v1302 = vmul.f32 %v1202, %v1292
        %v1303 = vmul.f32 %v1206, %v1292
        %v1304 = vmul.f32 %v1210, %v1292
        %v1305 = vmul.f32 %v1214, %v1292
        %v1306 = vmul.f32 %v1218, %v1292
        %v1307 = vmul.f32 %v1222, %v1292
        %v1308 = vmul.f32 %v1226, %v1292
        %v1309 = vmul.f32 %v1230, %v1292
        %v1310 = vmul.f32 %v1234, %v1292
        %v1311 = vmul.f32 %v1238, %v1292
        %v1312 = vmul.f32 %v1242, %v1292
        %v1313 = vmul.f32 %v1246, %v1292
        %v1314 = vmul.f32 %v1250, %v1292
        %v1315 = vmul.f32 %v1254, %v1292
        %v1316 = vmul.f32 %v1258, %v1292
        %v1317 = vmul.f32 %v1262, %v1292
        %v1318 = vmul.f32 %v1266, %v1292
        %v1319 = vmul.f32 %v1270, %v1292
        %v1320 = vmul.f32 %v1274, %v1292
        %v1321 = vmul.f32 %v1278, %v1292
        %v1322 = vmul.f32 %v1282, %v1292
        %v1323 = vmul.f32 %v1286, %v1292
        %v1324 = vmul.f32 %v1290, %v1292
        %v1325 = vadd.f32 %v1132, %v1293
        %v1326 = vadd.f32 %v1133, %v1294
        %v1327 = vadd.f32 %v1134, %v1295
        %v1328 = vadd.f32 %v1135, %v1296
        %v1329 = vadd.f32 %v1136, %v1297
        %v1330 = vadd.f32 %v1137, %v1298
        %v1331 = vadd.f32 %v1138, %v1299
        %v1332 = vadd.f32 %v1139, %v1300
        %v1333 = vadd.f32 %v1140, %v1301
        %v1334 = vadd.f32 %v1141, %v1302
        %v1335 = vadd.f32 %v1142, %v1303
        %v1336 = vadd.f32 %v1143, %v1304
        %v1337 = vadd.f32 %v1144, %v1305
        %v1338 = vadd.f32 %v1145, %v1306
        %v1339 = vadd.f32 %v1146, %v1307
        %v1340 = vadd.f32 %v1147, %v1308
        %v1341 = vadd.f32 %v1148, %v1309
        %v1342 = vadd.f32 %v1149, %v1310
        %v1343 = vadd.f32 %v1150, %v1311
        %v1344 = vadd.f32 %v1151, %v1312
        %v1345 = vadd.f32 %v1152, %v1313
        %v1346 = vadd.f32 %v1153, %v1314
        %v1347 = vadd.f32 %v1154, %v1315
        %v1348 = vadd.f32 %v1155, %v1316
        %v1349 = vadd.f32 %v1156, %v1317
        %v1350 = vadd.f32 %v1157, %v1318
        %v1351 = vadd.f32 %v1158, %v1319
        %v1352 = vadd.f32 %v1159, %v1320
        %v1353 = vadd.f32 %v1160, %v1321
        %v1354 = vadd.f32 %v1161, %v1322
        %v1355 = vadd.f32 %v1162, %v1323
        %v1356 = vadd.f32 %v1163, %v1324
        %vm1357 = vcmp.gt.f32.partialorder %v1325, 0.0
        %vm1358 = vcmp.gt.f32.partialorder %v1326, 0.0
        %vm1359 = vcmp.gt.f32.partialorder %v1327, 0.0
        %vm1360 = vcmp.gt.f32.partialorder %v1328, 0.0
        %vm1361 = vcmp.gt.f32.partialorder %v1329, 0.0
        %vm1362 = vcmp.gt.f32.partialorder %v1330, 0.0
        %vm1363 = vcmp.gt.f32.partialorder %v1331, 0.0
        %vm1364 = vcmp.gt.f32.partialorder %v1332, 0.0
        %vm1365 = vcmp.gt.f32.partialorder %v1333, 0.0
        %vm1366 = vcmp.gt.f32.partialorder %v1334, 0.0
        %vm1367 = vcmp.gt.f32.partialorder %v1335, 0.0
        %vm1368 = vcmp.gt.f32.partialorder %v1336, 0.0
        %vm1369 = vcmp.gt.f32.partialorder %v1337, 0.0
        %vm1370 = vcmp.gt.f32.partialorder %v1338, 0.0
        %vm1371 = vcmp.gt.f32.partialorder %v1339, 0.0
        %vm1372 = vcmp.gt.f32.partialorder %v1340, 0.0
        %vm1373 = vcmp.gt.f32.partialorder %v1341, 0.0
        %vm1374 = vcmp.gt.f32.partialorder %v1342, 0.0
        %vm1375 = vcmp.gt.f32.partialorder %v1343, 0.0
        %vm1376 = vcmp.gt.f32.partialorder %v1344, 0.0
        %vm1377 = vcmp.gt.f32.partialorder %v1345, 0.0
        %vm1378 = vcmp.gt.f32.partialorder %v1346, 0.0
        %vm1379 = vcmp.gt.f32.partialorder %v1347, 0.0
        %vm1380 = vcmp.gt.f32.partialorder %v1348, 0.0
        %vm1381 = vcmp.gt.f32.partialorder %v1349, 0.0
        %vm1382 = vcmp.gt.f32.partialorder %v1350, 0.0
        %vm1383 = vcmp.gt.f32.partialorder %v1351, 0.0
        %vm1384 = vcmp.gt.f32.partialorder %v1352, 0.0
        %vm1385 = vcmp.gt.f32.partialorder %v1353, 0.0
        %vm1386 = vcmp.gt.f32.partialorder %v1354, 0.0
        %vm1387 = vcmp.gt.f32.partialorder %v1355, 0.0
        %vm1388 = vcmp.gt.f32.partialorder %v1356, 0.0
        %v1389 = vmul.f32 %v1325, 1.442695
        %v1390 = vpow.pop %v1389
        %v1391 = vmul.f32 %v1326, 1.442695
        %v1392 = vpow.pop %v1391
        %v1393 = vmul.f32 %v1327, 1.442695
        %v1394 = vpow.pop %v1393
        %v1395 = vmul.f32 %v1328, 1.442695
        %v1396 = vpow.pop %v1395
        %v1397 = vmul.f32 %v1329, 1.442695
        %v1398 = vpow.pop %v1397
        %v1399 = vmul.f32 %v1330, 1.442695
        %v1400 = vpow.pop %v1399
        %v1401 = vmul.f32 %v1331, 1.442695
        %v1402 = vpow.pop %v1401
        %v1403 = vmul.f32 %v1332, 1.442695
        %v1404 = vpow.pop %v1403
        %v1405 = vmul.f32 %v1333, 1.442695
        %v1406 = vpow.pop %v1405
        %v1407 = vmul.f32 %v1334, 1.442695
        %v1408 = vpow.pop %v1407
        %v1409 = vmul.f32 %v1335, 1.442695
        %v1410 = vpow.pop %v1409
        %v1411 = vmul.f32 %v1336, 1.442695
        %v1412 = vpow.pop %v1411
        %v1413 = vmul.f32 %v1337, 1.442695
        %v1414 = vpow.pop %v1413
        %v1415 = vmul.f32 %v1338, 1.442695
        %v1416 = vpow.pop %v1415
        %v1417 = vmul.f32 %v1339, 1.442695
        %v1418 = vpow.pop %v1417
        %v1419 = vmul.f32 %v1340, 1.442695
        %v1420 = vpow.pop %v1419
        %v1421 = vmul.f32 %v1341, 1.442695
        %v1422 = vpow.pop %v1421
        %v1423 = vmul.f32 %v1342, 1.442695
        %v1424 = vpow.pop %v1423
        %v1425 = vmul.f32 %v1343, 1.442695
        %v1426 = vpow.pop %v1425
        %v1427 = vmul.f32 %v1344, 1.442695
        %v1428 = vpow.pop %v1427
        %v1429 = vmul.f32 %v1345, 1.442695
        %v1430 = vpow.pop %v1429
        %v1431 = vmul.f32 %v1346, 1.442695
        %v1432 = vpow.pop %v1431
        %v1433 = vmul.f32 %v1347, 1.442695
        %v1434 = vpow.pop %v1433
        %v1435 = vmul.f32 %v1348, 1.442695
        %v1436 = vpow.pop %v1435
        %v1437 = vmul.f32 %v1349, 1.442695
        %v1438 = vpow.pop %v1437
        %v1439 = vmul.f32 %v1350, 1.442695
        %v1440 = vpow.pop %v1439
        %v1441 = vmul.f32 %v1351, 1.442695
        %v1442 = vpow.pop %v1441
        %v1443 = vmul.f32 %v1352, 1.442695
        %v1444 = vpow.pop %v1443
        %v1445 = vmul.f32 %v1353, 1.442695
        %v1446 = vpow.pop %v1445
        %v1447 = vmul.f32 %v1354, 1.442695
        %v1448 = vpow.pop %v1447
        %v1449 = vmul.f32 %v1355, 1.442695
        %v1450 = vpow.pop %v1449
        %v1451 = vmul.f32 %v1356, 1.442695
        %v1452 = vpow.pop %v1451
        %v1453 = vsub.f32 %v1390, 1.0
        %v1454 = vsub.f32 %v1392, 1.0
        %v1455 = vsub.f32 %v1394, 1.0
        %v1456 = vsub.f32 %v1396, 1.0
        %v1457 = vsub.f32 %v1398, 1.0
        %v1458 = vsub.f32 %v1400, 1.0
        %v1459 = vsub.f32 %v1402, 1.0
        %v1460 = vsub.f32 %v1404, 1.0
        %v1461 = vsub.f32 %v1406, 1.0
        %v1462 = vsub.f32 %v1408, 1.0
        %v1463 = vsub.f32 %v1410, 1.0
        %v1464 = vsub.f32 %v1412, 1.0
        %v1465 = vsub.f32 %v1414, 1.0
        %v1466 = vsub.f32 %v1416, 1.0
        %v1467 = vsub.f32 %v1418, 1.0
        %v1468 = vsub.f32 %v1420, 1.0
        %v1469 = vsub.f32 %v1422, 1.0
        %v1470 = vsub.f32 %v1424, 1.0
        %v1471 = vsub.f32 %v1426, 1.0
        %v1472 = vsub.f32 %v1428, 1.0
        %v1473 = vsub.f32 %v1430, 1.0
        %v1474 = vsub.f32 %v1432, 1.0
        %v1475 = vsub.f32 %v1434, 1.0
        %v1476 = vsub.f32 %v1436, 1.0
        %v1477 = vsub.f32 %v1438, 1.0
        %v1478 = vsub.f32 %v1440, 1.0
        %v1479 = vsub.f32 %v1442, 1.0
        %v1480 = vsub.f32 %v1444, 1.0
        %v1481 = vsub.f32 %v1446, 1.0
        %v1482 = vsub.f32 %v1448, 1.0
        %v1483 = vsub.f32 %v1450, 1.0
        %v1484 = vsub.f32 %v1452, 1.0
        %v1485 = vmul.f32 %v1453, 1.6732632
        %v1486 = vmul.f32 %v1454, 1.6732632
        %v1487 = vmul.f32 %v1455, 1.6732632
        %v1488 = vmul.f32 %v1456, 1.6732632
        %v1489 = vmul.f32 %v1457, 1.6732632
        %v1490 = vmul.f32 %v1458, 1.6732632
        %v1491 = vmul.f32 %v1459, 1.6732632
        %v1492 = vmul.f32 %v1460, 1.6732632
        %v1493 = vmul.f32 %v1461, 1.6732632
        %v1494 = vmul.f32 %v1462, 1.6732632
        %v1495 = vmul.f32 %v1463, 1.6732632
        %v1496 = vmul.f32 %v1464, 1.6732632
        %v1497 = vmul.f32 %v1465, 1.6732632
        %v1498 = vmul.f32 %v1466, 1.6732632
        %v1499 = vmul.f32 %v1467, 1.6732632
        %v1500 = vmul.f32 %v1468, 1.6732632
        %v1501 = vmul.f32 %v1469, 1.6732632
        %v1502 = vmul.f32 %v1470, 1.6732632
        %v1503 = vmul.f32 %v1471, 1.6732632
        %v1504 = vmul.f32 %v1472, 1.6732632
        %v1505 = vmul.f32 %v1473, 1.6732632
        %v1506 = vmul.f32 %v1474, 1.6732632
        %v1507 = vmul.f32 %v1475, 1.6732632
        %v1508 = vmul.f32 %v1476, 1.6732632
        %v1509 = vmul.f32 %v1477, 1.6732632
        %v1510 = vmul.f32 %v1478, 1.6732632
        %v1511 = vmul.f32 %v1479, 1.6732632
        %v1512 = vmul.f32 %v1480, 1.6732632
        %v1513 = vmul.f32 %v1481, 1.6732632
        %v1514 = vmul.f32 %v1482, 1.6732632
        %v1515 = vmul.f32 %v1483, 1.6732632
        %v1516 = vmul.f32 %v1484, 1.6732632
        %v1517 = vsel %vm1357, %v1325, %v1485
        %v1518 = vsel %vm1358, %v1326, %v1486
        %v1519 = vsel %vm1359, %v1327, %v1487
        %v1520 = vsel %vm1360, %v1328, %v1488
        %v1521 = vsel %vm1361, %v1329, %v1489
        %v1522 = vsel %vm1362, %v1330, %v1490
        %v1523 = vsel %vm1363, %v1331, %v1491
        %v1524 = vsel %vm1364, %v1332, %v1492
        %v1525 = vsel %vm1365, %v1333, %v1493
        %v1526 = vsel %vm1366, %v1334, %v1494
        %v1527 = vsel %vm1367, %v1335, %v1495
        %v1528 = vsel %vm1368, %v1336, %v1496
        %v1529 = vsel %vm1369, %v1337, %v1497
        %v1530 = vsel %vm1370, %v1338, %v1498
        %v1531 = vsel %vm1371, %v1339, %v1499
        %v1532 = vsel %vm1372, %v1340, %v1500
        %v1533 = vsel %vm1373, %v1341, %v1501
        %v1534 = vsel %vm1374, %v1342, %v1502
        %v1535 = vsel %vm1375, %v1343, %v1503
        %v1536 = vsel %vm1376, %v1344, %v1504
        %v1537 = vsel %vm1377, %v1345, %v1505
        %v1538 = vsel %vm1378, %v1346, %v1506
        %v1539 = vsel %vm1379, %v1347, %v1507
        %v1540 = vsel %vm1380, %v1348, %v1508
        %v1541 = vsel %vm1381, %v1349, %v1509
        %v1542 = vsel %vm1382, %v1350, %v1510
        %v1543 = vsel %vm1383, %v1351, %v1511
        %v1544 = vsel %vm1384, %v1352, %v1512
        %v1545 = vsel %vm1385, %v1353, %v1513
        %v1546 = vsel %vm1386, %v1354, %v1514
        %v1547 = vsel %vm1387, %v1355, %v1515
        %v1548 = vsel %vm1388, %v1356, %v1516
        %v1549 = vmul.f32 %v1517, 1.050701
        %v1550 = vmul.f32 %v1518, 1.050701
        %v1551 = vmul.f32 %v1519, 1.050701
        %v1552 = vmul.f32 %v1520, 1.050701
        %v1553 = vmul.f32 %v1521, 1.050701
        %v1554 = vmul.f32 %v1522, 1.050701
        %v1555 = vmul.f32 %v1523, 1.050701
        %v1556 = vmul.f32 %v1524, 1.050701
        %v1557 = vmul.f32 %v1525, 1.050701
        %v1558 = vmul.f32 %v1526, 1.050701
        %v1559 = vmul.f32 %v1527, 1.050701
        %v1560 = vmul.f32 %v1528, 1.050701
        %v1561 = vmul.f32 %v1529, 1.050701
        %v1562 = vmul.f32 %v1530, 1.050701
        %v1563 = vmul.f32 %v1531, 1.050701
        %v1564 = vmul.f32 %v1532, 1.050701
        %v1565 = vmul.f32 %v1533, 1.050701
        %v1566 = vmul.f32 %v1534, 1.050701
        %v1567 = vmul.f32 %v1535, 1.050701
        %v1568 = vmul.f32 %v1536, 1.050701
        %v1569 = vmul.f32 %v1537, 1.050701
        %v1570 = vmul.f32 %v1538, 1.050701
        %v1571 = vmul.f32 %v1539, 1.050701
        %v1572 = vmul.f32 %v1540, 1.050701
        %v1573 = vmul.f32 %v1541, 1.050701
        %v1574 = vmul.f32 %v1542, 1.050701
        %v1575 = vmul.f32 %v1543, 1.050701
        %v1576 = vmul.f32 %v1544, 1.050701
        %v1577 = vmul.f32 %v1545, 1.050701
        %v1578 = vmul.f32 %v1546, 1.050701
        %v1579 = vmul.f32 %v1547, 1.050701
        %v1580 = vmul.f32 %v1548, 1.050701
        %v1581 = vpack.c.bf16 %v1550, %v1549
        %v1582 = vpack.c.bf16 %v1552, %v1551
        %v1583 = vpack.c.bf16 %v1554, %v1553
        %v1584 = vpack.c.bf16 %v1556, %v1555
        %v1585 = vpack.c.bf16 %v1558, %v1557
        %v1586 = vpack.c.bf16 %v1560, %v1559
        %v1587 = vpack.c.bf16 %v1562, %v1561
        %v1588 = vpack.c.bf16 %v1564, %v1563
        %v1589 = vpack.c.bf16 %v1566, %v1565
        %v1590 = vpack.c.bf16 %v1568, %v1567
        %v1591 = vpack.c.bf16 %v1570, %v1569
        %v1592 = vpack.c.bf16 %v1572, %v1571
        %v1593 = vpack.c.bf16 %v1574, %v1573
        %v1594 = vpack.c.bf16 %v1576, %v1575
        %v1595 = vpack.c.bf16 %v1578, %v1577
        %v1596 = vpack.c.bf16 %v1580, %v1579
        %v1597 = vld [vmem:[%s5] sm:$0xf]
        %v1598 = vld [vmem:[%s5 + $0x4] sm:$0xf]
        %v1599 = vld [vmem:[%s5 + $0x8] sm:$0xf]
        %v1600 = vld [vmem:[%s5 + $0xc] sm:$0xf]
        %v1601 = vld [vmem:[%s5 + $0x10] sm:$0xf]
        %v1602 = vld [vmem:[%s5 + $0x14] sm:$0xf]
        %v1603 = vld [vmem:[%s5 + $0x18] sm:$0xf]
        %v1604 = vld [vmem:[%s5 + $0x1c] sm:$0xf]
        %v1605 = vld [vmem:[%s5 + $0x20] sm:$0xf]
        %v1606 = vld [vmem:[%s5 + $0x24] sm:$0xf]
        %v1607 = vld [vmem:[%s5 + $0x28] sm:$0xf]
        %v1608 = vld [vmem:[%s5 + $0x2c] sm:$0xf]
        %v1609 = vld [vmem:[%s5 + $0x30] sm:$0xf]
        %v1610 = vld [vmem:[%s5 + $0x34] sm:$0xf]
        %v1611 = vld [vmem:[%s5 + $0x38] sm:$0xf]
        %v1612 = vld [vmem:[%s5 + $0x3c] sm:$0xf]
        %v1613 = vld [vmem:[%s6] sm:$0x1]
        %v1615 = vperm.slane %v1613, 0
        %v1633 = vunpack.c.l.b16 %v1597
        %v1634 = vunpack.c.l.b16 %v1598
        %v1635 = vunpack.c.l.b16 %v1599
        %v1636 = vunpack.c.l.b16 %v1600
        %v1637 = vunpack.c.l.b16 %v1601
        %v1638 = vunpack.c.l.b16 %v1602
        %v1639 = vunpack.c.l.b16 %v1603
        %v1640 = vunpack.c.l.b16 %v1604
        %v1641 = vunpack.c.l.b16 %v1605
        %v1642 = vunpack.c.l.b16 %v1606
        %v1643 = vunpack.c.l.b16 %v1607
        %v1644 = vunpack.c.l.b16 %v1608
        %v1645 = vunpack.c.l.b16 %v1609
        %v1646 = vunpack.c.l.b16 %v1610
        %v1647 = vunpack.c.l.b16 %v1611
        %v1648 = vunpack.c.l.b16 %v1612
        %v1649 = vpack.c.b16 %v1634, %v1633
        %v1650 = vpack.c.b16 %v1636, %v1635
        %v1651 = vpack.c.b16 %v1638, %v1637
        %v1652 = vpack.c.b16 %v1640, %v1639
        %v1653 = vpack.c.b16 %v1642, %v1641
        %v1654 = vpack.c.b16 %v1644, %v1643
        %v1655 = vpack.c.b16 %v1646, %v1645
        %v1656 = vpack.c.b16 %v1648, %v1647
        %1665 = vmatpush.bf16.msra.mxu0 %v1656
        %1666 = vmatpush.bf16.msra.mxu0 %v1655
        %1667 = vmatpush.bf16.msra.mxu0 %v1654
        %1668 = vmatpush.bf16.msra.mxu0 %v1653
        %1669 = vmatpush.bf16.msra.mxu0 %v1652
        %1670 = vmatpush.bf16.msra.mxu0 %v1651
        %1671 = vmatpush.bf16.msra.mxu0 %v1650
        %1672 = vmatpush.bf16.msra.mxu0 %v1649
        %1673 = vmatmul.bf16.gmra.mxu0 %v1581
        %v1674 = vpop.f32.mrf.mxu0
        %v1675 = vadd.f32 %v1615, %v1674
        %v1676 = vpop.f32.mrf.mxu0
        %v1677 = vadd.f32 %v1615, %v1676
        %1678 = vmatmul.bf16.gmra.mxu0 %v1582
        %v1679 = vpop.f32.mrf.mxu0
        %v1680 = vadd.f32 %v1615, %v1679
        %v1681 = vpop.f32.mrf.mxu0
        %v1682 = vadd.f32 %v1615, %v1681
        %1683 = vmatmul.bf16.gmra.mxu0 %v1583
        %v1684 = vpop.f32.mrf.mxu0
        %v1685 = vadd.f32 %v1615, %v1684
        %v1686 = vpop.f32.mrf.mxu0
        %v1687 = vadd.f32 %v1615, %v1686
        %1688 = vmatmul.bf16.gmra.mxu0 %v1584
        %v1689 = vpop.f32.mrf.mxu0
        %v1690 = vadd.f32 %v1615, %v1689
        %v1691 = vpop.f32.mrf.mxu0
        %v1692 = vadd.f32 %v1615, %v1691
        %1693 = vmatmul.bf16.gmra.mxu0 %v1585
        %v1694 = vpop.f32.mrf.mxu0
        %v1695 = vadd.f32 %v1615, %v1694
        %v1696 = vpop.f32.mrf.mxu0
        %v1697 = vadd.f32 %v1615, %v1696
        %1698 = vmatmul.bf16.gmra.mxu0 %v1586
        %v1699 = vpop.f32.mrf.mxu0
        %v1700 = vadd.f32 %v1615, %v1699
        %v1701 = vpop.f32.mrf.mxu0
        %v1702 = vadd.f32 %v1615, %v1701
        %1703 = vmatmul.bf16.gmra.mxu0 %v1587
        %v1704 = vpop.f32.mrf.mxu0
        %v1705 = vadd.f32 %v1615, %v1704
        %v1706 = vpop.f32.mrf.mxu0
        %v1707 = vadd.f32 %v1615, %v1706
        %1708 = vmatmul.bf16.gmra.mxu0 %v1588
        %v1709 = vpop.f32.mrf.mxu0
        %v1710 = vadd.f32 %v1615, %v1709
        %v1711 = vpop.f32.mrf.mxu0
        %v1712 = vadd.f32 %v1615, %v1711
        %1713 = vmatmul.bf16.gmra.mxu0 %v1589
        %v1714 = vpop.f32.mrf.mxu0
        %v1715 = vadd.f32 %v1615, %v1714
        %v1716 = vpop.f32.mrf.mxu0
        %v1717 = vadd.f32 %v1615, %v1716
        %1718 = vmatmul.bf16.gmra.mxu0 %v1590
        %v1719 = vpop.f32.mrf.mxu0
        %v1720 = vadd.f32 %v1615, %v1719
        %v1721 = vpop.f32.mrf.mxu0
        %v1722 = vadd.f32 %v1615, %v1721
        %1723 = vmatmul.bf16.gmra.mxu0 %v1591
        %v1724 = vpop.f32.mrf.mxu0
        %v1725 = vadd.f32 %v1615, %v1724
        %v1726 = vpop.f32.mrf.mxu0
        %v1727 = vadd.f32 %v1615, %v1726
        %1728 = vmatmul.bf16.gmra.mxu0 %v1592
        %v1729 = vpop.f32.mrf.mxu0
        %v1730 = vadd.f32 %v1615, %v1729
        %v1731 = vpop.f32.mrf.mxu0
        %v1732 = vadd.f32 %v1615, %v1731
        %1733 = vmatmul.bf16.gmra.mxu0 %v1593
        %v1734 = vpop.f32.mrf.mxu0
        %v1735 = vadd.f32 %v1615, %v1734
        %v1736 = vpop.f32.mrf.mxu0
        %v1737 = vadd.f32 %v1615, %v1736
        %1738 = vmatmul.bf16.gmra.mxu0 %v1594
        %v1739 = vpop.f32.mrf.mxu0
        %v1740 = vadd.f32 %v1615, %v1739
        %v1741 = vpop.f32.mrf.mxu0
        %v1742 = vadd.f32 %v1615, %v1741
        %1743 = vmatmul.bf16.gmra.mxu0 %v1595
        %v1744 = vpop.f32.mrf.mxu0
        %v1745 = vadd.f32 %v1615, %v1744
        %v1746 = vpop.f32.mrf.mxu0
        %v1747 = vadd.f32 %v1615, %v1746
        %1748 = vmatmul.bf16.gmra.mxu0 %v1596
        %v1749 = vpop.f32.mrf.mxu0
        %v1750 = vadd.f32 %v1615, %v1749
        %v1751 = vpop.f32.mrf.mxu0
        %v1752 = vadd.f32 %v1615, %v1751
        %1753 = vdwg.mxu0
        %vm1754 = vcmp.gt.f32.partialorder %v1675, 0.0
        %vm1755 = vcmp.gt.f32.partialorder %v1677, 0.0
        %vm1756 = vcmp.gt.f32.partialorder %v1680, 0.0
        %vm1757 = vcmp.gt.f32.partialorder %v1682, 0.0
        %vm1758 = vcmp.gt.f32.partialorder %v1685, 0.0
        %vm1759 = vcmp.gt.f32.partialorder %v1687, 0.0
        %vm1760 = vcmp.gt.f32.partialorder %v1690, 0.0
        %vm1761 = vcmp.gt.f32.partialorder %v1692, 0.0
        %vm1762 = vcmp.gt.f32.partialorder %v1695, 0.0
        %vm1763 = vcmp.gt.f32.partialorder %v1697, 0.0
        %vm1764 = vcmp.gt.f32.partialorder %v1700, 0.0
        %vm1765 = vcmp.gt.f32.partialorder %v1702, 0.0
        %vm1766 = vcmp.gt.f32.partialorder %v1705, 0.0
        %vm1767 = vcmp.gt.f32.partialorder %v1707, 0.0
        %vm1768 = vcmp.gt.f32.partialorder %v1710, 0.0
        %vm1769 = vcmp.gt.f32.partialorder %v1712, 0.0
        %vm1770 = vcmp.gt.f32.partialorder %v1715, 0.0
        %vm1771 = vcmp.gt.f32.partialorder %v1717, 0.0
        %vm1772 = vcmp.gt.f32.partialorder %v1720, 0.0
        %vm1773 = vcmp.gt.f32.partialorder %v1722, 0.0
        %vm1774 = vcmp.gt.f32.partialorder %v1725, 0.0
        %vm1775 = vcmp.gt.f32.partialorder %v1727, 0.0
        %vm1776 = vcmp.gt.f32.partialorder %v1730, 0.0
        %vm1777 = vcmp.gt.f32.partialorder %v1732, 0.0
        %vm1778 = vcmp.gt.f32.partialorder %v1735, 0.0
        %vm1779 = vcmp.gt.f32.partialorder %v1737, 0.0
        %vm1780 = vcmp.gt.f32.partialorder %v1740, 0.0
        %vm1781 = vcmp.gt.f32.partialorder %v1742, 0.0
        %vm1782 = vcmp.gt.f32.partialorder %v1745, 0.0
        %vm1783 = vcmp.gt.f32.partialorder %v1747, 0.0
        %vm1784 = vcmp.gt.f32.partialorder %v1750, 0.0
        %vm1785 = vcmp.gt.f32.partialorder %v1752, 0.0
        %v1786 = vmul.f32 %v1675, 1.442695
        %v1787 = vpow.pop %v1786
        %v1788 = vmul.f32 %v1677, 1.442695
        %v1789 = vpow.pop %v1788
        %v1790 = vmul.f32 %v1680, 1.442695
        %v1791 = vpow.pop %v1790
        %v1792 = vmul.f32 %v1682, 1.442695
        %v1793 = vpow.pop %v1792
        %v1794 = vmul.f32 %v1685, 1.442695
        %v1795 = vpow.pop %v1794
        %v1796 = vmul.f32 %v1687, 1.442695
        %v1797 = vpow.pop %v1796
        %v1798 = vmul.f32 %v1690, 1.442695
        %v1799 = vpow.pop %v1798
        %v1800 = vmul.f32 %v1692, 1.442695
        %v1801 = vpow.pop %v1800
        %v1802 = vmul.f32 %v1695, 1.442695
        %v1803 = vpow.pop %v1802
        %v1804 = vmul.f32 %v1697, 1.442695
        %v1805 = vpow.pop %v1804
        %v1806 = vmul.f32 %v1700, 1.442695
        %v1807 = vpow.pop %v1806
        %v1808 = vmul.f32 %v1702, 1.442695
        %v1809 = vpow.pop %v1808
        %v1810 = vmul.f32 %v1705, 1.442695
        %v1811 = vpow.pop %v1810
        %v1812 = vmul.f32 %v1707, 1.442695
        %v1813 = vpow.pop %v1812
        %v1814 = vmul.f32 %v1710, 1.442695
        %v1815 = vpow.pop %v1814
        %v1816 = vmul.f32 %v1712, 1.442695
        %v1817 = vpow.pop %v1816
        %v1818 = vmul.f32 %v1715, 1.442695
        %v1819 = vpow.pop %v1818
        %v1820 = vmul.f32 %v1717, 1.442695
        %v1821 = vpow.pop %v1820
        %v1822 = vmul.f32 %v1720, 1.442695
        %v1823 = vpow.pop %v1822
        %v1824 = vmul.f32 %v1722, 1.442695
        %v1825 = vpow.pop %v1824
        %v1826 = vmul.f32 %v1725, 1.442695
        %v1827 = vpow.pop %v1826
        %v1828 = vmul.f32 %v1727, 1.442695
        %v1829 = vpow.pop %v1828
        %v1830 = vmul.f32 %v1730, 1.442695
        %v1831 = vpow.pop %v1830
        %v1832 = vmul.f32 %v1732, 1.442695
        %v1833 = vpow.pop %v1832
        %v1834 = vmul.f32 %v1735, 1.442695
        %v1835 = vpow.pop %v1834
        %v1836 = vmul.f32 %v1737, 1.442695
        %v1837 = vpow.pop %v1836
        %v1838 = vmul.f32 %v1740, 1.442695
        %v1839 = vpow.pop %v1838
        %v1840 = vmul.f32 %v1742, 1.442695
        %v1841 = vpow.pop %v1840
        %v1842 = vmul.f32 %v1745, 1.442695
        %v1843 = vpow.pop %v1842
        %v1844 = vmul.f32 %v1747, 1.442695
        %v1845 = vpow.pop %v1844
        %v1846 = vmul.f32 %v1750, 1.442695
        %v1847 = vpow.pop %v1846
        %v1848 = vmul.f32 %v1752, 1.442695
        %v1849 = vpow.pop %v1848
        %v1850 = vsub.f32 %v1787, 1.0
        %v1851 = vsub.f32 %v1789, 1.0
        %v1852 = vsub.f32 %v1791, 1.0
        %v1853 = vsub.f32 %v1793, 1.0
        %v1854 = vsub.f32 %v1795, 1.0
        %v1855 = vsub.f32 %v1797, 1.0
        %v1856 = vsub.f32 %v1799, 1.0
        %v1857 = vsub.f32 %v1801, 1.0
        %v1858 = vsub.f32 %v1803, 1.0
        %v1859 = vsub.f32 %v1805, 1.0
        %v1860 = vsub.f32 %v1807, 1.0
        %v1861 = vsub.f32 %v1809, 1.0
        %v1862 = vsub.f32 %v1811, 1.0
        %v1863 = vsub.f32 %v1813, 1.0
        %v1864 = vsub.f32 %v1815, 1.0
        %v1865 = vsub.f32 %v1817, 1.0
        %v1866 = vsub.f32 %v1819, 1.0
        %v1867 = vsub.f32 %v1821, 1.0
        %v1868 = vsub.f32 %v1823, 1.0
        %v1869 = vsub.f32 %v1825, 1.0
        %v1870 = vsub.f32 %v1827, 1.0
        %v1871 = vsub.f32 %v1829, 1.0
        %v1872 = vsub.f32 %v1831, 1.0
        %v1873 = vsub.f32 %v1833, 1.0
        %v1874 = vsub.f32 %v1835, 1.0
        %v1875 = vsub.f32 %v1837, 1.0
        %v1876 = vsub.f32 %v1839, 1.0
        %v1877 = vsub.f32 %v1841, 1.0
        %v1878 = vsub.f32 %v1843, 1.0
        %v1879 = vsub.f32 %v1845, 1.0
        %v1880 = vsub.f32 %v1847, 1.0
        %v1881 = vsub.f32 %v1849, 1.0
        %v1882 = vmul.f32 %v1850, 1.6732632
        %v1883 = vmul.f32 %v1851, 1.6732632
        %v1884 = vmul.f32 %v1852, 1.6732632
        %v1885 = vmul.f32 %v1853, 1.6732632
        %v1886 = vmul.f32 %v1854, 1.6732632
        %v1887 = vmul.f32 %v1855, 1.6732632
        %v1888 = vmul.f32 %v1856, 1.6732632
        %v1889 = vmul.f32 %v1857, 1.6732632
        %v1890 = vmul.f32 %v1858, 1.6732632
        %v1891 = vmul.f32 %v1859, 1.6732632
        %v1892 = vmul.f32 %v1860, 1.6732632
        %v1893 = vmul.f32 %v1861, 1.6732632
        %v1894 = vmul.f32 %v1862, 1.6732632
        %v1895 = vmul.f32 %v1863, 1.6732632
        %v1896 = vmul.f32 %v1864, 1.6732632
        %v1897 = vmul.f32 %v1865, 1.6732632
        %v1898 = vmul.f32 %v1866, 1.6732632
        %v1899 = vmul.f32 %v1867, 1.6732632
        %v1900 = vmul.f32 %v1868, 1.6732632
        %v1901 = vmul.f32 %v1869, 1.6732632
        %v1902 = vmul.f32 %v1870, 1.6732632
        %v1903 = vmul.f32 %v1871, 1.6732632
        %v1904 = vmul.f32 %v1872, 1.6732632
        %v1905 = vmul.f32 %v1873, 1.6732632
        %v1906 = vmul.f32 %v1874, 1.6732632
        %v1907 = vmul.f32 %v1875, 1.6732632
        %v1908 = vmul.f32 %v1876, 1.6732632
        %v1909 = vmul.f32 %v1877, 1.6732632
        %v1910 = vmul.f32 %v1878, 1.6732632
        %v1911 = vmul.f32 %v1879, 1.6732632
        %v1912 = vmul.f32 %v1880, 1.6732632
        %v1913 = vmul.f32 %v1881, 1.6732632
        %v1914 = vsel %vm1754, %v1675, %v1882
        %v1915 = vsel %vm1755, %v1677, %v1883
        %v1916 = vsel %vm1756, %v1680, %v1884
        %v1917 = vsel %vm1757, %v1682, %v1885
        %v1918 = vsel %vm1758, %v1685, %v1886
        %v1919 = vsel %vm1759, %v1687, %v1887
        %v1920 = vsel %vm1760, %v1690, %v1888
        %v1921 = vsel %vm1761, %v1692, %v1889
        %v1922 = vsel %vm1762, %v1695, %v1890
        %v1923 = vsel %vm1763, %v1697, %v1891
        %v1924 = vsel %vm1764, %v1700, %v1892
        %v1925 = vsel %vm1765, %v1702, %v1893
        %v1926 = vsel %vm1766, %v1705, %v1894
        %v1927 = vsel %vm1767, %v1707, %v1895
        %v1928 = vsel %vm1768, %v1710, %v1896
        %v1929 = vsel %vm1769, %v1712, %v1897
        %v1930 = vsel %vm1770, %v1715, %v1898
        %v1931 = vsel %vm1771, %v1717, %v1899
        %v1932 = vsel %vm1772, %v1720, %v1900
        %v1933 = vsel %vm1773, %v1722, %v1901
        %v1934 = vsel %vm1774, %v1725, %v1902
        %v1935 = vsel %vm1775, %v1727, %v1903
        %v1936 = vsel %vm1776, %v1730, %v1904
        %v1937 = vsel %vm1777, %v1732, %v1905
        %v1938 = vsel %vm1778, %v1735, %v1906
        %v1939 = vsel %vm1779, %v1737, %v1907
        %v1940 = vsel %vm1780, %v1740, %v1908
        %v1941 = vsel %vm1781, %v1742, %v1909
        %v1942 = vsel %vm1782, %v1745, %v1910
        %v1943 = vsel %vm1783, %v1747, %v1911
        %v1944 = vsel %vm1784, %v1750, %v1912
        %v1945 = vsel %vm1785, %v1752, %v1913
        %v1946 = vmul.f32 %v1914, 1.050701
        %v1947 = vmul.f32 %v1915, 1.050701
        %v1948 = vmul.f32 %v1916, 1.050701
        %v1949 = vmul.f32 %v1917, 1.050701
        %v1950 = vmul.f32 %v1918, 1.050701
        %v1951 = vmul.f32 %v1919, 1.050701
        %v1952 = vmul.f32 %v1920, 1.050701
        %v1953 = vmul.f32 %v1921, 1.050701
        %v1954 = vmul.f32 %v1922, 1.050701
        %v1955 = vmul.f32 %v1923, 1.050701
        %v1956 = vmul.f32 %v1924, 1.050701
        %v1957 = vmul.f32 %v1925, 1.050701
        %v1958 = vmul.f32 %v1926, 1.050701
        %v1959 = vmul.f32 %v1927, 1.050701
        %v1960 = vmul.f32 %v1928, 1.050701
        %v1961 = vmul.f32 %v1929, 1.050701
        %v1962 = vmul.f32 %v1930, 1.050701
        %v1963 = vmul.f32 %v1931, 1.050701
        %v1964 = vmul.f32 %v1932, 1.050701
        %v1965 = vmul.f32 %v1933, 1.050701
        %v1966 = vmul.f32 %v1934, 1.050701
        %v1967 = vmul.f32 %v1935, 1.050701
        %v1968 = vmul.f32 %v1936, 1.050701
        %v1969 = vmul.f32 %v1937, 1.050701
        %v1970 = vmul.f32 %v1938, 1.050701
        %v1971 = vmul.f32 %v1939, 1.050701
        %v1972 = vmul.f32 %v1940, 1.050701
        %v1973 = vmul.f32 %v1941, 1.050701
        %v1974 = vmul.f32 %v1942, 1.050701
        %v1975 = vmul.f32 %v1943, 1.050701
        %v1976 = vmul.f32 %v1944, 1.050701
        %v1977 = vmul.f32 %v1945, 1.050701
        %v1978 = vpack.c.bf16 %v1947, %v1946
        %v1979 = vpack.c.bf16 %v1949, %v1948
        %v1980 = vpack.c.bf16 %v1951, %v1950
        %v1981 = vpack.c.bf16 %v1953, %v1952
        %v1982 = vpack.c.bf16 %v1955, %v1954
        %v1983 = vpack.c.bf16 %v1957, %v1956
        %v1984 = vpack.c.bf16 %v1959, %v1958
        %v1985 = vpack.c.bf16 %v1961, %v1960
        %v1986 = vpack.c.bf16 %v1963, %v1962
        %v1987 = vpack.c.bf16 %v1965, %v1964
        %v1988 = vpack.c.bf16 %v1967, %v1966
        %v1989 = vpack.c.bf16 %v1969, %v1968
        %v1990 = vpack.c.bf16 %v1971, %v1970
        %v1991 = vpack.c.bf16 %v1973, %v1972
        %v1992 = vpack.c.bf16 %v1975, %v1974
        %v1993 = vpack.c.bf16 %v1977, %v1976
        %v1994 = vld [vmem:[%s7] sm:$0xf]
        %v1995 = vld [vmem:[%s7 + $0x4] sm:$0xf]
        %v1996 = vld [vmem:[%s7 + $0x8] sm:$0xf]
        %v1997 = vld [vmem:[%s7 + $0xc] sm:$0xf]
        %v1998 = vld [vmem:[%s7 + $0x10] sm:$0xf]
        %v1999 = vld [vmem:[%s7 + $0x14] sm:$0xf]
        %v2000 = vld [vmem:[%s7 + $0x18] sm:$0xf]
        %v2001 = vld [vmem:[%s7 + $0x1c] sm:$0xf]
        %v2002 = vld [vmem:[%s7 + $0x20] sm:$0xf]
        %v2003 = vld [vmem:[%s7 + $0x24] sm:$0xf]
        %v2004 = vld [vmem:[%s7 + $0x28] sm:$0xf]
        %v2005 = vld [vmem:[%s7 + $0x2c] sm:$0xf]
        %v2006 = vld [vmem:[%s7 + $0x30] sm:$0xf]
        %v2007 = vld [vmem:[%s7 + $0x34] sm:$0xf]
        %v2008 = vld [vmem:[%s7 + $0x38] sm:$0xf]
        %v2009 = vld [vmem:[%s7 + $0x3c] sm:$0xf]
        %v2010 = vld [vmem:[%s8] sm:$0x1]
        %v2012 = vperm.slane %v2010, 0
        %v2030 = vunpack.c.l.b16 %v1994
        %v2031 = vunpack.c.l.b16 %v1995
        %v2032 = vunpack.c.l.b16 %v1996
        %v2033 = vunpack.c.l.b16 %v1997
        %v2034 = vunpack.c.l.b16 %v1998
        %v2035 = vunpack.c.l.b16 %v1999
        %v2036 = vunpack.c.l.b16 %v2000
        %v2037 = vunpack.c.l.b16 %v2001
        %v2038 = vunpack.c.l.b16 %v2002
        %v2039 = vunpack.c.l.b16 %v2003
        %v2040 = vunpack.c.l.b16 %v2004
        %v2041 = vunpack.c.l.b16 %v2005
        %v2042 = vunpack.c.l.b16 %v2006
        %v2043 = vunpack.c.l.b16 %v2007
        %v2044 = vunpack.c.l.b16 %v2008
        %v2045 = vunpack.c.l.b16 %v2009
        %v2046 = vpack.c.b16 %v2031, %v2030
        %v2047 = vpack.c.b16 %v2033, %v2032
        %v2048 = vpack.c.b16 %v2035, %v2034
        %v2049 = vpack.c.b16 %v2037, %v2036
        %v2050 = vpack.c.b16 %v2039, %v2038
        %v2051 = vpack.c.b16 %v2041, %v2040
        %v2052 = vpack.c.b16 %v2043, %v2042
        %v2053 = vpack.c.b16 %v2045, %v2044
        %2062 = vmatpush.bf16.msra.mxu0 %v2053
        %2063 = vmatpush.bf16.msra.mxu0 %v2052
        %2064 = vmatpush.bf16.msra.mxu0 %v2051
        %2065 = vmatpush.bf16.msra.mxu0 %v2050
        %2066 = vmatpush.bf16.msra.mxu0 %v2049
        %2067 = vmatpush.bf16.msra.mxu0 %v2048
        %2068 = vmatpush.bf16.msra.mxu0 %v2047
        %2069 = vmatpush.bf16.msra.mxu0 %v2046
        %2070 = vmatmul.bf16.gmra.mxu0 %v1978
        %v2071 = vpop.f32.mrf.mxu0
        %v2072 = vadd.f32 %v2012, %v2071
        %v2073 = vpop.f32.mrf.mxu0
        %v2074 = vadd.f32 %v2012, %v2073
        %2075 = vmatmul.bf16.gmra.mxu0 %v1979
        %v2076 = vpop.f32.mrf.mxu0
        %v2077 = vadd.f32 %v2012, %v2076
        %v2078 = vpop.f32.mrf.mxu0
        %v2079 = vadd.f32 %v2012, %v2078
        %2080 = vmatmul.bf16.gmra.mxu0 %v1980
        %v2081 = vpop.f32.mrf.mxu0
        %v2082 = vadd.f32 %v2012, %v2081
        %v2083 = vpop.f32.mrf.mxu0
        %v2084 = vadd.f32 %v2012, %v2083
        %2085 = vmatmul.bf16.gmra.mxu0 %v1981
        %v2086 = vpop.f32.mrf.mxu0
        %v2087 = vadd.f32 %v2012, %v2086
        %v2088 = vpop.f32.mrf.mxu0
        %v2089 = vadd.f32 %v2012, %v2088
        %2090 = vmatmul.bf16.gmra.mxu0 %v1982
        %v2091 = vpop.f32.mrf.mxu0
        %v2092 = vadd.f32 %v2012, %v2091
        %v2093 = vpop.f32.mrf.mxu0
        %v2094 = vadd.f32 %v2012, %v2093
        %2095 = vmatmul.bf16.gmra.mxu0 %v1983
        %v2096 = vpop.f32.mrf.mxu0
        %v2097 = vadd.f32 %v2012, %v2096
        %v2098 = vpop.f32.mrf.mxu0
        %v2099 = vadd.f32 %v2012, %v2098
        %2100 = vmatmul.bf16.gmra.mxu0 %v1984
        %v2101 = vpop.f32.mrf.mxu0
        %v2102 = vadd.f32 %v2012, %v2101
        %v2103 = vpop.f32.mrf.mxu0
        %v2104 = vadd.f32 %v2012, %v2103
        %2105 = vmatmul.bf16.gmra.mxu0 %v1985
        %v2106 = vpop.f32.mrf.mxu0
        %v2107 = vadd.f32 %v2012, %v2106
        %v2108 = vpop.f32.mrf.mxu0
        %v2109 = vadd.f32 %v2012, %v2108
        %2110 = vmatmul.bf16.gmra.mxu0 %v1986
        %v2111 = vpop.f32.mrf.mxu0
        %v2112 = vadd.f32 %v2012, %v2111
        %v2113 = vpop.f32.mrf.mxu0
        %v2114 = vadd.f32 %v2012, %v2113
        %2115 = vmatmul.bf16.gmra.mxu0 %v1987
        %v2116 = vpop.f32.mrf.mxu0
        %v2117 = vadd.f32 %v2012, %v2116
        %v2118 = vpop.f32.mrf.mxu0
        %v2119 = vadd.f32 %v2012, %v2118
        %2120 = vmatmul.bf16.gmra.mxu0 %v1988
        %v2121 = vpop.f32.mrf.mxu0
        %v2122 = vadd.f32 %v2012, %v2121
        %v2123 = vpop.f32.mrf.mxu0
        %v2124 = vadd.f32 %v2012, %v2123
        %2125 = vmatmul.bf16.gmra.mxu0 %v1989
        %v2126 = vpop.f32.mrf.mxu0
        %v2127 = vadd.f32 %v2012, %v2126
        %v2128 = vpop.f32.mrf.mxu0
        %v2129 = vadd.f32 %v2012, %v2128
        %2130 = vmatmul.bf16.gmra.mxu0 %v1990
        %v2131 = vpop.f32.mrf.mxu0
        %v2132 = vadd.f32 %v2012, %v2131
        %v2133 = vpop.f32.mrf.mxu0
        %v2134 = vadd.f32 %v2012, %v2133
        %2135 = vmatmul.bf16.gmra.mxu0 %v1991
        %v2136 = vpop.f32.mrf.mxu0
        %v2137 = vadd.f32 %v2012, %v2136
        %v2138 = vpop.f32.mrf.mxu0
        %v2139 = vadd.f32 %v2012, %v2138
        %2140 = vmatmul.bf16.gmra.mxu0 %v1992
        %v2141 = vpop.f32.mrf.mxu0
        %v2142 = vadd.f32 %v2012, %v2141
        %v2143 = vpop.f32.mrf.mxu0
        %v2144 = vadd.f32 %v2012, %v2143
        %2145 = vmatmul.bf16.gmra.mxu0 %v1993
        %v2146 = vpop.f32.mrf.mxu0
        %v2147 = vadd.f32 %v2012, %v2146
        %v2148 = vpop.f32.mrf.mxu0
        %v2149 = vadd.f32 %v2012, %v2148
        %2150 = vdwg.mxu0
        %v2151 = vld [vmem:[%s1] sm:$0x1]
        %2152 = vset.pattern.permute.xlu0 4
        %2153 = vperm.xlu0 %2152, %v516
        %v2154 = vpop.permute.xlu0 %2153
        %2156 = vset.pattern.permute.xlu0 4
        %2157 = vperm.xlu0 %2156, %v517
        %v2158 = vpop.permute.xlu0 %2157
        %2160 = vset.pattern.permute.xlu0 4
        %2161 = vperm.xlu0 %2160, %v518
        %v2162 = vpop.permute.xlu0 %2161
        %2164 = vset.pattern.permute.xlu0 4
        %2165 = vperm.xlu0 %2164, %v519
        %v2166 = vpop.permute.xlu0 %2165
        %2168 = vset.pattern.permute.xlu0 4
        %2169 = vperm.xlu0 %2168, %v520
        %v2170 = vpop.permute.xlu0 %2169
        %2172 = vset.pattern.permute.xlu0 4
        %2173 = vperm.xlu0 %2172, %v521
        %v2174 = vpop.permute.xlu0 %2173
        %2176 = vset.pattern.permute.xlu0 4
        %2177 = vperm.xlu0 %2176, %v522
        %v2178 = vpop.permute.xlu0 %2177
        %2180 = vset.pattern.permute.xlu0 4
        %2181 = vperm.xlu0 %2180, %v523
        %v2182 = vpop.permute.xlu0 %2181
        %2184 = vset.pattern.permute.xlu0 4
        %2185 = vperm.xlu0 %2184, %v524
        %v2186 = vpop.permute.xlu0 %2185
        %2188 = vset.pattern.permute.xlu0 4
        %2189 = vperm.xlu0 %2188, %v525
        %v2190 = vpop.permute.xlu0 %2189
        %2192 = vset.pattern.permute.xlu0 4
        %2193 = vperm.xlu0 %2192, %v526
        %v2194 = vpop.permute.xlu0 %2193
        %2196 = vset.pattern.permute.xlu0 4
        %2197 = vperm.xlu0 %2196, %v527
        %v2198 = vpop.permute.xlu0 %2197
        %2200 = vset.pattern.permute.xlu0 4
        %2201 = vperm.xlu0 %2200, %v528
        %v2202 = vpop.permute.xlu0 %2201
        %2204 = vset.pattern.permute.xlu0 4
        %2205 = vperm.xlu0 %2204, %v529
        %v2206 = vpop.permute.xlu0 %2205
        %2208 = vset.pattern.permute.xlu0 4
        %2209 = vperm.xlu0 %2208, %v530
        %v2210 = vpop.permute.xlu0 %2209
        %2212 = vset.pattern.permute.xlu0 4
        %2213 = vperm.xlu0 %2212, %v531
        %v2214 = vpop.permute.xlu0 %2213
        %2216 = vset.pattern.permute.xlu0 4
        %2217 = vperm.xlu0 %2216, %v532
        %v2218 = vpop.permute.xlu0 %2217
        %2220 = vset.pattern.permute.xlu0 4
        %2221 = vperm.xlu0 %2220, %v533
        %v2222 = vpop.permute.xlu0 %2221
        %2224 = vset.pattern.permute.xlu0 4
        %2225 = vperm.xlu0 %2224, %v534
        %v2226 = vpop.permute.xlu0 %2225
        %2228 = vset.pattern.permute.xlu0 4
        %2229 = vperm.xlu0 %2228, %v535
        %v2230 = vpop.permute.xlu0 %2229
        %2232 = vset.pattern.permute.xlu0 4
        %2233 = vperm.xlu0 %2232, %v536
        %v2234 = vpop.permute.xlu0 %2233
        %2236 = vset.pattern.permute.xlu0 4
        %2237 = vperm.xlu0 %2236, %v537
        %v2238 = vpop.permute.xlu0 %2237
        %2240 = vset.pattern.permute.xlu0 4
        %2241 = vperm.xlu0 %2240, %v538
        %v2242 = vpop.permute.xlu0 %2241
        %2244 = vset.pattern.permute.xlu0 4
        %2245 = vperm.xlu0 %2244, %v539
        %v2246 = vpop.permute.xlu0 %2245
        %2248 = vset.pattern.permute.xlu0 4
        %2249 = vperm.xlu0 %2248, %v540
        %v2250 = vpop.permute.xlu0 %2249
        %2252 = vset.pattern.permute.xlu0 4
        %2253 = vperm.xlu0 %2252, %v541
        %v2254 = vpop.permute.xlu0 %2253
        %2256 = vset.pattern.permute.xlu0 4
        %2257 = vperm.xlu0 %2256, %v542
        %v2258 = vpop.permute.xlu0 %2257
        %2260 = vset.pattern.permute.xlu0 4
        %2261 = vperm.xlu0 %2260, %v543
        %v2262 = vpop.permute.xlu0 %2261
        %2264 = vset.pattern.permute.xlu0 4
        %2265 = vperm.xlu0 %2264, %v544
        %v2266 = vpop.permute.xlu0 %2265
        %2268 = vset.pattern.permute.xlu0 4
        %2269 = vperm.xlu0 %2268, %v545
        %v2270 = vpop.permute.xlu0 %2269
        %2272 = vset.pattern.permute.xlu0 4
        %2273 = vperm.xlu0 %2272, %v546
        %v2274 = vpop.permute.xlu0 %2273
        %2276 = vset.pattern.permute.xlu0 4
        %2277 = vperm.xlu0 %2276, %v547
        %v2278 = vpop.permute.xlu0 %2277
        %v2281 = vperm.slane %v2151, 0
        %v2283 = vmul.f32 %v2154, %v2281
        %v2284 = vmul.f32 %v2158, %v2281
        %v2285 = vmul.f32 %v2162, %v2281
        %v2286 = vmul.f32 %v2166, %v2281
        %v2287 = vmul.f32 %v2170, %v2281
        %v2288 = vmul.f32 %v2174, %v2281
        %v2289 = vmul.f32 %v2178, %v2281
        %v2290 = vmul.f32 %v2182, %v2281
        %v2291 = vmul.f32 %v2186, %v2281
        %v2292 = vmul.f32 %v2190, %v2281
        %v2293 = vmul.f32 %v2194, %v2281
        %v2294 = vmul.f32 %v2198, %v2281
        %v2295 = vmul.f32 %v2202, %v2281
        %v2296 = vmul.f32 %v2206, %v2281
        %v2297 = vmul.f32 %v2210, %v2281
        %v2298 = vmul.f32 %v2214, %v2281
        %v2299 = vmul.f32 %v2218, %v2281
        %v2300 = vmul.f32 %v2222, %v2281
        %v2301 = vmul.f32 %v2226, %v2281
        %v2302 = vmul.f32 %v2230, %v2281
        %v2303 = vmul.f32 %v2234, %v2281
        %v2304 = vmul.f32 %v2238, %v2281
        %v2305 = vmul.f32 %v2242, %v2281
        %v2306 = vmul.f32 %v2246, %v2281
        %v2307 = vmul.f32 %v2250, %v2281
        %v2308 = vmul.f32 %v2254, %v2281
        %v2309 = vmul.f32 %v2258, %v2281
        %v2310 = vmul.f32 %v2262, %v2281
        %v2311 = vmul.f32 %v2266, %v2281
        %v2312 = vmul.f32 %v2270, %v2281
        %v2313 = vmul.f32 %v2274, %v2281
        %v2314 = vmul.f32 %v2278, %v2281
        %v2315 = vld [vmem:[%s2] sm:$0x1]
        %v2317 = vperm.slane %v2315, 0
        %v2319 = vadd.f32 %v2283, %v2317
        %v2320 = vadd.f32 %v2284, %v2317
        %v2321 = vadd.f32 %v2285, %v2317
        %v2322 = vadd.f32 %v2286, %v2317
        %v2323 = vadd.f32 %v2287, %v2317
        %v2324 = vadd.f32 %v2288, %v2317
        %v2325 = vadd.f32 %v2289, %v2317
        %v2326 = vadd.f32 %v2290, %v2317
        %v2327 = vadd.f32 %v2291, %v2317
        %v2328 = vadd.f32 %v2292, %v2317
        %v2329 = vadd.f32 %v2293, %v2317
        %v2330 = vadd.f32 %v2294, %v2317
        %v2331 = vadd.f32 %v2295, %v2317
        %v2332 = vadd.f32 %v2296, %v2317
        %v2333 = vadd.f32 %v2297, %v2317
        %v2334 = vadd.f32 %v2298, %v2317
        %v2335 = vadd.f32 %v2299, %v2317
        %v2336 = vadd.f32 %v2300, %v2317
        %v2337 = vadd.f32 %v2301, %v2317
        %v2338 = vadd.f32 %v2302, %v2317
        %v2339 = vadd.f32 %v2303, %v2317
        %v2340 = vadd.f32 %v2304, %v2317
        %v2341 = vadd.f32 %v2305, %v2317
        %v2342 = vadd.f32 %v2306, %v2317
        %v2343 = vadd.f32 %v2307, %v2317
        %v2344 = vadd.f32 %v2308, %v2317
        %v2345 = vadd.f32 %v2309, %v2317
        %v2346 = vadd.f32 %v2310, %v2317
        %v2347 = vadd.f32 %v2311, %v2317
        %v2348 = vadd.f32 %v2312, %v2317
        %v2349 = vadd.f32 %v2313, %v2317
        %v2350 = vadd.f32 %v2314, %v2317
        %v2351 = vand.u32 2147483647, %v2319
        %vm2352 = vcmp.le.f32.partialorder %v2351, 0.7853982
        %vm2353 = vcmp.lt.s32.totalorder %v2319, 0
        %v2354 = vand.u32 %v2319, 2139095040
        %v2355 = vshrl.u32 %v2354, 23
        %v2356 = vsub.s32 %v2355, 127
        %v2357 = vand.u32 2147483647, %v2319
        %v2358 = vand.u32 %v2357, 8388607
        %v2359 = vor.u32 %v2358, 8388608
        %v2360 = vsub.s32 0, %v2359
        %v2361 = vadd.s32 %v2356, 1
        %vm2362 = vcmp.gt.s32.totalorder %v2361, 0
        %v2363 = vsel %vm2362, %v2361, 0
        %v2364 = vshrl.u32 %v2363, 5
        %v2365 = vand.u32 %v2363, 31
        %v2366 = vsub.s32 32, %v2365
        %v2367 = vshrl.u32 683565275, %v2366
        %v2368 = vshll.u32 683565275, %v2365
        %v2369 = vshrl.u32 2475754826, %v2366
        %v2370 = vor.u32 %v2368, %v2369
        %v2371 = vshll.u32 2475754826, %v2365
        %v2372 = vshrl.u32 2131351028, %v2366
        %v2373 = vor.u32 %v2371, %v2372
        %v2374 = vshll.u32 2131351028, %v2365
        %v2375 = vshrl.u32 2102212464, %v2366
        %v2376 = vor.u32 %v2374, %v2375
        %v2377 = vshll.u32 2102212464, %v2365
        %v2378 = vshrl.u32 920167782, %v2366
        %v2379 = vor.u32 %v2377, %v2378
        %v2380 = vshll.u32 920167782, %v2365
        %v2381 = vshrl.u32 1326507024, %v2366
        %v2382 = vor.u32 %v2380, %v2381
        %vm2383 = vcmp.lt.s32.totalorder %v2364, 1
        %vm2384 = vcmp.lt.s32.totalorder %v2364, 2
        %vm2385 = vcmp.lt.s32.totalorder %v2364, 3
        %vm2386 = vcmp.lt.s32.totalorder %v2364, 4
        %v2387 = vsel %vm2383, %v2367, %v2370
        %v2388 = vsel %vm2386, %v2376, 2102212464
        %v2389 = vsel %vm2385, %v2373, %v2388
        %v2390 = vsel %vm2384, %v2387, %v2389
        %v2391 = vsel %vm2383, %v2370, %v2373
        %v2392 = vsel %vm2386, %v2379, 920167782
        %v2393 = vsel %vm2385, %v2376, %v2392
        %v2394 = vsel %vm2384, %v2391, %v2393
        %v2395 = vsel %vm2383, %v2373, %v2376
        %v2396 = vsel %vm2386, %v2382, 1326507024
        %v2397 = vsel %vm2385, %v2379, %v2396
        %v2398 = vsel %vm2384, %v2395, %v2397
        %v2399 = vshll.u32 %v2359, 8
        %v2400 = vand.u32 %v2399, 65535
        %v2401 = vshrl.u32 %v2399, 16
        %v2402 = vand.u32 %v2398, 65535
        %v2403 = vshrl.u32 %v2398, 16
        %v2404 = vmul.u32 %v2400, %v2402
        %v2405 = vmul.u32 %v2400, %v2403
        %v2406 = vmul.u32 %v2401, %v2402
        %v2407 = vmul.u32 %v2401, %v2403
        %v2408 = vshll.u32 %v2405, 16
        %v2409 = vshrl.u32 %v2405, 16
        %v2410 = vshll.u32 %v2406, 16
        %v2411 = vshrl.u32 %v2406, 16
        %vm2412 = vc.u32 %v2404, %v2408
        %v2413 = vsel %vm2412, 1, 0
        %v2414 = vadd.s32 %v2404, %v2408
        %v2415 = vadd.s32 %v2407, %v2413
        %vm2416 = vc.u32 %v2414, %v2410
        %v2417 = vsel %vm2416, 1, 0
        %v2418 = vadd.s32 %v2414, %v2410
        %v2419 = vadd.s32 %v2415, %v2417
        %v2420 = vadd.s32 %v2419, %v2409
        %v2421 = vadd.s32 %v2420, %v2411
        %v2422 = vand.u32 %v2399, 65535
        %v2423 = vshrl.u32 %v2399, 16
        %v2424 = vand.u32 %v2394, 65535
        %v2425 = vshrl.u32 %v2394, 16
        %v2426 = vmul.u32 %v2422, %v2424
        %v2427 = vmul.u32 %v2422, %v2425
        %v2428 = vmul.u32 %v2423, %v2424
        %v2429 = vmul.u32 %v2423, %v2425
        %v2430 = vshll.u32 %v2427, 16
        %v2431 = vshrl.u32 %v2427, 16
        %v2432 = vshll.u32 %v2428, 16
        %v2433 = vshrl.u32 %v2428, 16
        %vm2434 = vc.u32 %v2426, %v2430
        %v2435 = vsel %vm2434, 1, 0
        %v2436 = vadd.s32 %v2426, %v2430
        %v2437 = vadd.s32 %v2429, %v2435
        %vm2438 = vc.u32 %v2436, %v2432
        %v2439 = vsel %vm2438, 1, 0
        %v2440 = vadd.s32 %v2436, %v2432
        %v2441 = vadd.s32 %v2437, %v2439
        %v2442 = vadd.s32 %v2441, %v2431
        %v2443 = vadd.s32 %v2442, %v2433
        %v2444 = vmul.u32 %v2399, %v2390
        %v2445 = vadd.s32 %v2421, %v2440
        %vm2446 = vc.u32 %v2421, %v2440
        %v2447 = vadd.s32 %v2443, 1
        %v2448 = vsel %vm2446, %v2447, %v2443
        %v2449 = vadd.s32 %v2444, %v2448
        %v2450 = vadd.s32 %v2449, 536870912
        %v2451 = vshrl.u32 %v2450, 30
        %v2452 = vshll.u32 %v2451, 30
        %v2453 = vsub.s32 %v2449, %v2452
        %vm2454 = vcmp.lt.s32.totalorder %v2453, 0
        %v2455 = vsub.s32 0, %v2453
        %v2456 = vsel %vm2454, %v2455, %v2453
        %v2457 = vclz %v2456
        %v2458 = vsub.s32 %v2457, 2
        %vm2459 = vcmp.gt.s32.totalorder 0, %v2458
        %v2460 = vsel %vm2459, 0, %v2458
        %v2461 = vsub.s32 32, %v2460
        %v2462 = vshll.u32 %v2453, %v2460
        %v2463 = vshrl.u32 %v2445, %v2461
        %v2464 = vor.u32 %v2462, %v2463
        %v2465 = vsub.s32 4294967266, %v2460
        %v2466 = vadd.s32 %v2465, 127
        %v2467 = vshll.u32 %v2466, 23
        %v2468 = vor.u32 4788187, %v2467
        %v2469 = vand.u32 2147483647, %v2468
        %v2471 = vcvt.s32.f32 %v2464
        %v2472 = vmul.f32 %v2471, %v2469
        %v2473 = vxor.u32 %v2472, 2147483648
        %v2474 = vsel %vm2353, %v2473, %v2472
        %v2475 = vsub.s32 4, %v2451
        %v2476 = vsel %vm2353, %v2475, %v2451
        %v2477 = vsel %vm2352, %v2319, %v2474
        %v2478 = vsel %vm2352, 0, %v2476
        %v2479 = vmul.f32 %v2477, %v2477
        %v2480 = vmul.f32 %v2479, -0.001358992
        %v2481 = vadd.f32 %v2480, 0.041655596
        %v2482 = vmul.f32 %v2479, %v2481
        %v2483 = vadd.f32 %v2482, -0.4999988
        %v2484 = vmul.f32 %v2479, %v2483
        %v2485 = vadd.f32 1.0, %v2484
        %v2486 = vmul.f32 %v2477, %v2477
        %v2487 = vmul.f32 %v2486, -0.00019511016
        %v2488 = vadd.f32 %v2487, 0.008332121
        %v2489 = vmul.f32 %v2486, %v2488
        %v2490 = vadd.f32 %v2489, -0.16666654
        %v2491 = vmul.f32 %v2486, %v2490
        %v2492 = vadd.f32 %v2491, 1.0
        %v2493 = vmul.f32 %v2492, %v2477
        %vm2494 = vweird.f32 %v2319
        %v2495 = vand.u32 %v2478, 3
        %vm2496 = vcmp.lt.s32.totalorder %v2495, 2
        %vm2497 = vcmp.eq.s32.totalorder %v2495, 0
        %v2498 = vxor.u32 %v2493, 2147483648
        %v2499 = vsel %vm2497, %v2485, %v2498
        %vm2500 = vcmp.eq.s32.totalorder %v2495, 2
        %v2501 = vxor.u32 %v2485, 2147483648
        %v2502 = vsel %vm2500, %v2501, %v2493
        %v2503 = vsel %vm2496, %v2499, %v2502
        %v2504 = vsel %vm2494, nan, %v2503
        %v2505 = vand.u32 2147483647, %v2320
        %vm2506 = vcmp.le.f32.partialorder %v2505, 0.7853982
        %vm2507 = vcmp.lt.s32.totalorder %v2320, 0
        %v2508 = vand.u32 %v2320, 2139095040
        %v2509 = vshrl.u32 %v2508, 23
        %v2510 = vsub.s32 %v2509, 127
        %v2511 = vand.u32 2147483647, %v2320
        %v2512 = vand.u32 %v2511, 8388607
        %v2513 = vor.u32 %v2512, 8388608
        %v2514 = vsub.s32 0, %v2513
        %v2515 = vadd.s32 %v2510, 1
        %vm2516 = vcmp.gt.s32.totalorder %v2515, 0
        %v2517 = vsel %vm2516, %v2515, 0
        %v2518 = vshrl.u32 %v2517, 5
        %v2519 = vand.u32 %v2517, 31
        %v2520 = vsub.s32 32, %v2519
        %v2521 = vshrl.u32 683565275, %v2520
        %v2522 = vshll.u32 683565275, %v2519
        %v2523 = vshrl.u32 2475754826, %v2520
        %v2524 = vor.u32 %v2522, %v2523
        %v2525 = vshll.u32 2475754826, %v2519
        %v2526 = vshrl.u32 2131351028, %v2520
        %v2527 = vor.u32 %v2525, %v2526
        %v2528 = vshll.u32 2131351028, %v2519
        %v2529 = vshrl.u32 2102212464, %v2520
        %v2530 = vor.u32 %v2528, %v2529
        %v2531 = vshll.u32 2102212464, %v2519
        %v2532 = vshrl.u32 920167782, %v2520
        %v2533 = vor.u32 %v2531, %v2532
        %v2534 = vshll.u32 920167782, %v2519
        %v2535 = vshrl.u32 1326507024, %v2520
        %v2536 = vor.u32 %v2534, %v2535
        %vm2537 = vcmp.lt.s32.totalorder %v2518, 1
        %vm2538 = vcmp.lt.s32.totalorder %v2518, 2
        %vm2539 = vcmp.lt.s32.totalorder %v2518, 3
        %vm2540 = vcmp.lt.s32.totalorder %v2518, 4
        %v2541 = vsel %vm2537, %v2521, %v2524
        %v2542 = vsel %vm2540, %v2530, 2102212464
        %v2543 = vsel %vm2539, %v2527, %v2542
        %v2544 = vsel %vm2538, %v2541, %v2543
        %v2545 = vsel %vm2537, %v2524, %v2527
        %v2546 = vsel %vm2540, %v2533, 920167782
        %v2547 = vsel %vm2539, %v2530, %v2546
        %v2548 = vsel %vm2538, %v2545, %v2547
        %v2549 = vsel %vm2537, %v2527, %v2530
        %v2550 = vsel %vm2540, %v2536, 1326507024
        %v2551 = vsel %vm2539, %v2533, %v2550
        %v2552 = vsel %vm2538, %v2549, %v2551
        %v2553 = vshll.u32 %v2513, 8
        %v2554 = vand.u32 %v2553, 65535
        %v2555 = vshrl.u32 %v2553, 16
        %v2556 = vand.u32 %v2552, 65535
        %v2557 = vshrl.u32 %v2552, 16
        %v2558 = vmul.u32 %v2554, %v2556
        %v2559 = vmul.u32 %v2554, %v2557
        %v2560 = vmul.u32 %v2555, %v2556
        %v2561 = vmul.u32 %v2555, %v2557
        %v2562 = vshll.u32 %v2559, 16
        %v2563 = vshrl.u32 %v2559, 16
        %v2564 = vshll.u32 %v2560, 16
        %v2565 = vshrl.u32 %v2560, 16
        %vm2566 = vc.u32 %v2558, %v2562
        %v2567 = vsel %vm2566, 1, 0
        %v2568 = vadd.s32 %v2558, %v2562
        %v2569 = vadd.s32 %v2561, %v2567
        %vm2570 = vc.u32 %v2568, %v2564
        %v2571 = vsel %vm2570, 1, 0
        %v2572 = vadd.s32 %v2568, %v2564
        %v2573 = vadd.s32 %v2569, %v2571
        %v2574 = vadd.s32 %v2573, %v2563
        %v2575 = vadd.s32 %v2574, %v2565
        %v2576 = vand.u32 %v2553, 65535
        %v2577 = vshrl.u32 %v2553, 16
        %v2578 = vand.u32 %v2548, 65535
        %v2579 = vshrl.u32 %v2548, 16
        %v2580 = vmul.u32 %v2576, %v2578
        %v2581 = vmul.u32 %v2576, %v2579
        %v2582 = vmul.u32 %v2577, %v2578
        %v2583 = vmul.u32 %v2577, %v2579
        %v2584 = vshll.u32 %v2581, 16
        %v2585 = vshrl.u32 %v2581, 16
        %v2586 = vshll.u32 %v2582, 16
        %v2587 = vshrl.u32 %v2582, 16
        %vm2588 = vc.u32 %v2580, %v2584
        %v2589 = vsel %vm2588, 1, 0
        %v2590 = vadd.s32 %v2580, %v2584
        %v2591 = vadd.s32 %v2583, %v2589
        %vm2592 = vc.u32 %v2590, %v2586
        %v2593 = vsel %vm2592, 1, 0
        %v2594 = vadd.s32 %v2590, %v2586
        %v2595 = vadd.s32 %v2591, %v2593
        %v2596 = vadd.s32 %v2595, %v2585
        %v2597 = vadd.s32 %v2596, %v2587
        %v2598 = vmul.u32 %v2553, %v2544
        %v2599 = vadd.s32 %v2575, %v2594
        %vm2600 = vc.u32 %v2575, %v2594
        %v2601 = vadd.s32 %v2597, 1
        %v2602 = vsel %vm2600, %v2601, %v2597
        %v2603 = vadd.s32 %v2598, %v2602
        %v2604 = vadd.s32 %v2603, 536870912
        %v2605 = vshrl.u32 %v2604, 30
        %v2606 = vshll.u32 %v2605, 30
        %v2607 = vsub.s32 %v2603, %v2606
        %vm2608 = vcmp.lt.s32.totalorder %v2607, 0
        %v2609 = vsub.s32 0, %v2607
        %v2610 = vsel %vm2608, %v2609, %v2607
        %v2611 = vclz %v2610
        %v2612 = vsub.s32 %v2611, 2
        %vm2613 = vcmp.gt.s32.totalorder 0, %v2612
        %v2614 = vsel %vm2613, 0, %v2612
        %v2615 = vsub.s32 32, %v2614
        %v2616 = vshll.u32 %v2607, %v2614
        %v2617 = vshrl.u32 %v2599, %v2615
        %v2618 = vor.u32 %v2616, %v2617
        %v2619 = vsub.s32 4294967266, %v2614
        %v2620 = vadd.s32 %v2619, 127
        %v2621 = vshll.u32 %v2620, 23
        %v2622 = vor.u32 4788187, %v2621
        %v2623 = vand.u32 2147483647, %v2622
        %v2625 = vcvt.s32.f32 %v2618
        %v2626 = vmul.f32 %v2625, %v2623
        %v2627 = vxor.u32 %v2626, 2147483648
        %v2628 = vsel %vm2507, %v2627, %v2626
        %v2629 = vsub.s32 4, %v2605
        %v2630 = vsel %vm2507, %v2629, %v2605
        %v2631 = vsel %vm2506, %v2320, %v2628
        %v2632 = vsel %vm2506, 0, %v2630
        %v2633 = vmul.f32 %v2631, %v2631
        %v2634 = vmul.f32 %v2633, -0.001358992
        %v2635 = vadd.f32 %v2634, 0.041655596
        %v2636 = vmul.f32 %v2633, %v2635
        %v2637 = vadd.f32 %v2636, -0.4999988
        %v2638 = vmul.f32 %v2633, %v2637
        %v2639 = vadd.f32 1.0, %v2638
        %v2640 = vmul.f32 %v2631, %v2631
        %v2641 = vmul.f32 %v2640, -0.00019511016
        %v2642 = vadd.f32 %v2641, 0.008332121
        %v2643 = vmul.f32 %v2640, %v2642
        %v2644 = vadd.f32 %v2643, -0.16666654
        %v2645 = vmul.f32 %v2640, %v2644
        %v2646 = vadd.f32 %v2645, 1.0
        %v2647 = vmul.f32 %v2646, %v2631
        %vm2648 = vweird.f32 %v2320
        %v2649 = vand.u32 %v2632, 3
        %vm2650 = vcmp.lt.s32.totalorder %v2649, 2
        %vm2651 = vcmp.eq.s32.totalorder %v2649, 0
        %v2652 = vxor.u32 %v2647, 2147483648
        %v2653 = vsel %vm2651, %v2639, %v2652
        %vm2654 = vcmp.eq.s32.totalorder %v2649, 2
        %v2655 = vxor.u32 %v2639, 2147483648
        %v2656 = vsel %vm2654, %v2655, %v2647
        %v2657 = vsel %vm2650, %v2653, %v2656
        %v2658 = vsel %vm2648, nan, %v2657
        %v2659 = vand.u32 2147483647, %v2321
        %vm2660 = vcmp.le.f32.partialorder %v2659, 0.7853982
        %vm2661 = vcmp.lt.s32.totalorder %v2321, 0
        %v2662 = vand.u32 %v2321, 2139095040
        %v2663 = vshrl.u32 %v2662, 23
        %v2664 = vsub.s32 %v2663, 127
        %v2665 = vand.u32 2147483647, %v2321
        %v2666 = vand.u32 %v2665, 8388607
        %v2667 = vor.u32 %v2666, 8388608
        %v2668 = vsub.s32 0, %v2667
        %v2669 = vadd.s32 %v2664, 1
        %vm2670 = vcmp.gt.s32.totalorder %v2669, 0
        %v2671 = vsel %vm2670, %v2669, 0
        %v2672 = vshrl.u32 %v2671, 5
        %v2673 = vand.u32 %v2671, 31
        %v2674 = vsub.s32 32, %v2673
        %v2675 = vshrl.u32 683565275, %v2674
        %v2676 = vshll.u32 683565275, %v2673
        %v2677 = vshrl.u32 2475754826, %v2674
        %v2678 = vor.u32 %v2676, %v2677
        %v2679 = vshll.u32 2475754826, %v2673
        %v2680 = vshrl.u32 2131351028, %v2674
        %v2681 = vor.u32 %v2679, %v2680
        %v2682 = vshll.u32 2131351028, %v2673
        %v2683 = vshrl.u32 2102212464, %v2674
        %v2684 = vor.u32 %v2682, %v2683
        %v2685 = vshll.u32 2102212464, %v2673
        %v2686 = vshrl.u32 920167782, %v2674
        %v2687 = vor.u32 %v2685, %v2686
        %v2688 = vshll.u32 920167782, %v2673
        %v2689 = vshrl.u32 1326507024, %v2674
        %v2690 = vor.u32 %v2688, %v2689
        %vm2691 = vcmp.lt.s32.totalorder %v2672, 1
        %vm2692 = vcmp.lt.s32.totalorder %v2672, 2
        %vm2693 = vcmp.lt.s32.totalorder %v2672, 3
        %vm2694 = vcmp.lt.s32.totalorder %v2672, 4
        %v2695 = vsel %vm2691, %v2675, %v2678
        %v2696 = vsel %vm2694, %v2684, 2102212464
        %v2697 = vsel %vm2693, %v2681, %v2696
        %v2698 = vsel %vm2692, %v2695, %v2697
        %v2699 = vsel %vm2691, %v2678, %v2681
        %v2700 = vsel %vm2694, %v2687, 920167782
        %v2701 = vsel %vm2693, %v2684, %v2700
        %v2702 = vsel %vm2692, %v2699, %v2701
        %v2703 = vsel %vm2691, %v2681, %v2684
        %v2704 = vsel %vm2694, %v2690, 1326507024
        %v2705 = vsel %vm2693, %v2687, %v2704
        %v2706 = vsel %vm2692, %v2703, %v2705
        %v2707 = vshll.u32 %v2667, 8
        %v2708 = vand.u32 %v2707, 65535
        %v2709 = vshrl.u32 %v2707, 16
        %v2710 = vand.u32 %v2706, 65535
        %v2711 = vshrl.u32 %v2706, 16
        %v2712 = vmul.u32 %v2708, %v2710
        %v2713 = vmul.u32 %v2708, %v2711
        %v2714 = vmul.u32 %v2709, %v2710
        %v2715 = vmul.u32 %v2709, %v2711
        %v2716 = vshll.u32 %v2713, 16
        %v2717 = vshrl.u32 %v2713, 16
        %v2718 = vshll.u32 %v2714, 16
        %v2719 = vshrl.u32 %v2714, 16
        %vm2720 = vc.u32 %v2712, %v2716
        %v2721 = vsel %vm2720, 1, 0
        %v2722 = vadd.s32 %v2712, %v2716
        %v2723 = vadd.s32 %v2715, %v2721
        %vm2724 = vc.u32 %v2722, %v2718
        %v2725 = vsel %vm2724, 1, 0
        %v2726 = vadd.s32 %v2722, %v2718
        %v2727 = vadd.s32 %v2723, %v2725
        %v2728 = vadd.s32 %v2727, %v2717
        %v2729 = vadd.s32 %v2728, %v2719
        %v2730 = vand.u32 %v2707, 65535
        %v2731 = vshrl.u32 %v2707, 16
        %v2732 = vand.u32 %v2702, 65535
        %v2733 = vshrl.u32 %v2702, 16
        %v2734 = vmul.u32 %v2730, %v2732
        %v2735 = vmul.u32 %v2730, %v2733
        %v2736 = vmul.u32 %v2731, %v2732
        %v2737 = vmul.u32 %v2731, %v2733
        %v2738 = vshll.u32 %v2735, 16
        %v2739 = vshrl.u32 %v2735, 16
        %v2740 = vshll.u32 %v2736, 16
        %v2741 = vshrl.u32 %v2736, 16
        %vm2742 = vc.u32 %v2734, %v2738
        %v2743 = vsel %vm2742, 1, 0
        %v2744 = vadd.s32 %v2734, %v2738
        %v2745 = vadd.s32 %v2737, %v2743
        %vm2746 = vc.u32 %v2744, %v2740
        %v2747 = vsel %vm2746, 1, 0
        %v2748 = vadd.s32 %v2744, %v2740
        %v2749 = vadd.s32 %v2745, %v2747
        %v2750 = vadd.s32 %v2749, %v2739
        %v2751 = vadd.s32 %v2750, %v2741
        %v2752 = vmul.u32 %v2707, %v2698
        %v2753 = vadd.s32 %v2729, %v2748
        %vm2754 = vc.u32 %v2729, %v2748
        %v2755 = vadd.s32 %v2751, 1
        %v2756 = vsel %vm2754, %v2755, %v2751
        %v2757 = vadd.s32 %v2752, %v2756
        %v2758 = vadd.s32 %v2757, 536870912
        %v2759 = vshrl.u32 %v2758, 30
        %v2760 = vshll.u32 %v2759, 30
        %v2761 = vsub.s32 %v2757, %v2760
        %vm2762 = vcmp.lt.s32.totalorder %v2761, 0
        %v2763 = vsub.s32 0, %v2761
        %v2764 = vsel %vm2762, %v2763, %v2761
        %v2765 = vclz %v2764
        %v2766 = vsub.s32 %v2765, 2
        %vm2767 = vcmp.gt.s32.totalorder 0, %v2766
        %v2768 = vsel %vm2767, 0, %v2766
        %v2769 = vsub.s32 32, %v2768
        %v2770 = vshll.u32 %v2761, %v2768
        %v2771 = vshrl.u32 %v2753, %v2769
        %v2772 = vor.u32 %v2770, %v2771
        %v2773 = vsub.s32 4294967266, %v2768
        %v2774 = vadd.s32 %v2773, 127
        %v2775 = vshll.u32 %v2774, 23
        %v2776 = vor.u32 4788187, %v2775
        %v2777 = vand.u32 2147483647, %v2776
        %v2779 = vcvt.s32.f32 %v2772
        %v2780 = vmul.f32 %v2779, %v2777
        %v2781 = vxor.u32 %v2780, 2147483648
        %v2782 = vsel %vm2661, %v2781, %v2780
        %v2783 = vsub.s32 4, %v2759
        %v2784 = vsel %vm2661, %v2783, %v2759
        %v2785 = vsel %vm2660, %v2321, %v2782
        %v2786 = vsel %vm2660, 0, %v2784
        %v2787 = vmul.f32 %v2785, %v2785
        %v2788 = vmul.f32 %v2787, -0.001358992
        %v2789 = vadd.f32 %v2788, 0.041655596
        %v2790 = vmul.f32 %v2787, %v2789
        %v2791 = vadd.f32 %v2790, -0.4999988
        %v2792 = vmul.f32 %v2787, %v2791
        %v2793 = vadd.f32 1.0, %v2792
        %v2794 = vmul.f32 %v2785, %v2785
        %v2795 = vmul.f32 %v2794, -0.00019511016
        %v2796 = vadd.f32 %v2795, 0.008332121
        %v2797 = vmul.f32 %v2794, %v2796
        %v2798 = vadd.f32 %v2797, -0.16666654
        %v2799 = vmul.f32 %v2794, %v2798
        %v2800 = vadd.f32 %v2799, 1.0
        %v2801 = vmul.f32 %v2800, %v2785
        %vm2802 = vweird.f32 %v2321
        %v2803 = vand.u32 %v2786, 3
        %vm2804 = vcmp.lt.s32.totalorder %v2803, 2
        %vm2805 = vcmp.eq.s32.totalorder %v2803, 0
        %v2806 = vxor.u32 %v2801, 2147483648
        %v2807 = vsel %vm2805, %v2793, %v2806
        %vm2808 = vcmp.eq.s32.totalorder %v2803, 2
        %v2809 = vxor.u32 %v2793, 2147483648
        %v2810 = vsel %vm2808, %v2809, %v2801
        %v2811 = vsel %vm2804, %v2807, %v2810
        %v2812 = vsel %vm2802, nan, %v2811
        %v2813 = vand.u32 2147483647, %v2322
        %vm2814 = vcmp.le.f32.partialorder %v2813, 0.7853982
        %vm2815 = vcmp.lt.s32.totalorder %v2322, 0
        %v2816 = vand.u32 %v2322, 2139095040
        %v2817 = vshrl.u32 %v2816, 23
        %v2818 = vsub.s32 %v2817, 127
        %v2819 = vand.u32 2147483647, %v2322
        %v2820 = vand.u32 %v2819, 8388607
        %v2821 = vor.u32 %v2820, 8388608
        %v2822 = vsub.s32 0, %v2821
        %v2823 = vadd.s32 %v2818, 1
        %vm2824 = vcmp.gt.s32.totalorder %v2823, 0
        %v2825 = vsel %vm2824, %v2823, 0
        %v2826 = vshrl.u32 %v2825, 5
        %v2827 = vand.u32 %v2825, 31
        %v2828 = vsub.s32 32, %v2827
        %v2829 = vshrl.u32 683565275, %v2828
        %v2830 = vshll.u32 683565275, %v2827
        %v2831 = vshrl.u32 2475754826, %v2828
        %v2832 = vor.u32 %v2830, %v2831
        %v2833 = vshll.u32 2475754826, %v2827
        %v2834 = vshrl.u32 2131351028, %v2828
        %v2835 = vor.u32 %v2833, %v2834
        %v2836 = vshll.u32 2131351028, %v2827
        %v2837 = vshrl.u32 2102212464, %v2828
        %v2838 = vor.u32 %v2836, %v2837
        %v2839 = vshll.u32 2102212464, %v2827
        %v2840 = vshrl.u32 920167782, %v2828
        %v2841 = vor.u32 %v2839, %v2840
        %v2842 = vshll.u32 920167782, %v2827
        %v2843 = vshrl.u32 1326507024, %v2828
        %v2844 = vor.u32 %v2842, %v2843
        %vm2845 = vcmp.lt.s32.totalorder %v2826, 1
        %vm2846 = vcmp.lt.s32.totalorder %v2826, 2
        %vm2847 = vcmp.lt.s32.totalorder %v2826, 3
        %vm2848 = vcmp.lt.s32.totalorder %v2826, 4
        %v2849 = vsel %vm2845, %v2829, %v2832
        %v2850 = vsel %vm2848, %v2838, 2102212464
        %v2851 = vsel %vm2847, %v2835, %v2850
        %v2852 = vsel %vm2846, %v2849, %v2851
        %v2853 = vsel %vm2845, %v2832, %v2835
        %v2854 = vsel %vm2848, %v2841, 920167782
        %v2855 = vsel %vm2847, %v2838, %v2854
        %v2856 = vsel %vm2846, %v2853, %v2855
        %v2857 = vsel %vm2845, %v2835, %v2838
        %v2858 = vsel %vm2848, %v2844, 1326507024
        %v2859 = vsel %vm2847, %v2841, %v2858
        %v2860 = vsel %vm2846, %v2857, %v2859
        %v2861 = vshll.u32 %v2821, 8
        %v2862 = vand.u32 %v2861, 65535
        %v2863 = vshrl.u32 %v2861, 16
        %v2864 = vand.u32 %v2860, 65535
        %v2865 = vshrl.u32 %v2860, 16
        %v2866 = vmul.u32 %v2862, %v2864
        %v2867 = vmul.u32 %v2862, %v2865
        %v2868 = vmul.u32 %v2863, %v2864
        %v2869 = vmul.u32 %v2863, %v2865
        %v2870 = vshll.u32 %v2867, 16
        %v2871 = vshrl.u32 %v2867, 16
        %v2872 = vshll.u32 %v2868, 16
        %v2873 = vshrl.u32 %v2868, 16
        %vm2874 = vc.u32 %v2866, %v2870
        %v2875 = vsel %vm2874, 1, 0
        %v2876 = vadd.s32 %v2866, %v2870
        %v2877 = vadd.s32 %v2869, %v2875
        %vm2878 = vc.u32 %v2876, %v2872
        %v2879 = vsel %vm2878, 1, 0
        %v2880 = vadd.s32 %v2876, %v2872
        %v2881 = vadd.s32 %v2877, %v2879
        %v2882 = vadd.s32 %v2881, %v2871
        %v2883 = vadd.s32 %v2882, %v2873
        %v2884 = vand.u32 %v2861, 65535
        %v2885 = vshrl.u32 %v2861, 16
        %v2886 = vand.u32 %v2856, 65535
        %v2887 = vshrl.u32 %v2856, 16
        %v2888 = vmul.u32 %v2884, %v2886
        %v2889 = vmul.u32 %v2884, %v2887
        %v2890 = vmul.u32 %v2885, %v2886
        %v2891 = vmul.u32 %v2885, %v2887
        %v2892 = vshll.u32 %v2889, 16
        %v2893 = vshrl.u32 %v2889, 16
        %v2894 = vshll.u32 %v2890, 16
        %v2895 = vshrl.u32 %v2890, 16
        %vm2896 = vc.u32 %v2888, %v2892
        %v2897 = vsel %vm2896, 1, 0
        %v2898 = vadd.s32 %v2888, %v2892
        %v2899 = vadd.s32 %v2891, %v2897
        %vm2900 = vc.u32 %v2898, %v2894
        %v2901 = vsel %vm2900, 1, 0
        %v2902 = vadd.s32 %v2898, %v2894
        %v2903 = vadd.s32 %v2899, %v2901
        %v2904 = vadd.s32 %v2903, %v2893
        %v2905 = vadd.s32 %v2904, %v2895
        %v2906 = vmul.u32 %v2861, %v2852
        %v2907 = vadd.s32 %v2883, %v2902
        %vm2908 = vc.u32 %v2883, %v2902
        %v2909 = vadd.s32 %v2905, 1
        %v2910 = vsel %vm2908, %v2909, %v2905
        %v2911 = vadd.s32 %v2906, %v2910
        %v2912 = vadd.s32 %v2911, 536870912
        %v2913 = vshrl.u32 %v2912, 30
        %v2914 = vshll.u32 %v2913, 30
        %v2915 = vsub.s32 %v2911, %v2914
        %vm2916 = vcmp.lt.s32.totalorder %v2915, 0
        %v2917 = vsub.s32 0, %v2915
        %v2918 = vsel %vm2916, %v2917, %v2915
        %v2919 = vclz %v2918
        %v2920 = vsub.s32 %v2919, 2
        %vm2921 = vcmp.gt.s32.totalorder 0, %v2920
        %v2922 = vsel %vm2921, 0, %v2920
        %v2923 = vsub.s32 32, %v2922
        %v2924 = vshll.u32 %v2915, %v2922
        %v2925 = vshrl.u32 %v2907, %v2923
        %v2926 = vor.u32 %v2924, %v2925
        %v2927 = vsub.s32 4294967266, %v2922
        %v2928 = vadd.s32 %v2927, 127
        %v2929 = vshll.u32 %v2928, 23
        %v2930 = vor.u32 4788187, %v2929
        %v2931 = vand.u32 2147483647, %v2930
        %v2933 = vcvt.s32.f32 %v2926
        %v2934 = vmul.f32 %v2933, %v2931
        %v2935 = vxor.u32 %v2934, 2147483648
        %v2936 = vsel %vm2815, %v2935, %v2934
        %v2937 = vsub.s32 4, %v2913
        %v2938 = vsel %vm2815, %v2937, %v2913
        %v2939 = vsel %vm2814, %v2322, %v2936
        %v2940 = vsel %vm2814, 0, %v2938
        %v2941 = vmul.f32 %v2939, %v2939
        %v2942 = vmul.f32 %v2941, -0.001358992
        %v2943 = vadd.f32 %v2942, 0.041655596
        %v2944 = vmul.f32 %v2941, %v2943
        %v2945 = vadd.f32 %v2944, -0.4999988
        %v2946 = vmul.f32 %v2941, %v2945
        %v2947 = vadd.f32 1.0, %v2946
        %v2948 = vmul.f32 %v2939, %v2939
        %v2949 = vmul.f32 %v2948, -0.00019511016
        %v2950 = vadd.f32 %v2949, 0.008332121
        %v2951 = vmul.f32 %v2948, %v2950
        %v2952 = vadd.f32 %v2951, -0.16666654
        %v2953 = vmul.f32 %v2948, %v2952
        %v2954 = vadd.f32 %v2953, 1.0
        %v2955 = vmul.f32 %v2954, %v2939
        %vm2956 = vweird.f32 %v2322
        %v2957 = vand.u32 %v2940, 3
        %vm2958 = vcmp.lt.s32.totalorder %v2957, 2
        %vm2959 = vcmp.eq.s32.totalorder %v2957, 0
        %v2960 = vxor.u32 %v2955, 2147483648
        %v2961 = vsel %vm2959, %v2947, %v2960
        %vm2962 = vcmp.eq.s32.totalorder %v2957, 2
        %v2963 = vxor.u32 %v2947, 2147483648
        %v2964 = vsel %vm2962, %v2963, %v2955
        %v2965 = vsel %vm2958, %v2961, %v2964
        %v2966 = vsel %vm2956, nan, %v2965
        %v2967 = vand.u32 2147483647, %v2323
        %vm2968 = vcmp.le.f32.partialorder %v2967, 0.7853982
        %vm2969 = vcmp.lt.s32.totalorder %v2323, 0
        %v2970 = vand.u32 %v2323, 2139095040
        %v2971 = vshrl.u32 %v2970, 23
        %v2972 = vsub.s32 %v2971, 127
        %v2973 = vand.u32 2147483647, %v2323
        %v2974 = vand.u32 %v2973, 8388607
        %v2975 = vor.u32 %v2974, 8388608
        %v2976 = vsub.s32 0, %v2975
        %v2977 = vadd.s32 %v2972, 1
        %vm2978 = vcmp.gt.s32.totalorder %v2977, 0
        %v2979 = vsel %vm2978, %v2977, 0
        %v2980 = vshrl.u32 %v2979, 5
        %v2981 = vand.u32 %v2979, 31
        %v2982 = vsub.s32 32, %v2981
        %v2983 = vshrl.u32 683565275, %v2982
        %v2984 = vshll.u32 683565275, %v2981
        %v2985 = vshrl.u32 2475754826, %v2982
        %v2986 = vor.u32 %v2984, %v2985
        %v2987 = vshll.u32 2475754826, %v2981
        %v2988 = vshrl.u32 2131351028, %v2982
        %v2989 = vor.u32 %v2987, %v2988
        %v2990 = vshll.u32 2131351028, %v2981
        %v2991 = vshrl.u32 2102212464, %v2982
        %v2992 = vor.u32 %v2990, %v2991
        %v2993 = vshll.u32 2102212464, %v2981
        %v2994 = vshrl.u32 920167782, %v2982
        %v2995 = vor.u32 %v2993, %v2994
        %v2996 = vshll.u32 920167782, %v2981
        %v2997 = vshrl.u32 1326507024, %v2982
        %v2998 = vor.u32 %v2996, %v2997
        %vm2999 = vcmp.lt.s32.totalorder %v2980, 1
        %vm3000 = vcmp.lt.s32.totalorder %v2980, 2
        %vm3001 = vcmp.lt.s32.totalorder %v2980, 3
        %vm3002 = vcmp.lt.s32.totalorder %v2980, 4
        %v3003 = vsel %vm2999, %v2983, %v2986
        %v3004 = vsel %vm3002, %v2992, 2102212464
        %v3005 = vsel %vm3001, %v2989, %v3004
        %v3006 = vsel %vm3000, %v3003, %v3005
        %v3007 = vsel %vm2999, %v2986, %v2989
        %v3008 = vsel %vm3002, %v2995, 920167782
        %v3009 = vsel %vm3001, %v2992, %v3008
        %v3010 = vsel %vm3000, %v3007, %v3009
        %v3011 = vsel %vm2999, %v2989, %v2992
        %v3012 = vsel %vm3002, %v2998, 1326507024
        %v3013 = vsel %vm3001, %v2995, %v3012
        %v3014 = vsel %vm3000, %v3011, %v3013
        %v3015 = vshll.u32 %v2975, 8
        %v3016 = vand.u32 %v3015, 65535
        %v3017 = vshrl.u32 %v3015, 16
        %v3018 = vand.u32 %v3014, 65535
        %v3019 = vshrl.u32 %v3014, 16
        %v3020 = vmul.u32 %v3016, %v3018
        %v3021 = vmul.u32 %v3016, %v3019
        %v3022 = vmul.u32 %v3017, %v3018
        %v3023 = vmul.u32 %v3017, %v3019
        %v3024 = vshll.u32 %v3021, 16
        %v3025 = vshrl.u32 %v3021, 16
        %v3026 = vshll.u32 %v3022, 16
        %v3027 = vshrl.u32 %v3022, 16
        %vm3028 = vc.u32 %v3020, %v3024
        %v3029 = vsel %vm3028, 1, 0
        %v3030 = vadd.s32 %v3020, %v3024
        %v3031 = vadd.s32 %v3023, %v3029
        %vm3032 = vc.u32 %v3030, %v3026
        %v3033 = vsel %vm3032, 1, 0
        %v3034 = vadd.s32 %v3030, %v3026
        %v3035 = vadd.s32 %v3031, %v3033
        %v3036 = vadd.s32 %v3035, %v3025
        %v3037 = vadd.s32 %v3036, %v3027
        %v3038 = vand.u32 %v3015, 65535
        %v3039 = vshrl.u32 %v3015, 16
        %v3040 = vand.u32 %v3010, 65535
        %v3041 = vshrl.u32 %v3010, 16
        %v3042 = vmul.u32 %v3038, %v3040
        %v3043 = vmul.u32 %v3038, %v3041
        %v3044 = vmul.u32 %v3039, %v3040
        %v3045 = vmul.u32 %v3039, %v3041
        %v3046 = vshll.u32 %v3043, 16
        %v3047 = vshrl.u32 %v3043, 16
        %v3048 = vshll.u32 %v3044, 16
        %v3049 = vshrl.u32 %v3044, 16
        %vm3050 = vc.u32 %v3042, %v3046
        %v3051 = vsel %vm3050, 1, 0
        %v3052 = vadd.s32 %v3042, %v3046
        %v3053 = vadd.s32 %v3045, %v3051
        %vm3054 = vc.u32 %v3052, %v3048
        %v3055 = vsel %vm3054, 1, 0
        %v3056 = vadd.s32 %v3052, %v3048
        %v3057 = vadd.s32 %v3053, %v3055
        %v3058 = vadd.s32 %v3057, %v3047
        %v3059 = vadd.s32 %v3058, %v3049
        %v3060 = vmul.u32 %v3015, %v3006
        %v3061 = vadd.s32 %v3037, %v3056
        %vm3062 = vc.u32 %v3037, %v3056
        %v3063 = vadd.s32 %v3059, 1
        %v3064 = vsel %vm3062, %v3063, %v3059
        %v3065 = vadd.s32 %v3060, %v3064
        %v3066 = vadd.s32 %v3065, 536870912
        %v3067 = vshrl.u32 %v3066, 30
        %v3068 = vshll.u32 %v3067, 30
        %v3069 = vsub.s32 %v3065, %v3068
        %vm3070 = vcmp.lt.s32.totalorder %v3069, 0
        %v3071 = vsub.s32 0, %v3069
        %v3072 = vsel %vm3070, %v3071, %v3069
        %v3073 = vclz %v3072
        %v3074 = vsub.s32 %v3073, 2
        %vm3075 = vcmp.gt.s32.totalorder 0, %v3074
        %v3076 = vsel %vm3075, 0, %v3074
        %v3077 = vsub.s32 32, %v3076
        %v3078 = vshll.u32 %v3069, %v3076
        %v3079 = vshrl.u32 %v3061, %v3077
        %v3080 = vor.u32 %v3078, %v3079
        %v3081 = vsub.s32 4294967266, %v3076
        %v3082 = vadd.s32 %v3081, 127
        %v3083 = vshll.u32 %v3082, 23
        %v3084 = vor.u32 4788187, %v3083
        %v3085 = vand.u32 2147483647, %v3084
        %v3087 = vcvt.s32.f32 %v3080
        %v3088 = vmul.f32 %v3087, %v3085
        %v3089 = vxor.u32 %v3088, 2147483648
        %v3090 = vsel %vm2969, %v3089, %v3088
        %v3091 = vsub.s32 4, %v3067
        %v3092 = vsel %vm2969, %v3091, %v3067
        %v3093 = vsel %vm2968, %v2323, %v3090
        %v3094 = vsel %vm2968, 0, %v3092
        %v3095 = vmul.f32 %v3093, %v3093
        %v3096 = vmul.f32 %v3095, -0.001358992
        %v3097 = vadd.f32 %v3096, 0.041655596
        %v3098 = vmul.f32 %v3095, %v3097
        %v3099 = vadd.f32 %v3098, -0.4999988
        %v3100 = vmul.f32 %v3095, %v3099
        %v3101 = vadd.f32 1.0, %v3100
        %v3102 = vmul.f32 %v3093, %v3093
        %v3103 = vmul.f32 %v3102, -0.00019511016
        %v3104 = vadd.f32 %v3103, 0.008332121
        %v3105 = vmul.f32 %v3102, %v3104
        %v3106 = vadd.f32 %v3105, -0.16666654
        %v3107 = vmul.f32 %v3102, %v3106
        %v3108 = vadd.f32 %v3107, 1.0
        %v3109 = vmul.f32 %v3108, %v3093
        %vm3110 = vweird.f32 %v2323
        %v3111 = vand.u32 %v3094, 3
        %vm3112 = vcmp.lt.s32.totalorder %v3111, 2
        %vm3113 = vcmp.eq.s32.totalorder %v3111, 0
        %v3114 = vxor.u32 %v3109, 2147483648
        %v3115 = vsel %vm3113, %v3101, %v3114
        %vm3116 = vcmp.eq.s32.totalorder %v3111, 2
        %v3117 = vxor.u32 %v3101, 2147483648
        %v3118 = vsel %vm3116, %v3117, %v3109
        %v3119 = vsel %vm3112, %v3115, %v3118
        %v3120 = vsel %vm3110, nan, %v3119
        %v3121 = vand.u32 2147483647, %v2324
        %vm3122 = vcmp.le.f32.partialorder %v3121, 0.7853982
        %vm3123 = vcmp.lt.s32.totalorder %v2324, 0
        %v3124 = vand.u32 %v2324, 2139095040
        %v3125 = vshrl.u32 %v3124, 23
        %v3126 = vsub.s32 %v3125, 127
        %v3127 = vand.u32 2147483647, %v2324
        %v3128 = vand.u32 %v3127, 8388607
        %v3129 = vor.u32 %v3128, 8388608
        %v3130 = vsub.s32 0, %v3129
        %v3131 = vadd.s32 %v3126, 1
        %vm3132 = vcmp.gt.s32.totalorder %v3131, 0
        %v3133 = vsel %vm3132, %v3131, 0
        %v3134 = vshrl.u32 %v3133, 5
        %v3135 = vand.u32 %v3133, 31
        %v3136 = vsub.s32 32, %v3135
        %v3137 = vshrl.u32 683565275, %v3136
        %v3138 = vshll.u32 683565275, %v3135
        %v3139 = vshrl.u32 2475754826, %v3136
        %v3140 = vor.u32 %v3138, %v3139
        %v3141 = vshll.u32 2475754826, %v3135
        %v3142 = vshrl.u32 2131351028, %v3136
        %v3143 = vor.u32 %v3141, %v3142
        %v3144 = vshll.u32 2131351028, %v3135
        %v3145 = vshrl.u32 2102212464, %v3136
        %v3146 = vor.u32 %v3144, %v3145
        %v3147 = vshll.u32 2102212464, %v3135
        %v3148 = vshrl.u32 920167782, %v3136
        %v3149 = vor.u32 %v3147, %v3148
        %v3150 = vshll.u32 920167782, %v3135
        %v3151 = vshrl.u32 1326507024, %v3136
        %v3152 = vor.u32 %v3150, %v3151
        %vm3153 = vcmp.lt.s32.totalorder %v3134, 1
        %vm3154 = vcmp.lt.s32.totalorder %v3134, 2
        %vm3155 = vcmp.lt.s32.totalorder %v3134, 3
        %vm3156 = vcmp.lt.s32.totalorder %v3134, 4
        %v3157 = vsel %vm3153, %v3137, %v3140
        %v3158 = vsel %vm3156, %v3146, 2102212464
        %v3159 = vsel %vm3155, %v3143, %v3158
        %v3160 = vsel %vm3154, %v3157, %v3159
        %v3161 = vsel %vm3153, %v3140, %v3143
        %v3162 = vsel %vm3156, %v3149, 920167782
        %v3163 = vsel %vm3155, %v3146, %v3162
        %v3164 = vsel %vm3154, %v3161, %v3163
        %v3165 = vsel %vm3153, %v3143, %v3146
        %v3166 = vsel %vm3156, %v3152, 1326507024
        %v3167 = vsel %vm3155, %v3149, %v3166
        %v3168 = vsel %vm3154, %v3165, %v3167
        %v3169 = vshll.u32 %v3129, 8
        %v3170 = vand.u32 %v3169, 65535
        %v3171 = vshrl.u32 %v3169, 16
        %v3172 = vand.u32 %v3168, 65535
        %v3173 = vshrl.u32 %v3168, 16
        %v3174 = vmul.u32 %v3170, %v3172
        %v3175 = vmul.u32 %v3170, %v3173
        %v3176 = vmul.u32 %v3171, %v3172
        %v3177 = vmul.u32 %v3171, %v3173
        %v3178 = vshll.u32 %v3175, 16
        %v3179 = vshrl.u32 %v3175, 16
        %v3180 = vshll.u32 %v3176, 16
        %v3181 = vshrl.u32 %v3176, 16
        %vm3182 = vc.u32 %v3174, %v3178
        %v3183 = vsel %vm3182, 1, 0
        %v3184 = vadd.s32 %v3174, %v3178
        %v3185 = vadd.s32 %v3177, %v3183
        %vm3186 = vc.u32 %v3184, %v3180
        %v3187 = vsel %vm3186, 1, 0
        %v3188 = vadd.s32 %v3184, %v3180
        %v3189 = vadd.s32 %v3185, %v3187
        %v3190 = vadd.s32 %v3189, %v3179
        %v3191 = vadd.s32 %v3190, %v3181
        %v3192 = vand.u32 %v3169, 65535
        %v3193 = vshrl.u32 %v3169, 16
        %v3194 = vand.u32 %v3164, 65535
        %v3195 = vshrl.u32 %v3164, 16
        %v3196 = vmul.u32 %v3192, %v3194
        %v3197 = vmul.u32 %v3192, %v3195
        %v3198 = vmul.u32 %v3193, %v3194
        %v3199 = vmul.u32 %v3193, %v3195
        %v3200 = vshll.u32 %v3197, 16
        %v3201 = vshrl.u32 %v3197, 16
        %v3202 = vshll.u32 %v3198, 16
        %v3203 = vshrl.u32 %v3198, 16
        %vm3204 = vc.u32 %v3196, %v3200
        %v3205 = vsel %vm3204, 1, 0
        %v3206 = vadd.s32 %v3196, %v3200
        %v3207 = vadd.s32 %v3199, %v3205
        %vm3208 = vc.u32 %v3206, %v3202
        %v3209 = vsel %vm3208, 1, 0
        %v3210 = vadd.s32 %v3206, %v3202
        %v3211 = vadd.s32 %v3207, %v3209
        %v3212 = vadd.s32 %v3211, %v3201
        %v3213 = vadd.s32 %v3212, %v3203
        %v3214 = vmul.u32 %v3169, %v3160
        %v3215 = vadd.s32 %v3191, %v3210
        %vm3216 = vc.u32 %v3191, %v3210
        %v3217 = vadd.s32 %v3213, 1
        %v3218 = vsel %vm3216, %v3217, %v3213
        %v3219 = vadd.s32 %v3214, %v3218
        %v3220 = vadd.s32 %v3219, 536870912
        %v3221 = vshrl.u32 %v3220, 30
        %v3222 = vshll.u32 %v3221, 30
        %v3223 = vsub.s32 %v3219, %v3222
        %vm3224 = vcmp.lt.s32.totalorder %v3223, 0
        %v3225 = vsub.s32 0, %v3223
        %v3226 = vsel %vm3224, %v3225, %v3223
        %v3227 = vclz %v3226
        %v3228 = vsub.s32 %v3227, 2
        %vm3229 = vcmp.gt.s32.totalorder 0, %v3228
        %v3230 = vsel %vm3229, 0, %v3228
        %v3231 = vsub.s32 32, %v3230
        %v3232 = vshll.u32 %v3223, %v3230
        %v3233 = vshrl.u32 %v3215, %v3231
        %v3234 = vor.u32 %v3232, %v3233
        %v3235 = vsub.s32 4294967266, %v3230
        %v3236 = vadd.s32 %v3235, 127
        %v3237 = vshll.u32 %v3236, 23
        %v3238 = vor.u32 4788187, %v3237
        %v3239 = vand.u32 2147483647, %v3238
        %v3241 = vcvt.s32.f32 %v3234
        %v3242 = vmul.f32 %v3241, %v3239
        %v3243 = vxor.u32 %v3242, 2147483648
        %v3244 = vsel %vm3123, %v3243, %v3242
        %v3245 = vsub.s32 4, %v3221
        %v3246 = vsel %vm3123, %v3245, %v3221
        %v3247 = vsel %vm3122, %v2324, %v3244
        %v3248 = vsel %vm3122, 0, %v3246
        %v3249 = vmul.f32 %v3247, %v3247
        %v3250 = vmul.f32 %v3249, -0.001358992
        %v3251 = vadd.f32 %v3250, 0.041655596
        %v3252 = vmul.f32 %v3249, %v3251
        %v3253 = vadd.f32 %v3252, -0.4999988
        %v3254 = vmul.f32 %v3249, %v3253
        %v3255 = vadd.f32 1.0, %v3254
        %v3256 = vmul.f32 %v3247, %v3247
        %v3257 = vmul.f32 %v3256, -0.00019511016
        %v3258 = vadd.f32 %v3257, 0.008332121
        %v3259 = vmul.f32 %v3256, %v3258
        %v3260 = vadd.f32 %v3259, -0.16666654
        %v3261 = vmul.f32 %v3256, %v3260
        %v3262 = vadd.f32 %v3261, 1.0
        %v3263 = vmul.f32 %v3262, %v3247
        %vm3264 = vweird.f32 %v2324
        %v3265 = vand.u32 %v3248, 3
        %vm3266 = vcmp.lt.s32.totalorder %v3265, 2
        %vm3267 = vcmp.eq.s32.totalorder %v3265, 0
        %v3268 = vxor.u32 %v3263, 2147483648
        %v3269 = vsel %vm3267, %v3255, %v3268
        %vm3270 = vcmp.eq.s32.totalorder %v3265, 2
        %v3271 = vxor.u32 %v3255, 2147483648
        %v3272 = vsel %vm3270, %v3271, %v3263
        %v3273 = vsel %vm3266, %v3269, %v3272
        %v3274 = vsel %vm3264, nan, %v3273
        %v3275 = vand.u32 2147483647, %v2325
        %vm3276 = vcmp.le.f32.partialorder %v3275, 0.7853982
        %vm3277 = vcmp.lt.s32.totalorder %v2325, 0
        %v3278 = vand.u32 %v2325, 2139095040
        %v3279 = vshrl.u32 %v3278, 23
        %v3280 = vsub.s32 %v3279, 127
        %v3281 = vand.u32 2147483647, %v2325
        %v3282 = vand.u32 %v3281, 8388607
        %v3283 = vor.u32 %v3282, 8388608
        %v3284 = vsub.s32 0, %v3283
        %v3285 = vadd.s32 %v3280, 1
        %vm3286 = vcmp.gt.s32.totalorder %v3285, 0
        %v3287 = vsel %vm3286, %v3285, 0
        %v3288 = vshrl.u32 %v3287, 5
        %v3289 = vand.u32 %v3287, 31
        %v3290 = vsub.s32 32, %v3289
        %v3291 = vshrl.u32 683565275, %v3290
        %v3292 = vshll.u32 683565275, %v3289
        %v3293 = vshrl.u32 2475754826, %v3290
        %v3294 = vor.u32 %v3292, %v3293
        %v3295 = vshll.u32 2475754826, %v3289
        %v3296 = vshrl.u32 2131351028, %v3290
        %v3297 = vor.u32 %v3295, %v3296
        %v3298 = vshll.u32 2131351028, %v3289
        %v3299 = vshrl.u32 2102212464, %v3290
        %v3300 = vor.u32 %v3298, %v3299
        %v3301 = vshll.u32 2102212464, %v3289
        %v3302 = vshrl.u32 920167782, %v3290
        %v3303 = vor.u32 %v3301, %v3302
        %v3304 = vshll.u32 920167782, %v3289
        %v3305 = vshrl.u32 1326507024, %v3290
        %v3306 = vor.u32 %v3304, %v3305
        %vm3307 = vcmp.lt.s32.totalorder %v3288, 1
        %vm3308 = vcmp.lt.s32.totalorder %v3288, 2
        %vm3309 = vcmp.lt.s32.totalorder %v3288, 3
        %vm3310 = vcmp.lt.s32.totalorder %v3288, 4
        %v3311 = vsel %vm3307, %v3291, %v3294
        %v3312 = vsel %vm3310, %v3300, 2102212464
        %v3313 = vsel %vm3309, %v3297, %v3312
        %v3314 = vsel %vm3308, %v3311, %v3313
        %v3315 = vsel %vm3307, %v3294, %v3297
        %v3316 = vsel %vm3310, %v3303, 920167782
        %v3317 = vsel %vm3309, %v3300, %v3316
        %v3318 = vsel %vm3308, %v3315, %v3317
        %v3319 = vsel %vm3307, %v3297, %v3300
        %v3320 = vsel %vm3310, %v3306, 1326507024
        %v3321 = vsel %vm3309, %v3303, %v3320
        %v3322 = vsel %vm3308, %v3319, %v3321
        %v3323 = vshll.u32 %v3283, 8
        %v3324 = vand.u32 %v3323, 65535
        %v3325 = vshrl.u32 %v3323, 16
        %v3326 = vand.u32 %v3322, 65535
        %v3327 = vshrl.u32 %v3322, 16
        %v3328 = vmul.u32 %v3324, %v3326
        %v3329 = vmul.u32 %v3324, %v3327
        %v3330 = vmul.u32 %v3325, %v3326
        %v3331 = vmul.u32 %v3325, %v3327
        %v3332 = vshll.u32 %v3329, 16
        %v3333 = vshrl.u32 %v3329, 16
        %v3334 = vshll.u32 %v3330, 16
        %v3335 = vshrl.u32 %v3330, 16
        %vm3336 = vc.u32 %v3328, %v3332
        %v3337 = vsel %vm3336, 1, 0
        %v3338 = vadd.s32 %v3328, %v3332
        %v3339 = vadd.s32 %v3331, %v3337
        %vm3340 = vc.u32 %v3338, %v3334
        %v3341 = vsel %vm3340, 1, 0
        %v3342 = vadd.s32 %v3338, %v3334
        %v3343 = vadd.s32 %v3339, %v3341
        %v3344 = vadd.s32 %v3343, %v3333
        %v3345 = vadd.s32 %v3344, %v3335
        %v3346 = vand.u32 %v3323, 65535
        %v3347 = vshrl.u32 %v3323, 16
        %v3348 = vand.u32 %v3318, 65535
        %v3349 = vshrl.u32 %v3318, 16
        %v3350 = vmul.u32 %v3346, %v3348
        %v3351 = vmul.u32 %v3346, %v3349
        %v3352 = vmul.u32 %v3347, %v3348
        %v3353 = vmul.u32 %v3347, %v3349
        %v3354 = vshll.u32 %v3351, 16
        %v3355 = vshrl.u32 %v3351, 16
        %v3356 = vshll.u32 %v3352, 16
        %v3357 = vshrl.u32 %v3352, 16
        %vm3358 = vc.u32 %v3350, %v3354
        %v3359 = vsel %vm3358, 1, 0
        %v3360 = vadd.s32 %v3350, %v3354
        %v3361 = vadd.s32 %v3353, %v3359
        %vm3362 = vc.u32 %v3360, %v3356
        %v3363 = vsel %vm3362, 1, 0
        %v3364 = vadd.s32 %v3360, %v3356
        %v3365 = vadd.s32 %v3361, %v3363
        %v3366 = vadd.s32 %v3365, %v3355
        %v3367 = vadd.s32 %v3366, %v3357
        %v3368 = vmul.u32 %v3323, %v3314
        %v3369 = vadd.s32 %v3345, %v3364
        %vm3370 = vc.u32 %v3345, %v3364
        %v3371 = vadd.s32 %v3367, 1
        %v3372 = vsel %vm3370, %v3371, %v3367
        %v3373 = vadd.s32 %v3368, %v3372
        %v3374 = vadd.s32 %v3373, 536870912
        %v3375 = vshrl.u32 %v3374, 30
        %v3376 = vshll.u32 %v3375, 30
        %v3377 = vsub.s32 %v3373, %v3376
        %vm3378 = vcmp.lt.s32.totalorder %v3377, 0
        %v3379 = vsub.s32 0, %v3377
        %v3380 = vsel %vm3378, %v3379, %v3377
        %v3381 = vclz %v3380
        %v3382 = vsub.s32 %v3381, 2
        %vm3383 = vcmp.gt.s32.totalorder 0, %v3382
        %v3384 = vsel %vm3383, 0, %v3382
        %v3385 = vsub.s32 32, %v3384
        %v3386 = vshll.u32 %v3377, %v3384
        %v3387 = vshrl.u32 %v3369, %v3385
        %v3388 = vor.u32 %v3386, %v3387
        %v3389 = vsub.s32 4294967266, %v3384
        %v3390 = vadd.s32 %v3389, 127
        %v3391 = vshll.u32 %v3390, 23
        %v3392 = vor.u32 4788187, %v3391
        %v3393 = vand.u32 2147483647, %v3392
        %v3395 = vcvt.s32.f32 %v3388
        %v3396 = vmul.f32 %v3395, %v3393
        %v3397 = vxor.u32 %v3396, 2147483648
        %v3398 = vsel %vm3277, %v3397, %v3396
        %v3399 = vsub.s32 4, %v3375
        %v3400 = vsel %vm3277, %v3399, %v3375
        %v3401 = vsel %vm3276, %v2325, %v3398
        %v3402 = vsel %vm3276, 0, %v3400
        %v3403 = vmul.f32 %v3401, %v3401
        %v3404 = vmul.f32 %v3403, -0.001358992
        %v3405 = vadd.f32 %v3404, 0.041655596
        %v3406 = vmul.f32 %v3403, %v3405
        %v3407 = vadd.f32 %v3406, -0.4999988
        %v3408 = vmul.f32 %v3403, %v3407
        %v3409 = vadd.f32 1.0, %v3408
        %v3410 = vmul.f32 %v3401, %v3401
        %v3411 = vmul.f32 %v3410, -0.00019511016
        %v3412 = vadd.f32 %v3411, 0.008332121
        %v3413 = vmul.f32 %v3410, %v3412
        %v3414 = vadd.f32 %v3413, -0.16666654
        %v3415 = vmul.f32 %v3410, %v3414
        %v3416 = vadd.f32 %v3415, 1.0
        %v3417 = vmul.f32 %v3416, %v3401
        %vm3418 = vweird.f32 %v2325
        %v3419 = vand.u32 %v3402, 3
        %vm3420 = vcmp.lt.s32.totalorder %v3419, 2
        %vm3421 = vcmp.eq.s32.totalorder %v3419, 0
        %v3422 = vxor.u32 %v3417, 2147483648
        %v3423 = vsel %vm3421, %v3409, %v3422
        %vm3424 = vcmp.eq.s32.totalorder %v3419, 2
        %v3425 = vxor.u32 %v3409, 2147483648
        %v3426 = vsel %vm3424, %v3425, %v3417
        %v3427 = vsel %vm3420, %v3423, %v3426
        %v3428 = vsel %vm3418, nan, %v3427
        %v3429 = vand.u32 2147483647, %v2326
        %vm3430 = vcmp.le.f32.partialorder %v3429, 0.7853982
        %vm3431 = vcmp.lt.s32.totalorder %v2326, 0
        %v3432 = vand.u32 %v2326, 2139095040
        %v3433 = vshrl.u32 %v3432, 23
        %v3434 = vsub.s32 %v3433, 127
        %v3435 = vand.u32 2147483647, %v2326
        %v3436 = vand.u32 %v3435, 8388607
        %v3437 = vor.u32 %v3436, 8388608
        %v3438 = vsub.s32 0, %v3437
        %v3439 = vadd.s32 %v3434, 1
        %vm3440 = vcmp.gt.s32.totalorder %v3439, 0
        %v3441 = vsel %vm3440, %v3439, 0
        %v3442 = vshrl.u32 %v3441, 5
        %v3443 = vand.u32 %v3441, 31
        %v3444 = vsub.s32 32, %v3443
        %v3445 = vshrl.u32 683565275, %v3444
        %v3446 = vshll.u32 683565275, %v3443
        %v3447 = vshrl.u32 2475754826, %v3444
        %v3448 = vor.u32 %v3446, %v3447
        %v3449 = vshll.u32 2475754826, %v3443
        %v3450 = vshrl.u32 2131351028, %v3444
        %v3451 = vor.u32 %v3449, %v3450
        %v3452 = vshll.u32 2131351028, %v3443
        %v3453 = vshrl.u32 2102212464, %v3444
        %v3454 = vor.u32 %v3452, %v3453
        %v3455 = vshll.u32 2102212464, %v3443
        %v3456 = vshrl.u32 920167782, %v3444
        %v3457 = vor.u32 %v3455, %v3456
        %v3458 = vshll.u32 920167782, %v3443
        %v3459 = vshrl.u32 1326507024, %v3444
        %v3460 = vor.u32 %v3458, %v3459
        %vm3461 = vcmp.lt.s32.totalorder %v3442, 1
        %vm3462 = vcmp.lt.s32.totalorder %v3442, 2
        %vm3463 = vcmp.lt.s32.totalorder %v3442, 3
        %vm3464 = vcmp.lt.s32.totalorder %v3442, 4
        %v3465 = vsel %vm3461, %v3445, %v3448
        %v3466 = vsel %vm3464, %v3454, 2102212464
        %v3467 = vsel %vm3463, %v3451, %v3466
        %v3468 = vsel %vm3462, %v3465, %v3467
        %v3469 = vsel %vm3461, %v3448, %v3451
        %v3470 = vsel %vm3464, %v3457, 920167782
        %v3471 = vsel %vm3463, %v3454, %v3470
        %v3472 = vsel %vm3462, %v3469, %v3471
        %v3473 = vsel %vm3461, %v3451, %v3454
        %v3474 = vsel %vm3464, %v3460, 1326507024
        %v3475 = vsel %vm3463, %v3457, %v3474
        %v3476 = vsel %vm3462, %v3473, %v3475
        %v3477 = vshll.u32 %v3437, 8
        %v3478 = vand.u32 %v3477, 65535
        %v3479 = vshrl.u32 %v3477, 16
        %v3480 = vand.u32 %v3476, 65535
        %v3481 = vshrl.u32 %v3476, 16
        %v3482 = vmul.u32 %v3478, %v3480
        %v3483 = vmul.u32 %v3478, %v3481
        %v3484 = vmul.u32 %v3479, %v3480
        %v3485 = vmul.u32 %v3479, %v3481
        %v3486 = vshll.u32 %v3483, 16
        %v3487 = vshrl.u32 %v3483, 16
        %v3488 = vshll.u32 %v3484, 16
        %v3489 = vshrl.u32 %v3484, 16
        %vm3490 = vc.u32 %v3482, %v3486
        %v3491 = vsel %vm3490, 1, 0
        %v3492 = vadd.s32 %v3482, %v3486
        %v3493 = vadd.s32 %v3485, %v3491
        %vm3494 = vc.u32 %v3492, %v3488
        %v3495 = vsel %vm3494, 1, 0
        %v3496 = vadd.s32 %v3492, %v3488
        %v3497 = vadd.s32 %v3493, %v3495
        %v3498 = vadd.s32 %v3497, %v3487
        %v3499 = vadd.s32 %v3498, %v3489
        %v3500 = vand.u32 %v3477, 65535
        %v3501 = vshrl.u32 %v3477, 16
        %v3502 = vand.u32 %v3472, 65535
        %v3503 = vshrl.u32 %v3472, 16
        %v3504 = vmul.u32 %v3500, %v3502
        %v3505 = vmul.u32 %v3500, %v3503
        %v3506 = vmul.u32 %v3501, %v3502
        %v3507 = vmul.u32 %v3501, %v3503
        %v3508 = vshll.u32 %v3505, 16
        %v3509 = vshrl.u32 %v3505, 16
        %v3510 = vshll.u32 %v3506, 16
        %v3511 = vshrl.u32 %v3506, 16
        %vm3512 = vc.u32 %v3504, %v3508
        %v3513 = vsel %vm3512, 1, 0
        %v3514 = vadd.s32 %v3504, %v3508
        %v3515 = vadd.s32 %v3507, %v3513
        %vm3516 = vc.u32 %v3514, %v3510
        %v3517 = vsel %vm3516, 1, 0
        %v3518 = vadd.s32 %v3514, %v3510
        %v3519 = vadd.s32 %v3515, %v3517
        %v3520 = vadd.s32 %v3519, %v3509
        %v3521 = vadd.s32 %v3520, %v3511
        %v3522 = vmul.u32 %v3477, %v3468
        %v3523 = vadd.s32 %v3499, %v3518
        %vm3524 = vc.u32 %v3499, %v3518
        %v3525 = vadd.s32 %v3521, 1
        %v3526 = vsel %vm3524, %v3525, %v3521
        %v3527 = vadd.s32 %v3522, %v3526
        %v3528 = vadd.s32 %v3527, 536870912
        %v3529 = vshrl.u32 %v3528, 30
        %v3530 = vshll.u32 %v3529, 30
        %v3531 = vsub.s32 %v3527, %v3530
        %vm3532 = vcmp.lt.s32.totalorder %v3531, 0
        %v3533 = vsub.s32 0, %v3531
        %v3534 = vsel %vm3532, %v3533, %v3531
        %v3535 = vclz %v3534
        %v3536 = vsub.s32 %v3535, 2
        %vm3537 = vcmp.gt.s32.totalorder 0, %v3536
        %v3538 = vsel %vm3537, 0, %v3536
        %v3539 = vsub.s32 32, %v3538
        %v3540 = vshll.u32 %v3531, %v3538
        %v3541 = vshrl.u32 %v3523, %v3539
        %v3542 = vor.u32 %v3540, %v3541
        %v3543 = vsub.s32 4294967266, %v3538
        %v3544 = vadd.s32 %v3543, 127
        %v3545 = vshll.u32 %v3544, 23
        %v3546 = vor.u32 4788187, %v3545
        %v3547 = vand.u32 2147483647, %v3546
        %v3549 = vcvt.s32.f32 %v3542
        %v3550 = vmul.f32 %v3549, %v3547
        %v3551 = vxor.u32 %v3550, 2147483648
        %v3552 = vsel %vm3431, %v3551, %v3550
        %v3553 = vsub.s32 4, %v3529
        %v3554 = vsel %vm3431, %v3553, %v3529
        %v3555 = vsel %vm3430, %v2326, %v3552
        %v3556 = vsel %vm3430, 0, %v3554
        %v3557 = vmul.f32 %v3555, %v3555
        %v3558 = vmul.f32 %v3557, -0.001358992
        %v3559 = vadd.f32 %v3558, 0.041655596
        %v3560 = vmul.f32 %v3557, %v3559
        %v3561 = vadd.f32 %v3560, -0.4999988
        %v3562 = vmul.f32 %v3557, %v3561
        %v3563 = vadd.f32 1.0, %v3562
        %v3564 = vmul.f32 %v3555, %v3555
        %v3565 = vmul.f32 %v3564, -0.00019511016
        %v3566 = vadd.f32 %v3565, 0.008332121
        %v3567 = vmul.f32 %v3564, %v3566
        %v3568 = vadd.f32 %v3567, -0.16666654
        %v3569 = vmul.f32 %v3564, %v3568
        %v3570 = vadd.f32 %v3569, 1.0
        %v3571 = vmul.f32 %v3570, %v3555
        %vm3572 = vweird.f32 %v2326
        %v3573 = vand.u32 %v3556, 3
        %vm3574 = vcmp.lt.s32.totalorder %v3573, 2
        %vm3575 = vcmp.eq.s32.totalorder %v3573, 0
        %v3576 = vxor.u32 %v3571, 2147483648
        %v3577 = vsel %vm3575, %v3563, %v3576
        %vm3578 = vcmp.eq.s32.totalorder %v3573, 2
        %v3579 = vxor.u32 %v3563, 2147483648
        %v3580 = vsel %vm3578, %v3579, %v3571
        %v3581 = vsel %vm3574, %v3577, %v3580
        %v3582 = vsel %vm3572, nan, %v3581
        %v3583 = vand.u32 2147483647, %v2327
        %vm3584 = vcmp.le.f32.partialorder %v3583, 0.7853982
        %vm3585 = vcmp.lt.s32.totalorder %v2327, 0
        %v3586 = vand.u32 %v2327, 2139095040
        %v3587 = vshrl.u32 %v3586, 23
        %v3588 = vsub.s32 %v3587, 127
        %v3589 = vand.u32 2147483647, %v2327
        %v3590 = vand.u32 %v3589, 8388607
        %v3591 = vor.u32 %v3590, 8388608
        %v3592 = vsub.s32 0, %v3591
        %v3593 = vadd.s32 %v3588, 1
        %vm3594 = vcmp.gt.s32.totalorder %v3593, 0
        %v3595 = vsel %vm3594, %v3593, 0
        %v3596 = vshrl.u32 %v3595, 5
        %v3597 = vand.u32 %v3595, 31
        %v3598 = vsub.s32 32, %v3597
        %v3599 = vshrl.u32 683565275, %v3598
        %v3600 = vshll.u32 683565275, %v3597
        %v3601 = vshrl.u32 2475754826, %v3598
        %v3602 = vor.u32 %v3600, %v3601
        %v3603 = vshll.u32 2475754826, %v3597
        %v3604 = vshrl.u32 2131351028, %v3598
        %v3605 = vor.u32 %v3603, %v3604
        %v3606 = vshll.u32 2131351028, %v3597
        %v3607 = vshrl.u32 2102212464, %v3598
        %v3608 = vor.u32 %v3606, %v3607
        %v3609 = vshll.u32 2102212464, %v3597
        %v3610 = vshrl.u32 920167782, %v3598
        %v3611 = vor.u32 %v3609, %v3610
        %v3612 = vshll.u32 920167782, %v3597
        %v3613 = vshrl.u32 1326507024, %v3598
        %v3614 = vor.u32 %v3612, %v3613
        %vm3615 = vcmp.lt.s32.totalorder %v3596, 1
        %vm3616 = vcmp.lt.s32.totalorder %v3596, 2
        %vm3617 = vcmp.lt.s32.totalorder %v3596, 3
        %vm3618 = vcmp.lt.s32.totalorder %v3596, 4
        %v3619 = vsel %vm3615, %v3599, %v3602
        %v3620 = vsel %vm3618, %v3608, 2102212464
        %v3621 = vsel %vm3617, %v3605, %v3620
        %v3622 = vsel %vm3616, %v3619, %v3621
        %v3623 = vsel %vm3615, %v3602, %v3605
        %v3624 = vsel %vm3618, %v3611, 920167782
        %v3625 = vsel %vm3617, %v3608, %v3624
        %v3626 = vsel %vm3616, %v3623, %v3625
        %v3627 = vsel %vm3615, %v3605, %v3608
        %v3628 = vsel %vm3618, %v3614, 1326507024
        %v3629 = vsel %vm3617, %v3611, %v3628
        %v3630 = vsel %vm3616, %v3627, %v3629
        %v3631 = vshll.u32 %v3591, 8
        %v3632 = vand.u32 %v3631, 65535
        %v3633 = vshrl.u32 %v3631, 16
        %v3634 = vand.u32 %v3630, 65535
        %v3635 = vshrl.u32 %v3630, 16
        %v3636 = vmul.u32 %v3632, %v3634
        %v3637 = vmul.u32 %v3632, %v3635
        %v3638 = vmul.u32 %v3633, %v3634
        %v3639 = vmul.u32 %v3633, %v3635
        %v3640 = vshll.u32 %v3637, 16
        %v3641 = vshrl.u32 %v3637, 16
        %v3642 = vshll.u32 %v3638, 16
        %v3643 = vshrl.u32 %v3638, 16
        %vm3644 = vc.u32 %v3636, %v3640
        %v3645 = vsel %vm3644, 1, 0
        %v3646 = vadd.s32 %v3636, %v3640
        %v3647 = vadd.s32 %v3639, %v3645
        %vm3648 = vc.u32 %v3646, %v3642
        %v3649 = vsel %vm3648, 1, 0
        %v3650 = vadd.s32 %v3646, %v3642
        %v3651 = vadd.s32 %v3647, %v3649
        %v3652 = vadd.s32 %v3651, %v3641
        %v3653 = vadd.s32 %v3652, %v3643
        %v3654 = vand.u32 %v3631, 65535
        %v3655 = vshrl.u32 %v3631, 16
        %v3656 = vand.u32 %v3626, 65535
        %v3657 = vshrl.u32 %v3626, 16
        %v3658 = vmul.u32 %v3654, %v3656
        %v3659 = vmul.u32 %v3654, %v3657
        %v3660 = vmul.u32 %v3655, %v3656
        %v3661 = vmul.u32 %v3655, %v3657
        %v3662 = vshll.u32 %v3659, 16
        %v3663 = vshrl.u32 %v3659, 16
        %v3664 = vshll.u32 %v3660, 16
        %v3665 = vshrl.u32 %v3660, 16
        %vm3666 = vc.u32 %v3658, %v3662
        %v3667 = vsel %vm3666, 1, 0
        %v3668 = vadd.s32 %v3658, %v3662
        %v3669 = vadd.s32 %v3661, %v3667
        %vm3670 = vc.u32 %v3668, %v3664
        %v3671 = vsel %vm3670, 1, 0
        %v3672 = vadd.s32 %v3668, %v3664
        %v3673 = vadd.s32 %v3669, %v3671
        %v3674 = vadd.s32 %v3673, %v3663
        %v3675 = vadd.s32 %v3674, %v3665
        %v3676 = vmul.u32 %v3631, %v3622
        %v3677 = vadd.s32 %v3653, %v3672
        %vm3678 = vc.u32 %v3653, %v3672
        %v3679 = vadd.s32 %v3675, 1
        %v3680 = vsel %vm3678, %v3679, %v3675
        %v3681 = vadd.s32 %v3676, %v3680
        %v3682 = vadd.s32 %v3681, 536870912
        %v3683 = vshrl.u32 %v3682, 30
        %v3684 = vshll.u32 %v3683, 30
        %v3685 = vsub.s32 %v3681, %v3684
        %vm3686 = vcmp.lt.s32.totalorder %v3685, 0
        %v3687 = vsub.s32 0, %v3685
        %v3688 = vsel %vm3686, %v3687, %v3685
        %v3689 = vclz %v3688
        %v3690 = vsub.s32 %v3689, 2
        %vm3691 = vcmp.gt.s32.totalorder 0, %v3690
        %v3692 = vsel %vm3691, 0, %v3690
        %v3693 = vsub.s32 32, %v3692
        %v3694 = vshll.u32 %v3685, %v3692
        %v3695 = vshrl.u32 %v3677, %v3693
        %v3696 = vor.u32 %v3694, %v3695
        %v3697 = vsub.s32 4294967266, %v3692
        %v3698 = vadd.s32 %v3697, 127
        %v3699 = vshll.u32 %v3698, 23
        %v3700 = vor.u32 4788187, %v3699
        %v3701 = vand.u32 2147483647, %v3700
        %v3703 = vcvt.s32.f32 %v3696
        %v3704 = vmul.f32 %v3703, %v3701
        %v3705 = vxor.u32 %v3704, 2147483648
        %v3706 = vsel %vm3585, %v3705, %v3704
        %v3707 = vsub.s32 4, %v3683
        %v3708 = vsel %vm3585, %v3707, %v3683
        %v3709 = vsel %vm3584, %v2327, %v3706
        %v3710 = vsel %vm3584, 0, %v3708
        %v3711 = vmul.f32 %v3709, %v3709
        %v3712 = vmul.f32 %v3711, -0.001358992
        %v3713 = vadd.f32 %v3712, 0.041655596
        %v3714 = vmul.f32 %v3711, %v3713
        %v3715 = vadd.f32 %v3714, -0.4999988
        %v3716 = vmul.f32 %v3711, %v3715
        %v3717 = vadd.f32 1.0, %v3716
        %v3718 = vmul.f32 %v3709, %v3709
        %v3719 = vmul.f32 %v3718, -0.00019511016
        %v3720 = vadd.f32 %v3719, 0.008332121
        %v3721 = vmul.f32 %v3718, %v3720
        %v3722 = vadd.f32 %v3721, -0.16666654
        %v3723 = vmul.f32 %v3718, %v3722
        %v3724 = vadd.f32 %v3723, 1.0
        %v3725 = vmul.f32 %v3724, %v3709
        %vm3726 = vweird.f32 %v2327
        %v3727 = vand.u32 %v3710, 3
        %vm3728 = vcmp.lt.s32.totalorder %v3727, 2
        %vm3729 = vcmp.eq.s32.totalorder %v3727, 0
        %v3730 = vxor.u32 %v3725, 2147483648
        %v3731 = vsel %vm3729, %v3717, %v3730
        %vm3732 = vcmp.eq.s32.totalorder %v3727, 2
        %v3733 = vxor.u32 %v3717, 2147483648
        %v3734 = vsel %vm3732, %v3733, %v3725
        %v3735 = vsel %vm3728, %v3731, %v3734
        %v3736 = vsel %vm3726, nan, %v3735
        %v3737 = vand.u32 2147483647, %v2328
        %vm3738 = vcmp.le.f32.partialorder %v3737, 0.7853982
        %vm3739 = vcmp.lt.s32.totalorder %v2328, 0
        %v3740 = vand.u32 %v2328, 2139095040
        %v3741 = vshrl.u32 %v3740, 23
        %v3742 = vsub.s32 %v3741, 127
        %v3743 = vand.u32 2147483647, %v2328
        %v3744 = vand.u32 %v3743, 8388607
        %v3745 = vor.u32 %v3744, 8388608
        %v3746 = vsub.s32 0, %v3745
        %v3747 = vadd.s32 %v3742, 1
        %vm3748 = vcmp.gt.s32.totalorder %v3747, 0
        %v3749 = vsel %vm3748, %v3747, 0
        %v3750 = vshrl.u32 %v3749, 5
        %v3751 = vand.u32 %v3749, 31
        %v3752 = vsub.s32 32, %v3751
        %v3753 = vshrl.u32 683565275, %v3752
        %v3754 = vshll.u32 683565275, %v3751
        %v3755 = vshrl.u32 2475754826, %v3752
        %v3756 = vor.u32 %v3754, %v3755
        %v3757 = vshll.u32 2475754826, %v3751
        %v3758 = vshrl.u32 2131351028, %v3752
        %v3759 = vor.u32 %v3757, %v3758
        %v3760 = vshll.u32 2131351028, %v3751
        %v3761 = vshrl.u32 2102212464, %v3752
        %v3762 = vor.u32 %v3760, %v3761
        %v3763 = vshll.u32 2102212464, %v3751
        %v3764 = vshrl.u32 920167782, %v3752
        %v3765 = vor.u32 %v3763, %v3764
        %v3766 = vshll.u32 920167782, %v3751
        %v3767 = vshrl.u32 1326507024, %v3752
        %v3768 = vor.u32 %v3766, %v3767
        %vm3769 = vcmp.lt.s32.totalorder %v3750, 1
        %vm3770 = vcmp.lt.s32.totalorder %v3750, 2
        %vm3771 = vcmp.lt.s32.totalorder %v3750, 3
        %vm3772 = vcmp.lt.s32.totalorder %v3750, 4
        %v3773 = vsel %vm3769, %v3753, %v3756
        %v3774 = vsel %vm3772, %v3762, 2102212464
        %v3775 = vsel %vm3771, %v3759, %v3774
        %v3776 = vsel %vm3770, %v3773, %v3775
        %v3777 = vsel %vm3769, %v3756, %v3759
        %v3778 = vsel %vm3772, %v3765, 920167782
        %v3779 = vsel %vm3771, %v3762, %v3778
        %v3780 = vsel %vm3770, %v3777, %v3779
        %v3781 = vsel %vm3769, %v3759, %v3762
        %v3782 = vsel %vm3772, %v3768, 1326507024
        %v3783 = vsel %vm3771, %v3765, %v3782
        %v3784 = vsel %vm3770, %v3781, %v3783
        %v3785 = vshll.u32 %v3745, 8
        %v3786 = vand.u32 %v3785, 65535
        %v3787 = vshrl.u32 %v3785, 16
        %v3788 = vand.u32 %v3784, 65535
        %v3789 = vshrl.u32 %v3784, 16
        %v3790 = vmul.u32 %v3786, %v3788
        %v3791 = vmul.u32 %v3786, %v3789
        %v3792 = vmul.u32 %v3787, %v3788
        %v3793 = vmul.u32 %v3787, %v3789
        %v3794 = vshll.u32 %v3791, 16
        %v3795 = vshrl.u32 %v3791, 16
        %v3796 = vshll.u32 %v3792, 16
        %v3797 = vshrl.u32 %v3792, 16
        %vm3798 = vc.u32 %v3790, %v3794
        %v3799 = vsel %vm3798, 1, 0
        %v3800 = vadd.s32 %v3790, %v3794
        %v3801 = vadd.s32 %v3793, %v3799
        %vm3802 = vc.u32 %v3800, %v3796
        %v3803 = vsel %vm3802, 1, 0
        %v3804 = vadd.s32 %v3800, %v3796
        %v3805 = vadd.s32 %v3801, %v3803
        %v3806 = vadd.s32 %v3805, %v3795
        %v3807 = vadd.s32 %v3806, %v3797
        %v3808 = vand.u32 %v3785, 65535
        %v3809 = vshrl.u32 %v3785, 16
        %v3810 = vand.u32 %v3780, 65535
        %v3811 = vshrl.u32 %v3780, 16
        %v3812 = vmul.u32 %v3808, %v3810
        %v3813 = vmul.u32 %v3808, %v3811
        %v3814 = vmul.u32 %v3809, %v3810
        %v3815 = vmul.u32 %v3809, %v3811
        %v3816 = vshll.u32 %v3813, 16
        %v3817 = vshrl.u32 %v3813, 16
        %v3818 = vshll.u32 %v3814, 16
        %v3819 = vshrl.u32 %v3814, 16
        %vm3820 = vc.u32 %v3812, %v3816
        %v3821 = vsel %vm3820, 1, 0
        %v3822 = vadd.s32 %v3812, %v3816
        %v3823 = vadd.s32 %v3815, %v3821
        %vm3824 = vc.u32 %v3822, %v3818
        %v3825 = vsel %vm3824, 1, 0
        %v3826 = vadd.s32 %v3822, %v3818
        %v3827 = vadd.s32 %v3823, %v3825
        %v3828 = vadd.s32 %v3827, %v3817
        %v3829 = vadd.s32 %v3828, %v3819
        %v3830 = vmul.u32 %v3785, %v3776
        %v3831 = vadd.s32 %v3807, %v3826
        %vm3832 = vc.u32 %v3807, %v3826
        %v3833 = vadd.s32 %v3829, 1
        %v3834 = vsel %vm3832, %v3833, %v3829
        %v3835 = vadd.s32 %v3830, %v3834
        %v3836 = vadd.s32 %v3835, 536870912
        %v3837 = vshrl.u32 %v3836, 30
        %v3838 = vshll.u32 %v3837, 30
        %v3839 = vsub.s32 %v3835, %v3838
        %vm3840 = vcmp.lt.s32.totalorder %v3839, 0
        %v3841 = vsub.s32 0, %v3839
        %v3842 = vsel %vm3840, %v3841, %v3839
        %v3843 = vclz %v3842
        %v3844 = vsub.s32 %v3843, 2
        %vm3845 = vcmp.gt.s32.totalorder 0, %v3844
        %v3846 = vsel %vm3845, 0, %v3844
        %v3847 = vsub.s32 32, %v3846
        %v3848 = vshll.u32 %v3839, %v3846
        %v3849 = vshrl.u32 %v3831, %v3847
        %v3850 = vor.u32 %v3848, %v3849
        %v3851 = vsub.s32 4294967266, %v3846
        %v3852 = vadd.s32 %v3851, 127
        %v3853 = vshll.u32 %v3852, 23
        %v3854 = vor.u32 4788187, %v3853
        %v3855 = vand.u32 2147483647, %v3854
        %v3857 = vcvt.s32.f32 %v3850
        %v3858 = vmul.f32 %v3857, %v3855
        %v3859 = vxor.u32 %v3858, 2147483648
        %v3860 = vsel %vm3739, %v3859, %v3858
        %v3861 = vsub.s32 4, %v3837
        %v3862 = vsel %vm3739, %v3861, %v3837
        %v3863 = vsel %vm3738, %v2328, %v3860
        %v3864 = vsel %vm3738, 0, %v3862
        %v3865 = vmul.f32 %v3863, %v3863
        %v3866 = vmul.f32 %v3865, -0.001358992
        %v3867 = vadd.f32 %v3866, 0.041655596
        %v3868 = vmul.f32 %v3865, %v3867
        %v3869 = vadd.f32 %v3868, -0.4999988
        %v3870 = vmul.f32 %v3865, %v3869
        %v3871 = vadd.f32 1.0, %v3870
        %v3872 = vmul.f32 %v3863, %v3863
        %v3873 = vmul.f32 %v3872, -0.00019511016
        %v3874 = vadd.f32 %v3873, 0.008332121
        %v3875 = vmul.f32 %v3872, %v3874
        %v3876 = vadd.f32 %v3875, -0.16666654
        %v3877 = vmul.f32 %v3872, %v3876
        %v3878 = vadd.f32 %v3877, 1.0
        %v3879 = vmul.f32 %v3878, %v3863
        %vm3880 = vweird.f32 %v2328
        %v3881 = vand.u32 %v3864, 3
        %vm3882 = vcmp.lt.s32.totalorder %v3881, 2
        %vm3883 = vcmp.eq.s32.totalorder %v3881, 0
        %v3884 = vxor.u32 %v3879, 2147483648
        %v3885 = vsel %vm3883, %v3871, %v3884
        %vm3886 = vcmp.eq.s32.totalorder %v3881, 2
        %v3887 = vxor.u32 %v3871, 2147483648
        %v3888 = vsel %vm3886, %v3887, %v3879
        %v3889 = vsel %vm3882, %v3885, %v3888
        %v3890 = vsel %vm3880, nan, %v3889
        %v3891 = vand.u32 2147483647, %v2329
        %vm3892 = vcmp.le.f32.partialorder %v3891, 0.7853982
        %vm3893 = vcmp.lt.s32.totalorder %v2329, 0
        %v3894 = vand.u32 %v2329, 2139095040
        %v3895 = vshrl.u32 %v3894, 23
        %v3896 = vsub.s32 %v3895, 127
        %v3897 = vand.u32 2147483647, %v2329
        %v3898 = vand.u32 %v3897, 8388607
        %v3899 = vor.u32 %v3898, 8388608
        %v3900 = vsub.s32 0, %v3899
        %v3901 = vadd.s32 %v3896, 1
        %vm3902 = vcmp.gt.s32.totalorder %v3901, 0
        %v3903 = vsel %vm3902, %v3901, 0
        %v3904 = vshrl.u32 %v3903, 5
        %v3905 = vand.u32 %v3903, 31
        %v3906 = vsub.s32 32, %v3905
        %v3907 = vshrl.u32 683565275, %v3906
        %v3908 = vshll.u32 683565275, %v3905
        %v3909 = vshrl.u32 2475754826, %v3906
        %v3910 = vor.u32 %v3908, %v3909
        %v3911 = vshll.u32 2475754826, %v3905
        %v3912 = vshrl.u32 2131351028, %v3906
        %v3913 = vor.u32 %v3911, %v3912
        %v3914 = vshll.u32 2131351028, %v3905
        %v3915 = vshrl.u32 2102212464, %v3906
        %v3916 = vor.u32 %v3914, %v3915
        %v3917 = vshll.u32 2102212464, %v3905
        %v3918 = vshrl.u32 920167782, %v3906
        %v3919 = vor.u32 %v3917, %v3918
        %v3920 = vshll.u32 920167782, %v3905
        %v3921 = vshrl.u32 1326507024, %v3906
        %v3922 = vor.u32 %v3920, %v3921
        %vm3923 = vcmp.lt.s32.totalorder %v3904, 1
        %vm3924 = vcmp.lt.s32.totalorder %v3904, 2
        %vm3925 = vcmp.lt.s32.totalorder %v3904, 3
        %vm3926 = vcmp.lt.s32.totalorder %v3904, 4
        %v3927 = vsel %vm3923, %v3907, %v3910
        %v3928 = vsel %vm3926, %v3916, 2102212464
        %v3929 = vsel %vm3925, %v3913, %v3928
        %v3930 = vsel %vm3924, %v3927, %v3929
        %v3931 = vsel %vm3923, %v3910, %v3913
        %v3932 = vsel %vm3926, %v3919, 920167782
        %v3933 = vsel %vm3925, %v3916, %v3932
        %v3934 = vsel %vm3924, %v3931, %v3933
        %v3935 = vsel %vm3923, %v3913, %v3916
        %v3936 = vsel %vm3926, %v3922, 1326507024
        %v3937 = vsel %vm3925, %v3919, %v3936
        %v3938 = vsel %vm3924, %v3935, %v3937
        %v3939 = vshll.u32 %v3899, 8
        %v3940 = vand.u32 %v3939, 65535
        %v3941 = vshrl.u32 %v3939, 16
        %v3942 = vand.u32 %v3938, 65535
        %v3943 = vshrl.u32 %v3938, 16
        %v3944 = vmul.u32 %v3940, %v3942
        %v3945 = vmul.u32 %v3940, %v3943
        %v3946 = vmul.u32 %v3941, %v3942
        %v3947 = vmul.u32 %v3941, %v3943
        %v3948 = vshll.u32 %v3945, 16
        %v3949 = vshrl.u32 %v3945, 16
        %v3950 = vshll.u32 %v3946, 16
        %v3951 = vshrl.u32 %v3946, 16
        %vm3952 = vc.u32 %v3944, %v3948
        %v3953 = vsel %vm3952, 1, 0
        %v3954 = vadd.s32 %v3944, %v3948
        %v3955 = vadd.s32 %v3947, %v3953
        %vm3956 = vc.u32 %v3954, %v3950
        %v3957 = vsel %vm3956, 1, 0
        %v3958 = vadd.s32 %v3954, %v3950
        %v3959 = vadd.s32 %v3955, %v3957
        %v3960 = vadd.s32 %v3959, %v3949
        %v3961 = vadd.s32 %v3960, %v3951
        %v3962 = vand.u32 %v3939, 65535
        %v3963 = vshrl.u32 %v3939, 16
        %v3964 = vand.u32 %v3934, 65535
        %v3965 = vshrl.u32 %v3934, 16
        %v3966 = vmul.u32 %v3962, %v3964
        %v3967 = vmul.u32 %v3962, %v3965
        %v3968 = vmul.u32 %v3963, %v3964
        %v3969 = vmul.u32 %v3963, %v3965
        %v3970 = vshll.u32 %v3967, 16
        %v3971 = vshrl.u32 %v3967, 16
        %v3972 = vshll.u32 %v3968, 16
        %v3973 = vshrl.u32 %v3968, 16
        %vm3974 = vc.u32 %v3966, %v3970
        %v3975 = vsel %vm3974, 1, 0
        %v3976 = vadd.s32 %v3966, %v3970
        %v3977 = vadd.s32 %v3969, %v3975
        %vm3978 = vc.u32 %v3976, %v3972
        %v3979 = vsel %vm3978, 1, 0
        %v3980 = vadd.s32 %v3976, %v3972
        %v3981 = vadd.s32 %v3977, %v3979
        %v3982 = vadd.s32 %v3981, %v3971
        %v3983 = vadd.s32 %v3982, %v3973
        %v3984 = vmul.u32 %v3939, %v3930
        %v3985 = vadd.s32 %v3961, %v3980
        %vm3986 = vc.u32 %v3961, %v3980
        %v3987 = vadd.s32 %v3983, 1
        %v3988 = vsel %vm3986, %v3987, %v3983
        %v3989 = vadd.s32 %v3984, %v3988
        %v3990 = vadd.s32 %v3989, 536870912
        %v3991 = vshrl.u32 %v3990, 30
        %v3992 = vshll.u32 %v3991, 30
        %v3993 = vsub.s32 %v3989, %v3992
        %vm3994 = vcmp.lt.s32.totalorder %v3993, 0
        %v3995 = vsub.s32 0, %v3993
        %v3996 = vsel %vm3994, %v3995, %v3993
        %v3997 = vclz %v3996
        %v3998 = vsub.s32 %v3997, 2
        %vm3999 = vcmp.gt.s32.totalorder 0, %v3998
        %v4000 = vsel %vm3999, 0, %v3998
        %v4001 = vsub.s32 32, %v4000
        %v4002 = vshll.u32 %v3993, %v4000
        %v4003 = vshrl.u32 %v3985, %v4001
        %v4004 = vor.u32 %v4002, %v4003
        %v4005 = vsub.s32 4294967266, %v4000
        %v4006 = vadd.s32 %v4005, 127
        %v4007 = vshll.u32 %v4006, 23
        %v4008 = vor.u32 4788187, %v4007
        %v4009 = vand.u32 2147483647, %v4008
        %v4011 = vcvt.s32.f32 %v4004
        %v4012 = vmul.f32 %v4011, %v4009
        %v4013 = vxor.u32 %v4012, 2147483648
        %v4014 = vsel %vm3893, %v4013, %v4012
        %v4015 = vsub.s32 4, %v3991
        %v4016 = vsel %vm3893, %v4015, %v3991
        %v4017 = vsel %vm3892, %v2329, %v4014
        %v4018 = vsel %vm3892, 0, %v4016
        %v4019 = vmul.f32 %v4017, %v4017
        %v4020 = vmul.f32 %v4019, -0.001358992
        %v4021 = vadd.f32 %v4020, 0.041655596
        %v4022 = vmul.f32 %v4019, %v4021
        %v4023 = vadd.f32 %v4022, -0.4999988
        %v4024 = vmul.f32 %v4019, %v4023
        %v4025 = vadd.f32 1.0, %v4024
        %v4026 = vmul.f32 %v4017, %v4017
        %v4027 = vmul.f32 %v4026, -0.00019511016
        %v4028 = vadd.f32 %v4027, 0.008332121
        %v4029 = vmul.f32 %v4026, %v4028
        %v4030 = vadd.f32 %v4029, -0.16666654
        %v4031 = vmul.f32 %v4026, %v4030
        %v4032 = vadd.f32 %v4031, 1.0
        %v4033 = vmul.f32 %v4032, %v4017
        %vm4034 = vweird.f32 %v2329
        %v4035 = vand.u32 %v4018, 3
        %vm4036 = vcmp.lt.s32.totalorder %v4035, 2
        %vm4037 = vcmp.eq.s32.totalorder %v4035, 0
        %v4038 = vxor.u32 %v4033, 2147483648
        %v4039 = vsel %vm4037, %v4025, %v4038
        %vm4040 = vcmp.eq.s32.totalorder %v4035, 2
        %v4041 = vxor.u32 %v4025, 2147483648
        %v4042 = vsel %vm4040, %v4041, %v4033
        %v4043 = vsel %vm4036, %v4039, %v4042
        %v4044 = vsel %vm4034, nan, %v4043
        %v4045 = vand.u32 2147483647, %v2330
        %vm4046 = vcmp.le.f32.partialorder %v4045, 0.7853982
        %vm4047 = vcmp.lt.s32.totalorder %v2330, 0
        %v4048 = vand.u32 %v2330, 2139095040
        %v4049 = vshrl.u32 %v4048, 23
        %v4050 = vsub.s32 %v4049, 127
        %v4051 = vand.u32 2147483647, %v2330
        %v4052 = vand.u32 %v4051, 8388607
        %v4053 = vor.u32 %v4052, 8388608
        %v4054 = vsub.s32 0, %v4053
        %v4055 = vadd.s32 %v4050, 1
        %vm4056 = vcmp.gt.s32.totalorder %v4055, 0
        %v4057 = vsel %vm4056, %v4055, 0
        %v4058 = vshrl.u32 %v4057, 5
        %v4059 = vand.u32 %v4057, 31
        %v4060 = vsub.s32 32, %v4059
        %v4061 = vshrl.u32 683565275, %v4060
        %v4062 = vshll.u32 683565275, %v4059
        %v4063 = vshrl.u32 2475754826, %v4060
        %v4064 = vor.u32 %v4062, %v4063
        %v4065 = vshll.u32 2475754826, %v4059
        %v4066 = vshrl.u32 2131351028, %v4060
        %v4067 = vor.u32 %v4065, %v4066
        %v4068 = vshll.u32 2131351028, %v4059
        %v4069 = vshrl.u32 2102212464, %v4060
        %v4070 = vor.u32 %v4068, %v4069
        %v4071 = vshll.u32 2102212464, %v4059
        %v4072 = vshrl.u32 920167782, %v4060
        %v4073 = vor.u32 %v4071, %v4072
        %v4074 = vshll.u32 920167782, %v4059
        %v4075 = vshrl.u32 1326507024, %v4060
        %v4076 = vor.u32 %v4074, %v4075
        %vm4077 = vcmp.lt.s32.totalorder %v4058, 1
        %vm4078 = vcmp.lt.s32.totalorder %v4058, 2
        %vm4079 = vcmp.lt.s32.totalorder %v4058, 3
        %vm4080 = vcmp.lt.s32.totalorder %v4058, 4
        %v4081 = vsel %vm4077, %v4061, %v4064
        %v4082 = vsel %vm4080, %v4070, 2102212464
        %v4083 = vsel %vm4079, %v4067, %v4082
        %v4084 = vsel %vm4078, %v4081, %v4083
        %v4085 = vsel %vm4077, %v4064, %v4067
        %v4086 = vsel %vm4080, %v4073, 920167782
        %v4087 = vsel %vm4079, %v4070, %v4086
        %v4088 = vsel %vm4078, %v4085, %v4087
        %v4089 = vsel %vm4077, %v4067, %v4070
        %v4090 = vsel %vm4080, %v4076, 1326507024
        %v4091 = vsel %vm4079, %v4073, %v4090
        %v4092 = vsel %vm4078, %v4089, %v4091
        %v4093 = vshll.u32 %v4053, 8
        %v4094 = vand.u32 %v4093, 65535
        %v4095 = vshrl.u32 %v4093, 16
        %v4096 = vand.u32 %v4092, 65535
        %v4097 = vshrl.u32 %v4092, 16
        %v4098 = vmul.u32 %v4094, %v4096
        %v4099 = vmul.u32 %v4094, %v4097
        %v4100 = vmul.u32 %v4095, %v4096
        %v4101 = vmul.u32 %v4095, %v4097
        %v4102 = vshll.u32 %v4099, 16
        %v4103 = vshrl.u32 %v4099, 16
        %v4104 = vshll.u32 %v4100, 16
        %v4105 = vshrl.u32 %v4100, 16
        %vm4106 = vc.u32 %v4098, %v4102
        %v4107 = vsel %vm4106, 1, 0
        %v4108 = vadd.s32 %v4098, %v4102
        %v4109 = vadd.s32 %v4101, %v4107
        %vm4110 = vc.u32 %v4108, %v4104
        %v4111 = vsel %vm4110, 1, 0
        %v4112 = vadd.s32 %v4108, %v4104
        %v4113 = vadd.s32 %v4109, %v4111
        %v4114 = vadd.s32 %v4113, %v4103
        %v4115 = vadd.s32 %v4114, %v4105
        %v4116 = vand.u32 %v4093, 65535
        %v4117 = vshrl.u32 %v4093, 16
        %v4118 = vand.u32 %v4088, 65535
        %v4119 = vshrl.u32 %v4088, 16
        %v4120 = vmul.u32 %v4116, %v4118
        %v4121 = vmul.u32 %v4116, %v4119
        %v4122 = vmul.u32 %v4117, %v4118
        %v4123 = vmul.u32 %v4117, %v4119
        %v4124 = vshll.u32 %v4121, 16
        %v4125 = vshrl.u32 %v4121, 16
        %v4126 = vshll.u32 %v4122, 16
        %v4127 = vshrl.u32 %v4122, 16
        %vm4128 = vc.u32 %v4120, %v4124
        %v4129 = vsel %vm4128, 1, 0
        %v4130 = vadd.s32 %v4120, %v4124
        %v4131 = vadd.s32 %v4123, %v4129
        %vm4132 = vc.u32 %v4130, %v4126
        %v4133 = vsel %vm4132, 1, 0
        %v4134 = vadd.s32 %v4130, %v4126
        %v4135 = vadd.s32 %v4131, %v4133
        %v4136 = vadd.s32 %v4135, %v4125
        %v4137 = vadd.s32 %v4136, %v4127
        %v4138 = vmul.u32 %v4093, %v4084
        %v4139 = vadd.s32 %v4115, %v4134
        %vm4140 = vc.u32 %v4115, %v4134
        %v4141 = vadd.s32 %v4137, 1
        %v4142 = vsel %vm4140, %v4141, %v4137
        %v4143 = vadd.s32 %v4138, %v4142
        %v4144 = vadd.s32 %v4143, 536870912
        %v4145 = vshrl.u32 %v4144, 30
        %v4146 = vshll.u32 %v4145, 30
        %v4147 = vsub.s32 %v4143, %v4146
        %vm4148 = vcmp.lt.s32.totalorder %v4147, 0
        %v4149 = vsub.s32 0, %v4147
        %v4150 = vsel %vm4148, %v4149, %v4147
        %v4151 = vclz %v4150
        %v4152 = vsub.s32 %v4151, 2
        %vm4153 = vcmp.gt.s32.totalorder 0, %v4152
        %v4154 = vsel %vm4153, 0, %v4152
        %v4155 = vsub.s32 32, %v4154
        %v4156 = vshll.u32 %v4147, %v4154
        %v4157 = vshrl.u32 %v4139, %v4155
        %v4158 = vor.u32 %v4156, %v4157
        %v4159 = vsub.s32 4294967266, %v4154
        %v4160 = vadd.s32 %v4159, 127
        %v4161 = vshll.u32 %v4160, 23
        %v4162 = vor.u32 4788187, %v4161
        %v4163 = vand.u32 2147483647, %v4162
        %v4165 = vcvt.s32.f32 %v4158
        %v4166 = vmul.f32 %v4165, %v4163
        %v4167 = vxor.u32 %v4166, 2147483648
        %v4168 = vsel %vm4047, %v4167, %v4166
        %v4169 = vsub.s32 4, %v4145
        %v4170 = vsel %vm4047, %v4169, %v4145
        %v4171 = vsel %vm4046, %v2330, %v4168
        %v4172 = vsel %vm4046, 0, %v4170
        %v4173 = vmul.f32 %v4171, %v4171
        %v4174 = vmul.f32 %v4173, -0.001358992
        %v4175 = vadd.f32 %v4174, 0.041655596
        %v4176 = vmul.f32 %v4173, %v4175
        %v4177 = vadd.f32 %v4176, -0.4999988
        %v4178 = vmul.f32 %v4173, %v4177
        %v4179 = vadd.f32 1.0, %v4178
        %v4180 = vmul.f32 %v4171, %v4171
        %v4181 = vmul.f32 %v4180, -0.00019511016
        %v4182 = vadd.f32 %v4181, 0.008332121
        %v4183 = vmul.f32 %v4180, %v4182
        %v4184 = vadd.f32 %v4183, -0.16666654
        %v4185 = vmul.f32 %v4180, %v4184
        %v4186 = vadd.f32 %v4185, 1.0
        %v4187 = vmul.f32 %v4186, %v4171
        %vm4188 = vweird.f32 %v2330
        %v4189 = vand.u32 %v4172, 3
        %vm4190 = vcmp.lt.s32.totalorder %v4189, 2
        %vm4191 = vcmp.eq.s32.totalorder %v4189, 0
        %v4192 = vxor.u32 %v4187, 2147483648
        %v4193 = vsel %vm4191, %v4179, %v4192
        %vm4194 = vcmp.eq.s32.totalorder %v4189, 2
        %v4195 = vxor.u32 %v4179, 2147483648
        %v4196 = vsel %vm4194, %v4195, %v4187
        %v4197 = vsel %vm4190, %v4193, %v4196
        %v4198 = vsel %vm4188, nan, %v4197
        %v4199 = vand.u32 2147483647, %v2331
        %vm4200 = vcmp.le.f32.partialorder %v4199, 0.7853982
        %vm4201 = vcmp.lt.s32.totalorder %v2331, 0
        %v4202 = vand.u32 %v2331, 2139095040
        %v4203 = vshrl.u32 %v4202, 23
        %v4204 = vsub.s32 %v4203, 127
        %v4205 = vand.u32 2147483647, %v2331
        %v4206 = vand.u32 %v4205, 8388607
        %v4207 = vor.u32 %v4206, 8388608
        %v4208 = vsub.s32 0, %v4207
        %v4209 = vadd.s32 %v4204, 1
        %vm4210 = vcmp.gt.s32.totalorder %v4209, 0
        %v4211 = vsel %vm4210, %v4209, 0
        %v4212 = vshrl.u32 %v4211, 5
        %v4213 = vand.u32 %v4211, 31
        %v4214 = vsub.s32 32, %v4213
        %v4215 = vshrl.u32 683565275, %v4214
        %v4216 = vshll.u32 683565275, %v4213
        %v4217 = vshrl.u32 2475754826, %v4214
        %v4218 = vor.u32 %v4216, %v4217
        %v4219 = vshll.u32 2475754826, %v4213
        %v4220 = vshrl.u32 2131351028, %v4214
        %v4221 = vor.u32 %v4219, %v4220
        %v4222 = vshll.u32 2131351028, %v4213
        %v4223 = vshrl.u32 2102212464, %v4214
        %v4224 = vor.u32 %v4222, %v4223
        %v4225 = vshll.u32 2102212464, %v4213
        %v4226 = vshrl.u32 920167782, %v4214
        %v4227 = vor.u32 %v4225, %v4226
        %v4228 = vshll.u32 920167782, %v4213
        %v4229 = vshrl.u32 1326507024, %v4214
        %v4230 = vor.u32 %v4228, %v4229
        %vm4231 = vcmp.lt.s32.totalorder %v4212, 1
        %vm4232 = vcmp.lt.s32.totalorder %v4212, 2
        %vm4233 = vcmp.lt.s32.totalorder %v4212, 3
        %vm4234 = vcmp.lt.s32.totalorder %v4212, 4
        %v4235 = vsel %vm4231, %v4215, %v4218
        %v4236 = vsel %vm4234, %v4224, 2102212464
        %v4237 = vsel %vm4233, %v4221, %v4236
        %v4238 = vsel %vm4232, %v4235, %v4237
        %v4239 = vsel %vm4231, %v4218, %v4221
        %v4240 = vsel %vm4234, %v4227, 920167782
        %v4241 = vsel %vm4233, %v4224, %v4240
        %v4242 = vsel %vm4232, %v4239, %v4241
        %v4243 = vsel %vm4231, %v4221, %v4224
        %v4244 = vsel %vm4234, %v4230, 1326507024
        %v4245 = vsel %vm4233, %v4227, %v4244
        %v4246 = vsel %vm4232, %v4243, %v4245
        %v4247 = vshll.u32 %v4207, 8
        %v4248 = vand.u32 %v4247, 65535
        %v4249 = vshrl.u32 %v4247, 16
        %v4250 = vand.u32 %v4246, 65535
        %v4251 = vshrl.u32 %v4246, 16
        %v4252 = vmul.u32 %v4248, %v4250
        %v4253 = vmul.u32 %v4248, %v4251
        %v4254 = vmul.u32 %v4249, %v4250
        %v4255 = vmul.u32 %v4249, %v4251
        %v4256 = vshll.u32 %v4253, 16
        %v4257 = vshrl.u32 %v4253, 16
        %v4258 = vshll.u32 %v4254, 16
        %v4259 = vshrl.u32 %v4254, 16
        %vm4260 = vc.u32 %v4252, %v4256
        %v4261 = vsel %vm4260, 1, 0
        %v4262 = vadd.s32 %v4252, %v4256
        %v4263 = vadd.s32 %v4255, %v4261
        %vm4264 = vc.u32 %v4262, %v4258
        %v4265 = vsel %vm4264, 1, 0
        %v4266 = vadd.s32 %v4262, %v4258
        %v4267 = vadd.s32 %v4263, %v4265
        %v4268 = vadd.s32 %v4267, %v4257
        %v4269 = vadd.s32 %v4268, %v4259
        %v4270 = vand.u32 %v4247, 65535
        %v4271 = vshrl.u32 %v4247, 16
        %v4272 = vand.u32 %v4242, 65535
        %v4273 = vshrl.u32 %v4242, 16
        %v4274 = vmul.u32 %v4270, %v4272
        %v4275 = vmul.u32 %v4270, %v4273
        %v4276 = vmul.u32 %v4271, %v4272
        %v4277 = vmul.u32 %v4271, %v4273
        %v4278 = vshll.u32 %v4275, 16
        %v4279 = vshrl.u32 %v4275, 16
        %v4280 = vshll.u32 %v4276, 16
        %v4281 = vshrl.u32 %v4276, 16
        %vm4282 = vc.u32 %v4274, %v4278
        %v4283 = vsel %vm4282, 1, 0
        %v4284 = vadd.s32 %v4274, %v4278
        %v4285 = vadd.s32 %v4277, %v4283
        %vm4286 = vc.u32 %v4284, %v4280
        %v4287 = vsel %vm4286, 1, 0
        %v4288 = vadd.s32 %v4284, %v4280
        %v4289 = vadd.s32 %v4285, %v4287
        %v4290 = vadd.s32 %v4289, %v4279
        %v4291 = vadd.s32 %v4290, %v4281
        %v4292 = vmul.u32 %v4247, %v4238
        %v4293 = vadd.s32 %v4269, %v4288
        %vm4294 = vc.u32 %v4269, %v4288
        %v4295 = vadd.s32 %v4291, 1
        %v4296 = vsel %vm4294, %v4295, %v4291
        %v4297 = vadd.s32 %v4292, %v4296
        %v4298 = vadd.s32 %v4297, 536870912
        %v4299 = vshrl.u32 %v4298, 30
        %v4300 = vshll.u32 %v4299, 30
        %v4301 = vsub.s32 %v4297, %v4300
        %vm4302 = vcmp.lt.s32.totalorder %v4301, 0
        %v4303 = vsub.s32 0, %v4301
        %v4304 = vsel %vm4302, %v4303, %v4301
        %v4305 = vclz %v4304
        %v4306 = vsub.s32 %v4305, 2
        %vm4307 = vcmp.gt.s32.totalorder 0, %v4306
        %v4308 = vsel %vm4307, 0, %v4306
        %v4309 = vsub.s32 32, %v4308
        %v4310 = vshll.u32 %v4301, %v4308
        %v4311 = vshrl.u32 %v4293, %v4309
        %v4312 = vor.u32 %v4310, %v4311
        %v4313 = vsub.s32 4294967266, %v4308
        %v4314 = vadd.s32 %v4313, 127
        %v4315 = vshll.u32 %v4314, 23
        %v4316 = vor.u32 4788187, %v4315
        %v4317 = vand.u32 2147483647, %v4316
        %v4319 = vcvt.s32.f32 %v4312
        %v4320 = vmul.f32 %v4319, %v4317
        %v4321 = vxor.u32 %v4320, 2147483648
        %v4322 = vsel %vm4201, %v4321, %v4320
        %v4323 = vsub.s32 4, %v4299
        %v4324 = vsel %vm4201, %v4323, %v4299
        %v4325 = vsel %vm4200, %v2331, %v4322
        %v4326 = vsel %vm4200, 0, %v4324
        %v4327 = vmul.f32 %v4325, %v4325
        %v4328 = vmul.f32 %v4327, -0.001358992
        %v4329 = vadd.f32 %v4328, 0.041655596
        %v4330 = vmul.f32 %v4327, %v4329
        %v4331 = vadd.f32 %v4330, -0.4999988
        %v4332 = vmul.f32 %v4327, %v4331
        %v4333 = vadd.f32 1.0, %v4332
        %v4334 = vmul.f32 %v4325, %v4325
        %v4335 = vmul.f32 %v4334, -0.00019511016
        %v4336 = vadd.f32 %v4335, 0.008332121
        %v4337 = vmul.f32 %v4334, %v4336
        %v4338 = vadd.f32 %v4337, -0.16666654
        %v4339 = vmul.f32 %v4334, %v4338
        %v4340 = vadd.f32 %v4339, 1.0
        %v4341 = vmul.f32 %v4340, %v4325
        %vm4342 = vweird.f32 %v2331
        %v4343 = vand.u32 %v4326, 3
        %vm4344 = vcmp.lt.s32.totalorder %v4343, 2
        %vm4345 = vcmp.eq.s32.totalorder %v4343, 0
        %v4346 = vxor.u32 %v4341, 2147483648
        %v4347 = vsel %vm4345, %v4333, %v4346
        %vm4348 = vcmp.eq.s32.totalorder %v4343, 2
        %v4349 = vxor.u32 %v4333, 2147483648
        %v4350 = vsel %vm4348, %v4349, %v4341
        %v4351 = vsel %vm4344, %v4347, %v4350
        %v4352 = vsel %vm4342, nan, %v4351
        %v4353 = vand.u32 2147483647, %v2332
        %vm4354 = vcmp.le.f32.partialorder %v4353, 0.7853982
        %vm4355 = vcmp.lt.s32.totalorder %v2332, 0
        %v4356 = vand.u32 %v2332, 2139095040
        %v4357 = vshrl.u32 %v4356, 23
        %v4358 = vsub.s32 %v4357, 127
        %v4359 = vand.u32 2147483647, %v2332
        %v4360 = vand.u32 %v4359, 8388607
        %v4361 = vor.u32 %v4360, 8388608
        %v4362 = vsub.s32 0, %v4361
        %v4363 = vadd.s32 %v4358, 1
        %vm4364 = vcmp.gt.s32.totalorder %v4363, 0
        %v4365 = vsel %vm4364, %v4363, 0
        %v4366 = vshrl.u32 %v4365, 5
        %v4367 = vand.u32 %v4365, 31
        %v4368 = vsub.s32 32, %v4367
        %v4369 = vshrl.u32 683565275, %v4368
        %v4370 = vshll.u32 683565275, %v4367
        %v4371 = vshrl.u32 2475754826, %v4368
        %v4372 = vor.u32 %v4370, %v4371
        %v4373 = vshll.u32 2475754826, %v4367
        %v4374 = vshrl.u32 2131351028, %v4368
        %v4375 = vor.u32 %v4373, %v4374
        %v4376 = vshll.u32 2131351028, %v4367
        %v4377 = vshrl.u32 2102212464, %v4368
        %v4378 = vor.u32 %v4376, %v4377
        %v4379 = vshll.u32 2102212464, %v4367
        %v4380 = vshrl.u32 920167782, %v4368
        %v4381 = vor.u32 %v4379, %v4380
        %v4382 = vshll.u32 920167782, %v4367
        %v4383 = vshrl.u32 1326507024, %v4368
        %v4384 = vor.u32 %v4382, %v4383
        %vm4385 = vcmp.lt.s32.totalorder %v4366, 1
        %vm4386 = vcmp.lt.s32.totalorder %v4366, 2
        %vm4387 = vcmp.lt.s32.totalorder %v4366, 3
        %vm4388 = vcmp.lt.s32.totalorder %v4366, 4
        %v4389 = vsel %vm4385, %v4369, %v4372
        %v4390 = vsel %vm4388, %v4378, 2102212464
        %v4391 = vsel %vm4387, %v4375, %v4390
        %v4392 = vsel %vm4386, %v4389, %v4391
        %v4393 = vsel %vm4385, %v4372, %v4375
        %v4394 = vsel %vm4388, %v4381, 920167782
        %v4395 = vsel %vm4387, %v4378, %v4394
        %v4396 = vsel %vm4386, %v4393, %v4395
        %v4397 = vsel %vm4385, %v4375, %v4378
        %v4398 = vsel %vm4388, %v4384, 1326507024
        %v4399 = vsel %vm4387, %v4381, %v4398
        %v4400 = vsel %vm4386, %v4397, %v4399
        %v4401 = vshll.u32 %v4361, 8
        %v4402 = vand.u32 %v4401, 65535
        %v4403 = vshrl.u32 %v4401, 16
        %v4404 = vand.u32 %v4400, 65535
        %v4405 = vshrl.u32 %v4400, 16
        %v4406 = vmul.u32 %v4402, %v4404
        %v4407 = vmul.u32 %v4402, %v4405
        %v4408 = vmul.u32 %v4403, %v4404
        %v4409 = vmul.u32 %v4403, %v4405
        %v4410 = vshll.u32 %v4407, 16
        %v4411 = vshrl.u32 %v4407, 16
        %v4412 = vshll.u32 %v4408, 16
        %v4413 = vshrl.u32 %v4408, 16
        %vm4414 = vc.u32 %v4406, %v4410
        %v4415 = vsel %vm4414, 1, 0
        %v4416 = vadd.s32 %v4406, %v4410
        %v4417 = vadd.s32 %v4409, %v4415
        %vm4418 = vc.u32 %v4416, %v4412
        %v4419 = vsel %vm4418, 1, 0
        %v4420 = vadd.s32 %v4416, %v4412
        %v4421 = vadd.s32 %v4417, %v4419
        %v4422 = vadd.s32 %v4421, %v4411
        %v4423 = vadd.s32 %v4422, %v4413
        %v4424 = vand.u32 %v4401, 65535
        %v4425 = vshrl.u32 %v4401, 16
        %v4426 = vand.u32 %v4396, 65535
        %v4427 = vshrl.u32 %v4396, 16
        %v4428 = vmul.u32 %v4424, %v4426
        %v4429 = vmul.u32 %v4424, %v4427
        %v4430 = vmul.u32 %v4425, %v4426
        %v4431 = vmul.u32 %v4425, %v4427
        %v4432 = vshll.u32 %v4429, 16
        %v4433 = vshrl.u32 %v4429, 16
        %v4434 = vshll.u32 %v4430, 16
        %v4435 = vshrl.u32 %v4430, 16
        %vm4436 = vc.u32 %v4428, %v4432
        %v4437 = vsel %vm4436, 1, 0
        %v4438 = vadd.s32 %v4428, %v4432
        %v4439 = vadd.s32 %v4431, %v4437
        %vm4440 = vc.u32 %v4438, %v4434
        %v4441 = vsel %vm4440, 1, 0
        %v4442 = vadd.s32 %v4438, %v4434
        %v4443 = vadd.s32 %v4439, %v4441
        %v4444 = vadd.s32 %v4443, %v4433
        %v4445 = vadd.s32 %v4444, %v4435
        %v4446 = vmul.u32 %v4401, %v4392
        %v4447 = vadd.s32 %v4423, %v4442
        %vm4448 = vc.u32 %v4423, %v4442
        %v4449 = vadd.s32 %v4445, 1
        %v4450 = vsel %vm4448, %v4449, %v4445
        %v4451 = vadd.s32 %v4446, %v4450
        %v4452 = vadd.s32 %v4451, 536870912
        %v4453 = vshrl.u32 %v4452, 30
        %v4454 = vshll.u32 %v4453, 30
        %v4455 = vsub.s32 %v4451, %v4454
        %vm4456 = vcmp.lt.s32.totalorder %v4455, 0
        %v4457 = vsub.s32 0, %v4455
        %v4458 = vsel %vm4456, %v4457, %v4455
        %v4459 = vclz %v4458
        %v4460 = vsub.s32 %v4459, 2
        %vm4461 = vcmp.gt.s32.totalorder 0, %v4460
        %v4462 = vsel %vm4461, 0, %v4460
        %v4463 = vsub.s32 32, %v4462
        %v4464 = vshll.u32 %v4455, %v4462
        %v4465 = vshrl.u32 %v4447, %v4463
        %v4466 = vor.u32 %v4464, %v4465
        %v4467 = vsub.s32 4294967266, %v4462
        %v4468 = vadd.s32 %v4467, 127
        %v4469 = vshll.u32 %v4468, 23
        %v4470 = vor.u32 4788187, %v4469
        %v4471 = vand.u32 2147483647, %v4470
        %v4473 = vcvt.s32.f32 %v4466
        %v4474 = vmul.f32 %v4473, %v4471
        %v4475 = vxor.u32 %v4474, 2147483648
        %v4476 = vsel %vm4355, %v4475, %v4474
        %v4477 = vsub.s32 4, %v4453
        %v4478 = vsel %vm4355, %v4477, %v4453
        %v4479 = vsel %vm4354, %v2332, %v4476
        %v4480 = vsel %vm4354, 0, %v4478
        %v4481 = vmul.f32 %v4479, %v4479
        %v4482 = vmul.f32 %v4481, -0.001358992
        %v4483 = vadd.f32 %v4482, 0.041655596
        %v4484 = vmul.f32 %v4481, %v4483
        %v4485 = vadd.f32 %v4484, -0.4999988
        %v4486 = vmul.f32 %v4481, %v4485
        %v4487 = vadd.f32 1.0, %v4486
        %v4488 = vmul.f32 %v4479, %v4479
        %v4489 = vmul.f32 %v4488, -0.00019511016
        %v4490 = vadd.f32 %v4489, 0.008332121
        %v4491 = vmul.f32 %v4488, %v4490
        %v4492 = vadd.f32 %v4491, -0.16666654
        %v4493 = vmul.f32 %v4488, %v4492
        %v4494 = vadd.f32 %v4493, 1.0
        %v4495 = vmul.f32 %v4494, %v4479
        %vm4496 = vweird.f32 %v2332
        %v4497 = vand.u32 %v4480, 3
        %vm4498 = vcmp.lt.s32.totalorder %v4497, 2
        %vm4499 = vcmp.eq.s32.totalorder %v4497, 0
        %v4500 = vxor.u32 %v4495, 2147483648
        %v4501 = vsel %vm4499, %v4487, %v4500
        %vm4502 = vcmp.eq.s32.totalorder %v4497, 2
        %v4503 = vxor.u32 %v4487, 2147483648
        %v4504 = vsel %vm4502, %v4503, %v4495
        %v4505 = vsel %vm4498, %v4501, %v4504
        %v4506 = vsel %vm4496, nan, %v4505
        %v4507 = vand.u32 2147483647, %v2333
        %vm4508 = vcmp.le.f32.partialorder %v4507, 0.7853982
        %vm4509 = vcmp.lt.s32.totalorder %v2333, 0
        %v4510 = vand.u32 %v2333, 2139095040
        %v4511 = vshrl.u32 %v4510, 23
        %v4512 = vsub.s32 %v4511, 127
        %v4513 = vand.u32 2147483647, %v2333
        %v4514 = vand.u32 %v4513, 8388607
        %v4515 = vor.u32 %v4514, 8388608
        %v4516 = vsub.s32 0, %v4515
        %v4517 = vadd.s32 %v4512, 1
        %vm4518 = vcmp.gt.s32.totalorder %v4517, 0
        %v4519 = vsel %vm4518, %v4517, 0
        %v4520 = vshrl.u32 %v4519, 5
        %v4521 = vand.u32 %v4519, 31
        %v4522 = vsub.s32 32, %v4521
        %v4523 = vshrl.u32 683565275, %v4522
        %v4524 = vshll.u32 683565275, %v4521
        %v4525 = vshrl.u32 2475754826, %v4522
        %v4526 = vor.u32 %v4524, %v4525
        %v4527 = vshll.u32 2475754826, %v4521
        %v4528 = vshrl.u32 2131351028, %v4522
        %v4529 = vor.u32 %v4527, %v4528
        %v4530 = vshll.u32 2131351028, %v4521
        %v4531 = vshrl.u32 2102212464, %v4522
        %v4532 = vor.u32 %v4530, %v4531
        %v4533 = vshll.u32 2102212464, %v4521
        %v4534 = vshrl.u32 920167782, %v4522
        %v4535 = vor.u32 %v4533, %v4534
        %v4536 = vshll.u32 920167782, %v4521
        %v4537 = vshrl.u32 1326507024, %v4522
        %v4538 = vor.u32 %v4536, %v4537
        %vm4539 = vcmp.lt.s32.totalorder %v4520, 1
        %vm4540 = vcmp.lt.s32.totalorder %v4520, 2
        %vm4541 = vcmp.lt.s32.totalorder %v4520, 3
        %vm4542 = vcmp.lt.s32.totalorder %v4520, 4
        %v4543 = vsel %vm4539, %v4523, %v4526
        %v4544 = vsel %vm4542, %v4532, 2102212464
        %v4545 = vsel %vm4541, %v4529, %v4544
        %v4546 = vsel %vm4540, %v4543, %v4545
        %v4547 = vsel %vm4539, %v4526, %v4529
        %v4548 = vsel %vm4542, %v4535, 920167782
        %v4549 = vsel %vm4541, %v4532, %v4548
        %v4550 = vsel %vm4540, %v4547, %v4549
        %v4551 = vsel %vm4539, %v4529, %v4532
        %v4552 = vsel %vm4542, %v4538, 1326507024
        %v4553 = vsel %vm4541, %v4535, %v4552
        %v4554 = vsel %vm4540, %v4551, %v4553
        %v4555 = vshll.u32 %v4515, 8
        %v4556 = vand.u32 %v4555, 65535
        %v4557 = vshrl.u32 %v4555, 16
        %v4558 = vand.u32 %v4554, 65535
        %v4559 = vshrl.u32 %v4554, 16
        %v4560 = vmul.u32 %v4556, %v4558
        %v4561 = vmul.u32 %v4556, %v4559
        %v4562 = vmul.u32 %v4557, %v4558
        %v4563 = vmul.u32 %v4557, %v4559
        %v4564 = vshll.u32 %v4561, 16
        %v4565 = vshrl.u32 %v4561, 16
        %v4566 = vshll.u32 %v4562, 16
        %v4567 = vshrl.u32 %v4562, 16
        %vm4568 = vc.u32 %v4560, %v4564
        %v4569 = vsel %vm4568, 1, 0
        %v4570 = vadd.s32 %v4560, %v4564
        %v4571 = vadd.s32 %v4563, %v4569
        %vm4572 = vc.u32 %v4570, %v4566
        %v4573 = vsel %vm4572, 1, 0
        %v4574 = vadd.s32 %v4570, %v4566
        %v4575 = vadd.s32 %v4571, %v4573
        %v4576 = vadd.s32 %v4575, %v4565
        %v4577 = vadd.s32 %v4576, %v4567
        %v4578 = vand.u32 %v4555, 65535
        %v4579 = vshrl.u32 %v4555, 16
        %v4580 = vand.u32 %v4550, 65535
        %v4581 = vshrl.u32 %v4550, 16
        %v4582 = vmul.u32 %v4578, %v4580
        %v4583 = vmul.u32 %v4578, %v4581
        %v4584 = vmul.u32 %v4579, %v4580
        %v4585 = vmul.u32 %v4579, %v4581
        %v4586 = vshll.u32 %v4583, 16
        %v4587 = vshrl.u32 %v4583, 16
        %v4588 = vshll.u32 %v4584, 16
        %v4589 = vshrl.u32 %v4584, 16
        %vm4590 = vc.u32 %v4582, %v4586
        %v4591 = vsel %vm4590, 1, 0
        %v4592 = vadd.s32 %v4582, %v4586
        %v4593 = vadd.s32 %v4585, %v4591
        %vm4594 = vc.u32 %v4592, %v4588
        %v4595 = vsel %vm4594, 1, 0
        %v4596 = vadd.s32 %v4592, %v4588
        %v4597 = vadd.s32 %v4593, %v4595
        %v4598 = vadd.s32 %v4597, %v4587
        %v4599 = vadd.s32 %v4598, %v4589
        %v4600 = vmul.u32 %v4555, %v4546
        %v4601 = vadd.s32 %v4577, %v4596
        %vm4602 = vc.u32 %v4577, %v4596
        %v4603 = vadd.s32 %v4599, 1
        %v4604 = vsel %vm4602, %v4603, %v4599
        %v4605 = vadd.s32 %v4600, %v4604
        %v4606 = vadd.s32 %v4605, 536870912
        %v4607 = vshrl.u32 %v4606, 30
        %v4608 = vshll.u32 %v4607, 30
        %v4609 = vsub.s32 %v4605, %v4608
        %vm4610 = vcmp.lt.s32.totalorder %v4609, 0
        %v4611 = vsub.s32 0, %v4609
        %v4612 = vsel %vm4610, %v4611, %v4609
        %v4613 = vclz %v4612
        %v4614 = vsub.s32 %v4613, 2
        %vm4615 = vcmp.gt.s32.totalorder 0, %v4614
        %v4616 = vsel %vm4615, 0, %v4614
        %v4617 = vsub.s32 32, %v4616
        %v4618 = vshll.u32 %v4609, %v4616
        %v4619 = vshrl.u32 %v4601, %v4617
        %v4620 = vor.u32 %v4618, %v4619
        %v4621 = vsub.s32 4294967266, %v4616
        %v4622 = vadd.s32 %v4621, 127
        %v4623 = vshll.u32 %v4622, 23
        %v4624 = vor.u32 4788187, %v4623
        %v4625 = vand.u32 2147483647, %v4624
        %v4627 = vcvt.s32.f32 %v4620
        %v4628 = vmul.f32 %v4627, %v4625
        %v4629 = vxor.u32 %v4628, 2147483648
        %v4630 = vsel %vm4509, %v4629, %v4628
        %v4631 = vsub.s32 4, %v4607
        %v4632 = vsel %vm4509, %v4631, %v4607
        %v4633 = vsel %vm4508, %v2333, %v4630
        %v4634 = vsel %vm4508, 0, %v4632
        %v4635 = vmul.f32 %v4633, %v4633
        %v4636 = vmul.f32 %v4635, -0.001358992
        %v4637 = vadd.f32 %v4636, 0.041655596
        %v4638 = vmul.f32 %v4635, %v4637
        %v4639 = vadd.f32 %v4638, -0.4999988
        %v4640 = vmul.f32 %v4635, %v4639
        %v4641 = vadd.f32 1.0, %v4640
        %v4642 = vmul.f32 %v4633, %v4633
        %v4643 = vmul.f32 %v4642, -0.00019511016
        %v4644 = vadd.f32 %v4643, 0.008332121
        %v4645 = vmul.f32 %v4642, %v4644
        %v4646 = vadd.f32 %v4645, -0.16666654
        %v4647 = vmul.f32 %v4642, %v4646
        %v4648 = vadd.f32 %v4647, 1.0
        %v4649 = vmul.f32 %v4648, %v4633
        %vm4650 = vweird.f32 %v2333
        %v4651 = vand.u32 %v4634, 3
        %vm4652 = vcmp.lt.s32.totalorder %v4651, 2
        %vm4653 = vcmp.eq.s32.totalorder %v4651, 0
        %v4654 = vxor.u32 %v4649, 2147483648
        %v4655 = vsel %vm4653, %v4641, %v4654
        %vm4656 = vcmp.eq.s32.totalorder %v4651, 2
        %v4657 = vxor.u32 %v4641, 2147483648
        %v4658 = vsel %vm4656, %v4657, %v4649
        %v4659 = vsel %vm4652, %v4655, %v4658
        %v4660 = vsel %vm4650, nan, %v4659
        %v4661 = vand.u32 2147483647, %v2334
        %vm4662 = vcmp.le.f32.partialorder %v4661, 0.7853982
        %vm4663 = vcmp.lt.s32.totalorder %v2334, 0
        %v4664 = vand.u32 %v2334, 2139095040
        %v4665 = vshrl.u32 %v4664, 23
        %v4666 = vsub.s32 %v4665, 127
        %v4667 = vand.u32 2147483647, %v2334
        %v4668 = vand.u32 %v4667, 8388607
        %v4669 = vor.u32 %v4668, 8388608
        %v4670 = vsub.s32 0, %v4669
        %v4671 = vadd.s32 %v4666, 1
        %vm4672 = vcmp.gt.s32.totalorder %v4671, 0
        %v4673 = vsel %vm4672, %v4671, 0
        %v4674 = vshrl.u32 %v4673, 5
        %v4675 = vand.u32 %v4673, 31
        %v4676 = vsub.s32 32, %v4675
        %v4677 = vshrl.u32 683565275, %v4676
        %v4678 = vshll.u32 683565275, %v4675
        %v4679 = vshrl.u32 2475754826, %v4676
        %v4680 = vor.u32 %v4678, %v4679
        %v4681 = vshll.u32 2475754826, %v4675
        %v4682 = vshrl.u32 2131351028, %v4676
        %v4683 = vor.u32 %v4681, %v4682
        %v4684 = vshll.u32 2131351028, %v4675
        %v4685 = vshrl.u32 2102212464, %v4676
        %v4686 = vor.u32 %v4684, %v4685
        %v4687 = vshll.u32 2102212464, %v4675
        %v4688 = vshrl.u32 920167782, %v4676
        %v4689 = vor.u32 %v4687, %v4688
        %v4690 = vshll.u32 920167782, %v4675
        %v4691 = vshrl.u32 1326507024, %v4676
        %v4692 = vor.u32 %v4690, %v4691
        %vm4693 = vcmp.lt.s32.totalorder %v4674, 1
        %vm4694 = vcmp.lt.s32.totalorder %v4674, 2
        %vm4695 = vcmp.lt.s32.totalorder %v4674, 3
        %vm4696 = vcmp.lt.s32.totalorder %v4674, 4
        %v4697 = vsel %vm4693, %v4677, %v4680
        %v4698 = vsel %vm4696, %v4686, 2102212464
        %v4699 = vsel %vm4695, %v4683, %v4698
        %v4700 = vsel %vm4694, %v4697, %v4699
        %v4701 = vsel %vm4693, %v4680, %v4683
        %v4702 = vsel %vm4696, %v4689, 920167782
        %v4703 = vsel %vm4695, %v4686, %v4702
        %v4704 = vsel %vm4694, %v4701, %v4703
        %v4705 = vsel %vm4693, %v4683, %v4686
        %v4706 = vsel %vm4696, %v4692, 1326507024
        %v4707 = vsel %vm4695, %v4689, %v4706
        %v4708 = vsel %vm4694, %v4705, %v4707
        %v4709 = vshll.u32 %v4669, 8
        %v4710 = vand.u32 %v4709, 65535
        %v4711 = vshrl.u32 %v4709, 16
        %v4712 = vand.u32 %v4708, 65535
        %v4713 = vshrl.u32 %v4708, 16
        %v4714 = vmul.u32 %v4710, %v4712
        %v4715 = vmul.u32 %v4710, %v4713
        %v4716 = vmul.u32 %v4711, %v4712
        %v4717 = vmul.u32 %v4711, %v4713
        %v4718 = vshll.u32 %v4715, 16
        %v4719 = vshrl.u32 %v4715, 16
        %v4720 = vshll.u32 %v4716, 16
        %v4721 = vshrl.u32 %v4716, 16
        %vm4722 = vc.u32 %v4714, %v4718
        %v4723 = vsel %vm4722, 1, 0
        %v4724 = vadd.s32 %v4714, %v4718
        %v4725 = vadd.s32 %v4717, %v4723
        %vm4726 = vc.u32 %v4724, %v4720
        %v4727 = vsel %vm4726, 1, 0
        %v4728 = vadd.s32 %v4724, %v4720
        %v4729 = vadd.s32 %v4725, %v4727
        %v4730 = vadd.s32 %v4729, %v4719
        %v4731 = vadd.s32 %v4730, %v4721
        %v4732 = vand.u32 %v4709, 65535
        %v4733 = vshrl.u32 %v4709, 16
        %v4734 = vand.u32 %v4704, 65535
        %v4735 = vshrl.u32 %v4704, 16
        %v4736 = vmul.u32 %v4732, %v4734
        %v4737 = vmul.u32 %v4732, %v4735
        %v4738 = vmul.u32 %v4733, %v4734
        %v4739 = vmul.u32 %v4733, %v4735
        %v4740 = vshll.u32 %v4737, 16
        %v4741 = vshrl.u32 %v4737, 16
        %v4742 = vshll.u32 %v4738, 16
        %v4743 = vshrl.u32 %v4738, 16
        %vm4744 = vc.u32 %v4736, %v4740
        %v4745 = vsel %vm4744, 1, 0
        %v4746 = vadd.s32 %v4736, %v4740
        %v4747 = vadd.s32 %v4739, %v4745
        %vm4748 = vc.u32 %v4746, %v4742
        %v4749 = vsel %vm4748, 1, 0
        %v4750 = vadd.s32 %v4746, %v4742
        %v4751 = vadd.s32 %v4747, %v4749
        %v4752 = vadd.s32 %v4751, %v4741
        %v4753 = vadd.s32 %v4752, %v4743
        %v4754 = vmul.u32 %v4709, %v4700
        %v4755 = vadd.s32 %v4731, %v4750
        %vm4756 = vc.u32 %v4731, %v4750
        %v4757 = vadd.s32 %v4753, 1
        %v4758 = vsel %vm4756, %v4757, %v4753
        %v4759 = vadd.s32 %v4754, %v4758
        %v4760 = vadd.s32 %v4759, 536870912
        %v4761 = vshrl.u32 %v4760, 30
        %v4762 = vshll.u32 %v4761, 30
        %v4763 = vsub.s32 %v4759, %v4762
        %vm4764 = vcmp.lt.s32.totalorder %v4763, 0
        %v4765 = vsub.s32 0, %v4763
        %v4766 = vsel %vm4764, %v4765, %v4763
        %v4767 = vclz %v4766
        %v4768 = vsub.s32 %v4767, 2
        %vm4769 = vcmp.gt.s32.totalorder 0, %v4768
        %v4770 = vsel %vm4769, 0, %v4768
        %v4771 = vsub.s32 32, %v4770
        %v4772 = vshll.u32 %v4763, %v4770
        %v4773 = vshrl.u32 %v4755, %v4771
        %v4774 = vor.u32 %v4772, %v4773
        %v4775 = vsub.s32 4294967266, %v4770
        %v4776 = vadd.s32 %v4775, 127
        %v4777 = vshll.u32 %v4776, 23
        %v4778 = vor.u32 4788187, %v4777
        %v4779 = vand.u32 2147483647, %v4778
        %v4781 = vcvt.s32.f32 %v4774
        %v4782 = vmul.f32 %v4781, %v4779
        %v4783 = vxor.u32 %v4782, 2147483648
        %v4784 = vsel %vm4663, %v4783, %v4782
        %v4785 = vsub.s32 4, %v4761
        %v4786 = vsel %vm4663, %v4785, %v4761
        %v4787 = vsel %vm4662, %v2334, %v4784
        %v4788 = vsel %vm4662, 0, %v4786
        %v4789 = vmul.f32 %v4787, %v4787
        %v4790 = vmul.f32 %v4789, -0.001358992
        %v4791 = vadd.f32 %v4790, 0.041655596
        %v4792 = vmul.f32 %v4789, %v4791
        %v4793 = vadd.f32 %v4792, -0.4999988
        %v4794 = vmul.f32 %v4789, %v4793
        %v4795 = vadd.f32 1.0, %v4794
        %v4796 = vmul.f32 %v4787, %v4787
        %v4797 = vmul.f32 %v4796, -0.00019511016
        %v4798 = vadd.f32 %v4797, 0.008332121
        %v4799 = vmul.f32 %v4796, %v4798
        %v4800 = vadd.f32 %v4799, -0.16666654
        %v4801 = vmul.f32 %v4796, %v4800
        %v4802 = vadd.f32 %v4801, 1.0
        %v4803 = vmul.f32 %v4802, %v4787
        %vm4804 = vweird.f32 %v2334
        %v4805 = vand.u32 %v4788, 3
        %vm4806 = vcmp.lt.s32.totalorder %v4805, 2
        %vm4807 = vcmp.eq.s32.totalorder %v4805, 0
        %v4808 = vxor.u32 %v4803, 2147483648
        %v4809 = vsel %vm4807, %v4795, %v4808
        %vm4810 = vcmp.eq.s32.totalorder %v4805, 2
        %v4811 = vxor.u32 %v4795, 2147483648
        %v4812 = vsel %vm4810, %v4811, %v4803
        %v4813 = vsel %vm4806, %v4809, %v4812
        %v4814 = vsel %vm4804, nan, %v4813
        %v4815 = vand.u32 2147483647, %v2335
        %vm4816 = vcmp.le.f32.partialorder %v4815, 0.7853982
        %vm4817 = vcmp.lt.s32.totalorder %v2335, 0
        %v4818 = vand.u32 %v2335, 2139095040
        %v4819 = vshrl.u32 %v4818, 23
        %v4820 = vsub.s32 %v4819, 127
        %v4821 = vand.u32 2147483647, %v2335
        %v4822 = vand.u32 %v4821, 8388607
        %v4823 = vor.u32 %v4822, 8388608
        %v4824 = vsub.s32 0, %v4823
        %v4825 = vadd.s32 %v4820, 1
        %vm4826 = vcmp.gt.s32.totalorder %v4825, 0
        %v4827 = vsel %vm4826, %v4825, 0
        %v4828 = vshrl.u32 %v4827, 5
        %v4829 = vand.u32 %v4827, 31
        %v4830 = vsub.s32 32, %v4829
        %v4831 = vshrl.u32 683565275, %v4830
        %v4832 = vshll.u32 683565275, %v4829
        %v4833 = vshrl.u32 2475754826, %v4830
        %v4834 = vor.u32 %v4832, %v4833
        %v4835 = vshll.u32 2475754826, %v4829
        %v4836 = vshrl.u32 2131351028, %v4830
        %v4837 = vor.u32 %v4835, %v4836
        %v4838 = vshll.u32 2131351028, %v4829
        %v4839 = vshrl.u32 2102212464, %v4830
        %v4840 = vor.u32 %v4838, %v4839
        %v4841 = vshll.u32 2102212464, %v4829
        %v4842 = vshrl.u32 920167782, %v4830
        %v4843 = vor.u32 %v4841, %v4842
        %v4844 = vshll.u32 920167782, %v4829
        %v4845 = vshrl.u32 1326507024, %v4830
        %v4846 = vor.u32 %v4844, %v4845
        %vm4847 = vcmp.lt.s32.totalorder %v4828, 1
        %vm4848 = vcmp.lt.s32.totalorder %v4828, 2
        %vm4849 = vcmp.lt.s32.totalorder %v4828, 3
        %vm4850 = vcmp.lt.s32.totalorder %v4828, 4
        %v4851 = vsel %vm4847, %v4831, %v4834
        %v4852 = vsel %vm4850, %v4840, 2102212464
        %v4853 = vsel %vm4849, %v4837, %v4852
        %v4854 = vsel %vm4848, %v4851, %v4853
        %v4855 = vsel %vm4847, %v4834, %v4837
        %v4856 = vsel %vm4850, %v4843, 920167782
        %v4857 = vsel %vm4849, %v4840, %v4856
        %v4858 = vsel %vm4848, %v4855, %v4857
        %v4859 = vsel %vm4847, %v4837, %v4840
        %v4860 = vsel %vm4850, %v4846, 1326507024
        %v4861 = vsel %vm4849, %v4843, %v4860
        %v4862 = vsel %vm4848, %v4859, %v4861
        %v4863 = vshll.u32 %v4823, 8
        %v4864 = vand.u32 %v4863, 65535
        %v4865 = vshrl.u32 %v4863, 16
        %v4866 = vand.u32 %v4862, 65535
        %v4867 = vshrl.u32 %v4862, 16
        %v4868 = vmul.u32 %v4864, %v4866
        %v4869 = vmul.u32 %v4864, %v4867
        %v4870 = vmul.u32 %v4865, %v4866
        %v4871 = vmul.u32 %v4865, %v4867
        %v4872 = vshll.u32 %v4869, 16
        %v4873 = vshrl.u32 %v4869, 16
        %v4874 = vshll.u32 %v4870, 16
        %v4875 = vshrl.u32 %v4870, 16
        %vm4876 = vc.u32 %v4868, %v4872
        %v4877 = vsel %vm4876, 1, 0
        %v4878 = vadd.s32 %v4868, %v4872
        %v4879 = vadd.s32 %v4871, %v4877
        %vm4880 = vc.u32 %v4878, %v4874
        %v4881 = vsel %vm4880, 1, 0
        %v4882 = vadd.s32 %v4878, %v4874
        %v4883 = vadd.s32 %v4879, %v4881
        %v4884 = vadd.s32 %v4883, %v4873
        %v4885 = vadd.s32 %v4884, %v4875
        %v4886 = vand.u32 %v4863, 65535
        %v4887 = vshrl.u32 %v4863, 16
        %v4888 = vand.u32 %v4858, 65535
        %v4889 = vshrl.u32 %v4858, 16
        %v4890 = vmul.u32 %v4886, %v4888
        %v4891 = vmul.u32 %v4886, %v4889
        %v4892 = vmul.u32 %v4887, %v4888
        %v4893 = vmul.u32 %v4887, %v4889
        %v4894 = vshll.u32 %v4891, 16
        %v4895 = vshrl.u32 %v4891, 16
        %v4896 = vshll.u32 %v4892, 16
        %v4897 = vshrl.u32 %v4892, 16
        %vm4898 = vc.u32 %v4890, %v4894
        %v4899 = vsel %vm4898, 1, 0
        %v4900 = vadd.s32 %v4890, %v4894
        %v4901 = vadd.s32 %v4893, %v4899
        %vm4902 = vc.u32 %v4900, %v4896
        %v4903 = vsel %vm4902, 1, 0
        %v4904 = vadd.s32 %v4900, %v4896
        %v4905 = vadd.s32 %v4901, %v4903
        %v4906 = vadd.s32 %v4905, %v4895
        %v4907 = vadd.s32 %v4906, %v4897
        %v4908 = vmul.u32 %v4863, %v4854
        %v4909 = vadd.s32 %v4885, %v4904
        %vm4910 = vc.u32 %v4885, %v4904
        %v4911 = vadd.s32 %v4907, 1
        %v4912 = vsel %vm4910, %v4911, %v4907
        %v4913 = vadd.s32 %v4908, %v4912
        %v4914 = vadd.s32 %v4913, 536870912
        %v4915 = vshrl.u32 %v4914, 30
        %v4916 = vshll.u32 %v4915, 30
        %v4917 = vsub.s32 %v4913, %v4916
        %vm4918 = vcmp.lt.s32.totalorder %v4917, 0
        %v4919 = vsub.s32 0, %v4917
        %v4920 = vsel %vm4918, %v4919, %v4917
        %v4921 = vclz %v4920
        %v4922 = vsub.s32 %v4921, 2
        %vm4923 = vcmp.gt.s32.totalorder 0, %v4922
        %v4924 = vsel %vm4923, 0, %v4922
        %v4925 = vsub.s32 32, %v4924
        %v4926 = vshll.u32 %v4917, %v4924
        %v4927 = vshrl.u32 %v4909, %v4925
        %v4928 = vor.u32 %v4926, %v4927
        %v4929 = vsub.s32 4294967266, %v4924
        %v4930 = vadd.s32 %v4929, 127
        %v4931 = vshll.u32 %v4930, 23
        %v4932 = vor.u32 4788187, %v4931
        %v4933 = vand.u32 2147483647, %v4932
        %v4935 = vcvt.s32.f32 %v4928
        %v4936 = vmul.f32 %v4935, %v4933
        %v4937 = vxor.u32 %v4936, 2147483648
        %v4938 = vsel %vm4817, %v4937, %v4936
        %v4939 = vsub.s32 4, %v4915
        %v4940 = vsel %vm4817, %v4939, %v4915
        %v4941 = vsel %vm4816, %v2335, %v4938
        %v4942 = vsel %vm4816, 0, %v4940
        %v4943 = vmul.f32 %v4941, %v4941
        %v4944 = vmul.f32 %v4943, -0.001358992
        %v4945 = vadd.f32 %v4944, 0.041655596
        %v4946 = vmul.f32 %v4943, %v4945
        %v4947 = vadd.f32 %v4946, -0.4999988
        %v4948 = vmul.f32 %v4943, %v4947
        %v4949 = vadd.f32 1.0, %v4948
        %v4950 = vmul.f32 %v4941, %v4941
        %v4951 = vmul.f32 %v4950, -0.00019511016
        %v4952 = vadd.f32 %v4951, 0.008332121
        %v4953 = vmul.f32 %v4950, %v4952
        %v4954 = vadd.f32 %v4953, -0.16666654
        %v4955 = vmul.f32 %v4950, %v4954
        %v4956 = vadd.f32 %v4955, 1.0
        %v4957 = vmul.f32 %v4956, %v4941
        %vm4958 = vweird.f32 %v2335
        %v4959 = vand.u32 %v4942, 3
        %vm4960 = vcmp.lt.s32.totalorder %v4959, 2
        %vm4961 = vcmp.eq.s32.totalorder %v4959, 0
        %v4962 = vxor.u32 %v4957, 2147483648
        %v4963 = vsel %vm4961, %v4949, %v4962
        %vm4964 = vcmp.eq.s32.totalorder %v4959, 2
        %v4965 = vxor.u32 %v4949, 2147483648
        %v4966 = vsel %vm4964, %v4965, %v4957
        %v4967 = vsel %vm4960, %v4963, %v4966
        %v4968 = vsel %vm4958, nan, %v4967
        %v4969 = vand.u32 2147483647, %v2336
        %vm4970 = vcmp.le.f32.partialorder %v4969, 0.7853982
        %vm4971 = vcmp.lt.s32.totalorder %v2336, 0
        %v4972 = vand.u32 %v2336, 2139095040
        %v4973 = vshrl.u32 %v4972, 23
        %v4974 = vsub.s32 %v4973, 127
        %v4975 = vand.u32 2147483647, %v2336
        %v4976 = vand.u32 %v4975, 8388607
        %v4977 = vor.u32 %v4976, 8388608
        %v4978 = vsub.s32 0, %v4977
        %v4979 = vadd.s32 %v4974, 1
        %vm4980 = vcmp.gt.s32.totalorder %v4979, 0
        %v4981 = vsel %vm4980, %v4979, 0
        %v4982 = vshrl.u32 %v4981, 5
        %v4983 = vand.u32 %v4981, 31
        %v4984 = vsub.s32 32, %v4983
        %v4985 = vshrl.u32 683565275, %v4984
        %v4986 = vshll.u32 683565275, %v4983
        %v4987 = vshrl.u32 2475754826, %v4984
        %v4988 = vor.u32 %v4986, %v4987
        %v4989 = vshll.u32 2475754826, %v4983
        %v4990 = vshrl.u32 2131351028, %v4984
        %v4991 = vor.u32 %v4989, %v4990
        %v4992 = vshll.u32 2131351028, %v4983
        %v4993 = vshrl.u32 2102212464, %v4984
        %v4994 = vor.u32 %v4992, %v4993
        %v4995 = vshll.u32 2102212464, %v4983
        %v4996 = vshrl.u32 920167782, %v4984
        %v4997 = vor.u32 %v4995, %v4996
        %v4998 = vshll.u32 920167782, %v4983
        %v4999 = vshrl.u32 1326507024, %v4984
        %v5000 = vor.u32 %v4998, %v4999
        %vm5001 = vcmp.lt.s32.totalorder %v4982, 1
        %vm5002 = vcmp.lt.s32.totalorder %v4982, 2
        %vm5003 = vcmp.lt.s32.totalorder %v4982, 3
        %vm5004 = vcmp.lt.s32.totalorder %v4982, 4
        %v5005 = vsel %vm5001, %v4985, %v4988
        %v5006 = vsel %vm5004, %v4994, 2102212464
        %v5007 = vsel %vm5003, %v4991, %v5006
        %v5008 = vsel %vm5002, %v5005, %v5007
        %v5009 = vsel %vm5001, %v4988, %v4991
        %v5010 = vsel %vm5004, %v4997, 920167782
        %v5011 = vsel %vm5003, %v4994, %v5010
        %v5012 = vsel %vm5002, %v5009, %v5011
        %v5013 = vsel %vm5001, %v4991, %v4994
        %v5014 = vsel %vm5004, %v5000, 1326507024
        %v5015 = vsel %vm5003, %v4997, %v5014
        %v5016 = vsel %vm5002, %v5013, %v5015
        %v5017 = vshll.u32 %v4977, 8
        %v5018 = vand.u32 %v5017, 65535
        %v5019 = vshrl.u32 %v5017, 16
        %v5020 = vand.u32 %v5016, 65535
        %v5021 = vshrl.u32 %v5016, 16
        %v5022 = vmul.u32 %v5018, %v5020
        %v5023 = vmul.u32 %v5018, %v5021
        %v5024 = vmul.u32 %v5019, %v5020
        %v5025 = vmul.u32 %v5019, %v5021
        %v5026 = vshll.u32 %v5023, 16
        %v5027 = vshrl.u32 %v5023, 16
        %v5028 = vshll.u32 %v5024, 16
        %v5029 = vshrl.u32 %v5024, 16
        %vm5030 = vc.u32 %v5022, %v5026
        %v5031 = vsel %vm5030, 1, 0
        %v5032 = vadd.s32 %v5022, %v5026
        %v5033 = vadd.s32 %v5025, %v5031
        %vm5034 = vc.u32 %v5032, %v5028
        %v5035 = vsel %vm5034, 1, 0
        %v5036 = vadd.s32 %v5032, %v5028
        %v5037 = vadd.s32 %v5033, %v5035
        %v5038 = vadd.s32 %v5037, %v5027
        %v5039 = vadd.s32 %v5038, %v5029
        %v5040 = vand.u32 %v5017, 65535
        %v5041 = vshrl.u32 %v5017, 16
        %v5042 = vand.u32 %v5012, 65535
        %v5043 = vshrl.u32 %v5012, 16
        %v5044 = vmul.u32 %v5040, %v5042
        %v5045 = vmul.u32 %v5040, %v5043
        %v5046 = vmul.u32 %v5041, %v5042
        %v5047 = vmul.u32 %v5041, %v5043
        %v5048 = vshll.u32 %v5045, 16
        %v5049 = vshrl.u32 %v5045, 16
        %v5050 = vshll.u32 %v5046, 16
        %v5051 = vshrl.u32 %v5046, 16
        %vm5052 = vc.u32 %v5044, %v5048
        %v5053 = vsel %vm5052, 1, 0
        %v5054 = vadd.s32 %v5044, %v5048
        %v5055 = vadd.s32 %v5047, %v5053
        %vm5056 = vc.u32 %v5054, %v5050
        %v5057 = vsel %vm5056, 1, 0
        %v5058 = vadd.s32 %v5054, %v5050
        %v5059 = vadd.s32 %v5055, %v5057
        %v5060 = vadd.s32 %v5059, %v5049
        %v5061 = vadd.s32 %v5060, %v5051
        %v5062 = vmul.u32 %v5017, %v5008
        %v5063 = vadd.s32 %v5039, %v5058
        %vm5064 = vc.u32 %v5039, %v5058
        %v5065 = vadd.s32 %v5061, 1
        %v5066 = vsel %vm5064, %v5065, %v5061
        %v5067 = vadd.s32 %v5062, %v5066
        %v5068 = vadd.s32 %v5067, 536870912
        %v5069 = vshrl.u32 %v5068, 30
        %v5070 = vshll.u32 %v5069, 30
        %v5071 = vsub.s32 %v5067, %v5070
        %vm5072 = vcmp.lt.s32.totalorder %v5071, 0
        %v5073 = vsub.s32 0, %v5071
        %v5074 = vsel %vm5072, %v5073, %v5071
        %v5075 = vclz %v5074
        %v5076 = vsub.s32 %v5075, 2
        %vm5077 = vcmp.gt.s32.totalorder 0, %v5076
        %v5078 = vsel %vm5077, 0, %v5076
        %v5079 = vsub.s32 32, %v5078
        %v5080 = vshll.u32 %v5071, %v5078
        %v5081 = vshrl.u32 %v5063, %v5079
        %v5082 = vor.u32 %v5080, %v5081
        %v5083 = vsub.s32 4294967266, %v5078
        %v5084 = vadd.s32 %v5083, 127
        %v5085 = vshll.u32 %v5084, 23
        %v5086 = vor.u32 4788187, %v5085
        %v5087 = vand.u32 2147483647, %v5086
        %v5089 = vcvt.s32.f32 %v5082
        %v5090 = vmul.f32 %v5089, %v5087
        %v5091 = vxor.u32 %v5090, 2147483648
        %v5092 = vsel %vm4971, %v5091, %v5090
        %v5093 = vsub.s32 4, %v5069
        %v5094 = vsel %vm4971, %v5093, %v5069
        %v5095 = vsel %vm4970, %v2336, %v5092
        %v5096 = vsel %vm4970, 0, %v5094
        %v5097 = vmul.f32 %v5095, %v5095
        %v5098 = vmul.f32 %v5097, -0.001358992
        %v5099 = vadd.f32 %v5098, 0.041655596
        %v5100 = vmul.f32 %v5097, %v5099
        %v5101 = vadd.f32 %v5100, -0.4999988
        %v5102 = vmul.f32 %v5097, %v5101
        %v5103 = vadd.f32 1.0, %v5102
        %v5104 = vmul.f32 %v5095, %v5095
        %v5105 = vmul.f32 %v5104, -0.00019511016
        %v5106 = vadd.f32 %v5105, 0.008332121
        %v5107 = vmul.f32 %v5104, %v5106
        %v5108 = vadd.f32 %v5107, -0.16666654
        %v5109 = vmul.f32 %v5104, %v5108
        %v5110 = vadd.f32 %v5109, 1.0
        %v5111 = vmul.f32 %v5110, %v5095
        %vm5112 = vweird.f32 %v2336
        %v5113 = vand.u32 %v5096, 3
        %vm5114 = vcmp.lt.s32.totalorder %v5113, 2
        %vm5115 = vcmp.eq.s32.totalorder %v5113, 0
        %v5116 = vxor.u32 %v5111, 2147483648
        %v5117 = vsel %vm5115, %v5103, %v5116
        %vm5118 = vcmp.eq.s32.totalorder %v5113, 2
        %v5119 = vxor.u32 %v5103, 2147483648
        %v5120 = vsel %vm5118, %v5119, %v5111
        %v5121 = vsel %vm5114, %v5117, %v5120
        %v5122 = vsel %vm5112, nan, %v5121
        %v5123 = vand.u32 2147483647, %v2337
        %vm5124 = vcmp.le.f32.partialorder %v5123, 0.7853982
        %vm5125 = vcmp.lt.s32.totalorder %v2337, 0
        %v5126 = vand.u32 %v2337, 2139095040
        %v5127 = vshrl.u32 %v5126, 23
        %v5128 = vsub.s32 %v5127, 127
        %v5129 = vand.u32 2147483647, %v2337
        %v5130 = vand.u32 %v5129, 8388607
        %v5131 = vor.u32 %v5130, 8388608
        %v5132 = vsub.s32 0, %v5131
        %v5133 = vadd.s32 %v5128, 1
        %vm5134 = vcmp.gt.s32.totalorder %v5133, 0
        %v5135 = vsel %vm5134, %v5133, 0
        %v5136 = vshrl.u32 %v5135, 5
        %v5137 = vand.u32 %v5135, 31
        %v5138 = vsub.s32 32, %v5137
        %v5139 = vshrl.u32 683565275, %v5138
        %v5140 = vshll.u32 683565275, %v5137
        %v5141 = vshrl.u32 2475754826, %v5138
        %v5142 = vor.u32 %v5140, %v5141
        %v5143 = vshll.u32 2475754826, %v5137
        %v5144 = vshrl.u32 2131351028, %v5138
        %v5145 = vor.u32 %v5143, %v5144
        %v5146 = vshll.u32 2131351028, %v5137
        %v5147 = vshrl.u32 2102212464, %v5138
        %v5148 = vor.u32 %v5146, %v5147
        %v5149 = vshll.u32 2102212464, %v5137
        %v5150 = vshrl.u32 920167782, %v5138
        %v5151 = vor.u32 %v5149, %v5150
        %v5152 = vshll.u32 920167782, %v5137
        %v5153 = vshrl.u32 1326507024, %v5138
        %v5154 = vor.u32 %v5152, %v5153
        %vm5155 = vcmp.lt.s32.totalorder %v5136, 1
        %vm5156 = vcmp.lt.s32.totalorder %v5136, 2
        %vm5157 = vcmp.lt.s32.totalorder %v5136, 3
        %vm5158 = vcmp.lt.s32.totalorder %v5136, 4
        %v5159 = vsel %vm5155, %v5139, %v5142
        %v5160 = vsel %vm5158, %v5148, 2102212464
        %v5161 = vsel %vm5157, %v5145, %v5160
        %v5162 = vsel %vm5156, %v5159, %v5161
        %v5163 = vsel %vm5155, %v5142, %v5145
        %v5164 = vsel %vm5158, %v5151, 920167782
        %v5165 = vsel %vm5157, %v5148, %v5164
        %v5166 = vsel %vm5156, %v5163, %v5165
        %v5167 = vsel %vm5155, %v5145, %v5148
        %v5168 = vsel %vm5158, %v5154, 1326507024
        %v5169 = vsel %vm5157, %v5151, %v5168
        %v5170 = vsel %vm5156, %v5167, %v5169
        %v5171 = vshll.u32 %v5131, 8
        %v5172 = vand.u32 %v5171, 65535
        %v5173 = vshrl.u32 %v5171, 16
        %v5174 = vand.u32 %v5170, 65535
        %v5175 = vshrl.u32 %v5170, 16
        %v5176 = vmul.u32 %v5172, %v5174
        %v5177 = vmul.u32 %v5172, %v5175
        %v5178 = vmul.u32 %v5173, %v5174
        %v5179 = vmul.u32 %v5173, %v5175
        %v5180 = vshll.u32 %v5177, 16
        %v5181 = vshrl.u32 %v5177, 16
        %v5182 = vshll.u32 %v5178, 16
        %v5183 = vshrl.u32 %v5178, 16
        %vm5184 = vc.u32 %v5176, %v5180
        %v5185 = vsel %vm5184, 1, 0
        %v5186 = vadd.s32 %v5176, %v5180
        %v5187 = vadd.s32 %v5179, %v5185
        %vm5188 = vc.u32 %v5186, %v5182
        %v5189 = vsel %vm5188, 1, 0
        %v5190 = vadd.s32 %v5186, %v5182
        %v5191 = vadd.s32 %v5187, %v5189
        %v5192 = vadd.s32 %v5191, %v5181
        %v5193 = vadd.s32 %v5192, %v5183
        %v5194 = vand.u32 %v5171, 65535
        %v5195 = vshrl.u32 %v5171, 16
        %v5196 = vand.u32 %v5166, 65535
        %v5197 = vshrl.u32 %v5166, 16
        %v5198 = vmul.u32 %v5194, %v5196
        %v5199 = vmul.u32 %v5194, %v5197
        %v5200 = vmul.u32 %v5195, %v5196
        %v5201 = vmul.u32 %v5195, %v5197
        %v5202 = vshll.u32 %v5199, 16
        %v5203 = vshrl.u32 %v5199, 16
        %v5204 = vshll.u32 %v5200, 16
        %v5205 = vshrl.u32 %v5200, 16
        %vm5206 = vc.u32 %v5198, %v5202
        %v5207 = vsel %vm5206, 1, 0
        %v5208 = vadd.s32 %v5198, %v5202
        %v5209 = vadd.s32 %v5201, %v5207
        %vm5210 = vc.u32 %v5208, %v5204
        %v5211 = vsel %vm5210, 1, 0
        %v5212 = vadd.s32 %v5208, %v5204
        %v5213 = vadd.s32 %v5209, %v5211
        %v5214 = vadd.s32 %v5213, %v5203
        %v5215 = vadd.s32 %v5214, %v5205
        %v5216 = vmul.u32 %v5171, %v5162
        %v5217 = vadd.s32 %v5193, %v5212
        %vm5218 = vc.u32 %v5193, %v5212
        %v5219 = vadd.s32 %v5215, 1
        %v5220 = vsel %vm5218, %v5219, %v5215
        %v5221 = vadd.s32 %v5216, %v5220
        %v5222 = vadd.s32 %v5221, 536870912
        %v5223 = vshrl.u32 %v5222, 30
        %v5224 = vshll.u32 %v5223, 30
        %v5225 = vsub.s32 %v5221, %v5224
        %vm5226 = vcmp.lt.s32.totalorder %v5225, 0
        %v5227 = vsub.s32 0, %v5225
        %v5228 = vsel %vm5226, %v5227, %v5225
        %v5229 = vclz %v5228
        %v5230 = vsub.s32 %v5229, 2
        %vm5231 = vcmp.gt.s32.totalorder 0, %v5230
        %v5232 = vsel %vm5231, 0, %v5230
        %v5233 = vsub.s32 32, %v5232
        %v5234 = vshll.u32 %v5225, %v5232
        %v5235 = vshrl.u32 %v5217, %v5233
        %v5236 = vor.u32 %v5234, %v5235
        %v5237 = vsub.s32 4294967266, %v5232
        %v5238 = vadd.s32 %v5237, 127
        %v5239 = vshll.u32 %v5238, 23
        %v5240 = vor.u32 4788187, %v5239
        %v5241 = vand.u32 2147483647, %v5240
        %v5243 = vcvt.s32.f32 %v5236
        %v5244 = vmul.f32 %v5243, %v5241
        %v5245 = vxor.u32 %v5244, 2147483648
        %v5246 = vsel %vm5125, %v5245, %v5244
        %v5247 = vsub.s32 4, %v5223
        %v5248 = vsel %vm5125, %v5247, %v5223
        %v5249 = vsel %vm5124, %v2337, %v5246
        %v5250 = vsel %vm5124, 0, %v5248
        %v5251 = vmul.f32 %v5249, %v5249
        %v5252 = vmul.f32 %v5251, -0.001358992
        %v5253 = vadd.f32 %v5252, 0.041655596
        %v5254 = vmul.f32 %v5251, %v5253
        %v5255 = vadd.f32 %v5254, -0.4999988
        %v5256 = vmul.f32 %v5251, %v5255
        %v5257 = vadd.f32 1.0, %v5256
        %v5258 = vmul.f32 %v5249, %v5249
        %v5259 = vmul.f32 %v5258, -0.00019511016
        %v5260 = vadd.f32 %v5259, 0.008332121
        %v5261 = vmul.f32 %v5258, %v5260
        %v5262 = vadd.f32 %v5261, -0.16666654
        %v5263 = vmul.f32 %v5258, %v5262
        %v5264 = vadd.f32 %v5263, 1.0
        %v5265 = vmul.f32 %v5264, %v5249
        %vm5266 = vweird.f32 %v2337
        %v5267 = vand.u32 %v5250, 3
        %vm5268 = vcmp.lt.s32.totalorder %v5267, 2
        %vm5269 = vcmp.eq.s32.totalorder %v5267, 0
        %v5270 = vxor.u32 %v5265, 2147483648
        %v5271 = vsel %vm5269, %v5257, %v5270
        %vm5272 = vcmp.eq.s32.totalorder %v5267, 2
        %v5273 = vxor.u32 %v5257, 2147483648
        %v5274 = vsel %vm5272, %v5273, %v5265
        %v5275 = vsel %vm5268, %v5271, %v5274
        %v5276 = vsel %vm5266, nan, %v5275
        %v5277 = vand.u32 2147483647, %v2338
        %vm5278 = vcmp.le.f32.partialorder %v5277, 0.7853982
        %vm5279 = vcmp.lt.s32.totalorder %v2338, 0
        %v5280 = vand.u32 %v2338, 2139095040
        %v5281 = vshrl.u32 %v5280, 23
        %v5282 = vsub.s32 %v5281, 127
        %v5283 = vand.u32 2147483647, %v2338
        %v5284 = vand.u32 %v5283, 8388607
        %v5285 = vor.u32 %v5284, 8388608
        %v5286 = vsub.s32 0, %v5285
        %v5287 = vadd.s32 %v5282, 1
        %vm5288 = vcmp.gt.s32.totalorder %v5287, 0
        %v5289 = vsel %vm5288, %v5287, 0
        %v5290 = vshrl.u32 %v5289, 5
        %v5291 = vand.u32 %v5289, 31
        %v5292 = vsub.s32 32, %v5291
        %v5293 = vshrl.u32 683565275, %v5292
        %v5294 = vshll.u32 683565275, %v5291
        %v5295 = vshrl.u32 2475754826, %v5292
        %v5296 = vor.u32 %v5294, %v5295
        %v5297 = vshll.u32 2475754826, %v5291
        %v5298 = vshrl.u32 2131351028, %v5292
        %v5299 = vor.u32 %v5297, %v5298
        %v5300 = vshll.u32 2131351028, %v5291
        %v5301 = vshrl.u32 2102212464, %v5292
        %v5302 = vor.u32 %v5300, %v5301
        %v5303 = vshll.u32 2102212464, %v5291
        %v5304 = vshrl.u32 920167782, %v5292
        %v5305 = vor.u32 %v5303, %v5304
        %v5306 = vshll.u32 920167782, %v5291
        %v5307 = vshrl.u32 1326507024, %v5292
        %v5308 = vor.u32 %v5306, %v5307
        %vm5309 = vcmp.lt.s32.totalorder %v5290, 1
        %vm5310 = vcmp.lt.s32.totalorder %v5290, 2
        %vm5311 = vcmp.lt.s32.totalorder %v5290, 3
        %vm5312 = vcmp.lt.s32.totalorder %v5290, 4
        %v5313 = vsel %vm5309, %v5293, %v5296
        %v5314 = vsel %vm5312, %v5302, 2102212464
        %v5315 = vsel %vm5311, %v5299, %v5314
        %v5316 = vsel %vm5310, %v5313, %v5315
        %v5317 = vsel %vm5309, %v5296, %v5299
        %v5318 = vsel %vm5312, %v5305, 920167782
        %v5319 = vsel %vm5311, %v5302, %v5318
        %v5320 = vsel %vm5310, %v5317, %v5319
        %v5321 = vsel %vm5309, %v5299, %v5302
        %v5322 = vsel %vm5312, %v5308, 1326507024
        %v5323 = vsel %vm5311, %v5305, %v5322
        %v5324 = vsel %vm5310, %v5321, %v5323
        %v5325 = vshll.u32 %v5285, 8
        %v5326 = vand.u32 %v5325, 65535
        %v5327 = vshrl.u32 %v5325, 16
        %v5328 = vand.u32 %v5324, 65535
        %v5329 = vshrl.u32 %v5324, 16
        %v5330 = vmul.u32 %v5326, %v5328
        %v5331 = vmul.u32 %v5326, %v5329
        %v5332 = vmul.u32 %v5327, %v5328
        %v5333 = vmul.u32 %v5327, %v5329
        %v5334 = vshll.u32 %v5331, 16
        %v5335 = vshrl.u32 %v5331, 16
        %v5336 = vshll.u32 %v5332, 16
        %v5337 = vshrl.u32 %v5332, 16
        %vm5338 = vc.u32 %v5330, %v5334
        %v5339 = vsel %vm5338, 1, 0
        %v5340 = vadd.s32 %v5330, %v5334
        %v5341 = vadd.s32 %v5333, %v5339
        %vm5342 = vc.u32 %v5340, %v5336
        %v5343 = vsel %vm5342, 1, 0
        %v5344 = vadd.s32 %v5340, %v5336
        %v5345 = vadd.s32 %v5341, %v5343
        %v5346 = vadd.s32 %v5345, %v5335
        %v5347 = vadd.s32 %v5346, %v5337
        %v5348 = vand.u32 %v5325, 65535
        %v5349 = vshrl.u32 %v5325, 16
        %v5350 = vand.u32 %v5320, 65535
        %v5351 = vshrl.u32 %v5320, 16
        %v5352 = vmul.u32 %v5348, %v5350
        %v5353 = vmul.u32 %v5348, %v5351
        %v5354 = vmul.u32 %v5349, %v5350
        %v5355 = vmul.u32 %v5349, %v5351
        %v5356 = vshll.u32 %v5353, 16
        %v5357 = vshrl.u32 %v5353, 16
        %v5358 = vshll.u32 %v5354, 16
        %v5359 = vshrl.u32 %v5354, 16
        %vm5360 = vc.u32 %v5352, %v5356
        %v5361 = vsel %vm5360, 1, 0
        %v5362 = vadd.s32 %v5352, %v5356
        %v5363 = vadd.s32 %v5355, %v5361
        %vm5364 = vc.u32 %v5362, %v5358
        %v5365 = vsel %vm5364, 1, 0
        %v5366 = vadd.s32 %v5362, %v5358
        %v5367 = vadd.s32 %v5363, %v5365
        %v5368 = vadd.s32 %v5367, %v5357
        %v5369 = vadd.s32 %v5368, %v5359
        %v5370 = vmul.u32 %v5325, %v5316
        %v5371 = vadd.s32 %v5347, %v5366
        %vm5372 = vc.u32 %v5347, %v5366
        %v5373 = vadd.s32 %v5369, 1
        %v5374 = vsel %vm5372, %v5373, %v5369
        %v5375 = vadd.s32 %v5370, %v5374
        %v5376 = vadd.s32 %v5375, 536870912
        %v5377 = vshrl.u32 %v5376, 30
        %v5378 = vshll.u32 %v5377, 30
        %v5379 = vsub.s32 %v5375, %v5378
        %vm5380 = vcmp.lt.s32.totalorder %v5379, 0
        %v5381 = vsub.s32 0, %v5379
        %v5382 = vsel %vm5380, %v5381, %v5379
        %v5383 = vclz %v5382
        %v5384 = vsub.s32 %v5383, 2
        %vm5385 = vcmp.gt.s32.totalorder 0, %v5384
        %v5386 = vsel %vm5385, 0, %v5384
        %v5387 = vsub.s32 32, %v5386
        %v5388 = vshll.u32 %v5379, %v5386
        %v5389 = vshrl.u32 %v5371, %v5387
        %v5390 = vor.u32 %v5388, %v5389
        %v5391 = vsub.s32 4294967266, %v5386
        %v5392 = vadd.s32 %v5391, 127
        %v5393 = vshll.u32 %v5392, 23
        %v5394 = vor.u32 4788187, %v5393
        %v5395 = vand.u32 2147483647, %v5394
        %v5397 = vcvt.s32.f32 %v5390
        %v5398 = vmul.f32 %v5397, %v5395
        %v5399 = vxor.u32 %v5398, 2147483648
        %v5400 = vsel %vm5279, %v5399, %v5398
        %v5401 = vsub.s32 4, %v5377
        %v5402 = vsel %vm5279, %v5401, %v5377
        %v5403 = vsel %vm5278, %v2338, %v5400
        %v5404 = vsel %vm5278, 0, %v5402
        %v5405 = vmul.f32 %v5403, %v5403
        %v5406 = vmul.f32 %v5405, -0.001358992
        %v5407 = vadd.f32 %v5406, 0.041655596
        %v5408 = vmul.f32 %v5405, %v5407
        %v5409 = vadd.f32 %v5408, -0.4999988
        %v5410 = vmul.f32 %v5405, %v5409
        %v5411 = vadd.f32 1.0, %v5410
        %v5412 = vmul.f32 %v5403, %v5403
        %v5413 = vmul.f32 %v5412, -0.00019511016
        %v5414 = vadd.f32 %v5413, 0.008332121
        %v5415 = vmul.f32 %v5412, %v5414
        %v5416 = vadd.f32 %v5415, -0.16666654
        %v5417 = vmul.f32 %v5412, %v5416
        %v5418 = vadd.f32 %v5417, 1.0
        %v5419 = vmul.f32 %v5418, %v5403
        %vm5420 = vweird.f32 %v2338
        %v5421 = vand.u32 %v5404, 3
        %vm5422 = vcmp.lt.s32.totalorder %v5421, 2
        %vm5423 = vcmp.eq.s32.totalorder %v5421, 0
        %v5424 = vxor.u32 %v5419, 2147483648
        %v5425 = vsel %vm5423, %v5411, %v5424
        %vm5426 = vcmp.eq.s32.totalorder %v5421, 2
        %v5427 = vxor.u32 %v5411, 2147483648
        %v5428 = vsel %vm5426, %v5427, %v5419
        %v5429 = vsel %vm5422, %v5425, %v5428
        %v5430 = vsel %vm5420, nan, %v5429
        %v5431 = vand.u32 2147483647, %v2339
        %vm5432 = vcmp.le.f32.partialorder %v5431, 0.7853982
        %vm5433 = vcmp.lt.s32.totalorder %v2339, 0
        %v5434 = vand.u32 %v2339, 2139095040
        %v5435 = vshrl.u32 %v5434, 23
        %v5436 = vsub.s32 %v5435, 127
        %v5437 = vand.u32 2147483647, %v2339
        %v5438 = vand.u32 %v5437, 8388607
        %v5439 = vor.u32 %v5438, 8388608
        %v5440 = vsub.s32 0, %v5439
        %v5441 = vadd.s32 %v5436, 1
        %vm5442 = vcmp.gt.s32.totalorder %v5441, 0
        %v5443 = vsel %vm5442, %v5441, 0
        %v5444 = vshrl.u32 %v5443, 5
        %v5445 = vand.u32 %v5443, 31
        %v5446 = vsub.s32 32, %v5445
        %v5447 = vshrl.u32 683565275, %v5446
        %v5448 = vshll.u32 683565275, %v5445
        %v5449 = vshrl.u32 2475754826, %v5446
        %v5450 = vor.u32 %v5448, %v5449
        %v5451 = vshll.u32 2475754826, %v5445
        %v5452 = vshrl.u32 2131351028, %v5446
        %v5453 = vor.u32 %v5451, %v5452
        %v5454 = vshll.u32 2131351028, %v5445
        %v5455 = vshrl.u32 2102212464, %v5446
        %v5456 = vor.u32 %v5454, %v5455
        %v5457 = vshll.u32 2102212464, %v5445
        %v5458 = vshrl.u32 920167782, %v5446
        %v5459 = vor.u32 %v5457, %v5458
        %v5460 = vshll.u32 920167782, %v5445
        %v5461 = vshrl.u32 1326507024, %v5446
        %v5462 = vor.u32 %v5460, %v5461
        %vm5463 = vcmp.lt.s32.totalorder %v5444, 1
        %vm5464 = vcmp.lt.s32.totalorder %v5444, 2
        %vm5465 = vcmp.lt.s32.totalorder %v5444, 3
        %vm5466 = vcmp.lt.s32.totalorder %v5444, 4
        %v5467 = vsel %vm5463, %v5447, %v5450
        %v5468 = vsel %vm5466, %v5456, 2102212464
        %v5469 = vsel %vm5465, %v5453, %v5468
        %v5470 = vsel %vm5464, %v5467, %v5469
        %v5471 = vsel %vm5463, %v5450, %v5453
        %v5472 = vsel %vm5466, %v5459, 920167782
        %v5473 = vsel %vm5465, %v5456, %v5472
        %v5474 = vsel %vm5464, %v5471, %v5473
        %v5475 = vsel %vm5463, %v5453, %v5456
        %v5476 = vsel %vm5466, %v5462, 1326507024
        %v5477 = vsel %vm5465, %v5459, %v5476
        %v5478 = vsel %vm5464, %v5475, %v5477
        %v5479 = vshll.u32 %v5439, 8
        %v5480 = vand.u32 %v5479, 65535
        %v5481 = vshrl.u32 %v5479, 16
        %v5482 = vand.u32 %v5478, 65535
        %v5483 = vshrl.u32 %v5478, 16
        %v5484 = vmul.u32 %v5480, %v5482
        %v5485 = vmul.u32 %v5480, %v5483
        %v5486 = vmul.u32 %v5481, %v5482
        %v5487 = vmul.u32 %v5481, %v5483
        %v5488 = vshll.u32 %v5485, 16
        %v5489 = vshrl.u32 %v5485, 16
        %v5490 = vshll.u32 %v5486, 16
        %v5491 = vshrl.u32 %v5486, 16
        %vm5492 = vc.u32 %v5484, %v5488
        %v5493 = vsel %vm5492, 1, 0
        %v5494 = vadd.s32 %v5484, %v5488
        %v5495 = vadd.s32 %v5487, %v5493
        %vm5496 = vc.u32 %v5494, %v5490
        %v5497 = vsel %vm5496, 1, 0
        %v5498 = vadd.s32 %v5494, %v5490
        %v5499 = vadd.s32 %v5495, %v5497
        %v5500 = vadd.s32 %v5499, %v5489
        %v5501 = vadd.s32 %v5500, %v5491
        %v5502 = vand.u32 %v5479, 65535
        %v5503 = vshrl.u32 %v5479, 16
        %v5504 = vand.u32 %v5474, 65535
        %v5505 = vshrl.u32 %v5474, 16
        %v5506 = vmul.u32 %v5502, %v5504
        %v5507 = vmul.u32 %v5502, %v5505
        %v5508 = vmul.u32 %v5503, %v5504
        %v5509 = vmul.u32 %v5503, %v5505
        %v5510 = vshll.u32 %v5507, 16
        %v5511 = vshrl.u32 %v5507, 16
        %v5512 = vshll.u32 %v5508, 16
        %v5513 = vshrl.u32 %v5508, 16
        %vm5514 = vc.u32 %v5506, %v5510
        %v5515 = vsel %vm5514, 1, 0
        %v5516 = vadd.s32 %v5506, %v5510
        %v5517 = vadd.s32 %v5509, %v5515
        %vm5518 = vc.u32 %v5516, %v5512
        %v5519 = vsel %vm5518, 1, 0
        %v5520 = vadd.s32 %v5516, %v5512
        %v5521 = vadd.s32 %v5517, %v5519
        %v5522 = vadd.s32 %v5521, %v5511
        %v5523 = vadd.s32 %v5522, %v5513
        %v5524 = vmul.u32 %v5479, %v5470
        %v5525 = vadd.s32 %v5501, %v5520
        %vm5526 = vc.u32 %v5501, %v5520
        %v5527 = vadd.s32 %v5523, 1
        %v5528 = vsel %vm5526, %v5527, %v5523
        %v5529 = vadd.s32 %v5524, %v5528
        %v5530 = vadd.s32 %v5529, 536870912
        %v5531 = vshrl.u32 %v5530, 30
        %v5532 = vshll.u32 %v5531, 30
        %v5533 = vsub.s32 %v5529, %v5532
        %vm5534 = vcmp.lt.s32.totalorder %v5533, 0
        %v5535 = vsub.s32 0, %v5533
        %v5536 = vsel %vm5534, %v5535, %v5533
        %v5537 = vclz %v5536
        %v5538 = vsub.s32 %v5537, 2
        %vm5539 = vcmp.gt.s32.totalorder 0, %v5538
        %v5540 = vsel %vm5539, 0, %v5538
        %v5541 = vsub.s32 32, %v5540
        %v5542 = vshll.u32 %v5533, %v5540
        %v5543 = vshrl.u32 %v5525, %v5541
        %v5544 = vor.u32 %v5542, %v5543
        %v5545 = vsub.s32 4294967266, %v5540
        %v5546 = vadd.s32 %v5545, 127
        %v5547 = vshll.u32 %v5546, 23
        %v5548 = vor.u32 4788187, %v5547
        %v5549 = vand.u32 2147483647, %v5548
        %v5551 = vcvt.s32.f32 %v5544
        %v5552 = vmul.f32 %v5551, %v5549
        %v5553 = vxor.u32 %v5552, 2147483648
        %v5554 = vsel %vm5433, %v5553, %v5552
        %v5555 = vsub.s32 4, %v5531
        %v5556 = vsel %vm5433, %v5555, %v5531
        %v5557 = vsel %vm5432, %v2339, %v5554
        %v5558 = vsel %vm5432, 0, %v5556
        %v5559 = vmul.f32 %v5557, %v5557
        %v5560 = vmul.f32 %v5559, -0.001358992
        %v5561 = vadd.f32 %v5560, 0.041655596
        %v5562 = vmul.f32 %v5559, %v5561
        %v5563 = vadd.f32 %v5562, -0.4999988
        %v5564 = vmul.f32 %v5559, %v5563
        %v5565 = vadd.f32 1.0, %v5564
        %v5566 = vmul.f32 %v5557, %v5557
        %v5567 = vmul.f32 %v5566, -0.00019511016
        %v5568 = vadd.f32 %v5567, 0.008332121
        %v5569 = vmul.f32 %v5566, %v5568
        %v5570 = vadd.f32 %v5569, -0.16666654
        %v5571 = vmul.f32 %v5566, %v5570
        %v5572 = vadd.f32 %v5571, 1.0
        %v5573 = vmul.f32 %v5572, %v5557
        %vm5574 = vweird.f32 %v2339
        %v5575 = vand.u32 %v5558, 3
        %vm5576 = vcmp.lt.s32.totalorder %v5575, 2
        %vm5577 = vcmp.eq.s32.totalorder %v5575, 0
        %v5578 = vxor.u32 %v5573, 2147483648
        %v5579 = vsel %vm5577, %v5565, %v5578
        %vm5580 = vcmp.eq.s32.totalorder %v5575, 2
        %v5581 = vxor.u32 %v5565, 2147483648
        %v5582 = vsel %vm5580, %v5581, %v5573
        %v5583 = vsel %vm5576, %v5579, %v5582
        %v5584 = vsel %vm5574, nan, %v5583
        %v5585 = vand.u32 2147483647, %v2340
        %vm5586 = vcmp.le.f32.partialorder %v5585, 0.7853982
        %vm5587 = vcmp.lt.s32.totalorder %v2340, 0
        %v5588 = vand.u32 %v2340, 2139095040
        %v5589 = vshrl.u32 %v5588, 23
        %v5590 = vsub.s32 %v5589, 127
        %v5591 = vand.u32 2147483647, %v2340
        %v5592 = vand.u32 %v5591, 8388607
        %v5593 = vor.u32 %v5592, 8388608
        %v5594 = vsub.s32 0, %v5593
        %v5595 = vadd.s32 %v5590, 1
        %vm5596 = vcmp.gt.s32.totalorder %v5595, 0
        %v5597 = vsel %vm5596, %v5595, 0
        %v5598 = vshrl.u32 %v5597, 5
        %v5599 = vand.u32 %v5597, 31
        %v5600 = vsub.s32 32, %v5599
        %v5601 = vshrl.u32 683565275, %v5600
        %v5602 = vshll.u32 683565275, %v5599
        %v5603 = vshrl.u32 2475754826, %v5600
        %v5604 = vor.u32 %v5602, %v5603
        %v5605 = vshll.u32 2475754826, %v5599
        %v5606 = vshrl.u32 2131351028, %v5600
        %v5607 = vor.u32 %v5605, %v5606
        %v5608 = vshll.u32 2131351028, %v5599
        %v5609 = vshrl.u32 2102212464, %v5600
        %v5610 = vor.u32 %v5608, %v5609
        %v5611 = vshll.u32 2102212464, %v5599
        %v5612 = vshrl.u32 920167782, %v5600
        %v5613 = vor.u32 %v5611, %v5612
        %v5614 = vshll.u32 920167782, %v5599
        %v5615 = vshrl.u32 1326507024, %v5600
        %v5616 = vor.u32 %v5614, %v5615
        %vm5617 = vcmp.lt.s32.totalorder %v5598, 1
        %vm5618 = vcmp.lt.s32.totalorder %v5598, 2
        %vm5619 = vcmp.lt.s32.totalorder %v5598, 3
        %vm5620 = vcmp.lt.s32.totalorder %v5598, 4
        %v5621 = vsel %vm5617, %v5601, %v5604
        %v5622 = vsel %vm5620, %v5610, 2102212464
        %v5623 = vsel %vm5619, %v5607, %v5622
        %v5624 = vsel %vm5618, %v5621, %v5623
        %v5625 = vsel %vm5617, %v5604, %v5607
        %v5626 = vsel %vm5620, %v5613, 920167782
        %v5627 = vsel %vm5619, %v5610, %v5626
        %v5628 = vsel %vm5618, %v5625, %v5627
        %v5629 = vsel %vm5617, %v5607, %v5610
        %v5630 = vsel %vm5620, %v5616, 1326507024
        %v5631 = vsel %vm5619, %v5613, %v5630
        %v5632 = vsel %vm5618, %v5629, %v5631
        %v5633 = vshll.u32 %v5593, 8
        %v5634 = vand.u32 %v5633, 65535
        %v5635 = vshrl.u32 %v5633, 16
        %v5636 = vand.u32 %v5632, 65535
        %v5637 = vshrl.u32 %v5632, 16
        %v5638 = vmul.u32 %v5634, %v5636
        %v5639 = vmul.u32 %v5634, %v5637
        %v5640 = vmul.u32 %v5635, %v5636
        %v5641 = vmul.u32 %v5635, %v5637
        %v5642 = vshll.u32 %v5639, 16
        %v5643 = vshrl.u32 %v5639, 16
        %v5644 = vshll.u32 %v5640, 16
        %v5645 = vshrl.u32 %v5640, 16
        %vm5646 = vc.u32 %v5638, %v5642
        %v5647 = vsel %vm5646, 1, 0
        %v5648 = vadd.s32 %v5638, %v5642
        %v5649 = vadd.s32 %v5641, %v5647
        %vm5650 = vc.u32 %v5648, %v5644
        %v5651 = vsel %vm5650, 1, 0
        %v5652 = vadd.s32 %v5648, %v5644
        %v5653 = vadd.s32 %v5649, %v5651
        %v5654 = vadd.s32 %v5653, %v5643
        %v5655 = vadd.s32 %v5654, %v5645
        %v5656 = vand.u32 %v5633, 65535
        %v5657 = vshrl.u32 %v5633, 16
        %v5658 = vand.u32 %v5628, 65535
        %v5659 = vshrl.u32 %v5628, 16
        %v5660 = vmul.u32 %v5656, %v5658
        %v5661 = vmul.u32 %v5656, %v5659
        %v5662 = vmul.u32 %v5657, %v5658
        %v5663 = vmul.u32 %v5657, %v5659
        %v5664 = vshll.u32 %v5661, 16
        %v5665 = vshrl.u32 %v5661, 16
        %v5666 = vshll.u32 %v5662, 16
        %v5667 = vshrl.u32 %v5662, 16
        %vm5668 = vc.u32 %v5660, %v5664
        %v5669 = vsel %vm5668, 1, 0
        %v5670 = vadd.s32 %v5660, %v5664
        %v5671 = vadd.s32 %v5663, %v5669
        %vm5672 = vc.u32 %v5670, %v5666
        %v5673 = vsel %vm5672, 1, 0
        %v5674 = vadd.s32 %v5670, %v5666
        %v5675 = vadd.s32 %v5671, %v5673
        %v5676 = vadd.s32 %v5675, %v5665
        %v5677 = vadd.s32 %v5676, %v5667
        %v5678 = vmul.u32 %v5633, %v5624
        %v5679 = vadd.s32 %v5655, %v5674
        %vm5680 = vc.u32 %v5655, %v5674
        %v5681 = vadd.s32 %v5677, 1
        %v5682 = vsel %vm5680, %v5681, %v5677
        %v5683 = vadd.s32 %v5678, %v5682
        %v5684 = vadd.s32 %v5683, 536870912
        %v5685 = vshrl.u32 %v5684, 30
        %v5686 = vshll.u32 %v5685, 30
        %v5687 = vsub.s32 %v5683, %v5686
        %vm5688 = vcmp.lt.s32.totalorder %v5687, 0
        %v5689 = vsub.s32 0, %v5687
        %v5690 = vsel %vm5688, %v5689, %v5687
        %v5691 = vclz %v5690
        %v5692 = vsub.s32 %v5691, 2
        %vm5693 = vcmp.gt.s32.totalorder 0, %v5692
        %v5694 = vsel %vm5693, 0, %v5692
        %v5695 = vsub.s32 32, %v5694
        %v5696 = vshll.u32 %v5687, %v5694
        %v5697 = vshrl.u32 %v5679, %v5695
        %v5698 = vor.u32 %v5696, %v5697
        %v5699 = vsub.s32 4294967266, %v5694
        %v5700 = vadd.s32 %v5699, 127
        %v5701 = vshll.u32 %v5700, 23
        %v5702 = vor.u32 4788187, %v5701
        %v5703 = vand.u32 2147483647, %v5702
        %v5705 = vcvt.s32.f32 %v5698
        %v5706 = vmul.f32 %v5705, %v5703
        %v5707 = vxor.u32 %v5706, 2147483648
        %v5708 = vsel %vm5587, %v5707, %v5706
        %v5709 = vsub.s32 4, %v5685
        %v5710 = vsel %vm5587, %v5709, %v5685
        %v5711 = vsel %vm5586, %v2340, %v5708
        %v5712 = vsel %vm5586, 0, %v5710
        %v5713 = vmul.f32 %v5711, %v5711
        %v5714 = vmul.f32 %v5713, -0.001358992
        %v5715 = vadd.f32 %v5714, 0.041655596
        %v5716 = vmul.f32 %v5713, %v5715
        %v5717 = vadd.f32 %v5716, -0.4999988
        %v5718 = vmul.f32 %v5713, %v5717
        %v5719 = vadd.f32 1.0, %v5718
        %v5720 = vmul.f32 %v5711, %v5711
        %v5721 = vmul.f32 %v5720, -0.00019511016
        %v5722 = vadd.f32 %v5721, 0.008332121
        %v5723 = vmul.f32 %v5720, %v5722
        %v5724 = vadd.f32 %v5723, -0.16666654
        %v5725 = vmul.f32 %v5720, %v5724
        %v5726 = vadd.f32 %v5725, 1.0
        %v5727 = vmul.f32 %v5726, %v5711
        %vm5728 = vweird.f32 %v2340
        %v5729 = vand.u32 %v5712, 3
        %vm5730 = vcmp.lt.s32.totalorder %v5729, 2
        %vm5731 = vcmp.eq.s32.totalorder %v5729, 0
        %v5732 = vxor.u32 %v5727, 2147483648
        %v5733 = vsel %vm5731, %v5719, %v5732
        %vm5734 = vcmp.eq.s32.totalorder %v5729, 2
        %v5735 = vxor.u32 %v5719, 2147483648
        %v5736 = vsel %vm5734, %v5735, %v5727
        %v5737 = vsel %vm5730, %v5733, %v5736
        %v5738 = vsel %vm5728, nan, %v5737
        %v5739 = vand.u32 2147483647, %v2341
        %vm5740 = vcmp.le.f32.partialorder %v5739, 0.7853982
        %vm5741 = vcmp.lt.s32.totalorder %v2341, 0
        %v5742 = vand.u32 %v2341, 2139095040
        %v5743 = vshrl.u32 %v5742, 23
        %v5744 = vsub.s32 %v5743, 127
        %v5745 = vand.u32 2147483647, %v2341
        %v5746 = vand.u32 %v5745, 8388607
        %v5747 = vor.u32 %v5746, 8388608
        %v5748 = vsub.s32 0, %v5747
        %v5749 = vadd.s32 %v5744, 1
        %vm5750 = vcmp.gt.s32.totalorder %v5749, 0
        %v5751 = vsel %vm5750, %v5749, 0
        %v5752 = vshrl.u32 %v5751, 5
        %v5753 = vand.u32 %v5751, 31
        %v5754 = vsub.s32 32, %v5753
        %v5755 = vshrl.u32 683565275, %v5754
        %v5756 = vshll.u32 683565275, %v5753
        %v5757 = vshrl.u32 2475754826, %v5754
        %v5758 = vor.u32 %v5756, %v5757
        %v5759 = vshll.u32 2475754826, %v5753
        %v5760 = vshrl.u32 2131351028, %v5754
        %v5761 = vor.u32 %v5759, %v5760
        %v5762 = vshll.u32 2131351028, %v5753
        %v5763 = vshrl.u32 2102212464, %v5754
        %v5764 = vor.u32 %v5762, %v5763
        %v5765 = vshll.u32 2102212464, %v5753
        %v5766 = vshrl.u32 920167782, %v5754
        %v5767 = vor.u32 %v5765, %v5766
        %v5768 = vshll.u32 920167782, %v5753
        %v5769 = vshrl.u32 1326507024, %v5754
        %v5770 = vor.u32 %v5768, %v5769
        %vm5771 = vcmp.lt.s32.totalorder %v5752, 1
        %vm5772 = vcmp.lt.s32.totalorder %v5752, 2
        %vm5773 = vcmp.lt.s32.totalorder %v5752, 3
        %vm5774 = vcmp.lt.s32.totalorder %v5752, 4
        %v5775 = vsel %vm5771, %v5755, %v5758
        %v5776 = vsel %vm5774, %v5764, 2102212464
        %v5777 = vsel %vm5773, %v5761, %v5776
        %v5778 = vsel %vm5772, %v5775, %v5777
        %v5779 = vsel %vm5771, %v5758, %v5761
        %v5780 = vsel %vm5774, %v5767, 920167782
        %v5781 = vsel %vm5773, %v5764, %v5780
        %v5782 = vsel %vm5772, %v5779, %v5781
        %v5783 = vsel %vm5771, %v5761, %v5764
        %v5784 = vsel %vm5774, %v5770, 1326507024
        %v5785 = vsel %vm5773, %v5767, %v5784
        %v5786 = vsel %vm5772, %v5783, %v5785
        %v5787 = vshll.u32 %v5747, 8
        %v5788 = vand.u32 %v5787, 65535
        %v5789 = vshrl.u32 %v5787, 16
        %v5790 = vand.u32 %v5786, 65535
        %v5791 = vshrl.u32 %v5786, 16
        %v5792 = vmul.u32 %v5788, %v5790
        %v5793 = vmul.u32 %v5788, %v5791
        %v5794 = vmul.u32 %v5789, %v5790
        %v5795 = vmul.u32 %v5789, %v5791
        %v5796 = vshll.u32 %v5793, 16
        %v5797 = vshrl.u32 %v5793, 16
        %v5798 = vshll.u32 %v5794, 16
        %v5799 = vshrl.u32 %v5794, 16
        %vm5800 = vc.u32 %v5792, %v5796
        %v5801 = vsel %vm5800, 1, 0
        %v5802 = vadd.s32 %v5792, %v5796
        %v5803 = vadd.s32 %v5795, %v5801
        %vm5804 = vc.u32 %v5802, %v5798
        %v5805 = vsel %vm5804, 1, 0
        %v5806 = vadd.s32 %v5802, %v5798
        %v5807 = vadd.s32 %v5803, %v5805
        %v5808 = vadd.s32 %v5807, %v5797
        %v5809 = vadd.s32 %v5808, %v5799
        %v5810 = vand.u32 %v5787, 65535
        %v5811 = vshrl.u32 %v5787, 16
        %v5812 = vand.u32 %v5782, 65535
        %v5813 = vshrl.u32 %v5782, 16
        %v5814 = vmul.u32 %v5810, %v5812
        %v5815 = vmul.u32 %v5810, %v5813
        %v5816 = vmul.u32 %v5811, %v5812
        %v5817 = vmul.u32 %v5811, %v5813
        %v5818 = vshll.u32 %v5815, 16
        %v5819 = vshrl.u32 %v5815, 16
        %v5820 = vshll.u32 %v5816, 16
        %v5821 = vshrl.u32 %v5816, 16
        %vm5822 = vc.u32 %v5814, %v5818
        %v5823 = vsel %vm5822, 1, 0
        %v5824 = vadd.s32 %v5814, %v5818
        %v5825 = vadd.s32 %v5817, %v5823
        %vm5826 = vc.u32 %v5824, %v5820
        %v5827 = vsel %vm5826, 1, 0
        %v5828 = vadd.s32 %v5824, %v5820
        %v5829 = vadd.s32 %v5825, %v5827
        %v5830 = vadd.s32 %v5829, %v5819
        %v5831 = vadd.s32 %v5830, %v5821
        %v5832 = vmul.u32 %v5787, %v5778
        %v5833 = vadd.s32 %v5809, %v5828
        %vm5834 = vc.u32 %v5809, %v5828
        %v5835 = vadd.s32 %v5831, 1
        %v5836 = vsel %vm5834, %v5835, %v5831
        %v5837 = vadd.s32 %v5832, %v5836
        %v5838 = vadd.s32 %v5837, 536870912
        %v5839 = vshrl.u32 %v5838, 30
        %v5840 = vshll.u32 %v5839, 30
        %v5841 = vsub.s32 %v5837, %v5840
        %vm5842 = vcmp.lt.s32.totalorder %v5841, 0
        %v5843 = vsub.s32 0, %v5841
        %v5844 = vsel %vm5842, %v5843, %v5841
        %v5845 = vclz %v5844
        %v5846 = vsub.s32 %v5845, 2
        %vm5847 = vcmp.gt.s32.totalorder 0, %v5846
        %v5848 = vsel %vm5847, 0, %v5846
        %v5849 = vsub.s32 32, %v5848
        %v5850 = vshll.u32 %v5841, %v5848
        %v5851 = vshrl.u32 %v5833, %v5849
        %v5852 = vor.u32 %v5850, %v5851
        %v5853 = vsub.s32 4294967266, %v5848
        %v5854 = vadd.s32 %v5853, 127
        %v5855 = vshll.u32 %v5854, 23
        %v5856 = vor.u32 4788187, %v5855
        %v5857 = vand.u32 2147483647, %v5856
        %v5859 = vcvt.s32.f32 %v5852
        %v5860 = vmul.f32 %v5859, %v5857
        %v5861 = vxor.u32 %v5860, 2147483648
        %v5862 = vsel %vm5741, %v5861, %v5860
        %v5863 = vsub.s32 4, %v5839
        %v5864 = vsel %vm5741, %v5863, %v5839
        %v5865 = vsel %vm5740, %v2341, %v5862
        %v5866 = vsel %vm5740, 0, %v5864
        %v5867 = vmul.f32 %v5865, %v5865
        %v5868 = vmul.f32 %v5867, -0.001358992
        %v5869 = vadd.f32 %v5868, 0.041655596
        %v5870 = vmul.f32 %v5867, %v5869
        %v5871 = vadd.f32 %v5870, -0.4999988
        %v5872 = vmul.f32 %v5867, %v5871
        %v5873 = vadd.f32 1.0, %v5872
        %v5874 = vmul.f32 %v5865, %v5865
        %v5875 = vmul.f32 %v5874, -0.00019511016
        %v5876 = vadd.f32 %v5875, 0.008332121
        %v5877 = vmul.f32 %v5874, %v5876
        %v5878 = vadd.f32 %v5877, -0.16666654
        %v5879 = vmul.f32 %v5874, %v5878
        %v5880 = vadd.f32 %v5879, 1.0
        %v5881 = vmul.f32 %v5880, %v5865
        %vm5882 = vweird.f32 %v2341
        %v5883 = vand.u32 %v5866, 3
        %vm5884 = vcmp.lt.s32.totalorder %v5883, 2
        %vm5885 = vcmp.eq.s32.totalorder %v5883, 0
        %v5886 = vxor.u32 %v5881, 2147483648
        %v5887 = vsel %vm5885, %v5873, %v5886
        %vm5888 = vcmp.eq.s32.totalorder %v5883, 2
        %v5889 = vxor.u32 %v5873, 2147483648
        %v5890 = vsel %vm5888, %v5889, %v5881
        %v5891 = vsel %vm5884, %v5887, %v5890
        %v5892 = vsel %vm5882, nan, %v5891
        %v5893 = vand.u32 2147483647, %v2342
        %vm5894 = vcmp.le.f32.partialorder %v5893, 0.7853982
        %vm5895 = vcmp.lt.s32.totalorder %v2342, 0
        %v5896 = vand.u32 %v2342, 2139095040
        %v5897 = vshrl.u32 %v5896, 23
        %v5898 = vsub.s32 %v5897, 127
        %v5899 = vand.u32 2147483647, %v2342
        %v5900 = vand.u32 %v5899, 8388607
        %v5901 = vor.u32 %v5900, 8388608
        %v5902 = vsub.s32 0, %v5901
        %v5903 = vadd.s32 %v5898, 1
        %vm5904 = vcmp.gt.s32.totalorder %v5903, 0
        %v5905 = vsel %vm5904, %v5903, 0
        %v5906 = vshrl.u32 %v5905, 5
        %v5907 = vand.u32 %v5905, 31
        %v5908 = vsub.s32 32, %v5907
        %v5909 = vshrl.u32 683565275, %v5908
        %v5910 = vshll.u32 683565275, %v5907
        %v5911 = vshrl.u32 2475754826, %v5908
        %v5912 = vor.u32 %v5910, %v5911
        %v5913 = vshll.u32 2475754826, %v5907
        %v5914 = vshrl.u32 2131351028, %v5908
        %v5915 = vor.u32 %v5913, %v5914
        %v5916 = vshll.u32 2131351028, %v5907
        %v5917 = vshrl.u32 2102212464, %v5908
        %v5918 = vor.u32 %v5916, %v5917
        %v5919 = vshll.u32 2102212464, %v5907
        %v5920 = vshrl.u32 920167782, %v5908
        %v5921 = vor.u32 %v5919, %v5920
        %v5922 = vshll.u32 920167782, %v5907
        %v5923 = vshrl.u32 1326507024, %v5908
        %v5924 = vor.u32 %v5922, %v5923
        %vm5925 = vcmp.lt.s32.totalorder %v5906, 1
        %vm5926 = vcmp.lt.s32.totalorder %v5906, 2
        %vm5927 = vcmp.lt.s32.totalorder %v5906, 3
        %vm5928 = vcmp.lt.s32.totalorder %v5906, 4
        %v5929 = vsel %vm5925, %v5909, %v5912
        %v5930 = vsel %vm5928, %v5918, 2102212464
        %v5931 = vsel %vm5927, %v5915, %v5930
        %v5932 = vsel %vm5926, %v5929, %v5931
        %v5933 = vsel %vm5925, %v5912, %v5915
        %v5934 = vsel %vm5928, %v5921, 920167782
        %v5935 = vsel %vm5927, %v5918, %v5934
        %v5936 = vsel %vm5926, %v5933, %v5935
        %v5937 = vsel %vm5925, %v5915, %v5918
        %v5938 = vsel %vm5928, %v5924, 1326507024
        %v5939 = vsel %vm5927, %v5921, %v5938
        %v5940 = vsel %vm5926, %v5937, %v5939
        %v5941 = vshll.u32 %v5901, 8
        %v5942 = vand.u32 %v5941, 65535
        %v5943 = vshrl.u32 %v5941, 16
        %v5944 = vand.u32 %v5940, 65535
        %v5945 = vshrl.u32 %v5940, 16
        %v5946 = vmul.u32 %v5942, %v5944
        %v5947 = vmul.u32 %v5942, %v5945
        %v5948 = vmul.u32 %v5943, %v5944
        %v5949 = vmul.u32 %v5943, %v5945
        %v5950 = vshll.u32 %v5947, 16
        %v5951 = vshrl.u32 %v5947, 16
        %v5952 = vshll.u32 %v5948, 16
        %v5953 = vshrl.u32 %v5948, 16
        %vm5954 = vc.u32 %v5946, %v5950
        %v5955 = vsel %vm5954, 1, 0
        %v5956 = vadd.s32 %v5946, %v5950
        %v5957 = vadd.s32 %v5949, %v5955
        %vm5958 = vc.u32 %v5956, %v5952
        %v5959 = vsel %vm5958, 1, 0
        %v5960 = vadd.s32 %v5956, %v5952
        %v5961 = vadd.s32 %v5957, %v5959
        %v5962 = vadd.s32 %v5961, %v5951
        %v5963 = vadd.s32 %v5962, %v5953
        %v5964 = vand.u32 %v5941, 65535
        %v5965 = vshrl.u32 %v5941, 16
        %v5966 = vand.u32 %v5936, 65535
        %v5967 = vshrl.u32 %v5936, 16
        %v5968 = vmul.u32 %v5964, %v5966
        %v5969 = vmul.u32 %v5964, %v5967
        %v5970 = vmul.u32 %v5965, %v5966
        %v5971 = vmul.u32 %v5965, %v5967
        %v5972 = vshll.u32 %v5969, 16
        %v5973 = vshrl.u32 %v5969, 16
        %v5974 = vshll.u32 %v5970, 16
        %v5975 = vshrl.u32 %v5970, 16
        %vm5976 = vc.u32 %v5968, %v5972
        %v5977 = vsel %vm5976, 1, 0
        %v5978 = vadd.s32 %v5968, %v5972
        %v5979 = vadd.s32 %v5971, %v5977
        %vm5980 = vc.u32 %v5978, %v5974
        %v5981 = vsel %vm5980, 1, 0
        %v5982 = vadd.s32 %v5978, %v5974
        %v5983 = vadd.s32 %v5979, %v5981
        %v5984 = vadd.s32 %v5983, %v5973
        %v5985 = vadd.s32 %v5984, %v5975
        %v5986 = vmul.u32 %v5941, %v5932
        %v5987 = vadd.s32 %v5963, %v5982
        %vm5988 = vc.u32 %v5963, %v5982
        %v5989 = vadd.s32 %v5985, 1
        %v5990 = vsel %vm5988, %v5989, %v5985
        %v5991 = vadd.s32 %v5986, %v5990
        %v5992 = vadd.s32 %v5991, 536870912
        %v5993 = vshrl.u32 %v5992, 30
        %v5994 = vshll.u32 %v5993, 30
        %v5995 = vsub.s32 %v5991, %v5994
        %vm5996 = vcmp.lt.s32.totalorder %v5995, 0
        %v5997 = vsub.s32 0, %v5995
        %v5998 = vsel %vm5996, %v5997, %v5995
        %v5999 = vclz %v5998
        %v6000 = vsub.s32 %v5999, 2
        %vm6001 = vcmp.gt.s32.totalorder 0, %v6000
        %v6002 = vsel %vm6001, 0, %v6000
        %v6003 = vsub.s32 32, %v6002
        %v6004 = vshll.u32 %v5995, %v6002
        %v6005 = vshrl.u32 %v5987, %v6003
        %v6006 = vor.u32 %v6004, %v6005
        %v6007 = vsub.s32 4294967266, %v6002
        %v6008 = vadd.s32 %v6007, 127
        %v6009 = vshll.u32 %v6008, 23
        %v6010 = vor.u32 4788187, %v6009
        %v6011 = vand.u32 2147483647, %v6010
        %v6013 = vcvt.s32.f32 %v6006
        %v6014 = vmul.f32 %v6013, %v6011
        %v6015 = vxor.u32 %v6014, 2147483648
        %v6016 = vsel %vm5895, %v6015, %v6014
        %v6017 = vsub.s32 4, %v5993
        %v6018 = vsel %vm5895, %v6017, %v5993
        %v6019 = vsel %vm5894, %v2342, %v6016
        %v6020 = vsel %vm5894, 0, %v6018
        %v6021 = vmul.f32 %v6019, %v6019
        %v6022 = vmul.f32 %v6021, -0.001358992
        %v6023 = vadd.f32 %v6022, 0.041655596
        %v6024 = vmul.f32 %v6021, %v6023
        %v6025 = vadd.f32 %v6024, -0.4999988
        %v6026 = vmul.f32 %v6021, %v6025
        %v6027 = vadd.f32 1.0, %v6026
        %v6028 = vmul.f32 %v6019, %v6019
        %v6029 = vmul.f32 %v6028, -0.00019511016
        %v6030 = vadd.f32 %v6029, 0.008332121
        %v6031 = vmul.f32 %v6028, %v6030
        %v6032 = vadd.f32 %v6031, -0.16666654
        %v6033 = vmul.f32 %v6028, %v6032
        %v6034 = vadd.f32 %v6033, 1.0
        %v6035 = vmul.f32 %v6034, %v6019
        %vm6036 = vweird.f32 %v2342
        %v6037 = vand.u32 %v6020, 3
        %vm6038 = vcmp.lt.s32.totalorder %v6037, 2
        %vm6039 = vcmp.eq.s32.totalorder %v6037, 0
        %v6040 = vxor.u32 %v6035, 2147483648
        %v6041 = vsel %vm6039, %v6027, %v6040
        %vm6042 = vcmp.eq.s32.totalorder %v6037, 2
        %v6043 = vxor.u32 %v6027, 2147483648
        %v6044 = vsel %vm6042, %v6043, %v6035
        %v6045 = vsel %vm6038, %v6041, %v6044
        %v6046 = vsel %vm6036, nan, %v6045
        %v6047 = vand.u32 2147483647, %v2343
        %vm6048 = vcmp.le.f32.partialorder %v6047, 0.7853982
        %vm6049 = vcmp.lt.s32.totalorder %v2343, 0
        %v6050 = vand.u32 %v2343, 2139095040
        %v6051 = vshrl.u32 %v6050, 23
        %v6052 = vsub.s32 %v6051, 127
        %v6053 = vand.u32 2147483647, %v2343
        %v6054 = vand.u32 %v6053, 8388607
        %v6055 = vor.u32 %v6054, 8388608
        %v6056 = vsub.s32 0, %v6055
        %v6057 = vadd.s32 %v6052, 1
        %vm6058 = vcmp.gt.s32.totalorder %v6057, 0
        %v6059 = vsel %vm6058, %v6057, 0
        %v6060 = vshrl.u32 %v6059, 5
        %v6061 = vand.u32 %v6059, 31
        %v6062 = vsub.s32 32, %v6061
        %v6063 = vshrl.u32 683565275, %v6062
        %v6064 = vshll.u32 683565275, %v6061
        %v6065 = vshrl.u32 2475754826, %v6062
        %v6066 = vor.u32 %v6064, %v6065
        %v6067 = vshll.u32 2475754826, %v6061
        %v6068 = vshrl.u32 2131351028, %v6062
        %v6069 = vor.u32 %v6067, %v6068
        %v6070 = vshll.u32 2131351028, %v6061
        %v6071 = vshrl.u32 2102212464, %v6062
        %v6072 = vor.u32 %v6070, %v6071
        %v6073 = vshll.u32 2102212464, %v6061
        %v6074 = vshrl.u32 920167782, %v6062
        %v6075 = vor.u32 %v6073, %v6074
        %v6076 = vshll.u32 920167782, %v6061
        %v6077 = vshrl.u32 1326507024, %v6062
        %v6078 = vor.u32 %v6076, %v6077
        %vm6079 = vcmp.lt.s32.totalorder %v6060, 1
        %vm6080 = vcmp.lt.s32.totalorder %v6060, 2
        %vm6081 = vcmp.lt.s32.totalorder %v6060, 3
        %vm6082 = vcmp.lt.s32.totalorder %v6060, 4
        %v6083 = vsel %vm6079, %v6063, %v6066
        %v6084 = vsel %vm6082, %v6072, 2102212464
        %v6085 = vsel %vm6081, %v6069, %v6084
        %v6086 = vsel %vm6080, %v6083, %v6085
        %v6087 = vsel %vm6079, %v6066, %v6069
        %v6088 = vsel %vm6082, %v6075, 920167782
        %v6089 = vsel %vm6081, %v6072, %v6088
        %v6090 = vsel %vm6080, %v6087, %v6089
        %v6091 = vsel %vm6079, %v6069, %v6072
        %v6092 = vsel %vm6082, %v6078, 1326507024
        %v6093 = vsel %vm6081, %v6075, %v6092
        %v6094 = vsel %vm6080, %v6091, %v6093
        %v6095 = vshll.u32 %v6055, 8
        %v6096 = vand.u32 %v6095, 65535
        %v6097 = vshrl.u32 %v6095, 16
        %v6098 = vand.u32 %v6094, 65535
        %v6099 = vshrl.u32 %v6094, 16
        %v6100 = vmul.u32 %v6096, %v6098
        %v6101 = vmul.u32 %v6096, %v6099
        %v6102 = vmul.u32 %v6097, %v6098
        %v6103 = vmul.u32 %v6097, %v6099
        %v6104 = vshll.u32 %v6101, 16
        %v6105 = vshrl.u32 %v6101, 16
        %v6106 = vshll.u32 %v6102, 16
        %v6107 = vshrl.u32 %v6102, 16
        %vm6108 = vc.u32 %v6100, %v6104
        %v6109 = vsel %vm6108, 1, 0
        %v6110 = vadd.s32 %v6100, %v6104
        %v6111 = vadd.s32 %v6103, %v6109
        %vm6112 = vc.u32 %v6110, %v6106
        %v6113 = vsel %vm6112, 1, 0
        %v6114 = vadd.s32 %v6110, %v6106
        %v6115 = vadd.s32 %v6111, %v6113
        %v6116 = vadd.s32 %v6115, %v6105
        %v6117 = vadd.s32 %v6116, %v6107
        %v6118 = vand.u32 %v6095, 65535
        %v6119 = vshrl.u32 %v6095, 16
        %v6120 = vand.u32 %v6090, 65535
        %v6121 = vshrl.u32 %v6090, 16
        %v6122 = vmul.u32 %v6118, %v6120
        %v6123 = vmul.u32 %v6118, %v6121
        %v6124 = vmul.u32 %v6119, %v6120
        %v6125 = vmul.u32 %v6119, %v6121
        %v6126 = vshll.u32 %v6123, 16
        %v6127 = vshrl.u32 %v6123, 16
        %v6128 = vshll.u32 %v6124, 16
        %v6129 = vshrl.u32 %v6124, 16
        %vm6130 = vc.u32 %v6122, %v6126
        %v6131 = vsel %vm6130, 1, 0
        %v6132 = vadd.s32 %v6122, %v6126
        %v6133 = vadd.s32 %v6125, %v6131
        %vm6134 = vc.u32 %v6132, %v6128
        %v6135 = vsel %vm6134, 1, 0
        %v6136 = vadd.s32 %v6132, %v6128
        %v6137 = vadd.s32 %v6133, %v6135
        %v6138 = vadd.s32 %v6137, %v6127
        %v6139 = vadd.s32 %v6138, %v6129
        %v6140 = vmul.u32 %v6095, %v6086
        %v6141 = vadd.s32 %v6117, %v6136
        %vm6142 = vc.u32 %v6117, %v6136
        %v6143 = vadd.s32 %v6139, 1
        %v6144 = vsel %vm6142, %v6143, %v6139
        %v6145 = vadd.s32 %v6140, %v6144
        %v6146 = vadd.s32 %v6145, 536870912
        %v6147 = vshrl.u32 %v6146, 30
        %v6148 = vshll.u32 %v6147, 30
        %v6149 = vsub.s32 %v6145, %v6148
        %vm6150 = vcmp.lt.s32.totalorder %v6149, 0
        %v6151 = vsub.s32 0, %v6149
        %v6152 = vsel %vm6150, %v6151, %v6149
        %v6153 = vclz %v6152
        %v6154 = vsub.s32 %v6153, 2
        %vm6155 = vcmp.gt.s32.totalorder 0, %v6154
        %v6156 = vsel %vm6155, 0, %v6154
        %v6157 = vsub.s32 32, %v6156
        %v6158 = vshll.u32 %v6149, %v6156
        %v6159 = vshrl.u32 %v6141, %v6157
        %v6160 = vor.u32 %v6158, %v6159
        %v6161 = vsub.s32 4294967266, %v6156
        %v6162 = vadd.s32 %v6161, 127
        %v6163 = vshll.u32 %v6162, 23
        %v6164 = vor.u32 4788187, %v6163
        %v6165 = vand.u32 2147483647, %v6164
        %v6167 = vcvt.s32.f32 %v6160
        %v6168 = vmul.f32 %v6167, %v6165
        %v6169 = vxor.u32 %v6168, 2147483648
        %v6170 = vsel %vm6049, %v6169, %v6168
        %v6171 = vsub.s32 4, %v6147
        %v6172 = vsel %vm6049, %v6171, %v6147
        %v6173 = vsel %vm6048, %v2343, %v6170
        %v6174 = vsel %vm6048, 0, %v6172
        %v6175 = vmul.f32 %v6173, %v6173
        %v6176 = vmul.f32 %v6175, -0.001358992
        %v6177 = vadd.f32 %v6176, 0.041655596
        %v6178 = vmul.f32 %v6175, %v6177
        %v6179 = vadd.f32 %v6178, -0.4999988
        %v6180 = vmul.f32 %v6175, %v6179
        %v6181 = vadd.f32 1.0, %v6180
        %v6182 = vmul.f32 %v6173, %v6173
        %v6183 = vmul.f32 %v6182, -0.00019511016
        %v6184 = vadd.f32 %v6183, 0.008332121
        %v6185 = vmul.f32 %v6182, %v6184
        %v6186 = vadd.f32 %v6185, -0.16666654
        %v6187 = vmul.f32 %v6182, %v6186
        %v6188 = vadd.f32 %v6187, 1.0
        %v6189 = vmul.f32 %v6188, %v6173
        %vm6190 = vweird.f32 %v2343
        %v6191 = vand.u32 %v6174, 3
        %vm6192 = vcmp.lt.s32.totalorder %v6191, 2
        %vm6193 = vcmp.eq.s32.totalorder %v6191, 0
        %v6194 = vxor.u32 %v6189, 2147483648
        %v6195 = vsel %vm6193, %v6181, %v6194
        %vm6196 = vcmp.eq.s32.totalorder %v6191, 2
        %v6197 = vxor.u32 %v6181, 2147483648
        %v6198 = vsel %vm6196, %v6197, %v6189
        %v6199 = vsel %vm6192, %v6195, %v6198
        %v6200 = vsel %vm6190, nan, %v6199
        %v6201 = vand.u32 2147483647, %v2344
        %vm6202 = vcmp.le.f32.partialorder %v6201, 0.7853982
        %vm6203 = vcmp.lt.s32.totalorder %v2344, 0
        %v6204 = vand.u32 %v2344, 2139095040
        %v6205 = vshrl.u32 %v6204, 23
        %v6206 = vsub.s32 %v6205, 127
        %v6207 = vand.u32 2147483647, %v2344
        %v6208 = vand.u32 %v6207, 8388607
        %v6209 = vor.u32 %v6208, 8388608
        %v6210 = vsub.s32 0, %v6209
        %v6211 = vadd.s32 %v6206, 1
        %vm6212 = vcmp.gt.s32.totalorder %v6211, 0
        %v6213 = vsel %vm6212, %v6211, 0
        %v6214 = vshrl.u32 %v6213, 5
        %v6215 = vand.u32 %v6213, 31
        %v6216 = vsub.s32 32, %v6215
        %v6217 = vshrl.u32 683565275, %v6216
        %v6218 = vshll.u32 683565275, %v6215
        %v6219 = vshrl.u32 2475754826, %v6216
        %v6220 = vor.u32 %v6218, %v6219
        %v6221 = vshll.u32 2475754826, %v6215
        %v6222 = vshrl.u32 2131351028, %v6216
        %v6223 = vor.u32 %v6221, %v6222
        %v6224 = vshll.u32 2131351028, %v6215
        %v6225 = vshrl.u32 2102212464, %v6216
        %v6226 = vor.u32 %v6224, %v6225
        %v6227 = vshll.u32 2102212464, %v6215
        %v6228 = vshrl.u32 920167782, %v6216
        %v6229 = vor.u32 %v6227, %v6228
        %v6230 = vshll.u32 920167782, %v6215
        %v6231 = vshrl.u32 1326507024, %v6216
        %v6232 = vor.u32 %v6230, %v6231
        %vm6233 = vcmp.lt.s32.totalorder %v6214, 1
        %vm6234 = vcmp.lt.s32.totalorder %v6214, 2
        %vm6235 = vcmp.lt.s32.totalorder %v6214, 3
        %vm6236 = vcmp.lt.s32.totalorder %v6214, 4
        %v6237 = vsel %vm6233, %v6217, %v6220
        %v6238 = vsel %vm6236, %v6226, 2102212464
        %v6239 = vsel %vm6235, %v6223, %v6238
        %v6240 = vsel %vm6234, %v6237, %v6239
        %v6241 = vsel %vm6233, %v6220, %v6223
        %v6242 = vsel %vm6236, %v6229, 920167782
        %v6243 = vsel %vm6235, %v6226, %v6242
        %v6244 = vsel %vm6234, %v6241, %v6243
        %v6245 = vsel %vm6233, %v6223, %v6226
        %v6246 = vsel %vm6236, %v6232, 1326507024
        %v6247 = vsel %vm6235, %v6229, %v6246
        %v6248 = vsel %vm6234, %v6245, %v6247
        %v6249 = vshll.u32 %v6209, 8
        %v6250 = vand.u32 %v6249, 65535
        %v6251 = vshrl.u32 %v6249, 16
        %v6252 = vand.u32 %v6248, 65535
        %v6253 = vshrl.u32 %v6248, 16
        %v6254 = vmul.u32 %v6250, %v6252
        %v6255 = vmul.u32 %v6250, %v6253
        %v6256 = vmul.u32 %v6251, %v6252
        %v6257 = vmul.u32 %v6251, %v6253
        %v6258 = vshll.u32 %v6255, 16
        %v6259 = vshrl.u32 %v6255, 16
        %v6260 = vshll.u32 %v6256, 16
        %v6261 = vshrl.u32 %v6256, 16
        %vm6262 = vc.u32 %v6254, %v6258
        %v6263 = vsel %vm6262, 1, 0
        %v6264 = vadd.s32 %v6254, %v6258
        %v6265 = vadd.s32 %v6257, %v6263
        %vm6266 = vc.u32 %v6264, %v6260
        %v6267 = vsel %vm6266, 1, 0
        %v6268 = vadd.s32 %v6264, %v6260
        %v6269 = vadd.s32 %v6265, %v6267
        %v6270 = vadd.s32 %v6269, %v6259
        %v6271 = vadd.s32 %v6270, %v6261
        %v6272 = vand.u32 %v6249, 65535
        %v6273 = vshrl.u32 %v6249, 16
        %v6274 = vand.u32 %v6244, 65535
        %v6275 = vshrl.u32 %v6244, 16
        %v6276 = vmul.u32 %v6272, %v6274
        %v6277 = vmul.u32 %v6272, %v6275
        %v6278 = vmul.u32 %v6273, %v6274
        %v6279 = vmul.u32 %v6273, %v6275
        %v6280 = vshll.u32 %v6277, 16
        %v6281 = vshrl.u32 %v6277, 16
        %v6282 = vshll.u32 %v6278, 16
        %v6283 = vshrl.u32 %v6278, 16
        %vm6284 = vc.u32 %v6276, %v6280
        %v6285 = vsel %vm6284, 1, 0
        %v6286 = vadd.s32 %v6276, %v6280
        %v6287 = vadd.s32 %v6279, %v6285
        %vm6288 = vc.u32 %v6286, %v6282
        %v6289 = vsel %vm6288, 1, 0
        %v6290 = vadd.s32 %v6286, %v6282
        %v6291 = vadd.s32 %v6287, %v6289
        %v6292 = vadd.s32 %v6291, %v6281
        %v6293 = vadd.s32 %v6292, %v6283
        %v6294 = vmul.u32 %v6249, %v6240
        %v6295 = vadd.s32 %v6271, %v6290
        %vm6296 = vc.u32 %v6271, %v6290
        %v6297 = vadd.s32 %v6293, 1
        %v6298 = vsel %vm6296, %v6297, %v6293
        %v6299 = vadd.s32 %v6294, %v6298
        %v6300 = vadd.s32 %v6299, 536870912
        %v6301 = vshrl.u32 %v6300, 30
        %v6302 = vshll.u32 %v6301, 30
        %v6303 = vsub.s32 %v6299, %v6302
        %vm6304 = vcmp.lt.s32.totalorder %v6303, 0
        %v6305 = vsub.s32 0, %v6303
        %v6306 = vsel %vm6304, %v6305, %v6303
        %v6307 = vclz %v6306
        %v6308 = vsub.s32 %v6307, 2
        %vm6309 = vcmp.gt.s32.totalorder 0, %v6308
        %v6310 = vsel %vm6309, 0, %v6308
        %v6311 = vsub.s32 32, %v6310
        %v6312 = vshll.u32 %v6303, %v6310
        %v6313 = vshrl.u32 %v6295, %v6311
        %v6314 = vor.u32 %v6312, %v6313
        %v6315 = vsub.s32 4294967266, %v6310
        %v6316 = vadd.s32 %v6315, 127
        %v6317 = vshll.u32 %v6316, 23
        %v6318 = vor.u32 4788187, %v6317
        %v6319 = vand.u32 2147483647, %v6318
        %v6321 = vcvt.s32.f32 %v6314
        %v6322 = vmul.f32 %v6321, %v6319
        %v6323 = vxor.u32 %v6322, 2147483648
        %v6324 = vsel %vm6203, %v6323, %v6322
        %v6325 = vsub.s32 4, %v6301
        %v6326 = vsel %vm6203, %v6325, %v6301
        %v6327 = vsel %vm6202, %v2344, %v6324
        %v6328 = vsel %vm6202, 0, %v6326
        %v6329 = vmul.f32 %v6327, %v6327
        %v6330 = vmul.f32 %v6329, -0.001358992
        %v6331 = vadd.f32 %v6330, 0.041655596
        %v6332 = vmul.f32 %v6329, %v6331
        %v6333 = vadd.f32 %v6332, -0.4999988
        %v6334 = vmul.f32 %v6329, %v6333
        %v6335 = vadd.f32 1.0, %v6334
        %v6336 = vmul.f32 %v6327, %v6327
        %v6337 = vmul.f32 %v6336, -0.00019511016
        %v6338 = vadd.f32 %v6337, 0.008332121
        %v6339 = vmul.f32 %v6336, %v6338
        %v6340 = vadd.f32 %v6339, -0.16666654
        %v6341 = vmul.f32 %v6336, %v6340
        %v6342 = vadd.f32 %v6341, 1.0
        %v6343 = vmul.f32 %v6342, %v6327
        %vm6344 = vweird.f32 %v2344
        %v6345 = vand.u32 %v6328, 3
        %vm6346 = vcmp.lt.s32.totalorder %v6345, 2
        %vm6347 = vcmp.eq.s32.totalorder %v6345, 0
        %v6348 = vxor.u32 %v6343, 2147483648
        %v6349 = vsel %vm6347, %v6335, %v6348
        %vm6350 = vcmp.eq.s32.totalorder %v6345, 2
        %v6351 = vxor.u32 %v6335, 2147483648
        %v6352 = vsel %vm6350, %v6351, %v6343
        %v6353 = vsel %vm6346, %v6349, %v6352
        %v6354 = vsel %vm6344, nan, %v6353
        %v6355 = vand.u32 2147483647, %v2345
        %vm6356 = vcmp.le.f32.partialorder %v6355, 0.7853982
        %vm6357 = vcmp.lt.s32.totalorder %v2345, 0
        %v6358 = vand.u32 %v2345, 2139095040
        %v6359 = vshrl.u32 %v6358, 23
        %v6360 = vsub.s32 %v6359, 127
        %v6361 = vand.u32 2147483647, %v2345
        %v6362 = vand.u32 %v6361, 8388607
        %v6363 = vor.u32 %v6362, 8388608
        %v6364 = vsub.s32 0, %v6363
        %v6365 = vadd.s32 %v6360, 1
        %vm6366 = vcmp.gt.s32.totalorder %v6365, 0
        %v6367 = vsel %vm6366, %v6365, 0
        %v6368 = vshrl.u32 %v6367, 5
        %v6369 = vand.u32 %v6367, 31
        %v6370 = vsub.s32 32, %v6369
        %v6371 = vshrl.u32 683565275, %v6370
        %v6372 = vshll.u32 683565275, %v6369
        %v6373 = vshrl.u32 2475754826, %v6370
        %v6374 = vor.u32 %v6372, %v6373
        %v6375 = vshll.u32 2475754826, %v6369
        %v6376 = vshrl.u32 2131351028, %v6370
        %v6377 = vor.u32 %v6375, %v6376
        %v6378 = vshll.u32 2131351028, %v6369
        %v6379 = vshrl.u32 2102212464, %v6370
        %v6380 = vor.u32 %v6378, %v6379
        %v6381 = vshll.u32 2102212464, %v6369
        %v6382 = vshrl.u32 920167782, %v6370
        %v6383 = vor.u32 %v6381, %v6382
        %v6384 = vshll.u32 920167782, %v6369
        %v6385 = vshrl.u32 1326507024, %v6370
        %v6386 = vor.u32 %v6384, %v6385
        %vm6387 = vcmp.lt.s32.totalorder %v6368, 1
        %vm6388 = vcmp.lt.s32.totalorder %v6368, 2
        %vm6389 = vcmp.lt.s32.totalorder %v6368, 3
        %vm6390 = vcmp.lt.s32.totalorder %v6368, 4
        %v6391 = vsel %vm6387, %v6371, %v6374
        %v6392 = vsel %vm6390, %v6380, 2102212464
        %v6393 = vsel %vm6389, %v6377, %v6392
        %v6394 = vsel %vm6388, %v6391, %v6393
        %v6395 = vsel %vm6387, %v6374, %v6377
        %v6396 = vsel %vm6390, %v6383, 920167782
        %v6397 = vsel %vm6389, %v6380, %v6396
        %v6398 = vsel %vm6388, %v6395, %v6397
        %v6399 = vsel %vm6387, %v6377, %v6380
        %v6400 = vsel %vm6390, %v6386, 1326507024
        %v6401 = vsel %vm6389, %v6383, %v6400
        %v6402 = vsel %vm6388, %v6399, %v6401
        %v6403 = vshll.u32 %v6363, 8
        %v6404 = vand.u32 %v6403, 65535
        %v6405 = vshrl.u32 %v6403, 16
        %v6406 = vand.u32 %v6402, 65535
        %v6407 = vshrl.u32 %v6402, 16
        %v6408 = vmul.u32 %v6404, %v6406
        %v6409 = vmul.u32 %v6404, %v6407
        %v6410 = vmul.u32 %v6405, %v6406
        %v6411 = vmul.u32 %v6405, %v6407
        %v6412 = vshll.u32 %v6409, 16
        %v6413 = vshrl.u32 %v6409, 16
        %v6414 = vshll.u32 %v6410, 16
        %v6415 = vshrl.u32 %v6410, 16
        %vm6416 = vc.u32 %v6408, %v6412
        %v6417 = vsel %vm6416, 1, 0
        %v6418 = vadd.s32 %v6408, %v6412
        %v6419 = vadd.s32 %v6411, %v6417
        %vm6420 = vc.u32 %v6418, %v6414
        %v6421 = vsel %vm6420, 1, 0
        %v6422 = vadd.s32 %v6418, %v6414
        %v6423 = vadd.s32 %v6419, %v6421
        %v6424 = vadd.s32 %v6423, %v6413
        %v6425 = vadd.s32 %v6424, %v6415
        %v6426 = vand.u32 %v6403, 65535
        %v6427 = vshrl.u32 %v6403, 16
        %v6428 = vand.u32 %v6398, 65535
        %v6429 = vshrl.u32 %v6398, 16
        %v6430 = vmul.u32 %v6426, %v6428
        %v6431 = vmul.u32 %v6426, %v6429
        %v6432 = vmul.u32 %v6427, %v6428
        %v6433 = vmul.u32 %v6427, %v6429
        %v6434 = vshll.u32 %v6431, 16
        %v6435 = vshrl.u32 %v6431, 16
        %v6436 = vshll.u32 %v6432, 16
        %v6437 = vshrl.u32 %v6432, 16
        %vm6438 = vc.u32 %v6430, %v6434
        %v6439 = vsel %vm6438, 1, 0
        %v6440 = vadd.s32 %v6430, %v6434
        %v6441 = vadd.s32 %v6433, %v6439
        %vm6442 = vc.u32 %v6440, %v6436
        %v6443 = vsel %vm6442, 1, 0
        %v6444 = vadd.s32 %v6440, %v6436
        %v6445 = vadd.s32 %v6441, %v6443
        %v6446 = vadd.s32 %v6445, %v6435
        %v6447 = vadd.s32 %v6446, %v6437
        %v6448 = vmul.u32 %v6403, %v6394
        %v6449 = vadd.s32 %v6425, %v6444
        %vm6450 = vc.u32 %v6425, %v6444
        %v6451 = vadd.s32 %v6447, 1
        %v6452 = vsel %vm6450, %v6451, %v6447
        %v6453 = vadd.s32 %v6448, %v6452
        %v6454 = vadd.s32 %v6453, 536870912
        %v6455 = vshrl.u32 %v6454, 30
        %v6456 = vshll.u32 %v6455, 30
        %v6457 = vsub.s32 %v6453, %v6456
        %vm6458 = vcmp.lt.s32.totalorder %v6457, 0
        %v6459 = vsub.s32 0, %v6457
        %v6460 = vsel %vm6458, %v6459, %v6457
        %v6461 = vclz %v6460
        %v6462 = vsub.s32 %v6461, 2
        %vm6463 = vcmp.gt.s32.totalorder 0, %v6462
        %v6464 = vsel %vm6463, 0, %v6462
        %v6465 = vsub.s32 32, %v6464
        %v6466 = vshll.u32 %v6457, %v6464
        %v6467 = vshrl.u32 %v6449, %v6465
        %v6468 = vor.u32 %v6466, %v6467
        %v6469 = vsub.s32 4294967266, %v6464
        %v6470 = vadd.s32 %v6469, 127
        %v6471 = vshll.u32 %v6470, 23
        %v6472 = vor.u32 4788187, %v6471
        %v6473 = vand.u32 2147483647, %v6472
        %v6475 = vcvt.s32.f32 %v6468
        %v6476 = vmul.f32 %v6475, %v6473
        %v6477 = vxor.u32 %v6476, 2147483648
        %v6478 = vsel %vm6357, %v6477, %v6476
        %v6479 = vsub.s32 4, %v6455
        %v6480 = vsel %vm6357, %v6479, %v6455
        %v6481 = vsel %vm6356, %v2345, %v6478
        %v6482 = vsel %vm6356, 0, %v6480
        %v6483 = vmul.f32 %v6481, %v6481
        %v6484 = vmul.f32 %v6483, -0.001358992
        %v6485 = vadd.f32 %v6484, 0.041655596
        %v6486 = vmul.f32 %v6483, %v6485
        %v6487 = vadd.f32 %v6486, -0.4999988
        %v6488 = vmul.f32 %v6483, %v6487
        %v6489 = vadd.f32 1.0, %v6488
        %v6490 = vmul.f32 %v6481, %v6481
        %v6491 = vmul.f32 %v6490, -0.00019511016
        %v6492 = vadd.f32 %v6491, 0.008332121
        %v6493 = vmul.f32 %v6490, %v6492
        %v6494 = vadd.f32 %v6493, -0.16666654
        %v6495 = vmul.f32 %v6490, %v6494
        %v6496 = vadd.f32 %v6495, 1.0
        %v6497 = vmul.f32 %v6496, %v6481
        %vm6498 = vweird.f32 %v2345
        %v6499 = vand.u32 %v6482, 3
        %vm6500 = vcmp.lt.s32.totalorder %v6499, 2
        %vm6501 = vcmp.eq.s32.totalorder %v6499, 0
        %v6502 = vxor.u32 %v6497, 2147483648
        %v6503 = vsel %vm6501, %v6489, %v6502
        %vm6504 = vcmp.eq.s32.totalorder %v6499, 2
        %v6505 = vxor.u32 %v6489, 2147483648
        %v6506 = vsel %vm6504, %v6505, %v6497
        %v6507 = vsel %vm6500, %v6503, %v6506
        %v6508 = vsel %vm6498, nan, %v6507
        %v6509 = vand.u32 2147483647, %v2346
        %vm6510 = vcmp.le.f32.partialorder %v6509, 0.7853982
        %vm6511 = vcmp.lt.s32.totalorder %v2346, 0
        %v6512 = vand.u32 %v2346, 2139095040
        %v6513 = vshrl.u32 %v6512, 23
        %v6514 = vsub.s32 %v6513, 127
        %v6515 = vand.u32 2147483647, %v2346
        %v6516 = vand.u32 %v6515, 8388607
        %v6517 = vor.u32 %v6516, 8388608
        %v6518 = vsub.s32 0, %v6517
        %v6519 = vadd.s32 %v6514, 1
        %vm6520 = vcmp.gt.s32.totalorder %v6519, 0
        %v6521 = vsel %vm6520, %v6519, 0
        %v6522 = vshrl.u32 %v6521, 5
        %v6523 = vand.u32 %v6521, 31
        %v6524 = vsub.s32 32, %v6523
        %v6525 = vshrl.u32 683565275, %v6524
        %v6526 = vshll.u32 683565275, %v6523
        %v6527 = vshrl.u32 2475754826, %v6524
        %v6528 = vor.u32 %v6526, %v6527
        %v6529 = vshll.u32 2475754826, %v6523
        %v6530 = vshrl.u32 2131351028, %v6524
        %v6531 = vor.u32 %v6529, %v6530
        %v6532 = vshll.u32 2131351028, %v6523
        %v6533 = vshrl.u32 2102212464, %v6524
        %v6534 = vor.u32 %v6532, %v6533
        %v6535 = vshll.u32 2102212464, %v6523
        %v6536 = vshrl.u32 920167782, %v6524
        %v6537 = vor.u32 %v6535, %v6536
        %v6538 = vshll.u32 920167782, %v6523
        %v6539 = vshrl.u32 1326507024, %v6524
        %v6540 = vor.u32 %v6538, %v6539
        %vm6541 = vcmp.lt.s32.totalorder %v6522, 1
        %vm6542 = vcmp.lt.s32.totalorder %v6522, 2
        %vm6543 = vcmp.lt.s32.totalorder %v6522, 3
        %vm6544 = vcmp.lt.s32.totalorder %v6522, 4
        %v6545 = vsel %vm6541, %v6525, %v6528
        %v6546 = vsel %vm6544, %v6534, 2102212464
        %v6547 = vsel %vm6543, %v6531, %v6546
        %v6548 = vsel %vm6542, %v6545, %v6547
        %v6549 = vsel %vm6541, %v6528, %v6531
        %v6550 = vsel %vm6544, %v6537, 920167782
        %v6551 = vsel %vm6543, %v6534, %v6550
        %v6552 = vsel %vm6542, %v6549, %v6551
        %v6553 = vsel %vm6541, %v6531, %v6534
        %v6554 = vsel %vm6544, %v6540, 1326507024
        %v6555 = vsel %vm6543, %v6537, %v6554
        %v6556 = vsel %vm6542, %v6553, %v6555
        %v6557 = vshll.u32 %v6517, 8
        %v6558 = vand.u32 %v6557, 65535
        %v6559 = vshrl.u32 %v6557, 16
        %v6560 = vand.u32 %v6556, 65535
        %v6561 = vshrl.u32 %v6556, 16
        %v6562 = vmul.u32 %v6558, %v6560
        %v6563 = vmul.u32 %v6558, %v6561
        %v6564 = vmul.u32 %v6559, %v6560
        %v6565 = vmul.u32 %v6559, %v6561
        %v6566 = vshll.u32 %v6563, 16
        %v6567 = vshrl.u32 %v6563, 16
        %v6568 = vshll.u32 %v6564, 16
        %v6569 = vshrl.u32 %v6564, 16
        %vm6570 = vc.u32 %v6562, %v6566
        %v6571 = vsel %vm6570, 1, 0
        %v6572 = vadd.s32 %v6562, %v6566
        %v6573 = vadd.s32 %v6565, %v6571
        %vm6574 = vc.u32 %v6572, %v6568
        %v6575 = vsel %vm6574, 1, 0
        %v6576 = vadd.s32 %v6572, %v6568
        %v6577 = vadd.s32 %v6573, %v6575
        %v6578 = vadd.s32 %v6577, %v6567
        %v6579 = vadd.s32 %v6578, %v6569
        %v6580 = vand.u32 %v6557, 65535
        %v6581 = vshrl.u32 %v6557, 16
        %v6582 = vand.u32 %v6552, 65535
        %v6583 = vshrl.u32 %v6552, 16
        %v6584 = vmul.u32 %v6580, %v6582
        %v6585 = vmul.u32 %v6580, %v6583
        %v6586 = vmul.u32 %v6581, %v6582
        %v6587 = vmul.u32 %v6581, %v6583
        %v6588 = vshll.u32 %v6585, 16
        %v6589 = vshrl.u32 %v6585, 16
        %v6590 = vshll.u32 %v6586, 16
        %v6591 = vshrl.u32 %v6586, 16
        %vm6592 = vc.u32 %v6584, %v6588
        %v6593 = vsel %vm6592, 1, 0
        %v6594 = vadd.s32 %v6584, %v6588
        %v6595 = vadd.s32 %v6587, %v6593
        %vm6596 = vc.u32 %v6594, %v6590
        %v6597 = vsel %vm6596, 1, 0
        %v6598 = vadd.s32 %v6594, %v6590
        %v6599 = vadd.s32 %v6595, %v6597
        %v6600 = vadd.s32 %v6599, %v6589
        %v6601 = vadd.s32 %v6600, %v6591
        %v6602 = vmul.u32 %v6557, %v6548
        %v6603 = vadd.s32 %v6579, %v6598
        %vm6604 = vc.u32 %v6579, %v6598
        %v6605 = vadd.s32 %v6601, 1
        %v6606 = vsel %vm6604, %v6605, %v6601
        %v6607 = vadd.s32 %v6602, %v6606
        %v6608 = vadd.s32 %v6607, 536870912
        %v6609 = vshrl.u32 %v6608, 30
        %v6610 = vshll.u32 %v6609, 30
        %v6611 = vsub.s32 %v6607, %v6610
        %vm6612 = vcmp.lt.s32.totalorder %v6611, 0
        %v6613 = vsub.s32 0, %v6611
        %v6614 = vsel %vm6612, %v6613, %v6611
        %v6615 = vclz %v6614
        %v6616 = vsub.s32 %v6615, 2
        %vm6617 = vcmp.gt.s32.totalorder 0, %v6616
        %v6618 = vsel %vm6617, 0, %v6616
        %v6619 = vsub.s32 32, %v6618
        %v6620 = vshll.u32 %v6611, %v6618
        %v6621 = vshrl.u32 %v6603, %v6619
        %v6622 = vor.u32 %v6620, %v6621
        %v6623 = vsub.s32 4294967266, %v6618
        %v6624 = vadd.s32 %v6623, 127
        %v6625 = vshll.u32 %v6624, 23
        %v6626 = vor.u32 4788187, %v6625
        %v6627 = vand.u32 2147483647, %v6626
        %v6629 = vcvt.s32.f32 %v6622
        %v6630 = vmul.f32 %v6629, %v6627
        %v6631 = vxor.u32 %v6630, 2147483648
        %v6632 = vsel %vm6511, %v6631, %v6630
        %v6633 = vsub.s32 4, %v6609
        %v6634 = vsel %vm6511, %v6633, %v6609
        %v6635 = vsel %vm6510, %v2346, %v6632
        %v6636 = vsel %vm6510, 0, %v6634
        %v6637 = vmul.f32 %v6635, %v6635
        %v6638 = vmul.f32 %v6637, -0.001358992
        %v6639 = vadd.f32 %v6638, 0.041655596
        %v6640 = vmul.f32 %v6637, %v6639
        %v6641 = vadd.f32 %v6640, -0.4999988
        %v6642 = vmul.f32 %v6637, %v6641
        %v6643 = vadd.f32 1.0, %v6642
        %v6644 = vmul.f32 %v6635, %v6635
        %v6645 = vmul.f32 %v6644, -0.00019511016
        %v6646 = vadd.f32 %v6645, 0.008332121
        %v6647 = vmul.f32 %v6644, %v6646
        %v6648 = vadd.f32 %v6647, -0.16666654
        %v6649 = vmul.f32 %v6644, %v6648
        %v6650 = vadd.f32 %v6649, 1.0
        %v6651 = vmul.f32 %v6650, %v6635
        %vm6652 = vweird.f32 %v2346
        %v6653 = vand.u32 %v6636, 3
        %vm6654 = vcmp.lt.s32.totalorder %v6653, 2
        %vm6655 = vcmp.eq.s32.totalorder %v6653, 0
        %v6656 = vxor.u32 %v6651, 2147483648
        %v6657 = vsel %vm6655, %v6643, %v6656
        %vm6658 = vcmp.eq.s32.totalorder %v6653, 2
        %v6659 = vxor.u32 %v6643, 2147483648
        %v6660 = vsel %vm6658, %v6659, %v6651
        %v6661 = vsel %vm6654, %v6657, %v6660
        %v6662 = vsel %vm6652, nan, %v6661
        %v6663 = vand.u32 2147483647, %v2347
        %vm6664 = vcmp.le.f32.partialorder %v6663, 0.7853982
        %vm6665 = vcmp.lt.s32.totalorder %v2347, 0
        %v6666 = vand.u32 %v2347, 2139095040
        %v6667 = vshrl.u32 %v6666, 23
        %v6668 = vsub.s32 %v6667, 127
        %v6669 = vand.u32 2147483647, %v2347
        %v6670 = vand.u32 %v6669, 8388607
        %v6671 = vor.u32 %v6670, 8388608
        %v6672 = vsub.s32 0, %v6671
        %v6673 = vadd.s32 %v6668, 1
        %vm6674 = vcmp.gt.s32.totalorder %v6673, 0
        %v6675 = vsel %vm6674, %v6673, 0
        %v6676 = vshrl.u32 %v6675, 5
        %v6677 = vand.u32 %v6675, 31
        %v6678 = vsub.s32 32, %v6677
        %v6679 = vshrl.u32 683565275, %v6678
        %v6680 = vshll.u32 683565275, %v6677
        %v6681 = vshrl.u32 2475754826, %v6678
        %v6682 = vor.u32 %v6680, %v6681
        %v6683 = vshll.u32 2475754826, %v6677
        %v6684 = vshrl.u32 2131351028, %v6678
        %v6685 = vor.u32 %v6683, %v6684
        %v6686 = vshll.u32 2131351028, %v6677
        %v6687 = vshrl.u32 2102212464, %v6678
        %v6688 = vor.u32 %v6686, %v6687
        %v6689 = vshll.u32 2102212464, %v6677
        %v6690 = vshrl.u32 920167782, %v6678
        %v6691 = vor.u32 %v6689, %v6690
        %v6692 = vshll.u32 920167782, %v6677
        %v6693 = vshrl.u32 1326507024, %v6678
        %v6694 = vor.u32 %v6692, %v6693
        %vm6695 = vcmp.lt.s32.totalorder %v6676, 1
        %vm6696 = vcmp.lt.s32.totalorder %v6676, 2
        %vm6697 = vcmp.lt.s32.totalorder %v6676, 3
        %vm6698 = vcmp.lt.s32.totalorder %v6676, 4
        %v6699 = vsel %vm6695, %v6679, %v6682
        %v6700 = vsel %vm6698, %v6688, 2102212464
        %v6701 = vsel %vm6697, %v6685, %v6700
        %v6702 = vsel %vm6696, %v6699, %v6701
        %v6703 = vsel %vm6695, %v6682, %v6685
        %v6704 = vsel %vm6698, %v6691, 920167782
        %v6705 = vsel %vm6697, %v6688, %v6704
        %v6706 = vsel %vm6696, %v6703, %v6705
        %v6707 = vsel %vm6695, %v6685, %v6688
        %v6708 = vsel %vm6698, %v6694, 1326507024
        %v6709 = vsel %vm6697, %v6691, %v6708
        %v6710 = vsel %vm6696, %v6707, %v6709
        %v6711 = vshll.u32 %v6671, 8
        %v6712 = vand.u32 %v6711, 65535
        %v6713 = vshrl.u32 %v6711, 16
        %v6714 = vand.u32 %v6710, 65535
        %v6715 = vshrl.u32 %v6710, 16
        %v6716 = vmul.u32 %v6712, %v6714
        %v6717 = vmul.u32 %v6712, %v6715
        %v6718 = vmul.u32 %v6713, %v6714
        %v6719 = vmul.u32 %v6713, %v6715
        %v6720 = vshll.u32 %v6717, 16
        %v6721 = vshrl.u32 %v6717, 16
        %v6722 = vshll.u32 %v6718, 16
        %v6723 = vshrl.u32 %v6718, 16
        %vm6724 = vc.u32 %v6716, %v6720
        %v6725 = vsel %vm6724, 1, 0
        %v6726 = vadd.s32 %v6716, %v6720
        %v6727 = vadd.s32 %v6719, %v6725
        %vm6728 = vc.u32 %v6726, %v6722
        %v6729 = vsel %vm6728, 1, 0
        %v6730 = vadd.s32 %v6726, %v6722
        %v6731 = vadd.s32 %v6727, %v6729
        %v6732 = vadd.s32 %v6731, %v6721
        %v6733 = vadd.s32 %v6732, %v6723
        %v6734 = vand.u32 %v6711, 65535
        %v6735 = vshrl.u32 %v6711, 16
        %v6736 = vand.u32 %v6706, 65535
        %v6737 = vshrl.u32 %v6706, 16
        %v6738 = vmul.u32 %v6734, %v6736
        %v6739 = vmul.u32 %v6734, %v6737
        %v6740 = vmul.u32 %v6735, %v6736
        %v6741 = vmul.u32 %v6735, %v6737
        %v6742 = vshll.u32 %v6739, 16
        %v6743 = vshrl.u32 %v6739, 16
        %v6744 = vshll.u32 %v6740, 16
        %v6745 = vshrl.u32 %v6740, 16
        %vm6746 = vc.u32 %v6738, %v6742
        %v6747 = vsel %vm6746, 1, 0
        %v6748 = vadd.s32 %v6738, %v6742
        %v6749 = vadd.s32 %v6741, %v6747
        %vm6750 = vc.u32 %v6748, %v6744
        %v6751 = vsel %vm6750, 1, 0
        %v6752 = vadd.s32 %v6748, %v6744
        %v6753 = vadd.s32 %v6749, %v6751
        %v6754 = vadd.s32 %v6753, %v6743
        %v6755 = vadd.s32 %v6754, %v6745
        %v6756 = vmul.u32 %v6711, %v6702
        %v6757 = vadd.s32 %v6733, %v6752
        %vm6758 = vc.u32 %v6733, %v6752
        %v6759 = vadd.s32 %v6755, 1
        %v6760 = vsel %vm6758, %v6759, %v6755
        %v6761 = vadd.s32 %v6756, %v6760
        %v6762 = vadd.s32 %v6761, 536870912
        %v6763 = vshrl.u32 %v6762, 30
        %v6764 = vshll.u32 %v6763, 30
        %v6765 = vsub.s32 %v6761, %v6764
        %vm6766 = vcmp.lt.s32.totalorder %v6765, 0
        %v6767 = vsub.s32 0, %v6765
        %v6768 = vsel %vm6766, %v6767, %v6765
        %v6769 = vclz %v6768
        %v6770 = vsub.s32 %v6769, 2
        %vm6771 = vcmp.gt.s32.totalorder 0, %v6770
        %v6772 = vsel %vm6771, 0, %v6770
        %v6773 = vsub.s32 32, %v6772
        %v6774 = vshll.u32 %v6765, %v6772
        %v6775 = vshrl.u32 %v6757, %v6773
        %v6776 = vor.u32 %v6774, %v6775
        %v6777 = vsub.s32 4294967266, %v6772
        %v6778 = vadd.s32 %v6777, 127
        %v6779 = vshll.u32 %v6778, 23
        %v6780 = vor.u32 4788187, %v6779
        %v6781 = vand.u32 2147483647, %v6780
        %v6783 = vcvt.s32.f32 %v6776
        %v6784 = vmul.f32 %v6783, %v6781
        %v6785 = vxor.u32 %v6784, 2147483648
        %v6786 = vsel %vm6665, %v6785, %v6784
        %v6787 = vsub.s32 4, %v6763
        %v6788 = vsel %vm6665, %v6787, %v6763
        %v6789 = vsel %vm6664, %v2347, %v6786
        %v6790 = vsel %vm6664, 0, %v6788
        %v6791 = vmul.f32 %v6789, %v6789
        %v6792 = vmul.f32 %v6791, -0.001358992
        %v6793 = vadd.f32 %v6792, 0.041655596
        %v6794 = vmul.f32 %v6791, %v6793
        %v6795 = vadd.f32 %v6794, -0.4999988
        %v6796 = vmul.f32 %v6791, %v6795
        %v6797 = vadd.f32 1.0, %v6796
        %v6798 = vmul.f32 %v6789, %v6789
        %v6799 = vmul.f32 %v6798, -0.00019511016
        %v6800 = vadd.f32 %v6799, 0.008332121
        %v6801 = vmul.f32 %v6798, %v6800
        %v6802 = vadd.f32 %v6801, -0.16666654
        %v6803 = vmul.f32 %v6798, %v6802
        %v6804 = vadd.f32 %v6803, 1.0
        %v6805 = vmul.f32 %v6804, %v6789
        %vm6806 = vweird.f32 %v2347
        %v6807 = vand.u32 %v6790, 3
        %vm6808 = vcmp.lt.s32.totalorder %v6807, 2
        %vm6809 = vcmp.eq.s32.totalorder %v6807, 0
        %v6810 = vxor.u32 %v6805, 2147483648
        %v6811 = vsel %vm6809, %v6797, %v6810
        %vm6812 = vcmp.eq.s32.totalorder %v6807, 2
        %v6813 = vxor.u32 %v6797, 2147483648
        %v6814 = vsel %vm6812, %v6813, %v6805
        %v6815 = vsel %vm6808, %v6811, %v6814
        %v6816 = vsel %vm6806, nan, %v6815
        %v6817 = vand.u32 2147483647, %v2348
        %vm6818 = vcmp.le.f32.partialorder %v6817, 0.7853982
        %vm6819 = vcmp.lt.s32.totalorder %v2348, 0
        %v6820 = vand.u32 %v2348, 2139095040
        %v6821 = vshrl.u32 %v6820, 23
        %v6822 = vsub.s32 %v6821, 127
        %v6823 = vand.u32 2147483647, %v2348
        %v6824 = vand.u32 %v6823, 8388607
        %v6825 = vor.u32 %v6824, 8388608
        %v6826 = vsub.s32 0, %v6825
        %v6827 = vadd.s32 %v6822, 1
        %vm6828 = vcmp.gt.s32.totalorder %v6827, 0
        %v6829 = vsel %vm6828, %v6827, 0
        %v6830 = vshrl.u32 %v6829, 5
        %v6831 = vand.u32 %v6829, 31
        %v6832 = vsub.s32 32, %v6831
        %v6833 = vshrl.u32 683565275, %v6832
        %v6834 = vshll.u32 683565275, %v6831
        %v6835 = vshrl.u32 2475754826, %v6832
        %v6836 = vor.u32 %v6834, %v6835
        %v6837 = vshll.u32 2475754826, %v6831
        %v6838 = vshrl.u32 2131351028, %v6832
        %v6839 = vor.u32 %v6837, %v6838
        %v6840 = vshll.u32 2131351028, %v6831
        %v6841 = vshrl.u32 2102212464, %v6832
        %v6842 = vor.u32 %v6840, %v6841
        %v6843 = vshll.u32 2102212464, %v6831
        %v6844 = vshrl.u32 920167782, %v6832
        %v6845 = vor.u32 %v6843, %v6844
        %v6846 = vshll.u32 920167782, %v6831
        %v6847 = vshrl.u32 1326507024, %v6832
        %v6848 = vor.u32 %v6846, %v6847
        %vm6849 = vcmp.lt.s32.totalorder %v6830, 1
        %vm6850 = vcmp.lt.s32.totalorder %v6830, 2
        %vm6851 = vcmp.lt.s32.totalorder %v6830, 3
        %vm6852 = vcmp.lt.s32.totalorder %v6830, 4
        %v6853 = vsel %vm6849, %v6833, %v6836
        %v6854 = vsel %vm6852, %v6842, 2102212464
        %v6855 = vsel %vm6851, %v6839, %v6854
        %v6856 = vsel %vm6850, %v6853, %v6855
        %v6857 = vsel %vm6849, %v6836, %v6839
        %v6858 = vsel %vm6852, %v6845, 920167782
        %v6859 = vsel %vm6851, %v6842, %v6858
        %v6860 = vsel %vm6850, %v6857, %v6859
        %v6861 = vsel %vm6849, %v6839, %v6842
        %v6862 = vsel %vm6852, %v6848, 1326507024
        %v6863 = vsel %vm6851, %v6845, %v6862
        %v6864 = vsel %vm6850, %v6861, %v6863
        %v6865 = vshll.u32 %v6825, 8
        %v6866 = vand.u32 %v6865, 65535
        %v6867 = vshrl.u32 %v6865, 16
        %v6868 = vand.u32 %v6864, 65535
        %v6869 = vshrl.u32 %v6864, 16
        %v6870 = vmul.u32 %v6866, %v6868
        %v6871 = vmul.u32 %v6866, %v6869
        %v6872 = vmul.u32 %v6867, %v6868
        %v6873 = vmul.u32 %v6867, %v6869
        %v6874 = vshll.u32 %v6871, 16
        %v6875 = vshrl.u32 %v6871, 16
        %v6876 = vshll.u32 %v6872, 16
        %v6877 = vshrl.u32 %v6872, 16
        %vm6878 = vc.u32 %v6870, %v6874
        %v6879 = vsel %vm6878, 1, 0
        %v6880 = vadd.s32 %v6870, %v6874
        %v6881 = vadd.s32 %v6873, %v6879
        %vm6882 = vc.u32 %v6880, %v6876
        %v6883 = vsel %vm6882, 1, 0
        %v6884 = vadd.s32 %v6880, %v6876
        %v6885 = vadd.s32 %v6881, %v6883
        %v6886 = vadd.s32 %v6885, %v6875
        %v6887 = vadd.s32 %v6886, %v6877
        %v6888 = vand.u32 %v6865, 65535
        %v6889 = vshrl.u32 %v6865, 16
        %v6890 = vand.u32 %v6860, 65535
        %v6891 = vshrl.u32 %v6860, 16
        %v6892 = vmul.u32 %v6888, %v6890
        %v6893 = vmul.u32 %v6888, %v6891
        %v6894 = vmul.u32 %v6889, %v6890
        %v6895 = vmul.u32 %v6889, %v6891
        %v6896 = vshll.u32 %v6893, 16
        %v6897 = vshrl.u32 %v6893, 16
        %v6898 = vshll.u32 %v6894, 16
        %v6899 = vshrl.u32 %v6894, 16
        %vm6900 = vc.u32 %v6892, %v6896
        %v6901 = vsel %vm6900, 1, 0
        %v6902 = vadd.s32 %v6892, %v6896
        %v6903 = vadd.s32 %v6895, %v6901
        %vm6904 = vc.u32 %v6902, %v6898
        %v6905 = vsel %vm6904, 1, 0
        %v6906 = vadd.s32 %v6902, %v6898
        %v6907 = vadd.s32 %v6903, %v6905
        %v6908 = vadd.s32 %v6907, %v6897
        %v6909 = vadd.s32 %v6908, %v6899
        %v6910 = vmul.u32 %v6865, %v6856
        %v6911 = vadd.s32 %v6887, %v6906
        %vm6912 = vc.u32 %v6887, %v6906
        %v6913 = vadd.s32 %v6909, 1
        %v6914 = vsel %vm6912, %v6913, %v6909
        %v6915 = vadd.s32 %v6910, %v6914
        %v6916 = vadd.s32 %v6915, 536870912
        %v6917 = vshrl.u32 %v6916, 30
        %v6918 = vshll.u32 %v6917, 30
        %v6919 = vsub.s32 %v6915, %v6918
        %vm6920 = vcmp.lt.s32.totalorder %v6919, 0
        %v6921 = vsub.s32 0, %v6919
        %v6922 = vsel %vm6920, %v6921, %v6919
        %v6923 = vclz %v6922
        %v6924 = vsub.s32 %v6923, 2
        %vm6925 = vcmp.gt.s32.totalorder 0, %v6924
        %v6926 = vsel %vm6925, 0, %v6924
        %v6927 = vsub.s32 32, %v6926
        %v6928 = vshll.u32 %v6919, %v6926
        %v6929 = vshrl.u32 %v6911, %v6927
        %v6930 = vor.u32 %v6928, %v6929
        %v6931 = vsub.s32 4294967266, %v6926
        %v6932 = vadd.s32 %v6931, 127
        %v6933 = vshll.u32 %v6932, 23
        %v6934 = vor.u32 4788187, %v6933
        %v6935 = vand.u32 2147483647, %v6934
        %v6937 = vcvt.s32.f32 %v6930
        %v6938 = vmul.f32 %v6937, %v6935
        %v6939 = vxor.u32 %v6938, 2147483648
        %v6940 = vsel %vm6819, %v6939, %v6938
        %v6941 = vsub.s32 4, %v6917
        %v6942 = vsel %vm6819, %v6941, %v6917
        %v6943 = vsel %vm6818, %v2348, %v6940
        %v6944 = vsel %vm6818, 0, %v6942
        %v6945 = vmul.f32 %v6943, %v6943
        %v6946 = vmul.f32 %v6945, -0.001358992
        %v6947 = vadd.f32 %v6946, 0.041655596
        %v6948 = vmul.f32 %v6945, %v6947
        %v6949 = vadd.f32 %v6948, -0.4999988
        %v6950 = vmul.f32 %v6945, %v6949
        %v6951 = vadd.f32 1.0, %v6950
        %v6952 = vmul.f32 %v6943, %v6943
        %v6953 = vmul.f32 %v6952, -0.00019511016
        %v6954 = vadd.f32 %v6953, 0.008332121
        %v6955 = vmul.f32 %v6952, %v6954
        %v6956 = vadd.f32 %v6955, -0.16666654
        %v6957 = vmul.f32 %v6952, %v6956
        %v6958 = vadd.f32 %v6957, 1.0
        %v6959 = vmul.f32 %v6958, %v6943
        %vm6960 = vweird.f32 %v2348
        %v6961 = vand.u32 %v6944, 3
        %vm6962 = vcmp.lt.s32.totalorder %v6961, 2
        %vm6963 = vcmp.eq.s32.totalorder %v6961, 0
        %v6964 = vxor.u32 %v6959, 2147483648
        %v6965 = vsel %vm6963, %v6951, %v6964
        %vm6966 = vcmp.eq.s32.totalorder %v6961, 2
        %v6967 = vxor.u32 %v6951, 2147483648
        %v6968 = vsel %vm6966, %v6967, %v6959
        %v6969 = vsel %vm6962, %v6965, %v6968
        %v6970 = vsel %vm6960, nan, %v6969
        %v6971 = vand.u32 2147483647, %v2349
        %vm6972 = vcmp.le.f32.partialorder %v6971, 0.7853982
        %vm6973 = vcmp.lt.s32.totalorder %v2349, 0
        %v6974 = vand.u32 %v2349, 2139095040
        %v6975 = vshrl.u32 %v6974, 23
        %v6976 = vsub.s32 %v6975, 127
        %v6977 = vand.u32 2147483647, %v2349
        %v6978 = vand.u32 %v6977, 8388607
        %v6979 = vor.u32 %v6978, 8388608
        %v6980 = vsub.s32 0, %v6979
        %v6981 = vadd.s32 %v6976, 1
        %vm6982 = vcmp.gt.s32.totalorder %v6981, 0
        %v6983 = vsel %vm6982, %v6981, 0
        %v6984 = vshrl.u32 %v6983, 5
        %v6985 = vand.u32 %v6983, 31
        %v6986 = vsub.s32 32, %v6985
        %v6987 = vshrl.u32 683565275, %v6986
        %v6988 = vshll.u32 683565275, %v6985
        %v6989 = vshrl.u32 2475754826, %v6986
        %v6990 = vor.u32 %v6988, %v6989
        %v6991 = vshll.u32 2475754826, %v6985
        %v6992 = vshrl.u32 2131351028, %v6986
        %v6993 = vor.u32 %v6991, %v6992
        %v6994 = vshll.u32 2131351028, %v6985
        %v6995 = vshrl.u32 2102212464, %v6986
        %v6996 = vor.u32 %v6994, %v6995
        %v6997 = vshll.u32 2102212464, %v6985
        %v6998 = vshrl.u32 920167782, %v6986
        %v6999 = vor.u32 %v6997, %v6998
        %v7000 = vshll.u32 920167782, %v6985
        %v7001 = vshrl.u32 1326507024, %v6986
        %v7002 = vor.u32 %v7000, %v7001
        %vm7003 = vcmp.lt.s32.totalorder %v6984, 1
        %vm7004 = vcmp.lt.s32.totalorder %v6984, 2
        %vm7005 = vcmp.lt.s32.totalorder %v6984, 3
        %vm7006 = vcmp.lt.s32.totalorder %v6984, 4
        %v7007 = vsel %vm7003, %v6987, %v6990
        %v7008 = vsel %vm7006, %v6996, 2102212464
        %v7009 = vsel %vm7005, %v6993, %v7008
        %v7010 = vsel %vm7004, %v7007, %v7009
        %v7011 = vsel %vm7003, %v6990, %v6993
        %v7012 = vsel %vm7006, %v6999, 920167782
        %v7013 = vsel %vm7005, %v6996, %v7012
        %v7014 = vsel %vm7004, %v7011, %v7013
        %v7015 = vsel %vm7003, %v6993, %v6996
        %v7016 = vsel %vm7006, %v7002, 1326507024
        %v7017 = vsel %vm7005, %v6999, %v7016
        %v7018 = vsel %vm7004, %v7015, %v7017
        %v7019 = vshll.u32 %v6979, 8
        %v7020 = vand.u32 %v7019, 65535
        %v7021 = vshrl.u32 %v7019, 16
        %v7022 = vand.u32 %v7018, 65535
        %v7023 = vshrl.u32 %v7018, 16
        %v7024 = vmul.u32 %v7020, %v7022
        %v7025 = vmul.u32 %v7020, %v7023
        %v7026 = vmul.u32 %v7021, %v7022
        %v7027 = vmul.u32 %v7021, %v7023
        %v7028 = vshll.u32 %v7025, 16
        %v7029 = vshrl.u32 %v7025, 16
        %v7030 = vshll.u32 %v7026, 16
        %v7031 = vshrl.u32 %v7026, 16
        %vm7032 = vc.u32 %v7024, %v7028
        %v7033 = vsel %vm7032, 1, 0
        %v7034 = vadd.s32 %v7024, %v7028
        %v7035 = vadd.s32 %v7027, %v7033
        %vm7036 = vc.u32 %v7034, %v7030
        %v7037 = vsel %vm7036, 1, 0
        %v7038 = vadd.s32 %v7034, %v7030
        %v7039 = vadd.s32 %v7035, %v7037
        %v7040 = vadd.s32 %v7039, %v7029
        %v7041 = vadd.s32 %v7040, %v7031
        %v7042 = vand.u32 %v7019, 65535
        %v7043 = vshrl.u32 %v7019, 16
        %v7044 = vand.u32 %v7014, 65535
        %v7045 = vshrl.u32 %v7014, 16
        %v7046 = vmul.u32 %v7042, %v7044
        %v7047 = vmul.u32 %v7042, %v7045
        %v7048 = vmul.u32 %v7043, %v7044
        %v7049 = vmul.u32 %v7043, %v7045
        %v7050 = vshll.u32 %v7047, 16
        %v7051 = vshrl.u32 %v7047, 16
        %v7052 = vshll.u32 %v7048, 16
        %v7053 = vshrl.u32 %v7048, 16
        %vm7054 = vc.u32 %v7046, %v7050
        %v7055 = vsel %vm7054, 1, 0
        %v7056 = vadd.s32 %v7046, %v7050
        %v7057 = vadd.s32 %v7049, %v7055
        %vm7058 = vc.u32 %v7056, %v7052
        %v7059 = vsel %vm7058, 1, 0
        %v7060 = vadd.s32 %v7056, %v7052
        %v7061 = vadd.s32 %v7057, %v7059
        %v7062 = vadd.s32 %v7061, %v7051
        %v7063 = vadd.s32 %v7062, %v7053
        %v7064 = vmul.u32 %v7019, %v7010
        %v7065 = vadd.s32 %v7041, %v7060
        %vm7066 = vc.u32 %v7041, %v7060
        %v7067 = vadd.s32 %v7063, 1
        %v7068 = vsel %vm7066, %v7067, %v7063
        %v7069 = vadd.s32 %v7064, %v7068
        %v7070 = vadd.s32 %v7069, 536870912
        %v7071 = vshrl.u32 %v7070, 30
        %v7072 = vshll.u32 %v7071, 30
        %v7073 = vsub.s32 %v7069, %v7072
        %vm7074 = vcmp.lt.s32.totalorder %v7073, 0
        %v7075 = vsub.s32 0, %v7073
        %v7076 = vsel %vm7074, %v7075, %v7073
        %v7077 = vclz %v7076
        %v7078 = vsub.s32 %v7077, 2
        %vm7079 = vcmp.gt.s32.totalorder 0, %v7078
        %v7080 = vsel %vm7079, 0, %v7078
        %v7081 = vsub.s32 32, %v7080
        %v7082 = vshll.u32 %v7073, %v7080
        %v7083 = vshrl.u32 %v7065, %v7081
        %v7084 = vor.u32 %v7082, %v7083
        %v7085 = vsub.s32 4294967266, %v7080
        %v7086 = vadd.s32 %v7085, 127
        %v7087 = vshll.u32 %v7086, 23
        %v7088 = vor.u32 4788187, %v7087
        %v7089 = vand.u32 2147483647, %v7088
        %v7091 = vcvt.s32.f32 %v7084
        %v7092 = vmul.f32 %v7091, %v7089
        %v7093 = vxor.u32 %v7092, 2147483648
        %v7094 = vsel %vm6973, %v7093, %v7092
        %v7095 = vsub.s32 4, %v7071
        %v7096 = vsel %vm6973, %v7095, %v7071
        %v7097 = vsel %vm6972, %v2349, %v7094
        %v7098 = vsel %vm6972, 0, %v7096
        %v7099 = vmul.f32 %v7097, %v7097
        %v7100 = vmul.f32 %v7099, -0.001358992
        %v7101 = vadd.f32 %v7100, 0.041655596
        %v7102 = vmul.f32 %v7099, %v7101
        %v7103 = vadd.f32 %v7102, -0.4999988
        %v7104 = vmul.f32 %v7099, %v7103
        %v7105 = vadd.f32 1.0, %v7104
        %v7106 = vmul.f32 %v7097, %v7097
        %v7107 = vmul.f32 %v7106, -0.00019511016
        %v7108 = vadd.f32 %v7107, 0.008332121
        %v7109 = vmul.f32 %v7106, %v7108
        %v7110 = vadd.f32 %v7109, -0.16666654
        %v7111 = vmul.f32 %v7106, %v7110
        %v7112 = vadd.f32 %v7111, 1.0
        %v7113 = vmul.f32 %v7112, %v7097
        %vm7114 = vweird.f32 %v2349
        %v7115 = vand.u32 %v7098, 3
        %vm7116 = vcmp.lt.s32.totalorder %v7115, 2
        %vm7117 = vcmp.eq.s32.totalorder %v7115, 0
        %v7118 = vxor.u32 %v7113, 2147483648
        %v7119 = vsel %vm7117, %v7105, %v7118
        %vm7120 = vcmp.eq.s32.totalorder %v7115, 2
        %v7121 = vxor.u32 %v7105, 2147483648
        %v7122 = vsel %vm7120, %v7121, %v7113
        %v7123 = vsel %vm7116, %v7119, %v7122
        %v7124 = vsel %vm7114, nan, %v7123
        %v7125 = vand.u32 2147483647, %v2350
        %vm7126 = vcmp.le.f32.partialorder %v7125, 0.7853982
        %vm7127 = vcmp.lt.s32.totalorder %v2350, 0
        %v7128 = vand.u32 %v2350, 2139095040
        %v7129 = vshrl.u32 %v7128, 23
        %v7130 = vsub.s32 %v7129, 127
        %v7131 = vand.u32 2147483647, %v2350
        %v7132 = vand.u32 %v7131, 8388607
        %v7133 = vor.u32 %v7132, 8388608
        %v7134 = vsub.s32 0, %v7133
        %v7135 = vadd.s32 %v7130, 1
        %vm7136 = vcmp.gt.s32.totalorder %v7135, 0
        %v7137 = vsel %vm7136, %v7135, 0
        %v7138 = vshrl.u32 %v7137, 5
        %v7139 = vand.u32 %v7137, 31
        %v7140 = vsub.s32 32, %v7139
        %v7141 = vshrl.u32 683565275, %v7140
        %v7142 = vshll.u32 683565275, %v7139
        %v7143 = vshrl.u32 2475754826, %v7140
        %v7144 = vor.u32 %v7142, %v7143
        %v7145 = vshll.u32 2475754826, %v7139
        %v7146 = vshrl.u32 2131351028, %v7140
        %v7147 = vor.u32 %v7145, %v7146
        %v7148 = vshll.u32 2131351028, %v7139
        %v7149 = vshrl.u32 2102212464, %v7140
        %v7150 = vor.u32 %v7148, %v7149
        %v7151 = vshll.u32 2102212464, %v7139
        %v7152 = vshrl.u32 920167782, %v7140
        %v7153 = vor.u32 %v7151, %v7152
        %v7154 = vshll.u32 920167782, %v7139
        %v7155 = vshrl.u32 1326507024, %v7140
        %v7156 = vor.u32 %v7154, %v7155
        %vm7157 = vcmp.lt.s32.totalorder %v7138, 1
        %vm7158 = vcmp.lt.s32.totalorder %v7138, 2
        %vm7159 = vcmp.lt.s32.totalorder %v7138, 3
        %vm7160 = vcmp.lt.s32.totalorder %v7138, 4
        %v7161 = vsel %vm7157, %v7141, %v7144
        %v7162 = vsel %vm7160, %v7150, 2102212464
        %v7163 = vsel %vm7159, %v7147, %v7162
        %v7164 = vsel %vm7158, %v7161, %v7163
        %v7165 = vsel %vm7157, %v7144, %v7147
        %v7166 = vsel %vm7160, %v7153, 920167782
        %v7167 = vsel %vm7159, %v7150, %v7166
        %v7168 = vsel %vm7158, %v7165, %v7167
        %v7169 = vsel %vm7157, %v7147, %v7150
        %v7170 = vsel %vm7160, %v7156, 1326507024
        %v7171 = vsel %vm7159, %v7153, %v7170
        %v7172 = vsel %vm7158, %v7169, %v7171
        %v7173 = vshll.u32 %v7133, 8
        %v7174 = vand.u32 %v7173, 65535
        %v7175 = vshrl.u32 %v7173, 16
        %v7176 = vand.u32 %v7172, 65535
        %v7177 = vshrl.u32 %v7172, 16
        %v7178 = vmul.u32 %v7174, %v7176
        %v7179 = vmul.u32 %v7174, %v7177
        %v7180 = vmul.u32 %v7175, %v7176
        %v7181 = vmul.u32 %v7175, %v7177
        %v7182 = vshll.u32 %v7179, 16
        %v7183 = vshrl.u32 %v7179, 16
        %v7184 = vshll.u32 %v7180, 16
        %v7185 = vshrl.u32 %v7180, 16
        %vm7186 = vc.u32 %v7178, %v7182
        %v7187 = vsel %vm7186, 1, 0
        %v7188 = vadd.s32 %v7178, %v7182
        %v7189 = vadd.s32 %v7181, %v7187
        %vm7190 = vc.u32 %v7188, %v7184
        %v7191 = vsel %vm7190, 1, 0
        %v7192 = vadd.s32 %v7188, %v7184
        %v7193 = vadd.s32 %v7189, %v7191
        %v7194 = vadd.s32 %v7193, %v7183
        %v7195 = vadd.s32 %v7194, %v7185
        %v7196 = vand.u32 %v7173, 65535
        %v7197 = vshrl.u32 %v7173, 16
        %v7198 = vand.u32 %v7168, 65535
        %v7199 = vshrl.u32 %v7168, 16
        %v7200 = vmul.u32 %v7196, %v7198
        %v7201 = vmul.u32 %v7196, %v7199
        %v7202 = vmul.u32 %v7197, %v7198
        %v7203 = vmul.u32 %v7197, %v7199
        %v7204 = vshll.u32 %v7201, 16
        %v7205 = vshrl.u32 %v7201, 16
        %v7206 = vshll.u32 %v7202, 16
        %v7207 = vshrl.u32 %v7202, 16
        %vm7208 = vc.u32 %v7200, %v7204
        %v7209 = vsel %vm7208, 1, 0
        %v7210 = vadd.s32 %v7200, %v7204
        %v7211 = vadd.s32 %v7203, %v7209
        %vm7212 = vc.u32 %v7210, %v7206
        %v7213 = vsel %vm7212, 1, 0
        %v7214 = vadd.s32 %v7210, %v7206
        %v7215 = vadd.s32 %v7211, %v7213
        %v7216 = vadd.s32 %v7215, %v7205
        %v7217 = vadd.s32 %v7216, %v7207
        %v7218 = vmul.u32 %v7173, %v7164
        %v7219 = vadd.s32 %v7195, %v7214
        %vm7220 = vc.u32 %v7195, %v7214
        %v7221 = vadd.s32 %v7217, 1
        %v7222 = vsel %vm7220, %v7221, %v7217
        %v7223 = vadd.s32 %v7218, %v7222
        %v7224 = vadd.s32 %v7223, 536870912
        %v7225 = vshrl.u32 %v7224, 30
        %v7226 = vshll.u32 %v7225, 30
        %v7227 = vsub.s32 %v7223, %v7226
        %vm7228 = vcmp.lt.s32.totalorder %v7227, 0
        %v7229 = vsub.s32 0, %v7227
        %v7230 = vsel %vm7228, %v7229, %v7227
        %v7231 = vclz %v7230
        %v7232 = vsub.s32 %v7231, 2
        %vm7233 = vcmp.gt.s32.totalorder 0, %v7232
        %v7234 = vsel %vm7233, 0, %v7232
        %v7235 = vsub.s32 32, %v7234
        %v7236 = vshll.u32 %v7227, %v7234
        %v7237 = vshrl.u32 %v7219, %v7235
        %v7238 = vor.u32 %v7236, %v7237
        %v7239 = vsub.s32 4294967266, %v7234
        %v7240 = vadd.s32 %v7239, 127
        %v7241 = vshll.u32 %v7240, 23
        %v7242 = vor.u32 4788187, %v7241
        %v7243 = vand.u32 2147483647, %v7242
        %v7245 = vcvt.s32.f32 %v7238
        %v7246 = vmul.f32 %v7245, %v7243
        %v7247 = vxor.u32 %v7246, 2147483648
        %v7248 = vsel %vm7127, %v7247, %v7246
        %v7249 = vsub.s32 4, %v7225
        %v7250 = vsel %vm7127, %v7249, %v7225
        %v7251 = vsel %vm7126, %v2350, %v7248
        %v7252 = vsel %vm7126, 0, %v7250
        %v7253 = vmul.f32 %v7251, %v7251
        %v7254 = vmul.f32 %v7253, -0.001358992
        %v7255 = vadd.f32 %v7254, 0.041655596
        %v7256 = vmul.f32 %v7253, %v7255
        %v7257 = vadd.f32 %v7256, -0.4999988
        %v7258 = vmul.f32 %v7253, %v7257
        %v7259 = vadd.f32 1.0, %v7258
        %v7260 = vmul.f32 %v7251, %v7251
        %v7261 = vmul.f32 %v7260, -0.00019511016
        %v7262 = vadd.f32 %v7261, 0.008332121
        %v7263 = vmul.f32 %v7260, %v7262
        %v7264 = vadd.f32 %v7263, -0.16666654
        %v7265 = vmul.f32 %v7260, %v7264
        %v7266 = vadd.f32 %v7265, 1.0
        %v7267 = vmul.f32 %v7266, %v7251
        %vm7268 = vweird.f32 %v2350
        %v7269 = vand.u32 %v7252, 3
        %vm7270 = vcmp.lt.s32.totalorder %v7269, 2
        %vm7271 = vcmp.eq.s32.totalorder %v7269, 0
        %v7272 = vxor.u32 %v7267, 2147483648
        %v7273 = vsel %vm7271, %v7259, %v7272
        %vm7274 = vcmp.eq.s32.totalorder %v7269, 2
        %v7275 = vxor.u32 %v7259, 2147483648
        %v7276 = vsel %vm7274, %v7275, %v7267
        %v7277 = vsel %vm7270, %v7273, %v7276
        %v7278 = vsel %vm7268, nan, %v7277
        %v7279 = vpack.c.bf16 %v2074, %v2072
        %v7280 = vpack.c.bf16 %v2079, %v2077
        %v7281 = vpack.c.bf16 %v2084, %v2082
        %v7282 = vpack.c.bf16 %v2089, %v2087
        %v7283 = vpack.c.bf16 %v2094, %v2092
        %v7284 = vpack.c.bf16 %v2099, %v2097
        %v7285 = vpack.c.bf16 %v2104, %v2102
        %v7286 = vpack.c.bf16 %v2109, %v2107
        %v7287 = vpack.c.bf16 %v2114, %v2112
        %v7288 = vpack.c.bf16 %v2119, %v2117
        %v7289 = vpack.c.bf16 %v2124, %v2122
        %v7290 = vpack.c.bf16 %v2129, %v2127
        %v7291 = vpack.c.bf16 %v2134, %v2132
        %v7292 = vpack.c.bf16 %v2139, %v2137
        %v7293 = vpack.c.bf16 %v2144, %v2142
        %v7294 = vpack.c.bf16 %v2149, %v2147
        %v7295 = vld [vmem:[%s9] sm:$0xf]
        %v7296 = vld [vmem:[%s9 + $0x4] sm:$0xf]
        %v7297 = vld [vmem:[%s9 + $0x8] sm:$0xf]
        %v7298 = vld [vmem:[%s9 + $0xc] sm:$0xf]
        %v7299 = vld [vmem:[%s9 + $0x10] sm:$0xf]
        %v7300 = vld [vmem:[%s9 + $0x14] sm:$0xf]
        %v7301 = vld [vmem:[%s9 + $0x18] sm:$0xf]
        %v7302 = vld [vmem:[%s9 + $0x1c] sm:$0xf]
        %v7303 = vld [vmem:[%s9 + $0x20] sm:$0xf]
        %v7304 = vld [vmem:[%s9 + $0x24] sm:$0xf]
        %v7305 = vld [vmem:[%s9 + $0x28] sm:$0xf]
        %v7306 = vld [vmem:[%s9 + $0x2c] sm:$0xf]
        %v7307 = vld [vmem:[%s9 + $0x30] sm:$0xf]
        %v7308 = vld [vmem:[%s9 + $0x34] sm:$0xf]
        %v7309 = vld [vmem:[%s9 + $0x38] sm:$0xf]
        %v7310 = vld [vmem:[%s9 + $0x3c] sm:$0xf]
        %v7311 = vpack.c.bf16 %v2658, %v2504
        %v7312 = vpack.c.bf16 %v2966, %v2812
        %v7313 = vpack.c.bf16 %v3274, %v3120
        %v7314 = vpack.c.bf16 %v3582, %v3428
        %v7315 = vpack.c.bf16 %v3890, %v3736
        %v7316 = vpack.c.bf16 %v4198, %v4044
        %v7317 = vpack.c.bf16 %v4506, %v4352
        %v7318 = vpack.c.bf16 %v4814, %v4660
        %v7319 = vpack.c.bf16 %v5122, %v4968
        %v7320 = vpack.c.bf16 %v5430, %v5276
        %v7321 = vpack.c.bf16 %v5738, %v5584
        %v7322 = vpack.c.bf16 %v6046, %v5892
        %v7323 = vpack.c.bf16 %v6354, %v6200
        %v7324 = vpack.c.bf16 %v6662, %v6508
        %v7325 = vpack.c.bf16 %v6970, %v6816
        %v7326 = vpack.c.bf16 %v7278, %v7124
        %v7327 = vld [vmem:[%s9 + $0x40] sm:$0xf]
        %v7328 = vld [vmem:[%s9 + $0x44] sm:$0xf]
        %v7329 = vld [vmem:[%s9 + $0x48] sm:$0xf]
        %v7330 = vld [vmem:[%s9 + $0x4c] sm:$0xf]
        %v7331 = vld [vmem:[%s9 + $0x50] sm:$0xf]
        %v7332 = vld [vmem:[%s9 + $0x54] sm:$0xf]
        %v7333 = vld [vmem:[%s9 + $0x58] sm:$0xf]
        %v7334 = vld [vmem:[%s9 + $0x5c] sm:$0xf]
        %v7335 = vld [vmem:[%s9 + $0x60] sm:$0xf]
        %v7336 = vld [vmem:[%s9 + $0x64] sm:$0xf]
        %v7337 = vld [vmem:[%s9 + $0x68] sm:$0xf]
        %v7338 = vld [vmem:[%s9 + $0x6c] sm:$0xf]
        %v7339 = vld [vmem:[%s9 + $0x70] sm:$0xf]
        %v7340 = vld [vmem:[%s9 + $0x74] sm:$0xf]
        %v7341 = vld [vmem:[%s9 + $0x78] sm:$0xf]
        %v7342 = vld [vmem:[%s9 + $0x7c] sm:$0xf]
        %v7359 = vunpack.c.l.b16 %v7327
        %v7360 = vunpack.c.l.b16 %v7328
        %v7361 = vunpack.c.l.b16 %v7329
        %v7362 = vunpack.c.l.b16 %v7330
        %v7363 = vunpack.c.l.b16 %v7331
        %v7364 = vunpack.c.l.b16 %v7332
        %v7365 = vunpack.c.l.b16 %v7333
        %v7366 = vunpack.c.l.b16 %v7334
        %v7367 = vunpack.c.l.b16 %v7335
        %v7368 = vunpack.c.l.b16 %v7336
        %v7369 = vunpack.c.l.b16 %v7337
        %v7370 = vunpack.c.l.b16 %v7338
        %v7371 = vunpack.c.l.b16 %v7339
        %v7372 = vunpack.c.l.b16 %v7340
        %v7373 = vunpack.c.l.b16 %v7341
        %v7374 = vunpack.c.l.b16 %v7342
        %v7375 = vpack.c.b16 %v7360, %v7359
        %v7376 = vpack.c.b16 %v7362, %v7361
        %v7377 = vpack.c.b16 %v7364, %v7363
        %v7378 = vpack.c.b16 %v7366, %v7365
        %v7379 = vpack.c.b16 %v7368, %v7367
        %v7380 = vpack.c.b16 %v7370, %v7369
        %v7381 = vpack.c.b16 %v7372, %v7371
        %v7382 = vpack.c.b16 %v7374, %v7373
        %7391 = vmatpush.bf16.msra.mxu0 %v7382
        %7392 = vmatpush.bf16.msra.mxu0 %v7381
        %7393 = vmatpush.bf16.msra.mxu0 %v7380
        %7394 = vmatpush.bf16.msra.mxu0 %v7379
        %7395 = vmatpush.bf16.msra.mxu0 %v7378
        %7396 = vmatpush.bf16.msra.mxu0 %v7377
        %7397 = vmatpush.bf16.msra.mxu0 %v7376
        %7398 = vmatpush.bf16.msra.mxu0 %v7375
        %7399 = vmatmul.bf16.gmra.mxu0 %v7311
        %v7400 = vpop.f32.mrf.mxu0
        %v7401 = vadd.f32 0.0, %v7400
        %v7402 = vpop.f32.mrf.mxu0
        %v7403 = vadd.f32 0.0, %v7402
        %7404 = vmatmul.bf16.gmra.mxu0 %v7312
        %v7405 = vpop.f32.mrf.mxu0
        %v7406 = vadd.f32 0.0, %v7405
        %v7407 = vpop.f32.mrf.mxu0
        %v7408 = vadd.f32 0.0, %v7407
        %7409 = vmatmul.bf16.gmra.mxu0 %v7313
        %v7410 = vpop.f32.mrf.mxu0
        %v7411 = vadd.f32 0.0, %v7410
        %v7412 = vpop.f32.mrf.mxu0
        %v7413 = vadd.f32 0.0, %v7412
        %7414 = vmatmul.bf16.gmra.mxu0 %v7314
        %v7415 = vpop.f32.mrf.mxu0
        %v7416 = vadd.f32 0.0, %v7415
        %v7417 = vpop.f32.mrf.mxu0
        %v7418 = vadd.f32 0.0, %v7417
        %7419 = vmatmul.bf16.gmra.mxu0 %v7315
        %v7420 = vpop.f32.mrf.mxu0
        %v7421 = vadd.f32 0.0, %v7420
        %v7422 = vpop.f32.mrf.mxu0
        %v7423 = vadd.f32 0.0, %v7422
        %7424 = vmatmul.bf16.gmra.mxu0 %v7316
        %v7425 = vpop.f32.mrf.mxu0
        %v7426 = vadd.f32 0.0, %v7425
        %v7427 = vpop.f32.mrf.mxu0
        %v7428 = vadd.f32 0.0, %v7427
        %7429 = vmatmul.bf16.gmra.mxu0 %v7317
        %v7430 = vpop.f32.mrf.mxu0
        %v7431 = vadd.f32 0.0, %v7430
        %v7432 = vpop.f32.mrf.mxu0
        %v7433 = vadd.f32 0.0, %v7432
        %7434 = vmatmul.bf16.gmra.mxu0 %v7318
        %v7435 = vpop.f32.mrf.mxu0
        %v7436 = vadd.f32 0.0, %v7435
        %v7437 = vpop.f32.mrf.mxu0
        %v7438 = vadd.f32 0.0, %v7437
        %7439 = vmatmul.bf16.gmra.mxu0 %v7319
        %v7440 = vpop.f32.mrf.mxu0
        %v7441 = vadd.f32 0.0, %v7440
        %v7442 = vpop.f32.mrf.mxu0
        %v7443 = vadd.f32 0.0, %v7442
        %7444 = vmatmul.bf16.gmra.mxu0 %v7320
        %v7445 = vpop.f32.mrf.mxu0
        %v7446 = vadd.f32 0.0, %v7445
        %v7447 = vpop.f32.mrf.mxu0
        %v7448 = vadd.f32 0.0, %v7447
        %7449 = vmatmul.bf16.gmra.mxu0 %v7321
        %v7450 = vpop.f32.mrf.mxu0
        %v7451 = vadd.f32 0.0, %v7450
        %v7452 = vpop.f32.mrf.mxu0
        %v7453 = vadd.f32 0.0, %v7452
        %7454 = vmatmul.bf16.gmra.mxu0 %v7322
        %v7455 = vpop.f32.mrf.mxu0
        %v7456 = vadd.f32 0.0, %v7455
        %v7457 = vpop.f32.mrf.mxu0
        %v7458 = vadd.f32 0.0, %v7457
        %7459 = vmatmul.bf16.gmra.mxu0 %v7323
        %v7460 = vpop.f32.mrf.mxu0
        %v7461 = vadd.f32 0.0, %v7460
        %v7462 = vpop.f32.mrf.mxu0
        %v7463 = vadd.f32 0.0, %v7462
        %7464 = vmatmul.bf16.gmra.mxu0 %v7324
        %v7465 = vpop.f32.mrf.mxu0
        %v7466 = vadd.f32 0.0, %v7465
        %v7467 = vpop.f32.mrf.mxu0
        %v7468 = vadd.f32 0.0, %v7467
        %7469 = vmatmul.bf16.gmra.mxu0 %v7325
        %v7470 = vpop.f32.mrf.mxu0
        %v7471 = vadd.f32 0.0, %v7470
        %v7472 = vpop.f32.mrf.mxu0
        %v7473 = vadd.f32 0.0, %v7472
        %7474 = vmatmul.bf16.gmra.mxu0 %v7326
        %v7475 = vpop.f32.mrf.mxu0
        %v7476 = vadd.f32 0.0, %v7475
        %v7477 = vpop.f32.mrf.mxu0
        %v7478 = vadd.f32 0.0, %v7477
        %7479 = vdwg.mxu0
        %v7496 = vunpack.c.l.b16 %v7295
        %v7497 = vunpack.c.l.b16 %v7296
        %v7498 = vunpack.c.l.b16 %v7297
        %v7499 = vunpack.c.l.b16 %v7298
        %v7500 = vunpack.c.l.b16 %v7299
        %v7501 = vunpack.c.l.b16 %v7300
        %v7502 = vunpack.c.l.b16 %v7301
        %v7503 = vunpack.c.l.b16 %v7302
        %v7504 = vunpack.c.l.b16 %v7303
        %v7505 = vunpack.c.l.b16 %v7304
        %v7506 = vunpack.c.l.b16 %v7305
        %v7507 = vunpack.c.l.b16 %v7306
        %v7508 = vunpack.c.l.b16 %v7307
        %v7509 = vunpack.c.l.b16 %v7308
        %v7510 = vunpack.c.l.b16 %v7309
        %v7511 = vunpack.c.l.b16 %v7310
        %v7512 = vpack.c.b16 %v7497, %v7496
        %v7513 = vpack.c.b16 %v7499, %v7498
        %v7514 = vpack.c.b16 %v7501, %v7500
        %v7515 = vpack.c.b16 %v7503, %v7502
        %v7516 = vpack.c.b16 %v7505, %v7504
        %v7517 = vpack.c.b16 %v7507, %v7506
        %v7518 = vpack.c.b16 %v7509, %v7508
        %v7519 = vpack.c.b16 %v7511, %v7510
        %7528 = vmatpush.bf16.msra.mxu0 %v7519
        %7529 = vmatpush.bf16.msra.mxu0 %v7518
        %7530 = vmatpush.bf16.msra.mxu0 %v7517
        %7531 = vmatpush.bf16.msra.mxu0 %v7516
        %7532 = vmatpush.bf16.msra.mxu0 %v7515
        %7533 = vmatpush.bf16.msra.mxu0 %v7514
        %7534 = vmatpush.bf16.msra.mxu0 %v7513
        %7535 = vmatpush.bf16.msra.mxu0 %v7512
        %7536 = vmatmul.bf16.gmra.mxu0 %v7279
        %v7537 = vpop.f32.mrf.mxu0
        %v7538 = vadd.f32 %v7401, %v7537
        %v7539 = vpop.f32.mrf.mxu0
        %v7540 = vadd.f32 %v7403, %v7539
        %7541 = vmatmul.bf16.gmra.mxu0 %v7280
        %v7542 = vpop.f32.mrf.mxu0
        %v7543 = vadd.f32 %v7406, %v7542
        %v7544 = vpop.f32.mrf.mxu0
        %v7545 = vadd.f32 %v7408, %v7544
        %7546 = vmatmul.bf16.gmra.mxu0 %v7281
        %v7547 = vpop.f32.mrf.mxu0
        %v7548 = vadd.f32 %v7411, %v7547
        %v7549 = vpop.f32.mrf.mxu0
        %v7550 = vadd.f32 %v7413, %v7549
        %7551 = vmatmul.bf16.gmra.mxu0 %v7282
        %v7552 = vpop.f32.mrf.mxu0
        %v7553 = vadd.f32 %v7416, %v7552
        %v7554 = vpop.f32.mrf.mxu0
        %v7555 = vadd.f32 %v7418, %v7554
        %7556 = vmatmul.bf16.gmra.mxu0 %v7283
        %v7557 = vpop.f32.mrf.mxu0
        %v7558 = vadd.f32 %v7421, %v7557
        %v7559 = vpop.f32.mrf.mxu0
        %v7560 = vadd.f32 %v7423, %v7559
        %7561 = vmatmul.bf16.gmra.mxu0 %v7284
        %v7562 = vpop.f32.mrf.mxu0
        %v7563 = vadd.f32 %v7426, %v7562
        %v7564 = vpop.f32.mrf.mxu0
        %v7565 = vadd.f32 %v7428, %v7564
        %7566 = vmatmul.bf16.gmra.mxu0 %v7285
        %v7567 = vpop.f32.mrf.mxu0
        %v7568 = vadd.f32 %v7431, %v7567
        %v7569 = vpop.f32.mrf.mxu0
        %v7570 = vadd.f32 %v7433, %v7569
        %7571 = vmatmul.bf16.gmra.mxu0 %v7286
        %v7572 = vpop.f32.mrf.mxu0
        %v7573 = vadd.f32 %v7436, %v7572
        %v7574 = vpop.f32.mrf.mxu0
        %v7575 = vadd.f32 %v7438, %v7574
        %7576 = vmatmul.bf16.gmra.mxu0 %v7287
        %v7577 = vpop.f32.mrf.mxu0
        %v7578 = vadd.f32 %v7441, %v7577
        %v7579 = vpop.f32.mrf.mxu0
        %v7580 = vadd.f32 %v7443, %v7579
        %7581 = vmatmul.bf16.gmra.mxu0 %v7288
        %v7582 = vpop.f32.mrf.mxu0
        %v7583 = vadd.f32 %v7446, %v7582
        %v7584 = vpop.f32.mrf.mxu0
        %v7585 = vadd.f32 %v7448, %v7584
        %7586 = vmatmul.bf16.gmra.mxu0 %v7289
        %v7587 = vpop.f32.mrf.mxu0
        %v7588 = vadd.f32 %v7451, %v7587
        %v7589 = vpop.f32.mrf.mxu0
        %v7590 = vadd.f32 %v7453, %v7589
        %7591 = vmatmul.bf16.gmra.mxu0 %v7290
        %v7592 = vpop.f32.mrf.mxu0
        %v7593 = vadd.f32 %v7456, %v7592
        %v7594 = vpop.f32.mrf.mxu0
        %v7595 = vadd.f32 %v7458, %v7594
        %7596 = vmatmul.bf16.gmra.mxu0 %v7291
        %v7597 = vpop.f32.mrf.mxu0
        %v7598 = vadd.f32 %v7461, %v7597
        %v7599 = vpop.f32.mrf.mxu0
        %v7600 = vadd.f32 %v7463, %v7599
        %7601 = vmatmul.bf16.gmra.mxu0 %v7292
        %v7602 = vpop.f32.mrf.mxu0
        %v7603 = vadd.f32 %v7466, %v7602
        %v7604 = vpop.f32.mrf.mxu0
        %v7605 = vadd.f32 %v7468, %v7604
        %7606 = vmatmul.bf16.gmra.mxu0 %v7293
        %v7607 = vpop.f32.mrf.mxu0
        %v7608 = vadd.f32 %v7471, %v7607
        %v7609 = vpop.f32.mrf.mxu0
        %v7610 = vadd.f32 %v7473, %v7609
        %7611 = vmatmul.bf16.gmra.mxu0 %v7294
        %v7612 = vpop.f32.mrf.mxu0
        %v7613 = vadd.f32 %v7476, %v7612
        %v7614 = vpop.f32.mrf.mxu0
        %v7615 = vadd.f32 %v7478, %v7614
        %7616 = vdwg.mxu0
        %v7617 = vld [vmem:[%s10] sm:$0x1]
        %v7619 = vperm.slane %v7617, 0
        %v7621 = vadd.f32 %v7538, %v7619
        %v7622 = vadd.f32 %v7540, %v7619
        %v7623 = vadd.f32 %v7543, %v7619
        %v7624 = vadd.f32 %v7545, %v7619
        %v7625 = vadd.f32 %v7548, %v7619
        %v7626 = vadd.f32 %v7550, %v7619
        %v7627 = vadd.f32 %v7553, %v7619
        %v7628 = vadd.f32 %v7555, %v7619
        %v7629 = vadd.f32 %v7558, %v7619
        %v7630 = vadd.f32 %v7560, %v7619
        %v7631 = vadd.f32 %v7563, %v7619
        %v7632 = vadd.f32 %v7565, %v7619
        %v7633 = vadd.f32 %v7568, %v7619
        %v7634 = vadd.f32 %v7570, %v7619
        %v7635 = vadd.f32 %v7573, %v7619
        %v7636 = vadd.f32 %v7575, %v7619
        %v7637 = vadd.f32 %v7578, %v7619
        %v7638 = vadd.f32 %v7580, %v7619
        %v7639 = vadd.f32 %v7583, %v7619
        %v7640 = vadd.f32 %v7585, %v7619
        %v7641 = vadd.f32 %v7588, %v7619
        %v7642 = vadd.f32 %v7590, %v7619
        %v7643 = vadd.f32 %v7593, %v7619
        %v7644 = vadd.f32 %v7595, %v7619
        %v7645 = vadd.f32 %v7598, %v7619
        %v7646 = vadd.f32 %v7600, %v7619
        %v7647 = vadd.f32 %v7603, %v7619
        %v7648 = vadd.f32 %v7605, %v7619
        %v7649 = vadd.f32 %v7608, %v7619
        %v7650 = vadd.f32 %v7610, %v7619
        %v7651 = vadd.f32 %v7613, %v7619
        %v7652 = vadd.f32 %v7615, %v7619
        %vm7653 = vcmp.gt.f32.partialorder %v7621, 0.0
        %vm7654 = vcmp.gt.f32.partialorder %v7622, 0.0
        %vm7655 = vcmp.gt.f32.partialorder %v7623, 0.0
        %vm7656 = vcmp.gt.f32.partialorder %v7624, 0.0
        %vm7657 = vcmp.gt.f32.partialorder %v7625, 0.0
        %vm7658 = vcmp.gt.f32.partialorder %v7626, 0.0
        %vm7659 = vcmp.gt.f32.partialorder %v7627, 0.0
        %vm7660 = vcmp.gt.f32.partialorder %v7628, 0.0
        %vm7661 = vcmp.gt.f32.partialorder %v7629, 0.0
        %vm7662 = vcmp.gt.f32.partialorder %v7630, 0.0
        %vm7663 = vcmp.gt.f32.partialorder %v7631, 0.0
        %vm7664 = vcmp.gt.f32.partialorder %v7632, 0.0
        %vm7665 = vcmp.gt.f32.partialorder %v7633, 0.0
        %vm7666 = vcmp.gt.f32.partialorder %v7634, 0.0
        %vm7667 = vcmp.gt.f32.partialorder %v7635, 0.0
        %vm7668 = vcmp.gt.f32.partialorder %v7636, 0.0
        %vm7669 = vcmp.gt.f32.partialorder %v7637, 0.0
        %vm7670 = vcmp.gt.f32.partialorder %v7638, 0.0
        %vm7671 = vcmp.gt.f32.partialorder %v7639, 0.0
        %vm7672 = vcmp.gt.f32.partialorder %v7640, 0.0
        %vm7673 = vcmp.gt.f32.partialorder %v7641, 0.0
        %vm7674 = vcmp.gt.f32.partialorder %v7642, 0.0
        %vm7675 = vcmp.gt.f32.partialorder %v7643, 0.0
        %vm7676 = vcmp.gt.f32.partialorder %v7644, 0.0
        %vm7677 = vcmp.gt.f32.partialorder %v7645, 0.0
        %vm7678 = vcmp.gt.f32.partialorder %v7646, 0.0
        %vm7679 = vcmp.gt.f32.partialorder %v7647, 0.0
        %vm7680 = vcmp.gt.f32.partialorder %v7648, 0.0
        %vm7681 = vcmp.gt.f32.partialorder %v7649, 0.0
        %vm7682 = vcmp.gt.f32.partialorder %v7650, 0.0
        %vm7683 = vcmp.gt.f32.partialorder %v7651, 0.0
        %vm7684 = vcmp.gt.f32.partialorder %v7652, 0.0
        %v7685 = vmul.f32 %v7621, 1.442695
        %v7686 = vpow.pop %v7685
        %v7687 = vmul.f32 %v7622, 1.442695
        %v7688 = vpow.pop %v7687
        %v7689 = vmul.f32 %v7623, 1.442695
        %v7690 = vpow.pop %v7689
        %v7691 = vmul.f32 %v7624, 1.442695
        %v7692 = vpow.pop %v7691
        %v7693 = vmul.f32 %v7625, 1.442695
        %v7694 = vpow.pop %v7693
        %v7695 = vmul.f32 %v7626, 1.442695
        %v7696 = vpow.pop %v7695
        %v7697 = vmul.f32 %v7627, 1.442695
        %v7698 = vpow.pop %v7697
        %v7699 = vmul.f32 %v7628, 1.442695
        %v7700 = vpow.pop %v7699
        %v7701 = vmul.f32 %v7629, 1.442695
        %v7702 = vpow.pop %v7701
        %v7703 = vmul.f32 %v7630, 1.442695
        %v7704 = vpow.pop %v7703
        %v7705 = vmul.f32 %v7631, 1.442695
        %v7706 = vpow.pop %v7705
        %v7707 = vmul.f32 %v7632, 1.442695
        %v7708 = vpow.pop %v7707
        %v7709 = vmul.f32 %v7633, 1.442695
        %v7710 = vpow.pop %v7709
        %v7711 = vmul.f32 %v7634, 1.442695
        %v7712 = vpow.pop %v7711
        %v7713 = vmul.f32 %v7635, 1.442695
        %v7714 = vpow.pop %v7713
        %v7715 = vmul.f32 %v7636, 1.442695
        %v7716 = vpow.pop %v7715
        %v7717 = vmul.f32 %v7637, 1.442695
        %v7718 = vpow.pop %v7717
        %v7719 = vmul.f32 %v7638, 1.442695
        %v7720 = vpow.pop %v7719
        %v7721 = vmul.f32 %v7639, 1.442695
        %v7722 = vpow.pop %v7721
        %v7723 = vmul.f32 %v7640, 1.442695
        %v7724 = vpow.pop %v7723
        %v7725 = vmul.f32 %v7641, 1.442695
        %v7726 = vpow.pop %v7725
        %v7727 = vmul.f32 %v7642, 1.442695
        %v7728 = vpow.pop %v7727
        %v7729 = vmul.f32 %v7643, 1.442695
        %v7730 = vpow.pop %v7729
        %v7731 = vmul.f32 %v7644, 1.442695
        %v7732 = vpow.pop %v7731
        %v7733 = vmul.f32 %v7645, 1.442695
        %v7734 = vpow.pop %v7733
        %v7735 = vmul.f32 %v7646, 1.442695
        %v7736 = vpow.pop %v7735
        %v7737 = vmul.f32 %v7647, 1.442695
        %v7738 = vpow.pop %v7737
        %v7739 = vmul.f32 %v7648, 1.442695
        %v7740 = vpow.pop %v7739
        %v7741 = vmul.f32 %v7649, 1.442695
        %v7742 = vpow.pop %v7741
        %v7743 = vmul.f32 %v7650, 1.442695
        %v7744 = vpow.pop %v7743
        %v7745 = vmul.f32 %v7651, 1.442695
        %v7746 = vpow.pop %v7745
        %v7747 = vmul.f32 %v7652, 1.442695
        %v7748 = vpow.pop %v7747
        %v7749 = vsub.f32 %v7686, 1.0
        %v7750 = vsub.f32 %v7688, 1.0
        %v7751 = vsub.f32 %v7690, 1.0
        %v7752 = vsub.f32 %v7692, 1.0
        %v7753 = vsub.f32 %v7694, 1.0
        %v7754 = vsub.f32 %v7696, 1.0
        %v7755 = vsub.f32 %v7698, 1.0
        %v7756 = vsub.f32 %v7700, 1.0
        %v7757 = vsub.f32 %v7702, 1.0
        %v7758 = vsub.f32 %v7704, 1.0
        %v7759 = vsub.f32 %v7706, 1.0
        %v7760 = vsub.f32 %v7708, 1.0
        %v7761 = vsub.f32 %v7710, 1.0
        %v7762 = vsub.f32 %v7712, 1.0
        %v7763 = vsub.f32 %v7714, 1.0
        %v7764 = vsub.f32 %v7716, 1.0
        %v7765 = vsub.f32 %v7718, 1.0
        %v7766 = vsub.f32 %v7720, 1.0
        %v7767 = vsub.f32 %v7722, 1.0
        %v7768 = vsub.f32 %v7724, 1.0
        %v7769 = vsub.f32 %v7726, 1.0
        %v7770 = vsub.f32 %v7728, 1.0
        %v7771 = vsub.f32 %v7730, 1.0
        %v7772 = vsub.f32 %v7732, 1.0
        %v7773 = vsub.f32 %v7734, 1.0
        %v7774 = vsub.f32 %v7736, 1.0
        %v7775 = vsub.f32 %v7738, 1.0
        %v7776 = vsub.f32 %v7740, 1.0
        %v7777 = vsub.f32 %v7742, 1.0
        %v7778 = vsub.f32 %v7744, 1.0
        %v7779 = vsub.f32 %v7746, 1.0
        %v7780 = vsub.f32 %v7748, 1.0
        %v7781 = vmul.f32 %v7749, 1.6732632
        %v7782 = vmul.f32 %v7750, 1.6732632
        %v7783 = vmul.f32 %v7751, 1.6732632
        %v7784 = vmul.f32 %v7752, 1.6732632
        %v7785 = vmul.f32 %v7753, 1.6732632
        %v7786 = vmul.f32 %v7754, 1.6732632
        %v7787 = vmul.f32 %v7755, 1.6732632
        %v7788 = vmul.f32 %v7756, 1.6732632
        %v7789 = vmul.f32 %v7757, 1.6732632
        %v7790 = vmul.f32 %v7758, 1.6732632
        %v7791 = vmul.f32 %v7759, 1.6732632
        %v7792 = vmul.f32 %v7760, 1.6732632
        %v7793 = vmul.f32 %v7761, 1.6732632
        %v7794 = vmul.f32 %v7762, 1.6732632
        %v7795 = vmul.f32 %v7763, 1.6732632
        %v7796 = vmul.f32 %v7764, 1.6732632
        %v7797 = vmul.f32 %v7765, 1.6732632
        %v7798 = vmul.f32 %v7766, 1.6732632
        %v7799 = vmul.f32 %v7767, 1.6732632
        %v7800 = vmul.f32 %v7768, 1.6732632
        %v7801 = vmul.f32 %v7769, 1.6732632
        %v7802 = vmul.f32 %v7770, 1.6732632
        %v7803 = vmul.f32 %v7771, 1.6732632
        %v7804 = vmul.f32 %v7772, 1.6732632
        %v7805 = vmul.f32 %v7773, 1.6732632
        %v7806 = vmul.f32 %v7774, 1.6732632
        %v7807 = vmul.f32 %v7775, 1.6732632
        %v7808 = vmul.f32 %v7776, 1.6732632
        %v7809 = vmul.f32 %v7777, 1.6732632
        %v7810 = vmul.f32 %v7778, 1.6732632
        %v7811 = vmul.f32 %v7779, 1.6732632
        %v7812 = vmul.f32 %v7780, 1.6732632
        %v7813 = vsel %vm7653, %v7621, %v7781
        %v7814 = vsel %vm7654, %v7622, %v7782
        %v7815 = vsel %vm7655, %v7623, %v7783
        %v7816 = vsel %vm7656, %v7624, %v7784
        %v7817 = vsel %vm7657, %v7625, %v7785
        %v7818 = vsel %vm7658, %v7626, %v7786
        %v7819 = vsel %vm7659, %v7627, %v7787
        %v7820 = vsel %vm7660, %v7628, %v7788
        %v7821 = vsel %vm7661, %v7629, %v7789
        %v7822 = vsel %vm7662, %v7630, %v7790
        %v7823 = vsel %vm7663, %v7631, %v7791
        %v7824 = vsel %vm7664, %v7632, %v7792
        %v7825 = vsel %vm7665, %v7633, %v7793
        %v7826 = vsel %vm7666, %v7634, %v7794
        %v7827 = vsel %vm7667, %v7635, %v7795
        %v7828 = vsel %vm7668, %v7636, %v7796
        %v7829 = vsel %vm7669, %v7637, %v7797
        %v7830 = vsel %vm7670, %v7638, %v7798
        %v7831 = vsel %vm7671, %v7639, %v7799
        %v7832 = vsel %vm7672, %v7640, %v7800
        %v7833 = vsel %vm7673, %v7641, %v7801
        %v7834 = vsel %vm7674, %v7642, %v7802
        %v7835 = vsel %vm7675, %v7643, %v7803
        %v7836 = vsel %vm7676, %v7644, %v7804
        %v7837 = vsel %vm7677, %v7645, %v7805
        %v7838 = vsel %vm7678, %v7646, %v7806
        %v7839 = vsel %vm7679, %v7647, %v7807
        %v7840 = vsel %vm7680, %v7648, %v7808
        %v7841 = vsel %vm7681, %v7649, %v7809
        %v7842 = vsel %vm7682, %v7650, %v7810
        %v7843 = vsel %vm7683, %v7651, %v7811
        %v7844 = vsel %vm7684, %v7652, %v7812
        %v7845 = vmul.f32 %v7813, 1.050701
        %v7846 = vmul.f32 %v7814, 1.050701
        %v7847 = vmul.f32 %v7815, 1.050701
        %v7848 = vmul.f32 %v7816, 1.050701
        %v7849 = vmul.f32 %v7817, 1.050701
        %v7850 = vmul.f32 %v7818, 1.050701
        %v7851 = vmul.f32 %v7819, 1.050701
        %v7852 = vmul.f32 %v7820, 1.050701
        %v7853 = vmul.f32 %v7821, 1.050701
        %v7854 = vmul.f32 %v7822, 1.050701
        %v7855 = vmul.f32 %v7823, 1.050701
        %v7856 = vmul.f32 %v7824, 1.050701
        %v7857 = vmul.f32 %v7825, 1.050701
        %v7858 = vmul.f32 %v7826, 1.050701
        %v7859 = vmul.f32 %v7827, 1.050701
        %v7860 = vmul.f32 %v7828, 1.050701
        %v7861 = vmul.f32 %v7829, 1.050701
        %v7862 = vmul.f32 %v7830, 1.050701
        %v7863 = vmul.f32 %v7831, 1.050701
        %v7864 = vmul.f32 %v7832, 1.050701
        %v7865 = vmul.f32 %v7833, 1.050701
        %v7866 = vmul.f32 %v7834, 1.050701
        %v7867 = vmul.f32 %v7835, 1.050701
        %v7868 = vmul.f32 %v7836, 1.050701
        %v7869 = vmul.f32 %v7837, 1.050701
        %v7870 = vmul.f32 %v7838, 1.050701
        %v7871 = vmul.f32 %v7839, 1.050701
        %v7872 = vmul.f32 %v7840, 1.050701
        %v7873 = vmul.f32 %v7841, 1.050701
        %v7874 = vmul.f32 %v7842, 1.050701
        %v7875 = vmul.f32 %v7843, 1.050701
        %v7876 = vmul.f32 %v7844, 1.050701
        %v7877 = vpack.c.bf16 %v7846, %v7845
        %v7878 = vpack.c.bf16 %v7848, %v7847
        %v7879 = vpack.c.bf16 %v7850, %v7849
        %v7880 = vpack.c.bf16 %v7852, %v7851
        %v7881 = vpack.c.bf16 %v7854, %v7853
        %v7882 = vpack.c.bf16 %v7856, %v7855
        %v7883 = vpack.c.bf16 %v7858, %v7857
        %v7884 = vpack.c.bf16 %v7860, %v7859
        %v7885 = vpack.c.bf16 %v7862, %v7861
        %v7886 = vpack.c.bf16 %v7864, %v7863
        %v7887 = vpack.c.bf16 %v7866, %v7865
        %v7888 = vpack.c.bf16 %v7868, %v7867
        %v7889 = vpack.c.bf16 %v7870, %v7869
        %v7890 = vpack.c.bf16 %v7872, %v7871
        %v7891 = vpack.c.bf16 %v7874, %v7873
        %v7892 = vpack.c.bf16 %v7876, %v7875
        %v7893 = vld [vmem:[%s11] sm:$0xf]
        %v7894 = vld [vmem:[%s11 + $0x4] sm:$0xf]
        %v7895 = vld [vmem:[%s11 + $0x8] sm:$0xf]
        %v7896 = vld [vmem:[%s11 + $0xc] sm:$0xf]
        %v7897 = vld [vmem:[%s11 + $0x10] sm:$0xf]
        %v7898 = vld [vmem:[%s11 + $0x14] sm:$0xf]
        %v7899 = vld [vmem:[%s11 + $0x18] sm:$0xf]
        %v7900 = vld [vmem:[%s11 + $0x1c] sm:$0xf]
        %v7901 = vld [vmem:[%s11 + $0x20] sm:$0xf]
        %v7902 = vld [vmem:[%s11 + $0x24] sm:$0xf]
        %v7903 = vld [vmem:[%s11 + $0x28] sm:$0xf]
        %v7904 = vld [vmem:[%s11 + $0x2c] sm:$0xf]
        %v7905 = vld [vmem:[%s11 + $0x30] sm:$0xf]
        %v7906 = vld [vmem:[%s11 + $0x34] sm:$0xf]
        %v7907 = vld [vmem:[%s11 + $0x38] sm:$0xf]
        %v7908 = vld [vmem:[%s11 + $0x3c] sm:$0xf]
        %v7909 = vld [vmem:[%s12] sm:$0x1]
        %v7911 = vperm.slane %v7909, 0
        %v7929 = vunpack.c.l.b16 %v7893
        %v7930 = vunpack.c.l.b16 %v7894
        %v7931 = vunpack.c.l.b16 %v7895
        %v7932 = vunpack.c.l.b16 %v7896
        %v7933 = vunpack.c.l.b16 %v7897
        %v7934 = vunpack.c.l.b16 %v7898
        %v7935 = vunpack.c.l.b16 %v7899
        %v7936 = vunpack.c.l.b16 %v7900
        %v7937 = vunpack.c.l.b16 %v7901
        %v7938 = vunpack.c.l.b16 %v7902
        %v7939 = vunpack.c.l.b16 %v7903
        %v7940 = vunpack.c.l.b16 %v7904
        %v7941 = vunpack.c.l.b16 %v7905
        %v7942 = vunpack.c.l.b16 %v7906
        %v7943 = vunpack.c.l.b16 %v7907
        %v7944 = vunpack.c.l.b16 %v7908
        %v7945 = vpack.c.b16 %v7930, %v7929
        %v7946 = vpack.c.b16 %v7932, %v7931
        %v7947 = vpack.c.b16 %v7934, %v7933
        %v7948 = vpack.c.b16 %v7936, %v7935
        %v7949 = vpack.c.b16 %v7938, %v7937
        %v7950 = vpack.c.b16 %v7940, %v7939
        %v7951 = vpack.c.b16 %v7942, %v7941
        %v7952 = vpack.c.b16 %v7944, %v7943
        %7961 = vmatpush.bf16.msra.mxu0 %v7952
        %7962 = vmatpush.bf16.msra.mxu0 %v7951
        %7963 = vmatpush.bf16.msra.mxu0 %v7950
        %7964 = vmatpush.bf16.msra.mxu0 %v7949
        %7965 = vmatpush.bf16.msra.mxu0 %v7948
        %7966 = vmatpush.bf16.msra.mxu0 %v7947
        %7967 = vmatpush.bf16.msra.mxu0 %v7946
        %7968 = vmatpush.bf16.msra.mxu0 %v7945
        %7969 = vmatmul.bf16.gmra.mxu0 %v7877
        %v7970 = vpop.f32.mrf.mxu0
        %v7971 = vadd.f32 %v7911, %v7970
        %v7972 = vpop.f32.mrf.mxu0
        %v7973 = vadd.f32 %v7911, %v7972
        %7974 = vmatmul.bf16.gmra.mxu0 %v7878
        %v7975 = vpop.f32.mrf.mxu0
        %v7976 = vadd.f32 %v7911, %v7975
        %v7977 = vpop.f32.mrf.mxu0
        %v7978 = vadd.f32 %v7911, %v7977
        %7979 = vmatmul.bf16.gmra.mxu0 %v7879
        %v7980 = vpop.f32.mrf.mxu0
        %v7981 = vadd.f32 %v7911, %v7980
        %v7982 = vpop.f32.mrf.mxu0
        %v7983 = vadd.f32 %v7911, %v7982
        %7984 = vmatmul.bf16.gmra.mxu0 %v7880
        %v7985 = vpop.f32.mrf.mxu0
        %v7986 = vadd.f32 %v7911, %v7985
        %v7987 = vpop.f32.mrf.mxu0
        %v7988 = vadd.f32 %v7911, %v7987
        %7989 = vmatmul.bf16.gmra.mxu0 %v7881
        %v7990 = vpop.f32.mrf.mxu0
        %v7991 = vadd.f32 %v7911, %v7990
        %v7992 = vpop.f32.mrf.mxu0
        %v7993 = vadd.f32 %v7911, %v7992
        %7994 = vmatmul.bf16.gmra.mxu0 %v7882
        %v7995 = vpop.f32.mrf.mxu0
        %v7996 = vadd.f32 %v7911, %v7995
        %v7997 = vpop.f32.mrf.mxu0
        %v7998 = vadd.f32 %v7911, %v7997
        %7999 = vmatmul.bf16.gmra.mxu0 %v7883
        %v8000 = vpop.f32.mrf.mxu0
        %v8001 = vadd.f32 %v7911, %v8000
        %v8002 = vpop.f32.mrf.mxu0
        %v8003 = vadd.f32 %v7911, %v8002
        %8004 = vmatmul.bf16.gmra.mxu0 %v7884
        %v8005 = vpop.f32.mrf.mxu0
        %v8006 = vadd.f32 %v7911, %v8005
        %v8007 = vpop.f32.mrf.mxu0
        %v8008 = vadd.f32 %v7911, %v8007
        %8009 = vmatmul.bf16.gmra.mxu0 %v7885
        %v8010 = vpop.f32.mrf.mxu0
        %v8011 = vadd.f32 %v7911, %v8010
        %v8012 = vpop.f32.mrf.mxu0
        %v8013 = vadd.f32 %v7911, %v8012
        %8014 = vmatmul.bf16.gmra.mxu0 %v7886
        %v8015 = vpop.f32.mrf.mxu0
        %v8016 = vadd.f32 %v7911, %v8015
        %v8017 = vpop.f32.mrf.mxu0
        %v8018 = vadd.f32 %v7911, %v8017
        %8019 = vmatmul.bf16.gmra.mxu0 %v7887
        %v8020 = vpop.f32.mrf.mxu0
        %v8021 = vadd.f32 %v7911, %v8020
        %v8022 = vpop.f32.mrf.mxu0
        %v8023 = vadd.f32 %v7911, %v8022
        %8024 = vmatmul.bf16.gmra.mxu0 %v7888
        %v8025 = vpop.f32.mrf.mxu0
        %v8026 = vadd.f32 %v7911, %v8025
        %v8027 = vpop.f32.mrf.mxu0
        %v8028 = vadd.f32 %v7911, %v8027
        %8029 = vmatmul.bf16.gmra.mxu0 %v7889
        %v8030 = vpop.f32.mrf.mxu0
        %v8031 = vadd.f32 %v7911, %v8030
        %v8032 = vpop.f32.mrf.mxu0
        %v8033 = vadd.f32 %v7911, %v8032
        %8034 = vmatmul.bf16.gmra.mxu0 %v7890
        %v8035 = vpop.f32.mrf.mxu0
        %v8036 = vadd.f32 %v7911, %v8035
        %v8037 = vpop.f32.mrf.mxu0
        %v8038 = vadd.f32 %v7911, %v8037
        %8039 = vmatmul.bf16.gmra.mxu0 %v7891
        %v8040 = vpop.f32.mrf.mxu0
        %v8041 = vadd.f32 %v7911, %v8040
        %v8042 = vpop.f32.mrf.mxu0
        %v8043 = vadd.f32 %v7911, %v8042
        %8044 = vmatmul.bf16.gmra.mxu0 %v7892
        %v8045 = vpop.f32.mrf.mxu0
        %v8046 = vadd.f32 %v7911, %v8045
        %v8047 = vpop.f32.mrf.mxu0
        %v8048 = vadd.f32 %v7911, %v8047
        %8049 = vdwg.mxu0
        %vm8050 = vcmp.gt.f32.partialorder %v7971, 0.0
        %vm8051 = vcmp.gt.f32.partialorder %v7973, 0.0
        %vm8052 = vcmp.gt.f32.partialorder %v7976, 0.0
        %vm8053 = vcmp.gt.f32.partialorder %v7978, 0.0
        %vm8054 = vcmp.gt.f32.partialorder %v7981, 0.0
        %vm8055 = vcmp.gt.f32.partialorder %v7983, 0.0
        %vm8056 = vcmp.gt.f32.partialorder %v7986, 0.0
        %vm8057 = vcmp.gt.f32.partialorder %v7988, 0.0
        %vm8058 = vcmp.gt.f32.partialorder %v7991, 0.0
        %vm8059 = vcmp.gt.f32.partialorder %v7993, 0.0
        %vm8060 = vcmp.gt.f32.partialorder %v7996, 0.0
        %vm8061 = vcmp.gt.f32.partialorder %v7998, 0.0
        %vm8062 = vcmp.gt.f32.partialorder %v8001, 0.0
        %vm8063 = vcmp.gt.f32.partialorder %v8003, 0.0
        %vm8064 = vcmp.gt.f32.partialorder %v8006, 0.0
        %vm8065 = vcmp.gt.f32.partialorder %v8008, 0.0
        %vm8066 = vcmp.gt.f32.partialorder %v8011, 0.0
        %vm8067 = vcmp.gt.f32.partialorder %v8013, 0.0
        %vm8068 = vcmp.gt.f32.partialorder %v8016, 0.0
        %vm8069 = vcmp.gt.f32.partialorder %v8018, 0.0
        %vm8070 = vcmp.gt.f32.partialorder %v8021, 0.0
        %vm8071 = vcmp.gt.f32.partialorder %v8023, 0.0
        %vm8072 = vcmp.gt.f32.partialorder %v8026, 0.0
        %vm8073 = vcmp.gt.f32.partialorder %v8028, 0.0
        %vm8074 = vcmp.gt.f32.partialorder %v8031, 0.0
        %vm8075 = vcmp.gt.f32.partialorder %v8033, 0.0
        %vm8076 = vcmp.gt.f32.partialorder %v8036, 0.0
        %vm8077 = vcmp.gt.f32.partialorder %v8038, 0.0
        %vm8078 = vcmp.gt.f32.partialorder %v8041, 0.0
        %vm8079 = vcmp.gt.f32.partialorder %v8043, 0.0
        %vm8080 = vcmp.gt.f32.partialorder %v8046, 0.0
        %vm8081 = vcmp.gt.f32.partialorder %v8048, 0.0
        %v8082 = vmul.f32 %v7971, 1.442695
        %v8083 = vpow.pop %v8082
        %v8084 = vmul.f32 %v7973, 1.442695
        %v8085 = vpow.pop %v8084
        %v8086 = vmul.f32 %v7976, 1.442695
        %v8087 = vpow.pop %v8086
        %v8088 = vmul.f32 %v7978, 1.442695
        %v8089 = vpow.pop %v8088
        %v8090 = vmul.f32 %v7981, 1.442695
        %v8091 = vpow.pop %v8090
        %v8092 = vmul.f32 %v7983, 1.442695
        %v8093 = vpow.pop %v8092
        %v8094 = vmul.f32 %v7986, 1.442695
        %v8095 = vpow.pop %v8094
        %v8096 = vmul.f32 %v7988, 1.442695
        %v8097 = vpow.pop %v8096
        %v8098 = vmul.f32 %v7991, 1.442695
        %v8099 = vpow.pop %v8098
        %v8100 = vmul.f32 %v7993, 1.442695
        %v8101 = vpow.pop %v8100
        %v8102 = vmul.f32 %v7996, 1.442695
        %v8103 = vpow.pop %v8102
        %v8104 = vmul.f32 %v7998, 1.442695
        %v8105 = vpow.pop %v8104
        %v8106 = vmul.f32 %v8001, 1.442695
        %v8107 = vpow.pop %v8106
        %v8108 = vmul.f32 %v8003, 1.442695
        %v8109 = vpow.pop %v8108
        %v8110 = vmul.f32 %v8006, 1.442695
        %v8111 = vpow.pop %v8110
        %v8112 = vmul.f32 %v8008, 1.442695
        %v8113 = vpow.pop %v8112
        %v8114 = vmul.f32 %v8011, 1.442695
        %v8115 = vpow.pop %v8114
        %v8116 = vmul.f32 %v8013, 1.442695
        %v8117 = vpow.pop %v8116
        %v8118 = vmul.f32 %v8016, 1.442695
        %v8119 = vpow.pop %v8118
        %v8120 = vmul.f32 %v8018, 1.442695
        %v8121 = vpow.pop %v8120
        %v8122 = vmul.f32 %v8021, 1.442695
        %v8123 = vpow.pop %v8122
        %v8124 = vmul.f32 %v8023, 1.442695
        %v8125 = vpow.pop %v8124
        %v8126 = vmul.f32 %v8026, 1.442695
        %v8127 = vpow.pop %v8126
        %v8128 = vmul.f32 %v8028, 1.442695
        %v8129 = vpow.pop %v8128
        %v8130 = vmul.f32 %v8031, 1.442695
        %v8131 = vpow.pop %v8130
        %v8132 = vmul.f32 %v8033, 1.442695
        %v8133 = vpow.pop %v8132
        %v8134 = vmul.f32 %v8036, 1.442695
        %v8135 = vpow.pop %v8134
        %v8136 = vmul.f32 %v8038, 1.442695
        %v8137 = vpow.pop %v8136
        %v8138 = vmul.f32 %v8041, 1.442695
        %v8139 = vpow.pop %v8138
        %v8140 = vmul.f32 %v8043, 1.442695
        %v8141 = vpow.pop %v8140
        %v8142 = vmul.f32 %v8046, 1.442695
        %v8143 = vpow.pop %v8142
        %v8144 = vmul.f32 %v8048, 1.442695
        %v8145 = vpow.pop %v8144
        %v8146 = vsub.f32 %v8083, 1.0
        %v8147 = vsub.f32 %v8085, 1.0
        %v8148 = vsub.f32 %v8087, 1.0
        %v8149 = vsub.f32 %v8089, 1.0
        %v8150 = vsub.f32 %v8091, 1.0
        %v8151 = vsub.f32 %v8093, 1.0
        %v8152 = vsub.f32 %v8095, 1.0
        %v8153 = vsub.f32 %v8097, 1.0
        %v8154 = vsub.f32 %v8099, 1.0
        %v8155 = vsub.f32 %v8101, 1.0
        %v8156 = vsub.f32 %v8103, 1.0
        %v8157 = vsub.f32 %v8105, 1.0
        %v8158 = vsub.f32 %v8107, 1.0
        %v8159 = vsub.f32 %v8109, 1.0
        %v8160 = vsub.f32 %v8111, 1.0
        %v8161 = vsub.f32 %v8113, 1.0
        %v8162 = vsub.f32 %v8115, 1.0
        %v8163 = vsub.f32 %v8117, 1.0
        %v8164 = vsub.f32 %v8119, 1.0
        %v8165 = vsub.f32 %v8121, 1.0
        %v8166 = vsub.f32 %v8123, 1.0
        %v8167 = vsub.f32 %v8125, 1.0
        %v8168 = vsub.f32 %v8127, 1.0
        %v8169 = vsub.f32 %v8129, 1.0
        %v8170 = vsub.f32 %v8131, 1.0
        %v8171 = vsub.f32 %v8133, 1.0
        %v8172 = vsub.f32 %v8135, 1.0
        %v8173 = vsub.f32 %v8137, 1.0
        %v8174 = vsub.f32 %v8139, 1.0
        %v8175 = vsub.f32 %v8141, 1.0
        %v8176 = vsub.f32 %v8143, 1.0
        %v8177 = vsub.f32 %v8145, 1.0
        %v8178 = vmul.f32 %v8146, 1.6732632
        %v8179 = vmul.f32 %v8147, 1.6732632
        %v8180 = vmul.f32 %v8148, 1.6732632
        %v8181 = vmul.f32 %v8149, 1.6732632
        %v8182 = vmul.f32 %v8150, 1.6732632
        %v8183 = vmul.f32 %v8151, 1.6732632
        %v8184 = vmul.f32 %v8152, 1.6732632
        %v8185 = vmul.f32 %v8153, 1.6732632
        %v8186 = vmul.f32 %v8154, 1.6732632
        %v8187 = vmul.f32 %v8155, 1.6732632
        %v8188 = vmul.f32 %v8156, 1.6732632
        %v8189 = vmul.f32 %v8157, 1.6732632
        %v8190 = vmul.f32 %v8158, 1.6732632
        %v8191 = vmul.f32 %v8159, 1.6732632
        %v8192 = vmul.f32 %v8160, 1.6732632
        %v8193 = vmul.f32 %v8161, 1.6732632
        %v8194 = vmul.f32 %v8162, 1.6732632
        %v8195 = vmul.f32 %v8163, 1.6732632
        %v8196 = vmul.f32 %v8164, 1.6732632
        %v8197 = vmul.f32 %v8165, 1.6732632
        %v8198 = vmul.f32 %v8166, 1.6732632
        %v8199 = vmul.f32 %v8167, 1.6732632
        %v8200 = vmul.f32 %v8168, 1.6732632
        %v8201 = vmul.f32 %v8169, 1.6732632
        %v8202 = vmul.f32 %v8170, 1.6732632
        %v8203 = vmul.f32 %v8171, 1.6732632
        %v8204 = vmul.f32 %v8172, 1.6732632
        %v8205 = vmul.f32 %v8173, 1.6732632
        %v8206 = vmul.f32 %v8174, 1.6732632
        %v8207 = vmul.f32 %v8175, 1.6732632
        %v8208 = vmul.f32 %v8176, 1.6732632
        %v8209 = vmul.f32 %v8177, 1.6732632
        %v8210 = vsel %vm8050, %v7971, %v8178
        %v8211 = vsel %vm8051, %v7973, %v8179
        %v8212 = vsel %vm8052, %v7976, %v8180
        %v8213 = vsel %vm8053, %v7978, %v8181
        %v8214 = vsel %vm8054, %v7981, %v8182
        %v8215 = vsel %vm8055, %v7983, %v8183
        %v8216 = vsel %vm8056, %v7986, %v8184
        %v8217 = vsel %vm8057, %v7988, %v8185
        %v8218 = vsel %vm8058, %v7991, %v8186
        %v8219 = vsel %vm8059, %v7993, %v8187
        %v8220 = vsel %vm8060, %v7996, %v8188
        %v8221 = vsel %vm8061, %v7998, %v8189
        %v8222 = vsel %vm8062, %v8001, %v8190
        %v8223 = vsel %vm8063, %v8003, %v8191
        %v8224 = vsel %vm8064, %v8006, %v8192
        %v8225 = vsel %vm8065, %v8008, %v8193
        %v8226 = vsel %vm8066, %v8011, %v8194
        %v8227 = vsel %vm8067, %v8013, %v8195
        %v8228 = vsel %vm8068, %v8016, %v8196
        %v8229 = vsel %vm8069, %v8018, %v8197
        %v8230 = vsel %vm8070, %v8021, %v8198
        %v8231 = vsel %vm8071, %v8023, %v8199
        %v8232 = vsel %vm8072, %v8026, %v8200
        %v8233 = vsel %vm8073, %v8028, %v8201
        %v8234 = vsel %vm8074, %v8031, %v8202
        %v8235 = vsel %vm8075, %v8033, %v8203
        %v8236 = vsel %vm8076, %v8036, %v8204
        %v8237 = vsel %vm8077, %v8038, %v8205
        %v8238 = vsel %vm8078, %v8041, %v8206
        %v8239 = vsel %vm8079, %v8043, %v8207
        %v8240 = vsel %vm8080, %v8046, %v8208
        %v8241 = vsel %vm8081, %v8048, %v8209
        %v8242 = vmul.f32 %v8210, 1.050701
        %v8243 = vmul.f32 %v8211, 1.050701
        %v8244 = vmul.f32 %v8212, 1.050701
        %v8245 = vmul.f32 %v8213, 1.050701
        %v8246 = vmul.f32 %v8214, 1.050701
        %v8247 = vmul.f32 %v8215, 1.050701
        %v8248 = vmul.f32 %v8216, 1.050701
        %v8249 = vmul.f32 %v8217, 1.050701
        %v8250 = vmul.f32 %v8218, 1.050701
        %v8251 = vmul.f32 %v8219, 1.050701
        %v8252 = vmul.f32 %v8220, 1.050701
        %v8253 = vmul.f32 %v8221, 1.050701
        %v8254 = vmul.f32 %v8222, 1.050701
        %v8255 = vmul.f32 %v8223, 1.050701
        %v8256 = vmul.f32 %v8224, 1.050701
        %v8257 = vmul.f32 %v8225, 1.050701
        %v8258 = vmul.f32 %v8226, 1.050701
        %v8259 = vmul.f32 %v8227, 1.050701
        %v8260 = vmul.f32 %v8228, 1.050701
        %v8261 = vmul.f32 %v8229, 1.050701
        %v8262 = vmul.f32 %v8230, 1.050701
        %v8263 = vmul.f32 %v8231, 1.050701
        %v8264 = vmul.f32 %v8232, 1.050701
        %v8265 = vmul.f32 %v8233, 1.050701
        %v8266 = vmul.f32 %v8234, 1.050701
        %v8267 = vmul.f32 %v8235, 1.050701
        %v8268 = vmul.f32 %v8236, 1.050701
        %v8269 = vmul.f32 %v8237, 1.050701
        %v8270 = vmul.f32 %v8238, 1.050701
        %v8271 = vmul.f32 %v8239, 1.050701
        %v8272 = vmul.f32 %v8240, 1.050701
        %v8273 = vmul.f32 %v8241, 1.050701
        %v8274 = vpack.c.bf16 %v8243, %v8242
        %v8275 = vpack.c.bf16 %v8245, %v8244
        %v8276 = vpack.c.bf16 %v8247, %v8246
        %v8277 = vpack.c.bf16 %v8249, %v8248
        %v8278 = vpack.c.bf16 %v8251, %v8250
        %v8279 = vpack.c.bf16 %v8253, %v8252
        %v8280 = vpack.c.bf16 %v8255, %v8254
        %v8281 = vpack.c.bf16 %v8257, %v8256
        %v8282 = vpack.c.bf16 %v8259, %v8258
        %v8283 = vpack.c.bf16 %v8261, %v8260
        %v8284 = vpack.c.bf16 %v8263, %v8262
        %v8285 = vpack.c.bf16 %v8265, %v8264
        %v8286 = vpack.c.bf16 %v8267, %v8266
        %v8287 = vpack.c.bf16 %v8269, %v8268
        %v8288 = vpack.c.bf16 %v8271, %v8270
        %v8289 = vpack.c.bf16 %v8273, %v8272
        %v8290 = vld [vmem:[%s13] sm:$0xf]
        %v8291 = vld [vmem:[%s13 + $0x4] sm:$0xf]
        %v8292 = vld [vmem:[%s13 + $0x8] sm:$0xf]
        %v8293 = vld [vmem:[%s13 + $0xc] sm:$0xf]
        %v8294 = vld [vmem:[%s13 + $0x10] sm:$0xf]
        %v8295 = vld [vmem:[%s13 + $0x14] sm:$0xf]
        %v8296 = vld [vmem:[%s13 + $0x18] sm:$0xf]
        %v8297 = vld [vmem:[%s13 + $0x1c] sm:$0xf]
        %v8298 = vld [vmem:[%s13 + $0x20] sm:$0xf]
        %v8299 = vld [vmem:[%s13 + $0x24] sm:$0xf]
        %v8300 = vld [vmem:[%s13 + $0x28] sm:$0xf]
        %v8301 = vld [vmem:[%s13 + $0x2c] sm:$0xf]
        %v8302 = vld [vmem:[%s13 + $0x30] sm:$0xf]
        %v8303 = vld [vmem:[%s13 + $0x34] sm:$0xf]
        %v8304 = vld [vmem:[%s13 + $0x38] sm:$0xf]
        %v8305 = vld [vmem:[%s13 + $0x3c] sm:$0xf]
        %v8306 = vld [vmem:[%s14] sm:$0x1]
        %v8308 = vperm.slane %v8306, 0
        %v8326 = vunpack.c.l.b16 %v8290
        %v8327 = vunpack.c.l.b16 %v8291
        %v8328 = vunpack.c.l.b16 %v8292
        %v8329 = vunpack.c.l.b16 %v8293
        %v8330 = vunpack.c.l.b16 %v8294
        %v8331 = vunpack.c.l.b16 %v8295
        %v8332 = vunpack.c.l.b16 %v8296
        %v8333 = vunpack.c.l.b16 %v8297
        %v8334 = vunpack.c.l.b16 %v8298
        %v8335 = vunpack.c.l.b16 %v8299
        %v8336 = vunpack.c.l.b16 %v8300
        %v8337 = vunpack.c.l.b16 %v8301
        %v8338 = vunpack.c.l.b16 %v8302
        %v8339 = vunpack.c.l.b16 %v8303
        %v8340 = vunpack.c.l.b16 %v8304
        %v8341 = vunpack.c.l.b16 %v8305
        %v8342 = vpack.c.b16 %v8327, %v8326
        %v8343 = vpack.c.b16 %v8329, %v8328
        %v8344 = vpack.c.b16 %v8331, %v8330
        %v8345 = vpack.c.b16 %v8333, %v8332
        %v8346 = vpack.c.b16 %v8335, %v8334
        %v8347 = vpack.c.b16 %v8337, %v8336
        %v8348 = vpack.c.b16 %v8339, %v8338
        %v8349 = vpack.c.b16 %v8341, %v8340
        %8358 = vmatpush.bf16.msra.mxu0 %v8349
        %8359 = vmatpush.bf16.msra.mxu0 %v8348
        %8360 = vmatpush.bf16.msra.mxu0 %v8347
        %8361 = vmatpush.bf16.msra.mxu0 %v8346
        %8362 = vmatpush.bf16.msra.mxu0 %v8345
        %8363 = vmatpush.bf16.msra.mxu0 %v8344
        %8364 = vmatpush.bf16.msra.mxu0 %v8343
        %8365 = vmatpush.bf16.msra.mxu0 %v8342
        %8366 = vmatmul.bf16.gmra.mxu0 %v8274
        %v8367 = vpop.f32.mrf.mxu0
        %v8368 = vadd.f32 %v8308, %v8367
        %v8369 = vpop.f32.mrf.mxu0
        %v8370 = vadd.f32 %v8308, %v8369
        %8371 = vmatmul.bf16.gmra.mxu0 %v8275
        %v8372 = vpop.f32.mrf.mxu0
        %v8373 = vadd.f32 %v8308, %v8372
        %v8374 = vpop.f32.mrf.mxu0
        %v8375 = vadd.f32 %v8308, %v8374
        %8376 = vmatmul.bf16.gmra.mxu0 %v8276
        %v8377 = vpop.f32.mrf.mxu0
        %v8378 = vadd.f32 %v8308, %v8377
        %v8379 = vpop.f32.mrf.mxu0
        %v8380 = vadd.f32 %v8308, %v8379
        %8381 = vmatmul.bf16.gmra.mxu0 %v8277
        %v8382 = vpop.f32.mrf.mxu0
        %v8383 = vadd.f32 %v8308, %v8382
        %v8384 = vpop.f32.mrf.mxu0
        %v8385 = vadd.f32 %v8308, %v8384
        %8386 = vmatmul.bf16.gmra.mxu0 %v8278
        %v8387 = vpop.f32.mrf.mxu0
        %v8388 = vadd.f32 %v8308, %v8387
        %v8389 = vpop.f32.mrf.mxu0
        %v8390 = vadd.f32 %v8308, %v8389
        %8391 = vmatmul.bf16.gmra.mxu0 %v8279
        %v8392 = vpop.f32.mrf.mxu0
        %v8393 = vadd.f32 %v8308, %v8392
        %v8394 = vpop.f32.mrf.mxu0
        %v8395 = vadd.f32 %v8308, %v8394
        %8396 = vmatmul.bf16.gmra.mxu0 %v8280
        %v8397 = vpop.f32.mrf.mxu0
        %v8398 = vadd.f32 %v8308, %v8397
        %v8399 = vpop.f32.mrf.mxu0
        %v8400 = vadd.f32 %v8308, %v8399
        %8401 = vmatmul.bf16.gmra.mxu0 %v8281
        %v8402 = vpop.f32.mrf.mxu0
        %v8403 = vadd.f32 %v8308, %v8402
        %v8404 = vpop.f32.mrf.mxu0
        %v8405 = vadd.f32 %v8308, %v8404
        %8406 = vmatmul.bf16.gmra.mxu0 %v8282
        %v8407 = vpop.f32.mrf.mxu0
        %v8408 = vadd.f32 %v8308, %v8407
        %v8409 = vpop.f32.mrf.mxu0
        %v8410 = vadd.f32 %v8308, %v8409
        %8411 = vmatmul.bf16.gmra.mxu0 %v8283
        %v8412 = vpop.f32.mrf.mxu0
        %v8413 = vadd.f32 %v8308, %v8412
        %v8414 = vpop.f32.mrf.mxu0
        %v8415 = vadd.f32 %v8308, %v8414
        %8416 = vmatmul.bf16.gmra.mxu0 %v8284
        %v8417 = vpop.f32.mrf.mxu0
        %v8418 = vadd.f32 %v8308, %v8417
        %v8419 = vpop.f32.mrf.mxu0
        %v8420 = vadd.f32 %v8308, %v8419
        %8421 = vmatmul.bf16.gmra.mxu0 %v8285
        %v8422 = vpop.f32.mrf.mxu0
        %v8423 = vadd.f32 %v8308, %v8422
        %v8424 = vpop.f32.mrf.mxu0
        %v8425 = vadd.f32 %v8308, %v8424
        %8426 = vmatmul.bf16.gmra.mxu0 %v8286
        %v8427 = vpop.f32.mrf.mxu0
        %v8428 = vadd.f32 %v8308, %v8427
        %v8429 = vpop.f32.mrf.mxu0
        %v8430 = vadd.f32 %v8308, %v8429
        %8431 = vmatmul.bf16.gmra.mxu0 %v8287
        %v8432 = vpop.f32.mrf.mxu0
        %v8433 = vadd.f32 %v8308, %v8432
        %v8434 = vpop.f32.mrf.mxu0
        %v8435 = vadd.f32 %v8308, %v8434
        %8436 = vmatmul.bf16.gmra.mxu0 %v8288
        %v8437 = vpop.f32.mrf.mxu0
        %v8438 = vadd.f32 %v8308, %v8437
        %v8439 = vpop.f32.mrf.mxu0
        %v8440 = vadd.f32 %v8308, %v8439
        %8441 = vmatmul.bf16.gmra.mxu0 %v8289
        %v8442 = vpop.f32.mrf.mxu0
        %v8443 = vadd.f32 %v8308, %v8442
        %v8444 = vpop.f32.mrf.mxu0
        %v8445 = vadd.f32 %v8308, %v8444
        %8446 = vdwg.mxu0
        %vm8447 = vcmask 31744
        %8448 = vst.msk [vmem:[%s496] sm:$0xff] %vm8447, %v8368
        %8449 = vst.msk [vmem:[%s496 + $0x8] sm:$0xff] %vm8447, %v8370
        %8450 = vst.msk [vmem:[%s496 + $0x10] sm:$0xff] %vm8447, %v8373
        %8451 = vst.msk [vmem:[%s496 + $0x18] sm:$0xff] %vm8447, %v8375
        %8452 = vst.msk [vmem:[%s496 + $0x20] sm:$0xff] %vm8447, %v8378
        %8453 = vst.msk [vmem:[%s496 + $0x28] sm:$0xff] %vm8447, %v8380
        %8454 = vst.msk [vmem:[%s496 + $0x30] sm:$0xff] %vm8447, %v8383
        %8455 = vst.msk [vmem:[%s496 + $0x38] sm:$0xff] %vm8447, %v8385
        %8456 = vst.msk [vmem:[%s496 + $0x40] sm:$0xff] %vm8447, %v8388
        %8457 = vst.msk [vmem:[%s496 + $0x48] sm:$0xff] %vm8447, %v8390
        %8458 = vst.msk [vmem:[%s496 + $0x50] sm:$0xff] %vm8447, %v8393
        %8459 = vst.msk [vmem:[%s496 + $0x58] sm:$0xff] %vm8447, %v8395
        %8460 = vst.msk [vmem:[%s496 + $0x60] sm:$0xff] %vm8447, %v8398
        %8461 = vst.msk [vmem:[%s496 + $0x68] sm:$0xff] %vm8447, %v8400
        %8462 = vst.msk [vmem:[%s496 + $0x70] sm:$0xff] %vm8447, %v8403
        %8463 = vst.msk [vmem:[%s496 + $0x78] sm:$0xff] %vm8447, %v8405
        %8464 = vst.msk [vmem:[%s496 + $0x80] sm:$0xff] %vm8447, %v8408
        %8465 = vst.msk [vmem:[%s496 + $0x88] sm:$0xff] %vm8447, %v8410
        %8466 = vst.msk [vmem:[%s496 + $0x90] sm:$0xff] %vm8447, %v8413
        %8467 = vst.msk [vmem:[%s496 + $0x98] sm:$0xff] %vm8447, %v8415
        %8468 = vst.msk [vmem:[%s496 + $0xa0] sm:$0xff] %vm8447, %v8418
        %8469 = vst.msk [vmem:[%s496 + $0xa8] sm:$0xff] %vm8447, %v8420
        %8470 = vst.msk [vmem:[%s496 + $0xb0] sm:$0xff] %vm8447, %v8423
        %8471 = vst.msk [vmem:[%s496 + $0xb8] sm:$0xff] %vm8447, %v8425
        %8472 = vst.msk [vmem:[%s496 + $0xc0] sm:$0xff] %vm8447, %v8428
        %8473 = vst.msk [vmem:[%s496 + $0xc8] sm:$0xff] %vm8447, %v8430
        %8474 = vst.msk [vmem:[%s496 + $0xd0] sm:$0xff] %vm8447, %v8433
        %8475 = vst.msk [vmem:[%s496 + $0xd8] sm:$0xff] %vm8447, %v8435
        %8476 = vst.msk [vmem:[%s496 + $0xe0] sm:$0xff] %vm8447, %v8438
        %8477 = vst.msk [vmem:[%s496 + $0xe8] sm:$0xff] %vm8447, %v8440
        %8478 = vst.msk [vmem:[%s496 + $0xf0] sm:$0xff] %vm8447, %v8443
        %8479 = vst.msk [vmem:[%s496 + $0xf8] sm:$0xff] %vm8447, %v8445
        %s8480 = sand.u32 %s354, 1
        %s8481 = sand.u32 %s354, 1
        %s8482 = smul.addr %s8481, 256
        %s8483 = scalar_lea.vmem [#allocation2], %s8482
        // Predicated region
        $region81: #{tpu_custom_call.1} parent=79 // pred_check
          %p8484 = pneg %p364
        $region82: #{tpu_custom_call.1} parent=79 // pred_check_branch
          %8486 = sbr.rel (%p8484) target = $region84
        $region83: #{tpu_custom_call.1} parent=79 // pred_region
          %s8487 = smul.u32 32, %s26
          %s8488 = ssub.s32 63, %s8487
          %p8489 = scmp.lt.s32.totalorder %s8488, 32
          %s8490 = scalar_select %p8489, %s8488, 32
          %s8491 = smul.u32 8, %s8490
          %p8492 = scmp.ne.s32.totalorder 0, %s8491
          %s8493 = smul.addr %s8487, 8
          %s8494 = scalar_lea.vmem %s15, %s8493
          // Predicated region
          $region85: #{tpu_custom_call.1} parent=83 // pred_check
            %p8495 = pneg %p8492
          $region86: #{tpu_custom_call.1} parent=83 // pred_check_branch
            %8497 = sbr.rel (%p8495) target = $region88
          $region87: #{tpu_custom_call.1} parent=83 // pred_region
            // Predicated region
            $region89: #{tpu_custom_call.1} parent=87 // pred_check
              _
            $region90: #{tpu_custom_call.1} parent=87 // pred_check_branch
              %8499 = sbr.rel (0) target = $region92
            $region91: #{tpu_custom_call.1} parent=87 // pred_region
              // Predicated region
              $region111: #{tpu_custom_call.1} parent=91 // pred_check
                _
              $region112: #{tpu_custom_call.1} parent=91 // pred_check_branch
                %8611 = sbr.rel (0) target = $region114
              $region113: #{tpu_custom_call.1} parent=91 // pred_region
                %s8612 = sshrl.u32 %s8490, 5
                // While loop
                $region115: #{tpu_custom_call.1} parent=113 // loop_pre_header
                  _
                $region116: #{tpu_custom_call.1} parent=113 // loop_header
                  %s8614 = sphi 0, %s8616
                  %p8615 = scmp.ge.s32.totalorder %s8614, %s8612
                  %s8619 = sphi 0, %s8688
                  %s8620 = sphi %s8483, %s8691
                  %s8621 = sphi %s8494, %s8692
                $region117: #{tpu_custom_call.1} parent=113 // loop_header_branch
                  %8618 = sbr.rel (%p8615) target = $region121
                $region118: #{tpu_custom_call.1} parent=113 // loop_body
                  %v8622 = vld [vmem:[%s8620] sm:$0xff]
                  %8623 = vst [vmem:[%s8621] sm:$0xff] %v8622
                  %v8624 = vld [vmem:[%s8620 + $0x8] sm:$0xff]
                  %8625 = vst [vmem:[%s8621 + $0x8] sm:$0xff] %v8624
                  %v8626 = vld [vmem:[%s8620 + $0x10] sm:$0xff]
                  %8627 = vst [vmem:[%s8621 + $0x10] sm:$0xff] %v8626
                  %v8628 = vld [vmem:[%s8620 + $0x18] sm:$0xff]
                  %8629 = vst [vmem:[%s8621 + $0x18] sm:$0xff] %v8628
                  %v8630 = vld [vmem:[%s8620 + $0x20] sm:$0xff]
                  %8631 = vst [vmem:[%s8621 + $0x20] sm:$0xff] %v8630
                  %v8632 = vld [vmem:[%s8620 + $0x28] sm:$0xff]
                  %8633 = vst [vmem:[%s8621 + $0x28] sm:$0xff] %v8632
                  %v8634 = vld [vmem:[%s8620 + $0x30] sm:$0xff]
                  %8635 = vst [vmem:[%s8621 + $0x30] sm:$0xff] %v8634
                  %v8636 = vld [vmem:[%s8620 + $0x38] sm:$0xff]
                  %8637 = vst [vmem:[%s8621 + $0x38] sm:$0xff] %v8636
                  %v8638 = vld [vmem:[%s8620 + $0x40] sm:$0xff]
                  %8639 = vst [vmem:[%s8621 + $0x40] sm:$0xff] %v8638
                  %v8640 = vld [vmem:[%s8620 + $0x48] sm:$0xff]
                  %8641 = vst [vmem:[%s8621 + $0x48] sm:$0xff] %v8640
                  %v8642 = vld [vmem:[%s8620 + $0x50] sm:$0xff]
                  %8643 = vst [vmem:[%s8621 + $0x50] sm:$0xff] %v8642
                  %v8644 = vld [vmem:[%s8620 + $0x58] sm:$0xff]
                  %8645 = vst [vmem:[%s8621 + $0x58] sm:$0xff] %v8644
                  %v8646 = vld [vmem:[%s8620 + $0x60] sm:$0xff]
                  %8647 = vst [vmem:[%s8621 + $0x60] sm:$0xff] %v8646
                  %v8648 = vld [vmem:[%s8620 + $0x68] sm:$0xff]
                  %8649 = vst [vmem:[%s8621 + $0x68] sm:$0xff] %v8648
                  %v8650 = vld [vmem:[%s8620 + $0x70] sm:$0xff]
                  %8651 = vst [vmem:[%s8621 + $0x70] sm:$0xff] %v8650
                  %v8652 = vld [vmem:[%s8620 + $0x78] sm:$0xff]
                  %8653 = vst [vmem:[%s8621 + $0x78] sm:$0xff] %v8652
                  %v8654 = vld [vmem:[%s8620 + $0x80] sm:$0xff]
                  %8655 = vst [vmem:[%s8621 + $0x80] sm:$0xff] %v8654
                  %v8656 = vld [vmem:[%s8620 + $0x88] sm:$0xff]
                  %8657 = vst [vmem:[%s8621 + $0x88] sm:$0xff] %v8656
                  %v8658 = vld [vmem:[%s8620 + $0x90] sm:$0xff]
                  %8659 = vst [vmem:[%s8621 + $0x90] sm:$0xff] %v8658
                  %v8660 = vld [vmem:[%s8620 + $0x98] sm:$0xff]
                  %8661 = vst [vmem:[%s8621 + $0x98] sm:$0xff] %v8660
                  %v8662 = vld [vmem:[%s8620 + $0xa0] sm:$0xff]
                  %8663 = vst [vmem:[%s8621 + $0xa0] sm:$0xff] %v8662
                  %v8664 = vld [vmem:[%s8620 + $0xa8] sm:$0xff]
                  %8665 = vst [vmem:[%s8621 + $0xa8] sm:$0xff] %v8664
                  %v8666 = vld [vmem:[%s8620 + $0xb0] sm:$0xff]
                  %8667 = vst [vmem:[%s8621 + $0xb0] sm:$0xff] %v8666
                  %v8668 = vld [vmem:[%s8620 + $0xb8] sm:$0xff]
                  %8669 = vst [vmem:[%s8621 + $0xb8] sm:$0xff] %v8668
                  %v8670 = vld [vmem:[%s8620 + $0xc0] sm:$0xff]
                  %8671 = vst [vmem:[%s8621 + $0xc0] sm:$0xff] %v8670
                  %v8672 = vld [vmem:[%s8620 + $0xc8] sm:$0xff]
                  %8673 = vst [vmem:[%s8621 + $0xc8] sm:$0xff] %v8672
                  %v8674 = vld [vmem:[%s8620 + $0xd0] sm:$0xff]
                  %8675 = vst [vmem:[%s8621 + $0xd0] sm:$0xff] %v8674
                  %v8676 = vld [vmem:[%s8620 + $0xd8] sm:$0xff]
                  %8677 = vst [vmem:[%s8621 + $0xd8] sm:$0xff] %v8676
                  %v8678 = vld [vmem:[%s8620 + $0xe0] sm:$0xff]
                  %8679 = vst [vmem:[%s8621 + $0xe0] sm:$0xff] %v8678
                  %v8680 = vld [vmem:[%s8620 + $0xe8] sm:$0xff]
                  %8681 = vst [vmem:[%s8621 + $0xe8] sm:$0xff] %v8680
                  %v8682 = vld [vmem:[%s8620 + $0xf0] sm:$0xff]
                  %8683 = vst [vmem:[%s8621 + $0xf0] sm:$0xff] %v8682
                  %v8684 = vld [vmem:[%s8620 + $0xf8] sm:$0xff]
                  %8685 = vst [vmem:[%s8621 + $0xf8] sm:$0xff] %v8684
                  %s8686 = sadd.s32 1, %s8619
                  %p8687 = scmp.ge.s32.totalorder %s8686, %s8612
                  %s8688 = scalar_select %p8687, 0, %s8686
                  %s8689 = smul.u32 %s8688, 256
                  %s8690 = smul.u32 %s8688, 256
                  %s8691 = scalar_lea.vmem %s8483, %s8689 [#allocation2]
                  %s8692 = scalar_lea.vmem %s8494, %s8690
                $region119: #{tpu_custom_call.1} parent=113 // loop_footer
                  %s8616 = sadd.s32 %s8614, 1
                $region120: #{tpu_custom_call.1} parent=113 // loop_footer_branch
                  %8613 = sbr.rel target = $region116
                $region121: #{tpu_custom_call.1} parent=113 // loop_exit
                  _
                %s8693 = sshrl.u32 %s8490, 5
                %s8694 = sand.u32 %s8490, 31
                %s8695 = smul.u32 %s8693, 32
                %s8696 = smul.u32 8, %s8695
                %s8697 = scalar_lea.vmem %s8483, %s8696 [#allocation2]
                %s8698 = smul.u32 8, %s8695
                %s8699 = scalar_lea.vmem %s8494, %s8698
                // While loop
                $region122: #{tpu_custom_call.1} parent=113 // loop_pre_header
                  _
                $region123: #{tpu_custom_call.1} parent=113 // loop_header
                  %s8701 = sphi 0, %s8703
                  %p8702 = scmp.ge.s32.totalorder %s8701, %s8694
                  %s8706 = sphi 0, %s8713
                  %s8707 = sphi %s8697, %s8716
                  %s8708 = sphi %s8699, %s8717
                $region124: #{tpu_custom_call.1} parent=113 // loop_header_branch
                  %8705 = sbr.rel (%p8702) target = $region128
                $region125: #{tpu_custom_call.1} parent=113 // loop_body
                  %v8709 = vld [vmem:[%s8707] sm:$0xff]
                  %8710 = vst [vmem:[%s8708] sm:$0xff] %v8709
                  %s8711 = sadd.s32 1, %s8706
                  %p8712 = scmp.ge.s32.totalorder %s8711, %s8694
                  %s8713 = scalar_select %p8712, 0, %s8711
                  %s8714 = smul.u32 %s8713, 8
                  %s8715 = smul.u32 %s8713, 8
                  %s8716 = scalar_lea.vmem %s8697, %s8714 [#allocation2]
                  %s8717 = scalar_lea.vmem %s8699, %s8715
                $region126: #{tpu_custom_call.1} parent=113 // loop_footer
                  %s8703 = sadd.s32 %s8701, 1
                $region127: #{tpu_custom_call.1} parent=113 // loop_footer_branch
                  %8700 = sbr.rel target = $region123
                $region128: #{tpu_custom_call.1} parent=113 // loop_exit
                  _
              $region114: #{tpu_custom_call.1} parent=91 // pred_fallthru
                _
              // Predicated region
              $region129: #{tpu_custom_call.1} parent=91 // pred_check
                _
              $region130: #{tpu_custom_call.1} parent=91 // pred_check_branch
                %8719 = sbr.rel target = $region132
              $region131: #{tpu_custom_call.1} parent=91 // pred_region
                _
              $region132: #{tpu_custom_call.1} parent=91 // pred_fallthru
                _
            $region92: #{tpu_custom_call.1} parent=87 // pred_fallthru
              _
            // Predicated region
            $region93: #{tpu_custom_call.1} parent=87 // pred_check
              _
            $region94: #{tpu_custom_call.1} parent=87 // pred_check_branch
              %8501 = sbr.rel target = $region96
            $region95: #{tpu_custom_call.1} parent=87 // pred_region
              %s8503 = ssub.s32 256, 1
              %s8504 = sshrl.u32 %s8490, 5
              // While loop
              $region97: #{tpu_custom_call.1} parent=95 // loop_pre_header
                _
              $region98: #{tpu_custom_call.1} parent=95 // loop_header
                %s8506 = sphi 0, %s8508
                %p8507 = scmp.ge.s32.totalorder %s8506, %s8504
                %s8511 = sphi 0, %s8580
                %s8512 = sphi %s8483, %s8583
                %s8513 = sphi %s8494, %s8584
              $region99: #{tpu_custom_call.1} parent=95 // loop_header_branch
                %8510 = sbr.rel (%p8507) target = $region103
              $region100: #{tpu_custom_call.1} parent=95 // loop_body
                %v8514 = vld [vmem:[%s8512] sm:%s8503]
                %8515 = vst [vmem:[%s8513] sm:%s8503] %v8514
                %v8516 = vld [vmem:[%s8512 + $0x8] sm:%s8503]
                %8517 = vst [vmem:[%s8513 + $0x8] sm:%s8503] %v8516
                %v8518 = vld [vmem:[%s8512 + $0x10] sm:%s8503]
                %8519 = vst [vmem:[%s8513 + $0x10] sm:%s8503] %v8518
                %v8520 = vld [vmem:[%s8512 + $0x18] sm:%s8503]
                %8521 = vst [vmem:[%s8513 + $0x18] sm:%s8503] %v8520
                %v8522 = vld [vmem:[%s8512 + $0x20] sm:%s8503]
                %8523 = vst [vmem:[%s8513 + $0x20] sm:%s8503] %v8522
                %v8524 = vld [vmem:[%s8512 + $0x28] sm:%s8503]
                %8525 = vst [vmem:[%s8513 + $0x28] sm:%s8503] %v8524
                %v8526 = vld [vmem:[%s8512 + $0x30] sm:%s8503]
                %8527 = vst [vmem:[%s8513 + $0x30] sm:%s8503] %v8526
                %v8528 = vld [vmem:[%s8512 + $0x38] sm:%s8503]
                %8529 = vst [vmem:[%s8513 + $0x38] sm:%s8503] %v8528
                %v8530 = vld [vmem:[%s8512 + $0x40] sm:%s8503]
                %8531 = vst [vmem:[%s8513 + $0x40] sm:%s8503] %v8530
                %v8532 = vld [vmem:[%s8512 + $0x48] sm:%s8503]
                %8533 = vst [vmem:[%s8513 + $0x48] sm:%s8503] %v8532
                %v8534 = vld [vmem:[%s8512 + $0x50] sm:%s8503]
                %8535 = vst [vmem:[%s8513 + $0x50] sm:%s8503] %v8534
                %v8536 = vld [vmem:[%s8512 + $0x58] sm:%s8503]
                %8537 = vst [vmem:[%s8513 + $0x58] sm:%s8503] %v8536
                %v8538 = vld [vmem:[%s8512 + $0x60] sm:%s8503]
                %8539 = vst [vmem:[%s8513 + $0x60] sm:%s8503] %v8538
                %v8540 = vld [vmem:[%s8512 + $0x68] sm:%s8503]
                %8541 = vst [vmem:[%s8513 + $0x68] sm:%s8503] %v8540
                %v8542 = vld [vmem:[%s8512 + $0x70] sm:%s8503]
                %8543 = vst [vmem:[%s8513 + $0x70] sm:%s8503] %v8542
                %v8544 = vld [vmem:[%s8512 + $0x78] sm:%s8503]
                %8545 = vst [vmem:[%s8513 + $0x78] sm:%s8503] %v8544
                %v8546 = vld [vmem:[%s8512 + $0x80] sm:%s8503]
                %8547 = vst [vmem:[%s8513 + $0x80] sm:%s8503] %v8546
                %v8548 = vld [vmem:[%s8512 + $0x88] sm:%s8503]
                %8549 = vst [vmem:[%s8513 + $0x88] sm:%s8503] %v8548
                %v8550 = vld [vmem:[%s8512 + $0x90] sm:%s8503]
                %8551 = vst [vmem:[%s8513 + $0x90] sm:%s8503] %v8550
                %v8552 = vld [vmem:[%s8512 + $0x98] sm:%s8503]
                %8553 = vst [vmem:[%s8513 + $0x98] sm:%s8503] %v8552
                %v8554 = vld [vmem:[%s8512 + $0xa0] sm:%s8503]
                %8555 = vst [vmem:[%s8513 + $0xa0] sm:%s8503] %v8554
                %v8556 = vld [vmem:[%s8512 + $0xa8] sm:%s8503]
                %8557 = vst [vmem:[%s8513 + $0xa8] sm:%s8503] %v8556
                %v8558 = vld [vmem:[%s8512 + $0xb0] sm:%s8503]
                %8559 = vst [vmem:[%s8513 + $0xb0] sm:%s8503] %v8558
                %v8560 = vld [vmem:[%s8512 + $0xb8] sm:%s8503]
                %8561 = vst [vmem:[%s8513 + $0xb8] sm:%s8503] %v8560
                %v8562 = vld [vmem:[%s8512 + $0xc0] sm:%s8503]
                %8563 = vst [vmem:[%s8513 + $0xc0] sm:%s8503] %v8562
                %v8564 = vld [vmem:[%s8512 + $0xc8] sm:%s8503]
                %8565 = vst [vmem:[%s8513 + $0xc8] sm:%s8503] %v8564
                %v8566 = vld [vmem:[%s8512 + $0xd0] sm:%s8503]
                %8567 = vst [vmem:[%s8513 + $0xd0] sm:%s8503] %v8566
                %v8568 = vld [vmem:[%s8512 + $0xd8] sm:%s8503]
                %8569 = vst [vmem:[%s8513 + $0xd8] sm:%s8503] %v8568
                %v8570 = vld [vmem:[%s8512 + $0xe0] sm:%s8503]
                %8571 = vst [vmem:[%s8513 + $0xe0] sm:%s8503] %v8570
                %v8572 = vld [vmem:[%s8512 + $0xe8] sm:%s8503]
                %8573 = vst [vmem:[%s8513 + $0xe8] sm:%s8503] %v8572
                %v8574 = vld [vmem:[%s8512 + $0xf0] sm:%s8503]
                %8575 = vst [vmem:[%s8513 + $0xf0] sm:%s8503] %v8574
                %v8576 = vld [vmem:[%s8512 + $0xf8] sm:%s8503]
                %8577 = vst [vmem:[%s8513 + $0xf8] sm:%s8503] %v8576
                %s8578 = sadd.s32 1, %s8511
                %p8579 = scmp.ge.s32.totalorder %s8578, %s8504
                %s8580 = scalar_select %p8579, 0, %s8578
                %s8581 = smul.u32 %s8580, 256
                %s8582 = smul.u32 %s8580, 256
                %s8583 = scalar_lea.vmem %s8483, %s8581 [#allocation2]
                %s8584 = scalar_lea.vmem %s8494, %s8582
              $region101: #{tpu_custom_call.1} parent=95 // loop_footer
                %s8508 = sadd.s32 %s8506, 1
              $region102: #{tpu_custom_call.1} parent=95 // loop_footer_branch
                %8505 = sbr.rel target = $region98
              $region103: #{tpu_custom_call.1} parent=95 // loop_exit
                _
              %s8585 = sshrl.u32 %s8490, 5
              %s8586 = sand.u32 %s8490, 31
              %s8587 = smul.u32 %s8585, 32
              %s8588 = smul.u32 8, %s8587
              %s8589 = scalar_lea.vmem %s8483, %s8588 [#allocation2]
              %s8590 = smul.u32 8, %s8587
              %s8591 = scalar_lea.vmem %s8494, %s8590
              // While loop
              $region104: #{tpu_custom_call.1} parent=95 // loop_pre_header
                _
              $region105: #{tpu_custom_call.1} parent=95 // loop_header
                %s8593 = sphi 0, %s8595
                %p8594 = scmp.ge.s32.totalorder %s8593, %s8586
                %s8598 = sphi 0, %s8605
                %s8599 = sphi %s8589, %s8608
                %s8600 = sphi %s8591, %s8609
              $region106: #{tpu_custom_call.1} parent=95 // loop_header_branch
                %8597 = sbr.rel (%p8594) target = $region110
              $region107: #{tpu_custom_call.1} parent=95 // loop_body
                %v8601 = vld [vmem:[%s8599] sm:%s8503]
                %8602 = vst [vmem:[%s8600] sm:%s8503] %v8601
                %s8603 = sadd.s32 1, %s8598
                %p8604 = scmp.ge.s32.totalorder %s8603, %s8586
                %s8605 = scalar_select %p8604, 0, %s8603
                %s8606 = smul.u32 %s8605, 8
                %s8607 = smul.u32 %s8605, 8
                %s8608 = scalar_lea.vmem %s8589, %s8606 [#allocation2]
                %s8609 = scalar_lea.vmem %s8591, %s8607
              $region108: #{tpu_custom_call.1} parent=95 // loop_footer
                %s8595 = sadd.s32 %s8593, 1
              $region109: #{tpu_custom_call.1} parent=95 // loop_footer_branch
                %8592 = sbr.rel target = $region105
              $region110: #{tpu_custom_call.1} parent=95 // loop_exit
                _
            $region96: #{tpu_custom_call.1} parent=87 // pred_fallthru
              _
          $region88: #{tpu_custom_call.1} parent=83 // pred_fallthru
            _
          %8720 = vnop
        $region84: #{tpu_custom_call.1} parent=79 // pred_fallthru
          _
      $region80: #{tpu_custom_call.1} parent=5 // pred_fallthru
        _
      %p8721 = scmp.le.s32.totalorder 2, %s21
      // Predicated region
      $region133: #{tpu_custom_call.1} parent=5 // pred_check
        %p8722 = pneg %p8721
      $region134: #{tpu_custom_call.1} parent=5 // pred_check_branch
        %8724 = sbr.rel (%p8722) target = $region136
      $region135: #{tpu_custom_call.1} parent=5 // pred_region
        %s8725 = ssub.s32 %s21, 2
        // Predicated region
        $region137: #{tpu_custom_call.1} parent=135 // pred_check
          %p8726 = pneg %p370
        $region138: #{tpu_custom_call.1} parent=135 // pred_check_branch
          %8728 = sbr.rel (%p8726) target = $region140
        $region139: #{tpu_custom_call.1} parent=135 // pred_region
          %s8729 = sand.u32 %s355, 1
          %s8730 = sand.u32 %s355, 1
          %s8731 = smul.addr %s8730, 256
          %s8732 = scalar_lea.vmem [#allocation2], %s8731
        $region140: #{tpu_custom_call.1} parent=135 // pred_fallthru
          _
      $region136: #{tpu_custom_call.1} parent=5 // pred_fallthru
        _
    $region6: #{tpu_custom_call.1} parent=1 // loop_footer
      %s25 = sadd.s32 1, %s21
    $region7: #{tpu_custom_call.1} parent=1 // loop_footer_branch
      %20 = sbr.rel target = $region3
    $region8: #{tpu_custom_call.1} parent=1 // loop_exit
      _

</llo_original>
